<compile_context>
chip_gen: v7x
topology: tpu7x:2x2x1
jax: 0.10.0
libtpu: 0.0.40
codegen_flags: <defaults>
</compile_context>

<pallas_src>
import math
import numpy as np
import jax
import jax.numpy as jnp
from jax.experimental import pallas as pl
from jax.experimental.pallas import tpu as pltpu

# ---------------- scaled-down configuration (stand-ins for swin_large sizes) ----
B = 2
IN_CH = 1
IMG_H, IMG_W = 16, 32          # stand-in for (112, 448)
PATCH = 4
EMBED = 32                      # stand-in for embed_dim=192
HEADS = 2
WS = 2                          # window size (stand-in for 7)
MLP_RATIO = 4
ENC_OUT = 16                    # stand-in for Linear(1536, 256) output dim
VOCAB = 16
DEC_DIM = 16
DEC_HEADS = 2
MAX_SEQ_LEN = 6
PAD_TOKEN, BOS_TOKEN, EOS_TOKEN = 0, 1, 2
TEMPERATURE = 0.333
FILTER_THRES = 0.9

HP, WP = IMG_H // PATCH, IMG_W // PATCH      # patch grid: 4 x 8
L0 = HP * WP                                  # 32 tokens


def _vmem_budget():
    """Per-generation scoped-VMEM budget: ~48 MiB on v7x (64 MiB/TC), ~96 MiB on
    v5e/v6e (128 MiB). Falls back to 32 MiB if the query is unavailable."""
    cap = 128 * 1024 * 1024
    try:
        info = pltpu.get_tpu_info()
        cap = int(getattr(info, "vmem_capacity_bytes", cap)) or cap
    except Exception:
        pass
    return max(32 * 1024 * 1024, min((cap * 3) // 4, 96 * 1024 * 1024))


VMEM_LIMIT = _vmem_budget()


# ---------------- in-kernel math helpers -----------------------------------------
def _ln_math(x, g, b, eps):
    mu = jnp.mean(x, axis=-1, keepdims=True)
    var = jnp.mean(jnp.square(x - mu), axis=-1, keepdims=True)
    return (x - mu) * jax.lax.rsqrt(var + eps) * g + b


def _softmax_rows(s, approx=True):
    s = s - jnp.max(s, axis=-1, keepdims=True)
    p = jnp.exp(s)
    denom = jnp.sum(p, axis=-1, keepdims=True)
    if approx:
        # EUP reciprocal (free slot) for the encoder attention
        return p * pl.reciprocal(denom, approx=True)
    # exact divide where sampling decisions depend on it (decoder logits path)
    return p / denom


def _mm(x, w_ref):
    # bf16 MXU operands, f32 accumulation
    return jnp.dot(x.astype(w_ref.dtype), w_ref[...],
                   preferred_element_type=jnp.float32)


# ---------------- generic fused linear (patch embed, context K/V projection) -----
def _linear_kernel(act):
    def kernel(x_ref, w_ref, b_ref, o_ref):
        y = _mm(x_ref[...], w_ref) + b_ref[...]
        if act == "gelu":
            # TODO(synk): PyTorch nn.GELU is exact-erf; tanh approximation used in-kernel.
            y = jax.nn.gelu(y)
        o_ref[...] = y.astype(o_ref.dtype)
    return kernel


def linear(x, w, b, act=None):
    shp = x.shape
    K = shp[-1]
    N = w.shape[-1]
    M = int(np.prod(shp[:-1]))
    x2 = x.reshape(M, K).astype(jnp.bfloat16)        # bf16 activations through HBM
    TM = min(M, 256)                                  # MXU-sized row tiles, cdiv grid
    out = pl.pallas_call(
        _linear_kernel(act),
        out_shape=jax.ShapeDtypeStruct((M, N), jnp.bfloat16),
        grid=(pl.cdiv(M, TM),),
        in_specs=[
            pl.BlockSpec((TM, K), lambda i: (i, 0)),
            pl.BlockSpec((K, N), lambda i: (0, 0)),
            pl.BlockSpec((1, N), lambda i: (0, 0)),
        ],
        out_specs=pl.BlockSpec((TM, N), lambda i: (i, 0)),
        compiler_params=pltpu.CompilerParams(
            dimension_semantics=("parallel",), vmem_limit_bytes=VMEM_LIMIT),
    )(x2, w, b.reshape(1, N))
    return out.reshape(shp[:-1] + (N,))


# ---------------- window partition / reverse (one-time relayout in the wrapper) --
def window_partition(x4):
    Bn, Hp, Wp, C = x4.shape
    nwh, nww = Hp // WS, Wp // WS
    xw = x4.reshape(Bn, nwh, WS, nww, WS, C).transpose(0, 1, 3, 2, 4, 5)
    return xw.reshape(Bn, nwh, nww, WS * WS, C)


def window_reverse(xw, Hp, Wp):
    Bn, nwh, nww, _, C = xw.shape
    x4 = xw.reshape(Bn, nwh, nww, WS, WS, C).transpose(0, 1, 3, 2, 4, 5)
    return x4.reshape(Bn, Hp, Wp, C)


# ---------------- fused Swin block kernel -----------------------------------------
def _relative_position_index(ws):
    coords = np.stack(np.meshgrid(np.arange(ws), np.arange(ws), indexing="ij"))
    coords_flat = coords.reshape(2, -1)
    rel = coords_flat[:, :, None] - coords_flat[:, None, :]
    rel = rel.transpose(1, 2, 0).astype(np.int64)
    rel[:, :, 0] += ws - 1
    rel[:, :, 1] += ws - 1
    rel[:, :, 0] *= 2 * ws - 1
    return rel.sum(-1)


REL_POS_IDX = jnp.asarray(_relative_position_index(WS).reshape(-1), dtype=jnp.int32)


def _swin_block_kernel(rt, nww, t, heads, hd, eps=1e-5):
    C = heads * hd
    nw = rt * nww            # windows per grid step
    ntok = nw * t            # tokens per grid step
    scale = hd ** -0.5

    def kernel(x_ref, ln1g, ln1b, wqkv, bqkv, rpb, wproj, bproj,
               ln2g, ln2b, w1, b1, w2, b2, o_ref):
        # windows arrive contiguous: (rt, nww, t, C) -> (ntok, C), no gather needed
        x = x_ref[...].astype(jnp.float32).reshape(ntok, C)
        xn = _ln_math(x, ln1g[...], ln1b[...], eps)
        qkv = _mm(xn, wqkv) + bqkv[...]                       # (ntok, 3C) f32
        rpb_all = rpb[...]                                    # loaded once (hoisted)
        head_outs = []
        for h in range(heads):                                # short unrolled head loop
            q_h = qkv[:, h * hd:(h + 1) * hd].reshape(nw, t, hd).astype(jnp.bfloat16)
            k_h = qkv[:, C + h * hd:C + (h + 1) * hd].reshape(nw, t, hd).astype(jnp.bfloat16)
            v_h = qkv[:, 2 * C + h * hd:2 * C + (h + 1) * hd].reshape(nw, t, hd).astype(jnp.bfloat16)
            # all windows of the tile batched into a single 3-D dot
            s = jnp.einsum('bqd,bkd->bqk', q_h, k_h,
                           preferred_element_type=jnp.float32)
            s = s * scale + rpb_all[h][None]
            p = _softmax_rows(s)
            o_h = jnp.einsum('bqk,bkd->bqd', p.astype(jnp.bfloat16), v_h,
                             preferred_element_type=jnp.float32)
            head_outs.append(o_h.reshape(ntok, hd))
        attn = head_outs[0] if heads == 1 else jnp.concatenate(head_outs, axis=-1)
        x1 = x + _mm(attn, wproj) + bproj[...]
        xn2 = _ln_math(x1, ln2g[...], ln2b[...], eps)
        # TODO(synk): PyTorch nn.GELU is exact-erf; tanh approximation used in-kernel.
        hmid = jax.nn.gelu(_mm(xn2, w1) + b1[...])
        x2 = x1 + _mm(hmid, w2) + b2[...]
        o_ref[...] = x2.reshape(rt, nww, t, C).astype(o_ref.dtype)

    return kernel


def swin_block(xw, p):
    """One fused W-MSA Swin block on window-contiguous bf16 activations
    xw: (B, nwh, nww, WS*WS, C)."""
    Bn, nwh, nww, tt, C = xw.shape
    hidden = C * MLP_RATIO
    rt = nwh                                  # window-rows per grid step (big tile)
    z2 = lambda b, i: (0, 0)
    z3 = lambda b, i: (0, 0, 0)
    xmap = lambda b, i: (b, i, 0, 0, 0)
    return pl.pallas_call(
        _swin_block_kernel(rt, nww, tt, HEADS, C // HEADS),
        out_shape=jax.ShapeDtypeStruct(xw.shape, jnp.bfloat16),
        grid=(Bn, nwh // rt),
        in_specs=[
            pl.BlockSpec((None, rt, nww, tt, C), xmap),
            pl.BlockSpec((1, C), z2), pl.BlockSpec((1, C), z2),
            pl.BlockSpec((C, 3 * C), z2), pl.BlockSpec((1, 3 * C), z2),
            pl.BlockSpec((HEADS, tt, tt), z3),
            pl.BlockSpec((C, C), z2), pl.BlockSpec((1, C), z2),
            pl.BlockSpec((1, C), z2), pl.BlockSpec((1, C), z2),
            pl.BlockSpec((C, hidden), z2), pl.BlockSpec((1, hidden), z2),
            pl.BlockSpec((hidden, C), z2), pl.BlockSpec((1, C), z2),
        ],
        out_specs=pl.BlockSpec((None, rt, nww, tt, C), xmap),
        compiler_params=pltpu.CompilerParams(
            dimension_semantics=("parallel", "parallel"),
            vmem_limit_bytes=VMEM_LIMIT),
    )(xw, p["ln1_g"], p["ln1_b"], p["wqkv"], p["bqkv"], p["rpb"],
      p["wproj"], p["bproj"], p["ln2_g"], p["ln2_b"],
      p["mlp_w1"], p["mlp_b1"], p["mlp_w2"], p["mlp_b2"])


# ---------------- PatchMerging (fused 2x2 decimation + LN + reduction matmul) -----
def _merge_kernel(wp, C, eps):
    def kernel(x_ref, g_ref, b_ref, w_ref, o_ref):
        x = x_ref[...].astype(jnp.float32)                    # (2, wp, C)
        x = x.reshape(2, wp // 2, 2, C)
        # PyTorch PatchMerging concat order: x0=(even r, even c), x1=(odd r, even c),
        #                                    x2=(even r, odd c),  x3=(odd r, odd c)
        xm = jnp.concatenate([x[0, :, 0, :], x[1, :, 0, :],
                              x[0, :, 1, :], x[1, :, 1, :]], axis=-1)   # (wp//2, 4C)
        xn = _ln_math(xm, g_ref[...], b_ref[...], eps)
        o_ref[...] = _mm(xn, w_ref).astype(o_ref.dtype)       # reduction has no bias
    return kernel


def patch_merging(x4, mp):
    Bn, Hp, Wp, C = x4.shape
    H2, W2 = Hp // 2, Wp // 2
    z2 = lambda b, i: (0, 0)
    out = pl.pallas_call(
        _merge_kernel(Wp, C, 1e-5),
        out_shape=jax.ShapeDtypeStruct((Bn, H2, W2, 2 * C), jnp.bfloat16),
        grid=(Bn, H2),
        in_specs=[
            pl.BlockSpec((None, 2, Wp, C), lambda b, i: (b, i, 0, 0)),
            pl.BlockSpec((1, 4 * C), z2),
            pl.BlockSpec((1, 4 * C), z2),
            pl.BlockSpec((4 * C, 2 * C), z2),
        ],
        out_specs=pl.BlockSpec((None, None, W2, 2 * C), lambda b, i: (b, i, 0, 0)),
        compiler_params=pltpu.CompilerParams(
            dimension_semantics=("parallel", "parallel"),
            vmem_limit_bytes=VMEM_LIMIT),
    )(x4, mp["ln_g"], mp["ln_b"], mp["w"])
    return out.reshape(Bn, H2 * W2, 2 * C)


# ---------------- encoder head: Linear + LayerNorm + AdaptiveAvgPool, fused -------
def _head_kernel(eps):
    def kernel(x_ref, w_ref, b_ref, g_ref, bb_ref, feat_ref, pool_ref):
        y = _mm(x_ref[...], w_ref) + b_ref[...]
        yn = _ln_math(y, g_ref[...], bb_ref[...], eps)
        feat_ref[...] = yn.astype(feat_ref.dtype)
        # AdaptiveAvgPool1d(1) over the last (feature) dim, fused with the LayerNorm.
        pool_ref[...] = jnp.mean(yn, axis=-1, keepdims=True).astype(pool_ref.dtype)
    return kernel


def encoder_head(x, ep):
    Bn, L, K = x.shape
    N = ep["head_w"].shape[-1]
    M = Bn * L
    x2 = x.reshape(M, K)
    TM = min(M, 256)
    feats, pooled = pl.pallas_call(
        _head_kernel(1e-6),
        out_shape=(jax.ShapeDtypeStruct((M, N), jnp.bfloat16),
                   jax.ShapeDtypeStruct((M, 1), jnp.float32)),
        grid=(pl.cdiv(M, TM),),
        in_specs=[
            pl.BlockSpec((TM, K), lambda i: (i, 0)),
            pl.BlockSpec((K, N), lambda i: (0, 0)),
            pl.BlockSpec((1, N), lambda i: (0, 0)),
            pl.BlockSpec((1, N), lambda i: (0, 0)),
            pl.BlockSpec((1, N), lambda i: (0, 0)),
        ],
        out_specs=(pl.BlockSpec((TM, N), lambda i: (i, 0)),
                   pl.BlockSpec((TM, 1), lambda i: (i, 0))),
        compiler_params=pltpu.CompilerParams(
            dimension_semantics=("parallel",), vmem_limit_bytes=VMEM_LIMIT),
    )(x2, ep["head_w"], ep["head_b"], ep["norm_g"], ep["norm_b"])
    return feats.reshape(Bn, L, N), pooled.reshape(Bn, L, 1)


# ---------------- Swin encoder ----------------------------------------------------
def encoder_forward(x_nchw, ep):
    """CustomSwinTransformer: PatchEmbed -> swin blocks -> merge -> Linear -> LN -> AvgPool."""
    Bn = x_nchw.shape[0]
    # PatchEmbed: Conv2d(k=4, s=4) expressed as patchify + matmul (Pallas kernel).
    x = x_nchw.reshape(Bn, IN_CH, HP, PATCH, WP, PATCH)
    x = jnp.transpose(x, (0, 2, 4, 1, 3, 5)).reshape(Bn, L0, IN_CH * PATCH * PATCH)
    x = linear(x, ep["patch_w"], ep["patch_b"])                  # [B, 32, EMBED] bf16
    x4 = x.reshape(Bn, HP, WP, EMBED)
    # one-time relayout to window-contiguous tokens; both blocks stay in this layout
    xw = window_partition(x4)                                    # [B, nwh, nww, WS*WS, C]
    # TODO(synk): full swin_large has 4 stages (depths 2,2,18,2) with shifted windows;
    # reduced to one stage of two non-shifted W-MSA blocks + one PatchMerging.
    xw = swin_block(xw, ep["block0"])
    xw = swin_block(xw, ep["block1"])
    x4 = window_reverse(xw, HP, WP)
    xm = patch_merging(x4, ep["merge"])                          # [B, 8, 2*EMBED] bf16
    feats, pooled = encoder_head(xm, ep)                         # fused Linear+LN+AvgPool
    # TODO(synk): reference CustomSwinTransformer.forward has no return statement
    # (returns None); we return the normed features as decoder context plus the pooled output.
    return feats, pooled


# ---------------- fused single-position decoder step (KV-cached) ------------------
def _decoder_step_kernel(T, heads, hd, eps=1e-5):
    d = heads * hd
    scale = hd ** -0.5
    neg = -1e9

    def mha_cached(q, k_cache, v_cache, k_new, v_new, n_valid):
        # q, k_new, v_new: (1, d) f32 ; k_cache, v_cache: (T, d) bf16
        pos = jax.lax.broadcasted_iota(jnp.int32, (1, T), 1)
        valid = pos < n_valid
        outs = []
        for h in range(heads):
            sl = slice(h * hd, (h + 1) * hd)
            qh = q[:, sl].astype(jnp.bfloat16)
            sc = jax.lax.dot_general(qh, k_cache[:, sl],
                                     (((1,), (1,)), ((), ())),
                                     preferred_element_type=jnp.float32) * scale   # (1, T)
            sc = jnp.where(valid, sc, neg)
            s_self = jnp.sum(q[:, sl] * k_new[:, sl], axis=-1, keepdims=True) * scale
            p = _softmax_rows(jnp.concatenate([sc, s_self], axis=-1), approx=False)
            out_h = jnp.dot(p[:, :T].astype(jnp.bfloat16), v_cache[:, sl],
                            preferred_element_type=jnp.float32)                    # (1, hd)
            outs.append(out_h + p[:, T:] * v_new[:, sl])
        return jnp.concatenate(outs, axis=-1)

    def mha_cross(q, kctx, vctx):
        # q: (1, d) f32 ; kctx, vctx: (Lc, d) bf16
        outs = []
        for h in range(heads):
            sl = slice(h * hd, (h + 1) * hd)
            sc = jax.lax.dot_general(q[:, sl].astype(jnp.bfloat16), kctx[:, sl],
                                     (((1,), (1,)), ((), ())),
                                     preferred_element_type=jnp.float32) * scale
            p = _softmax_rows(sc, approx=False)
            outs.append(jnp.dot(p.astype(jnp.bfloat16), vctx[:, sl],
                                preferred_element_type=jnp.float32))
        return jnp.concatenate(outs, axis=-1)

    def kernel(step_ref, x_ref, kcache_ref, vcache_ref, kc_ref, vc_ref,
               ln1g, ln1b, wqkv, bqkv, wo, bo,
               lncg, lncb, cwq, cbq, cwo, cbo,
               ln2g, ln2b, w1, b1, w2, b2,
               lnfg, lnfb, wlog, blog,
               logits_ref, knew_ref, vnew_ref):
        s_idx = step_ref[0]
        x = x_ref[...].astype(jnp.float32)                       # (1, d)
        # causal self-attention against the KV cache + the fresh K/V row
        xn = _ln_math(x, ln1g[...], ln1b[...], eps)
        qkv = _mm(xn, wqkv) + bqkv[...]                          # (1, 3d)
        q, kn, vn = qkv[:, :d], qkv[:, d:2 * d], qkv[:, 2 * d:]
        knew_ref[...] = kn.astype(knew_ref.dtype)
        vnew_ref[...] = vn.astype(vnew_ref.dtype)
        a = mha_cached(q, kcache_ref[...], vcache_ref[...], kn, vn, s_idx)
        x = x + _mm(a, wo) + bo[...]
        # cross-attention over the (loop-hoisted) encoder context projections
        xn = _ln_math(x, lncg[...], lncb[...], eps)
        qc = _mm(xn, cwq) + cbq[...]
        a = mha_cross(qc, kc_ref[...], vc_ref[...])
        x = x + _mm(a, cwo) + cbo[...]
        # feed-forward
        xn = _ln_math(x, ln2g[...], ln2b[...], eps)
        hmid = jax.nn.gelu(_mm(xn, w1) + b1[...])
        x = x + _mm(hmid, w2) + b2[...]
        xn = _ln_math(x, lnfg[...], lnfb[...], eps)
        logits_ref[...] = (_mm(xn, wlog) + blog[...]).astype(logits_ref.dtype)

    return kernel


def decoder_step(step, x, kcache, vcache, kc, vc, dp):
    Bn, _, d = x.shape
    T = kcache.shape[1]
    Lc = kc.shape[1]
    weights = [dp["ln1_g"], dp["ln1_b"], dp["wqkv"], dp["bqkv"], dp["wo"], dp["bo"],
               dp["lnc_g"], dp["lnc_b"], dp["cwq"], dp["cbq"], dp["cwo"], dp["cbo"],
               dp["ln2_g"], dp["ln2_b"], dp["ff1_w"], dp["ff1_b"], dp["ff2_w"], dp["ff2_b"],
               dp["lnf_g"], dp["lnf_b"], dp["logits_w"], dp["logits_b"]]

    def io_map(b, step_ref):
        return (b, 0, 0)

    def w_map(b, step_ref):
        return (0, 0)

    in_specs = [pl.BlockSpec((None, 1, d), io_map),
                pl.BlockSpec((None, T, d), io_map),
                pl.BlockSpec((None, T, d), io_map),
                pl.BlockSpec((None, Lc, d), io_map),
                pl.BlockSpec((None, Lc, d), io_map)]
    in_specs += [pl.BlockSpec(w.shape, w_map) for w in weights]
    out_specs = (pl.BlockSpec((None, 1, VOCAB), io_map),
                 pl.BlockSpec((None, 1, d), io_map),
                 pl.BlockSpec((None, 1, d), io_map))
    grid_spec = pltpu.PrefetchScalarGridSpec(
        num_scalar_prefetch=1, grid=(Bn,),
        in_specs=in_specs, out_specs=out_specs)
    return pl.pallas_call(
        _decoder_step_kernel(T, DEC_HEADS, d // DEC_HEADS),
        out_shape=(jax.ShapeDtypeStruct((Bn, 1, VOCAB), jnp.float32),
                   jax.ShapeDtypeStruct((Bn, 1, d), jnp.bfloat16),
                   jax.ShapeDtypeStruct((Bn, 1, d), jnp.bfloat16)),
        grid_spec=grid_spec,
        compiler_params=pltpu.CompilerParams(
            dimension_semantics=("parallel",), vmem_limit_bytes=VMEM_LIMIT),
    )(jnp.reshape(step, (1,)).astype(jnp.int32), x, kcache, vcache, kc, vc, *weights)


# ---------------- autoregressive generation (KV-cached fixed-shape scan) ----------
def generate(context, dp, key):
    """CustomARWrapper.generate: fixed-shape lax.scan decode with a KV cache; each
    step runs one fused single-position Pallas kernel (O(T) total decoder work).
    Cross-attention K/V of the static encoder context is hoisted out of the loop."""
    Bn = context.shape[0]
    T = MAX_SEQ_LEN
    kcvc = linear(context, dp["cwkv"], dp["cbkv"])               # hoisted context projection
    kc, vc = kcvc[..., :DEC_DIM], kcvc[..., DEC_DIM:]
    topk = int(math.ceil((1.0 - FILTER_THRES) * VOCAB))
    kcache0 = jnp.zeros((Bn, T, DEC_DIM), jnp.bfloat16)
    vcache0 = jnp.zeros((Bn, T, DEC_DIM), jnp.bfloat16)
    tok0 = jnp.full((Bn,), BOS_TOKEN, dtype=jnp.int32)

    def step(carry, s):
        tok, kcache, vcache, k = carry
        x = (dp["tok_emb"][tok] + dp["pos_emb"][s])[:, None, :].astype(jnp.bfloat16)
        logits, knew, vnew = decoder_step(s, x, kcache, vcache, kc, vc, dp)
        kcache = jax.lax.dynamic_update_slice_in_dim(kcache, knew, s, axis=1)
        vcache = jax.lax.dynamic_update_slice_in_dim(vcache, vnew, s, axis=1)
        logits = logits[:, 0, :]                                  # (Bn, VOCAB)
        kth = jnp.sort(logits, axis=-1)[:, -topk]
        # top_k filter (ties at the k-th value are kept, minor diff vs torch.topk)
        filtered = jnp.where(logits < kth[:, None], -1e9, logits)
        k, sub = jax.random.split(k)
        # TODO(synk): torch.multinomial replaced by jax.random.categorical.
        sample = jax.random.categorical(sub, filtered / TEMPERATURE, axis=-1).astype(jnp.int32)
        return (sample, kcache, vcache, k), sample

    (_, _, _, _), samples = jax.lax.scan(step, (tok0, kcache0, vcache0, key), jnp.arange(T))
    # TODO(synk): early EOS break dropped to keep shapes static under jit; all
    # MAX_SEQ_LEN tokens are generated (the prefix up to EOS matches the reference).
    return jnp.transpose(samples, (1, 0))


def swin_forward(x, params, key):
    """Mirrors Swin.forward: encode the image, then autoregressive decoding."""
    context, pooled = encoder_forward(x, params["enc"])
    dec = generate(context, params["dec"], key)
    return dec, pooled


# ---------------- deterministic parameter init & one-time kernel prep -------------
def init_params(key):
    keys = iter(jax.random.split(key, 256))

    def w(*shape, scale=0.02):
        return jax.random.normal(next(keys), shape, jnp.float32) * scale

    def zeros(*shape):
        return jnp.zeros(shape, jnp.float32)

    def ones(*shape):
        return jnp.ones(shape, jnp.float32)

    def block_params(dim):
        hidden = dim * MLP_RATIO
        return dict(
            ln1_g=ones(dim), ln1_b=zeros(dim),
            wqkv=w(dim, 3 * dim), bqkv=zeros(3 * dim),
            rpb_table=w((2 * WS - 1) ** 2, HEADS),
            wproj=w(dim, dim), bproj=zeros(dim),
            ln2_g=ones(dim), ln2_b=zeros(dim),
            mlp_w1=w(dim, hidden), mlp_b1=zeros(hidden),
            mlp_w2=w(hidden, dim), mlp_b2=zeros(dim),
        )

    enc = dict(
        patch_w=w(IN_CH * PATCH * PATCH, EMBED), patch_b=zeros(EMBED),
        block0=block_params(EMBED), block1=block_params(EMBED),
        merge=dict(ln_g=ones(4 * EMBED), ln_b=zeros(4 * EMBED), w=w(4 * EMBED, 2 * EMBED)),
        head_w=w(2 * EMBED, ENC_OUT), head_b=zeros(ENC_OUT),
        norm_g=ones(ENC_OUT), norm_b=zeros(ENC_OUT),
    )

    d = DEC_DIM
    dec = dict(
        tok_emb=w(VOCAB, d), pos_emb=w(MAX_SEQ_LEN, d),
        ln1_g=ones(d), ln1_b=zeros(d),
        wq=w(d, d), bq=zeros(d), wk=w(d, d), bk=zeros(d),
        wv=w(d, d), bv=zeros(d), wo=w(d, d), bo=zeros(d),
        lnc_g=ones(d), lnc_b=zeros(d),
        cwq=w(d, d), cbq=zeros(d), cwk=w(ENC_OUT, d), cbk=zeros(d),
        cwv=w(ENC_OUT, d), cbv=zeros(d), cwo=w(d, d), cbo=zeros(d),
        ln2_g=ones(d), ln2_b=zeros(d),
        ff1_w=w(d, 4 * d), ff1_b=zeros(4 * d),
        ff2_w=w(4 * d, d), ff2_b=zeros(d),
        lnf_g=ones(d), lnf_b=zeros(d),
        logits_w=w(d, VOCAB), logits_b=zeros(VOCAB),
    )
    return dict(enc=enc, dec=dec)


def prepare_params(params):
    """One-time prep: bf16 matmul weights (f32 accumulate), row-shaped LN/bias params,
    precomputed relative-position bias, fused QKV / context-KV weights."""
    def bf(x):
        return x.astype(jnp.bfloat16)

    def row(x):
        return x.reshape(1, -1).astype(jnp.float32)

    enc, dec = params["enc"], params["dec"]

    def prep_block(p):
        rpb = jnp.take(p["rpb_table"], REL_POS_IDX, axis=0)
        rpb = rpb.reshape(WS * WS, WS * WS, HEADS).transpose(2, 0, 1).astype(jnp.float32)
        return dict(
            ln1_g=row(p["ln1_g"]), ln1_b=row(p["ln1_b"]),
            wqkv=bf(p["wqkv"]), bqkv=row(p["bqkv"]), rpb=rpb,
            wproj=bf(p["wproj"]), bproj=row(p["bproj"]),
            ln2_g=row(p["ln2_g"]), ln2_b=row(p["ln2_b"]),
            mlp_w1=bf(p["mlp_w1"]), mlp_b1=row(p["mlp_b1"]),
            mlp_w2=bf(p["mlp_w2"]), mlp_b2=row(p["mlp_b2"]),
        )

    enc_p = dict(
        patch_w=bf(enc["patch_w"]), patch_b=row(enc["patch_b"]),
        block0=prep_block(enc["block0"]), block1=prep_block(enc["block1"]),
        merge=dict(ln_g=row(enc["merge"]["ln_g"]), ln_b=row(enc["merge"]["ln_b"]),
                   w=bf(enc["merge"]["w"])),
        head_w=bf(enc["head_w"]), head_b=row(enc["head_b"]),
        norm_g=row(enc["norm_g"]), norm_b=row(enc["norm_b"]),
    )

    dec_p = dict(
        tok_emb=dec["tok_emb"], pos_emb=dec["pos_emb"],
        ln1_g=row(dec["ln1_g"]), ln1_b=row(dec["ln1_b"]),
        wqkv=bf(jnp.concatenate([dec["wq"], dec["wk"], dec["wv"]], axis=1)),
        bqkv=row(jnp.concatenate([dec["bq"], dec["bk"], dec["bv"]])),
        wo=bf(dec["wo"]), bo=row(dec["bo"]),
        lnc_g=row(dec["lnc_g"]), lnc_b=row(dec["lnc_b"]),
        cwq=bf(dec["cwq"]), cbq=row(dec["cbq"]),
        cwkv=bf(jnp.concatenate([dec["cwk"], dec["cwv"]], axis=1)),
        cbkv=row(jnp.concatenate([dec["cbk"], dec["cbv"]])),
        cwo=bf(dec["cwo"]), cbo=row(dec["cbo"]),
        ln2_g=row(dec["ln2_g"]), ln2_b=row(dec["ln2_b"]),
        ff1_w=bf(dec["ff1_w"]), ff1_b=row(dec["ff1_b"]),
        ff2_w=bf(dec["ff2_w"]), ff2_b=row(dec["ff2_b"]),
        lnf_g=row(dec["lnf_g"]), lnf_b=row(dec["lnf_b"]),
        logits_w=bf(dec["logits_w"]), logits_b=row(dec["logits_b"]),
    )
    return dict(enc=enc_p, dec=dec_p)


# ---------------- main ------------------------------------------------------------
if __name__ == "__main__":
    root = jax.random.PRNGKey(0)
    pkey, xkey, skey = jax.random.split(root, 3)
    # TODO(synk): no checkpoint load (reference loads swin_large weights from swin.pth);
    # deterministic synthetic initializations instead.
    params = prepare_params(init_params(pkey))
    x = jax.random.normal(xkey, (B, IN_CH, IMG_H, IMG_W), jnp.float32)
    fwd = jax.jit(swin_forward)
    dec_tokens, pooled = fwd(x, params, skey)
    jax.block_until_ready(dec_tokens)
    jax.block_until_ready(pooled)
    assert dec_tokens.shape == (B, MAX_SEQ_LEN)
    assert pooled.shape == (B, (HP // 2) * (WP // 2), 1)
    print("KERNEL_OK")
</pallas_src>

<mosaic_0001>
module attributes {stable_mosaic.version = 11 : i64} {
  func.func @kernel(%arg0: i32, %arg1: i32, %arg2: memref<1x2x4x4x32xbf16, #tpu.memory_space<vmem>>, %arg3: memref<1x32xf32, #tpu.memory_space<vmem>>, %arg4: memref<1x32xf32, #tpu.memory_space<vmem>>, %arg5: memref<32x96xbf16, #tpu.memory_space<vmem>>, %arg6: memref<1x96xf32, #tpu.memory_space<vmem>>, %arg7: memref<2x4x4xf32, #tpu.memory_space<vmem>>, %arg8: memref<32x32xbf16, #tpu.memory_space<vmem>>, %arg9: memref<1x32xf32, #tpu.memory_space<vmem>>, %arg10: memref<1x32xf32, #tpu.memory_space<vmem>>, %arg11: memref<1x32xf32, #tpu.memory_space<vmem>>, %arg12: memref<32x128xbf16, #tpu.memory_space<vmem>>, %arg13: memref<1x128xf32, #tpu.memory_space<vmem>>, %arg14: memref<128x32xbf16, #tpu.memory_space<vmem>>, %arg15: memref<1x32xf32, #tpu.memory_space<vmem>>, %arg16: memref<1x2x4x4x32xbf16, #tpu.memory_space<vmem>>) attributes {dimension_semantics = [#tpu.dimension_semantics<parallel>, #tpu.dimension_semantics<parallel>], iteration_bounds = array<i64: 2, 1>, scalar_prefetch = 0 : i64, scratch_operands = 0 : i64, tpu.core_type = #tpu.core_type<tc>, window_params = [{transform_indices = @transform_0, window_bounds = array<i64: 1, 2, 4, 4, 32>}, {pipeline_mode = #tpu.pipeline_mode<synchronous>, transform_indices = @transform_1, window_bounds = array<i64: 1, 32>}, {pipeline_mode = #tpu.pipeline_mode<synchronous>, transform_indices = @transform_2, window_bounds = array<i64: 1, 32>}, {pipeline_mode = #tpu.pipeline_mode<synchronous>, transform_indices = @transform_3, window_bounds = array<i64: 32, 96>}, {pipeline_mode = #tpu.pipeline_mode<synchronous>, transform_indices = @transform_4, window_bounds = array<i64: 1, 96>}, {pipeline_mode = #tpu.pipeline_mode<synchronous>, transform_indices = @transform_5, window_bounds = array<i64: 2, 4, 4>}, {pipeline_mode = #tpu.pipeline_mode<synchronous>, transform_indices = @transform_6, window_bounds = array<i64: 32, 32>}, {pipeline_mode = #tpu.pipeline_mode<synchronous>, transform_indices = @transform_7, window_bounds = array<i64: 1, 32>}, {pipeline_mode = #tpu.pipeline_mode<synchronous>, transform_indices = @transform_8, window_bounds = array<i64: 1, 32>}, {pipeline_mode = #tpu.pipeline_mode<synchronous>, transform_indices = @transform_9, window_bounds = array<i64: 1, 32>}, {pipeline_mode = #tpu.pipeline_mode<synchronous>, transform_indices = @transform_10, window_bounds = array<i64: 32, 128>}, {pipeline_mode = #tpu.pipeline_mode<synchronous>, transform_indices = @transform_11, window_bounds = array<i64: 1, 128>}, {pipeline_mode = #tpu.pipeline_mode<synchronous>, transform_indices = @transform_12, window_bounds = array<i64: 128, 32>}, {pipeline_mode = #tpu.pipeline_mode<synchronous>, transform_indices = @transform_13, window_bounds = array<i64: 1, 32>}, {transform_indices = @transform_14, window_bounds = array<i64: 1, 2, 4, 4, 32>}]} {
    %c0 = arith.constant 0 : index
    %c0_0 = arith.constant 0 : index
    %c0_1 = arith.constant 0 : index
    %c0_2 = arith.constant 0 : index
    %c0_3 = arith.constant 0 : index
    %0 = vector.load %arg2[%c0, %c0_0, %c0_1, %c0_2, %c0_3] : memref<1x2x4x4x32xbf16, #tpu.memory_space<vmem>>, vector<1x2x4x4x32xbf16>
    %1 = vector.shape_cast %0 : vector<1x2x4x4x32xbf16> to vector<2x4x4x32xbf16>
    %2 = arith.extf %1 : vector<2x4x4x32xbf16> to vector<2x4x4x32xf32>
    %3 = vector.shape_cast %2 : vector<2x4x4x32xf32> to vector<32x32xf32>
    %c0_4 = arith.constant 0 : index
    %c0_5 = arith.constant 0 : index
    %4 = vector.load %arg3[%c0_4, %c0_5] : memref<1x32xf32, #tpu.memory_space<vmem>>, vector<1x32xf32>
    %c0_6 = arith.constant 0 : index
    %c0_7 = arith.constant 0 : index
    %5 = vector.load %arg4[%c0_6, %c0_7] : memref<1x32xf32, #tpu.memory_space<vmem>>, vector<1x32xf32>
    %cst = arith.constant dense<0.000000e+00> : vector<32xf32>
    %6 = vector.multi_reduction <add>, %3, %cst [1] : vector<32x32xf32> to vector<32xf32>
    %7 = vector.shape_cast %6 : vector<32xf32> to vector<32x1xf32>
    %cst_8 = arith.constant 3.200000e+01 : f32
    %8 = vector.broadcast %cst_8 : f32 to vector<32x1xf32>
    %9 = arith.divf %7, %8 : vector<32x1xf32>
    %10 = vector.broadcast %9 : vector<32x1xf32> to vector<32x32xf32>
    %11 = arith.subf %3, %10 : vector<32x32xf32>
    %12 = arith.mulf %11, %11 : vector<32x32xf32>
    %cst_9 = arith.constant dense<0.000000e+00> : vector<32xf32>
    %13 = vector.multi_reduction <add>, %12, %cst_9 [1] : vector<32x32xf32> to vector<32xf32>
    %14 = vector.shape_cast %13 : vector<32xf32> to vector<32x1xf32>
    %cst_10 = arith.constant 3.200000e+01 : f32
    %15 = vector.broadcast %cst_10 : f32 to vector<32x1xf32>
    %16 = arith.divf %14, %15 : vector<32x1xf32>
    %17 = vector.broadcast %9 : vector<32x1xf32> to vector<32x32xf32>
    %18 = arith.subf %3, %17 : vector<32x32xf32>
    %cst_11 = arith.constant 9.99999974E-6 : f32
    %19 = vector.broadcast %cst_11 : f32 to vector<32x1xf32>
    %20 = arith.addf %16, %19 : vector<32x1xf32>
    %21 = math.rsqrt %20 : vector<32x1xf32>
    %22 = vector.broadcast %21 : vector<32x1xf32> to vector<32x32xf32>
    %23 = arith.mulf %18, %22 : vector<32x32xf32>
    %24 = vector.broadcast %4 : vector<1x32xf32> to vector<32x32xf32>
    %25 = arith.mulf %23, %24 : vector<32x32xf32>
    %26 = vector.broadcast %5 : vector<1x32xf32> to vector<32x32xf32>
    %27 = arith.addf %25, %26 : vector<32x32xf32>
    %28 = arith.truncf %27 : vector<32x32xf32> to vector<32x32xbf16>
    %c0_12 = arith.constant 0 : index
    %c0_13 = arith.constant 0 : index
    %29 = vector.load %arg5[%c0_12, %c0_13] : memref<32x96xbf16, #tpu.memory_space<vmem>>, vector<32x96xbf16>
    %cst_14 = arith.constant dense<0.000000e+00> : vector<32x96xf32>
    %30 = tpu.matmul %28, %29, %cst_14 {dimension_numbers = #tpu.dot_dimension_numbers<[1], [0], [0], [1], [0, 0, 1, 1], [], []>} : vector<32x32xbf16>, vector<32x96xbf16>, vector<32x96xf32> -> vector<32x96xf32>
    %c0_15 = arith.constant 0 : index
    %c0_16 = arith.constant 0 : index
    %31 = vector.load %arg6[%c0_15, %c0_16] : memref<1x96xf32, #tpu.memory_space<vmem>>, vector<1x96xf32>
    %32 = vector.broadcast %31 : vector<1x96xf32> to vector<32x96xf32>
    %33 = arith.addf %30, %32 : vector<32x96xf32>
    %c0_17 = arith.constant 0 : index
    %c0_18 = arith.constant 0 : index
    %c0_19 = arith.constant 0 : index
    %34 = vector.load %arg7[%c0_17, %c0_18, %c0_19] : memref<2x4x4xf32, #tpu.memory_space<vmem>>, vector<2x4x4xf32>
    %35 = vector.extract_strided_slice %33 {offsets = [0, 0], sizes = [32, 16], strides = [1, 1]} : vector<32x96xf32> to vector<32x16xf32>
    %36 = vector.shape_cast %35 : vector<32x16xf32> to vector<8x4x16xf32>
    %37 = arith.truncf %36 : vector<8x4x16xf32> to vector<8x4x16xbf16>
    %38 = vector.extract_strided_slice %33 {offsets = [0, 32], sizes = [32, 16], strides = [1, 1]} : vector<32x96xf32> to vector<32x16xf32>
    %39 = vector.shape_cast %38 : vector<32x16xf32> to vector<8x4x16xf32>
    %40 = arith.truncf %39 : vector<8x4x16xf32> to vector<8x4x16xbf16>
    %41 = vector.extract_strided_slice %33 {offsets = [0, 64], sizes = [32, 16], strides = [1, 1]} : vector<32x96xf32> to vector<32x16xf32>
    %42 = vector.shape_cast %41 : vector<32x16xf32> to vector<8x4x16xf32>
    %43 = arith.truncf %42 : vector<8x4x16xf32> to vector<8x4x16xbf16>
    "tpu.trace_start"() <{level = 10 : i32, message = "bqd,bkd->bqk"}> : () -> ()
    %cst_20 = arith.constant dense<0.000000e+00> : vector<8x4x4xf32>
    %44 = tpu.matmul %37, %40, %cst_20 {dimension_numbers = #tpu.dot_dimension_numbers<[2], [2], [1], [1], [0, 0, 0, 1, 1, 1], [0], [0]>} : vector<8x4x16xbf16>, vector<8x4x16xbf16>, vector<8x4x4xf32> -> vector<8x4x4xf32>
    "tpu.trace_stop"() : () -> ()
    %cst_21 = arith.constant 2.500000e-01 : f32
    %45 = vector.broadcast %cst_21 : f32 to vector<8x4x4xf32>
    %46 = arith.mulf %44, %45 : vector<8x4x4xf32>
    %47 = vector.extract_strided_slice %34 {offsets = [0, 0, 0], sizes = [1, 4, 4], strides = [1, 1, 1]} : vector<2x4x4xf32> to vector<1x4x4xf32>
    %48 = vector.shape_cast %47 : vector<1x4x4xf32> to vector<4x4xf32>
    %49 = vector.shape_cast %48 : vector<4x4xf32> to vector<1x4x4xf32>
    %50 = vector.broadcast %49 : vector<1x4x4xf32> to vector<8x4x4xf32>
    %51 = arith.addf %46, %50 : vector<8x4x4xf32>
    %cst_22 = arith.constant dense<0xFF800000> : vector<8x4xf32>
    %52 = vector.multi_reduction <maximumf>, %51, %cst_22 [2] : vector<8x4x4xf32> to vector<8x4xf32>
    %53 = vector.shape_cast %52 : vector<8x4xf32> to vector<8x4x1xf32>
    %54 = vector.broadcast %53 : vector<8x4x1xf32> to vector<8x4x4xf32>
    %55 = arith.subf %51, %54 : vector<8x4x4xf32>
    %56 = math.exp %55 : vector<8x4x4xf32>
    %cst_23 = arith.constant dense<0.000000e+00> : vector<8x4xf32>
    %57 = vector.multi_reduction <add>, %56, %cst_23 [2] : vector<8x4x4xf32> to vector<8x4xf32>
    %58 = vector.shape_cast %57 : vector<8x4xf32> to vector<8x4x1xf32>
    %59 = tpu.reciprocal %58 {approx = true} : vector<8x4x1xf32> -> vector<8x4x1xf32>
    %60 = vector.broadcast %59 : vector<8x4x1xf32> to vector<8x4x4xf32>
    %61 = arith.mulf %56, %60 : vector<8x4x4xf32>
    %62 = arith.truncf %61 : vector<8x4x4xf32> to vector<8x4x4xbf16>
    "tpu.trace_start"() <{level = 10 : i32, message = "bqk,bkd->bqd"}> : () -> ()
    %cst_24 = arith.constant dense<0.000000e+00> : vector<8x4x16xf32>
    %63 = tpu.matmul %62, %43, %cst_24 {dimension_numbers = #tpu.dot_dimension_numbers<[2], [1], [1], [2], [0, 0, 0, 1, 1, 2], [0], [0]>} : vector<8x4x4xbf16>, vector<8x4x16xbf16>, vector<8x4x16xf32> -> vector<8x4x16xf32>
    "tpu.trace_stop"() : () -> ()
    %64 = vector.shape_cast %63 : vector<8x4x16xf32> to vector<32x16xf32>
    %65 = vector.extract_strided_slice %33 {offsets = [0, 16], sizes = [32, 16], strides = [1, 1]} : vector<32x96xf32> to vector<32x16xf32>
    %66 = vector.shape_cast %65 : vector<32x16xf32> to vector<8x4x16xf32>
    %67 = arith.truncf %66 : vector<8x4x16xf32> to vector<8x4x16xbf16>
    %68 = vector.extract_strided_slice %33 {offsets = [0, 48], sizes = [32, 16], strides = [1, 1]} : vector<32x96xf32> to vector<32x16xf32>
    %69 = vector.shape_cast %68 : vector<32x16xf32> to vector<8x4x16xf32>
    %70 = arith.truncf %69 : vector<8x4x16xf32> to vector<8x4x16xbf16>
    %71 = vector.extract_strided_slice %33 {offsets = [0, 80], sizes = [32, 16], strides = [1, 1]} : vector<32x96xf32> to vector<32x16xf32>
    %72 = vector.shape_cast %71 : vector<32x16xf32> to vector<8x4x16xf32>
    %73 = arith.truncf %72 : vector<8x4x16xf32> to vector<8x4x16xbf16>
    "tpu.trace_start"() <{level = 10 : i32, message = "bqd,bkd->bqk"}> : () -> ()
    %cst_25 = arith.constant dense<0.000000e+00> : vector<8x4x4xf32>
    %74 = tpu.matmul %67, %70, %cst_25 {dimension_numbers = #tpu.dot_dimension_numbers<[2], [2], [1], [1], [0, 0, 0, 1, 1, 1], [0], [0]>} : vector<8x4x16xbf16>, vector<8x4x16xbf16>, vector<8x4x4xf32> -> vector<8x4x4xf32>
    "tpu.trace_stop"() : () -> ()
    %cst_26 = arith.constant 2.500000e-01 : f32
    %75 = vector.broadcast %cst_26 : f32 to vector<8x4x4xf32>
    %76 = arith.mulf %74, %75 : vector<8x4x4xf32>
    %77 = vector.extract_strided_slice %34 {offsets = [1, 0, 0], sizes = [1, 4, 4], strides = [1, 1, 1]} : vector<2x4x4xf32> to vector<1x4x4xf32>
    %78 = vector.shape_cast %77 : vector<1x4x4xf32> to vector<4x4xf32>
    %79 = vector.shape_cast %78 : vector<4x4xf32> to vector<1x4x4xf32>
    %80 = vector.broadcast %79 : vector<1x4x4xf32> to vector<8x4x4xf32>
    %81 = arith.addf %76, %80 : vector<8x4x4xf32>
    %cst_27 = arith.constant dense<0xFF800000> : vector<8x4xf32>
    %82 = vector.multi_reduction <maximumf>, %81, %cst_27 [2] : vector<8x4x4xf32> to vector<8x4xf32>
    %83 = vector.shape_cast %82 : vector<8x4xf32> to vector<8x4x1xf32>
    %84 = vector.broadcast %83 : vector<8x4x1xf32> to vector<8x4x4xf32>
    %85 = arith.subf %81, %84 : vector<8x4x4xf32>
    %86 = math.exp %85 : vector<8x4x4xf32>
    %cst_28 = arith.constant dense<0.000000e+00> : vector<8x4xf32>
    %87 = vector.multi_reduction <add>, %86, %cst_28 [2] : vector<8x4x4xf32> to vector<8x4xf32>
    %88 = vector.shape_cast %87 : vector<8x4xf32> to vector<8x4x1xf32>
    %89 = tpu.reciprocal %88 {approx = true} : vector<8x4x1xf32> -> vector<8x4x1xf32>
    %90 = vector.broadcast %89 : vector<8x4x1xf32> to vector<8x4x4xf32>
    %91 = arith.mulf %86, %90 : vector<8x4x4xf32>
    %92 = arith.truncf %91 : vector<8x4x4xf32> to vector<8x4x4xbf16>
    "tpu.trace_start"() <{level = 10 : i32, message = "bqk,bkd->bqd"}> : () -> ()
    %cst_29 = arith.constant dense<0.000000e+00> : vector<8x4x16xf32>
    %93 = tpu.matmul %92, %73, %cst_29 {dimension_numbers = #tpu.dot_dimension_numbers<[2], [1], [1], [2], [0, 0, 0, 1, 1, 2], [0], [0]>} : vector<8x4x4xbf16>, vector<8x4x16xbf16>, vector<8x4x16xf32> -> vector<8x4x16xf32>
    "tpu.trace_stop"() : () -> ()
    %94 = vector.shape_cast %93 : vector<8x4x16xf32> to vector<32x16xf32>
    %95 = tpu.concatenate %64, %94 in 1 : vector<32x16xf32>, vector<32x16xf32> -> vector<32x32xf32>
    %96 = arith.truncf %95 : vector<32x32xf32> to vector<32x32xbf16>
    %c0_30 = arith.constant 0 : index
    %c0_31 = arith.constant 0 : index
    %97 = vector.load %arg8[%c0_30, %c0_31] : memref<32x32xbf16, #tpu.memory_space<vmem>>, vector<32x32xbf16>
    %cst_32 = arith.constant dense<0.000000e+00> : vector<32x32xf32>
    %98 = tpu.matmul %96, %97, %cst_32 {dimension_numbers = #tpu.dot_dimension_numbers<[1], [0], [0], [1], [0, 0, 1, 1], [], []>} : vector<32x32xbf16>, vector<32x32xbf16>, vector<32x32xf32> -> vector<32x32xf32>
    %99 = arith.addf %3, %98 : vector<32x32xf32>
    %c0_33 = arith.constant 0 : index
    %c0_34 = arith.constant 0 : index
    %100 = vector.load %arg9[%c0_33, %c0_34] : memref<1x32xf32, #tpu.memory_space<vmem>>, vector<1x32xf32>
    %101 = vector.broadcast %100 : vector<1x32xf32> to vector<32x32xf32>
    %102 = arith.addf %99, %101 : vector<32x32xf32>
    %c0_35 = arith.constant 0 : index
    %c0_36 = arith.constant 0 : index
    %103 = vector.load %arg10[%c0_35, %c0_36] : memref<1x32xf32, #tpu.memory_space<vmem>>, vector<1x32xf32>
    %c0_37 = arith.constant 0 : index
    %c0_38 = arith.constant 0 : index
    %104 = vector.load %arg11[%c0_37, %c0_38] : memref<1x32xf32, #tpu.memory_space<vmem>>, vector<1x32xf32>
    %cst_39 = arith.constant dense<0.000000e+00> : vector<32xf32>
    %105 = vector.multi_reduction <add>, %102, %cst_39 [1] : vector<32x32xf32> to vector<32xf32>
    %106 = vector.shape_cast %105 : vector<32xf32> to vector<32x1xf32>
    %cst_40 = arith.constant 3.200000e+01 : f32
    %107 = vector.broadcast %cst_40 : f32 to vector<32x1xf32>
    %108 = arith.divf %106, %107 : vector<32x1xf32>
    %109 = vector.broadcast %108 : vector<32x1xf32> to vector<32x32xf32>
    %110 = arith.subf %102, %109 : vector<32x32xf32>
    %111 = arith.mulf %110, %110 : vector<32x32xf32>
    %cst_41 = arith.constant dense<0.000000e+00> : vector<32xf32>
    %112 = vector.multi_reduction <add>, %111, %cst_41 [1] : vector<32x32xf32> to vector<32xf32>
    %113 = vector.shape_cast %112 : vector<32xf32> to vector<32x1xf32>
    %cst_42 = arith.constant 3.200000e+01 : f32
    %114 = vector.broadcast %cst_42 : f32 to vector<32x1xf32>
    %115 = arith.divf %113, %114 : vector<32x1xf32>
    %116 = vector.broadcast %108 : vector<32x1xf32> to vector<32x32xf32>
    %117 = arith.subf %102, %116 : vector<32x32xf32>
    %cst_43 = arith.constant 9.99999974E-6 : f32
    %118 = vector.broadcast %cst_43 : f32 to vector<32x1xf32>
    %119 = arith.addf %115, %118 : vector<32x1xf32>
    %120 = math.rsqrt %119 : vector<32x1xf32>
    %121 = vector.broadcast %120 : vector<32x1xf32> to vector<32x32xf32>
    %122 = arith.mulf %117, %121 : vector<32x32xf32>
    %123 = vector.broadcast %103 : vector<1x32xf32> to vector<32x32xf32>
    %124 = arith.mulf %122, %123 : vector<32x32xf32>
    %125 = vector.broadcast %104 : vector<1x32xf32> to vector<32x32xf32>
    %126 = arith.addf %124, %125 : vector<32x32xf32>
    %127 = arith.truncf %126 : vector<32x32xf32> to vector<32x32xbf16>
    %c0_44 = arith.constant 0 : index
    %c0_45 = arith.constant 0 : index
    %128 = vector.load %arg12[%c0_44, %c0_45] : memref<32x128xbf16, #tpu.memory_space<vmem>>, vector<32x128xbf16>
    %cst_46 = arith.constant dense<0.000000e+00> : vector<32x128xf32>
    %129 = tpu.matmul %127, %128, %cst_46 {dimension_numbers = #tpu.dot_dimension_numbers<[1], [0], [0], [1], [0, 0, 1, 1], [], []>} : vector<32x32xbf16>, vector<32x128xbf16>, vector<32x128xf32> -> vector<32x128xf32>
    %c0_47 = arith.constant 0 : index
    %c0_48 = arith.constant 0 : index
    %130 = vector.load %arg13[%c0_47, %c0_48] : memref<1x128xf32, #tpu.memory_space<vmem>>, vector<1x128xf32>
    %131 = vector.broadcast %130 : vector<1x128xf32> to vector<32x128xf32>
    %132 = arith.addf %129, %131 : vector<32x128xf32>
    %133 = arith.mulf %132, %132 : vector<32x128xf32>
    %134 = arith.mulf %132, %133 : vector<32x128xf32>
    %cst_49 = arith.constant 4.471500e-02 : f32
    %135 = vector.broadcast %cst_49 : f32 to vector<32x128xf32>
    %136 = arith.mulf %135, %134 : vector<32x128xf32>
    %137 = arith.addf %132, %136 : vector<32x128xf32>
    %cst_50 = arith.constant 0.797884583 : f32
    %138 = vector.broadcast %cst_50 : f32 to vector<32x128xf32>
    %139 = arith.mulf %138, %137 : vector<32x128xf32>
    %140 = math.tanh %139 : vector<32x128xf32>
    %cst_51 = arith.constant 1.000000e+00 : f32
    %141 = vector.broadcast %cst_51 : f32 to vector<32x128xf32>
    %142 = arith.addf %141, %140 : vector<32x128xf32>
    %cst_52 = arith.constant 5.000000e-01 : f32
    %143 = vector.broadcast %cst_52 : f32 to vector<32x128xf32>
    %144 = arith.mulf %143, %142 : vector<32x128xf32>
    %145 = arith.mulf %132, %144 : vector<32x128xf32>
    %146 = arith.truncf %145 : vector<32x128xf32> to vector<32x128xbf16>
    %c0_53 = arith.constant 0 : index
    %c0_54 = arith.constant 0 : index
    %147 = vector.load %arg14[%c0_53, %c0_54] : memref<128x32xbf16, #tpu.memory_space<vmem>>, vector<128x32xbf16>
    %cst_55 = arith.constant dense<0.000000e+00> : vector<32x32xf32>
    %148 = tpu.matmul %146, %147, %cst_55 {dimension_numbers = #tpu.dot_dimension_numbers<[1], [0], [0], [1], [0, 0, 1, 1], [], []>} : vector<32x128xbf16>, vector<128x32xbf16>, vector<32x32xf32> -> vector<32x32xf32>
    %149 = arith.addf %102, %148 : vector<32x32xf32>
    %c0_56 = arith.constant 0 : index
    %c0_57 = arith.constant 0 : index
    %150 = vector.load %arg15[%c0_56, %c0_57] : memref<1x32xf32, #tpu.memory_space<vmem>>, vector<1x32xf32>
    %151 = vector.broadcast %150 : vector<1x32xf32> to vector<32x32xf32>
    %152 = arith.addf %149, %151 : vector<32x32xf32>
    %153 = vector.shape_cast %152 : vector<32x32xf32> to vector<2x4x4x32xf32>
    %154 = arith.truncf %153 : vector<2x4x4x32xf32> to vector<2x4x4x32xbf16>
    %c0_58 = arith.constant 0 : index
    %c0_59 = arith.constant 0 : index
    %c0_60 = arith.constant 0 : index
    %c0_61 = arith.constant 0 : index
    %c0_62 = arith.constant 0 : index
    %155 = vector.load %arg16[%c0_58, %c0_59, %c0_60, %c0_61, %c0_62] : memref<1x2x4x4x32xbf16, #tpu.memory_space<vmem>>, vector<1x2x4x4x32xbf16>
    %156 = vector.shape_cast %155 : vector<1x2x4x4x32xbf16> to vector<2x4x4x32xbf16>
    %157 = vector.shape_cast %154 : vector<2x4x4x32xbf16> to vector<1x2x4x4x32xbf16>
    tpu.vector_store %arg16[%c0_58, %c0_59, %c0_60, %c0_61, %c0_62], %157 {strides = array<i32>} : memref<1x2x4x4x32xbf16, #tpu.memory_space<vmem>>, vector<1x2x4x4x32xbf16>,
    return
  }
  func.func @transform_0(%arg0: i32, %arg1: i32) -> (i32, i32, i32, i32, i32) {
    %c0_i32 = arith.constant 0 : i32
    %c0_i32_0 = arith.constant 0 : i32
    %c0_i32_1 = arith.constant 0 : i32
    %c0_i32_2 = arith.constant 0 : i32
    return %arg0, %arg1, %c0_i32, %c0_i32_0, %c0_i32_1 : i32, i32, i32, i32, i32
  }
  func.func @transform_1(%arg0: i32, %arg1: i32) -> (i32, i32) {
    %c0_i32 = arith.constant 0 : i32
    %c0_i32_0 = arith.constant 0 : i32
    %c0_i32_1 = arith.constant 0 : i32
    return %c0_i32, %c0_i32_0 : i32, i32
  }
  func.func @transform_2(%arg0: i32, %arg1: i32) -> (i32, i32) {
    %c0_i32 = arith.constant 0 : i32
    %c0_i32_0 = arith.constant 0 : i32
    %c0_i32_1 = arith.constant 0 : i32
    return %c0_i32, %c0_i32_0 : i32, i32
  }
  func.func @transform_3(%arg0: i32, %arg1: i32) -> (i32, i32) {
    %c0_i32 = arith.constant 0 : i32
    %c0_i32_0 = arith.constant 0 : i32
    %c0_i32_1 = arith.constant 0 : i32
    return %c0_i32, %c0_i32_0 : i32, i32
  }
  func.func @transform_4(%arg0: i32, %arg1: i32) -> (i32, i32) {
    %c0_i32 = arith.constant 0 : i32
    %c0_i32_0 = arith.constant 0 : i32
    %c0_i32_1 = arith.constant 0 : i32
    return %c0_i32, %c0_i32_0 : i32, i32
  }
  func.func @transform_5(%arg0: i32, %arg1: i32) -> (i32, i32, i32) {
    %c0_i32 = arith.constant 0 : i32
    %c0_i32_0 = arith.constant 0 : i32
    %c0_i32_1 = arith.constant 0 : i32
    %c0_i32_2 = arith.constant 0 : i32
    return %c0_i32, %c0_i32_0, %c0_i32_1 : i32, i32, i32
  }
  func.func @transform_6(%arg0: i32, %arg1: i32) -> (i32, i32) {
    %c0_i32 = arith.constant 0 : i32
    %c0_i32_0 = arith.constant 0 : i32
    %c0_i32_1 = arith.constant 0 : i32
    return %c0_i32, %c0_i32_0 : i32, i32
  }
  func.func @transform_7(%arg0: i32, %arg1: i32) -> (i32, i32) {
    %c0_i32 = arith.constant 0 : i32
    %c0_i32_0 = arith.constant 0 : i32
    %c0_i32_1 = arith.constant 0 : i32
    return %c0_i32, %c0_i32_0 : i32, i32
  }
  func.func @transform_8(%arg0: i32, %arg1: i32) -> (i32, i32) {
    %c0_i32 = arith.constant 0 : i32
    %c0_i32_0 = arith.constant 0 : i32
    %c0_i32_1 = arith.constant 0 : i32
    return %c0_i32, %c0_i32_0 : i32, i32
  }
  func.func @transform_9(%arg0: i32, %arg1: i32) -> (i32, i32) {
    %c0_i32 = arith.constant 0 : i32
    %c0_i32_0 = arith.constant 0 : i32
    %c0_i32_1 = arith.constant 0 : i32
    return %c0_i32, %c0_i32_0 : i32, i32
  }
  func.func @transform_10(%arg0: i32, %arg1: i32) -> (i32, i32) {
    %c0_i32 = arith.constant 0 : i32
    %c0_i32_0 = arith.constant 0 : i32
    %c0_i32_1 = arith.constant 0 : i32
    return %c0_i32, %c0_i32_0 : i32, i32
  }
  func.func @transform_11(%arg0: i32, %arg1: i32) -> (i32, i32) {
    %c0_i32 = arith.constant 0 : i32
    %c0_i32_0 = arith.constant 0 : i32
    %c0_i32_1 = arith.constant 0 : i32
    return %c0_i32, %c0_i32_0 : i32, i32
  }
  func.func @transform_12(%arg0: i32, %arg1: i32) -> (i32, i32) {
    %c0_i32 = arith.constant 0 : i32
    %c0_i32_0 = arith.constant 0 : i32
    %c0_i32_1 = arith.constant 0 : i32
    return %c0_i32, %c0_i32_0 : i32, i32
  }
  func.func @transform_13(%arg0: i32, %arg1: i32) -> (i32, i32) {
    %c0_i32 = arith.constant 0 : i32
    %c0_i32_0 = arith.constant 0 : i32
    %c0_i32_1 = arith.constant 0 : i32
    return %c0_i32, %c0_i32_0 : i32, i32
  }
  func.func @transform_14(%arg0: i32, %arg1: i32) -> (i32, i32, i32, i32, i32) {
    %c0_i32 = arith.constant 0 : i32
    %c0_i32_0 = arith.constant 0 : i32
    %c0_i32_1 = arith.constant 0 : i32
    %c0_i32_2 = arith.constant 0 : i32
    return %arg0, %arg1, %c0_i32, %c0_i32_0, %c0_i32_1 : i32, i32, i32, i32, i32
  }
}

module attributes {stable_mosaic.version = 11 : i64} {
  func.func @kernel(%arg0: i32, %arg1: memref<64x16xbf16, #tpu.memory_space<vmem>>, %arg2: memref<16x32xbf16, #tpu.memory_space<vmem>>, %arg3: memref<1x32xf32, #tpu.memory_space<vmem>>, %arg4: memref<64x32xbf16, #tpu.memory_space<vmem>>) attributes {dimension_semantics = [#tpu.dimension_semantics<parallel>], iteration_bounds = array<i64: 1>, scalar_prefetch = 0 : i64, scratch_operands = 0 : i64, tpu.core_type = #tpu.core_type<tc>, window_params = [{transform_indices = @transform_0, window_bounds = array<i64: 64, 16>}, {pipeline_mode = #tpu.pipeline_mode<synchronous>, transform_indices = @transform_1, window_bounds = array<i64: 16, 32>}, {pipeline_mode = #tpu.pipeline_mode<synchronous>, transform_indices = @transform_2, window_bounds = array<i64: 1, 32>}, {transform_indices = @transform_3, window_bounds = array<i64: 64, 32>}]} {
    %c0 = arith.constant 0 : index
    %c0_0 = arith.constant 0 : index
    %0 = vector.load %arg1[%c0, %c0_0] : memref<64x16xbf16, #tpu.memory_space<vmem>>, vector<64x16xbf16>
    %c0_1 = arith.constant 0 : index
    %c0_2 = arith.constant 0 : index
    %1 = vector.load %arg2[%c0_1, %c0_2] : memref<16x32xbf16, #tpu.memory_space<vmem>>, vector<16x32xbf16>
    %cst = arith.constant dense<0.000000e+00> : vector<64x32xf32>
    %2 = tpu.matmul %0, %1, %cst {dimension_numbers = #tpu.dot_dimension_numbers<[1], [0], [0], [1], [0, 0, 1, 1], [], []>} : vector<64x16xbf16>, vector<16x32xbf16>, vector<64x32xf32> -> vector<64x32xf32>
    %c0_3 = arith.constant 0 : index
    %c0_4 = arith.constant 0 : index
    %3 = vector.load %arg3[%c0_3, %c0_4] : memref<1x32xf32, #tpu.memory_space<vmem>>, vector<1x32xf32>
    %4 = vector.broadcast %3 : vector<1x32xf32> to vector<64x32xf32>
    %5 = arith.addf %2, %4 : vector<64x32xf32>
    %6 = arith.truncf %5 : vector<64x32xf32> to vector<64x32xbf16>
    %c0_5 = arith.constant 0 : index
    %c0_6 = arith.constant 0 : index
    %7 = vector.load %arg4[%c0_5, %c0_6] : memref<64x32xbf16, #tpu.memory_space<vmem>>, vector<64x32xbf16>
    tpu.vector_store %arg4[%c0_5, %c0_6], %6 {strides = array<i32>} : memref<64x32xbf16, #tpu.memory_space<vmem>>, vector<64x32xbf16>,
    return
  }
  func.func @transform_0(%arg0: i32) -> (i32, i32) {
    %c0_i32 = arith.constant 0 : i32
    %c0_i32_0 = arith.constant 0 : i32
    return %arg0, %c0_i32 : i32, i32
  }
  func.func @transform_1(%arg0: i32) -> (i32, i32) {
    %c0_i32 = arith.constant 0 : i32
    %c0_i32_0 = arith.constant 0 : i32
    %c0_i32_1 = arith.constant 0 : i32
    return %c0_i32, %c0_i32_0 : i32, i32
  }
  func.func @transform_2(%arg0: i32) -> (i32, i32) {
    %c0_i32 = arith.constant 0 : i32
    %c0_i32_0 = arith.constant 0 : i32
    %c0_i32_1 = arith.constant 0 : i32
    return %c0_i32, %c0_i32_0 : i32, i32
  }
  func.func @transform_3(%arg0: i32) -> (i32, i32) {
    %c0_i32 = arith.constant 0 : i32
    %c0_i32_0 = arith.constant 0 : i32
    return %arg0, %c0_i32 : i32, i32
  }
}

module attributes {stable_mosaic.version = 11 : i64} {
  func.func @kernel(%arg0: i32, %arg1: i32, %arg2: memref<1x2x8x32xbf16, #tpu.memory_space<vmem>>, %arg3: memref<1x128xf32, #tpu.memory_space<vmem>>, %arg4: memref<1x128xf32, #tpu.memory_space<vmem>>, %arg5: memref<128x64xbf16, #tpu.memory_space<vmem>>, %arg6: memref<1x1x4x64xbf16, #tpu.memory_space<vmem>>) attributes {dimension_semantics = [#tpu.dimension_semantics<parallel>, #tpu.dimension_semantics<parallel>], iteration_bounds = array<i64: 2, 2>, scalar_prefetch = 0 : i64, scratch_operands = 0 : i64, tpu.core_type = #tpu.core_type<tc>, window_params = [{transform_indices = @transform_0, window_bounds = array<i64: 1, 2, 8, 32>}, {pipeline_mode = #tpu.pipeline_mode<synchronous>, transform_indices = @transform_1, window_bounds = array<i64: 1, 128>}, {pipeline_mode = #tpu.pipeline_mode<synchronous>, transform_indices = @transform_2, window_bounds = array<i64: 1, 128>}, {pipeline_mode = #tpu.pipeline_mode<synchronous>, transform_indices = @transform_3, window_bounds = array<i64: 128, 64>}, {transform_indices = @transform_4, window_bounds = array<i64: 1, 1, 4, 64>}]} {
    %c0 = arith.constant 0 : index
    %c0_0 = arith.constant 0 : index
    %c0_1 = arith.constant 0 : index
    %c0_2 = arith.constant 0 : index
    %0 = vector.load %arg2[%c0, %c0_0, %c0_1, %c0_2] : memref<1x2x8x32xbf16, #tpu.memory_space<vmem>>, vector<1x2x8x32xbf16>
    %1 = vector.shape_cast %0 : vector<1x2x8x32xbf16> to vector<2x8x32xbf16>
    %2 = arith.extf %1 : vector<2x8x32xbf16> to vector<2x8x32xf32>
    %3 = vector.shape_cast %2 : vector<2x8x32xf32> to vector<2x4x2x32xf32>
    %4 = vector.extract_strided_slice %3 {offsets = [0, 0, 0, 0], sizes = [1, 4, 1, 32], strides = [1, 1, 1, 1]} : vector<2x4x2x32xf32> to vector<1x4x1x32xf32>
    %5 = vector.shape_cast %4 : vector<1x4x1x32xf32> to vector<4x32xf32>
    %6 = vector.extract_strided_slice %3 {offsets = [1, 0, 0, 0], sizes = [1, 4, 1, 32], strides = [1, 1, 1, 1]} : vector<2x4x2x32xf32> to vector<1x4x1x32xf32>
    %7 = vector.shape_cast %6 : vector<1x4x1x32xf32> to vector<4x32xf32>
    %8 = vector.extract_strided_slice %3 {offsets = [0, 0, 1, 0], sizes = [1, 4, 1, 32], strides = [1, 1, 1, 1]} : vector<2x4x2x32xf32> to vector<1x4x1x32xf32>
    %9 = vector.shape_cast %8 : vector<1x4x1x32xf32> to vector<4x32xf32>
    %10 = vector.extract_strided_slice %3 {offsets = [1, 0, 1, 0], sizes = [1, 4, 1, 32], strides = [1, 1, 1, 1]} : vector<2x4x2x32xf32> to vector<1x4x1x32xf32>
    %11 = vector.shape_cast %10 : vector<1x4x1x32xf32> to vector<4x32xf32>
    %12 = tpu.concatenate %5, %7, %9, %11 in 1 : vector<4x32xf32>, vector<4x32xf32>, vector<4x32xf32>, vector<4x32xf32> -> vector<4x128xf32>
    %c0_3 = arith.constant 0 : index
    %c0_4 = arith.constant 0 : index
    %13 = vector.load %arg3[%c0_3, %c0_4] : memref<1x128xf32, #tpu.memory_space<vmem>>, vector<1x128xf32>
    %c0_5 = arith.constant 0 : index
    %c0_6 = arith.constant 0 : index
    %14 = vector.load %arg4[%c0_5, %c0_6] : memref<1x128xf32, #tpu.memory_space<vmem>>, vector<1x128xf32>
    %cst = arith.constant dense<0.000000e+00> : vector<4xf32>
    %15 = vector.multi_reduction <add>, %12, %cst [1] : vector<4x128xf32> to vector<4xf32>
    %16 = vector.shape_cast %15 : vector<4xf32> to vector<4x1xf32>
    %cst_7 = arith.constant 1.280000e+02 : f32
    %17 = vector.broadcast %cst_7 : f32 to vector<4x1xf32>
    %18 = arith.divf %16, %17 : vector<4x1xf32>
    %19 = vector.broadcast %18 : vector<4x1xf32> to vector<4x128xf32>
    %20 = arith.subf %12, %19 : vector<4x128xf32>
    %21 = arith.mulf %20, %20 : vector<4x128xf32>
    %cst_8 = arith.constant dense<0.000000e+00> : vector<4xf32>
    %22 = vector.multi_reduction <add>, %21, %cst_8 [1] : vector<4x128xf32> to vector<4xf32>
    %23 = vector.shape_cast %22 : vector<4xf32> to vector<4x1xf32>
    %cst_9 = arith.constant 1.280000e+02 : f32
    %24 = vector.broadcast %cst_9 : f32 to vector<4x1xf32>
    %25 = arith.divf %23, %24 : vector<4x1xf32>
    %26 = vector.broadcast %18 : vector<4x1xf32> to vector<4x128xf32>
    %27 = arith.subf %12, %26 : vector<4x128xf32>
    %cst_10 = arith.constant 9.99999974E-6 : f32
    %28 = vector.broadcast %cst_10 : f32 to vector<4x1xf32>
    %29 = arith.addf %25, %28 : vector<4x1xf32>
    %30 = math.rsqrt %29 : vector<4x1xf32>
    %31 = vector.broadcast %30 : vector<4x1xf32> to vector<4x128xf32>
    %32 = arith.mulf %27, %31 : vector<4x128xf32>
    %33 = vector.broadcast %13 : vector<1x128xf32> to vector<4x128xf32>
    %34 = arith.mulf %32, %33 : vector<4x128xf32>
    %35 = vector.broadcast %14 : vector<1x128xf32> to vector<4x128xf32>
    %36 = arith.addf %34, %35 : vector<4x128xf32>
    %37 = arith.truncf %36 : vector<4x128xf32> to vector<4x128xbf16>
    %c0_11 = arith.constant 0 : index
    %c0_12 = arith.constant 0 : index
    %38 = vector.load %arg5[%c0_11, %c0_12] : memref<128x64xbf16, #tpu.memory_space<vmem>>, vector<128x64xbf16>
    %cst_13 = arith.constant dense<0.000000e+00> : vector<4x64xf32>
    %39 = tpu.matmul %37, %38, %cst_13 {dimension_numbers = #tpu.dot_dimension_numbers<[1], [0], [0], [1], [0, 0, 1, 1], [], []>} : vector<4x128xbf16>, vector<128x64xbf16>, vector<4x64xf32> -> vector<4x64xf32>
    %40 = arith.truncf %39 : vector<4x64xf32> to vector<4x64xbf16>
    %c0_14 = arith.constant 0 : index
    %c0_15 = arith.constant 0 : index
    %c0_16 = arith.constant 0 : index
    %c0_17 = arith.constant 0 : index
    %41 = vector.load %arg6[%c0_14, %c0_15, %c0_16, %c0_17] : memref<1x1x4x64xbf16, #tpu.memory_space<vmem>>, vector<1x1x4x64xbf16>
    %42 = vector.shape_cast %41 : vector<1x1x4x64xbf16> to vector<4x64xbf16>
    %43 = vector.shape_cast %40 : vector<4x64xbf16> to vector<1x1x4x64xbf16>
    tpu.vector_store %arg6[%c0_14, %c0_15, %c0_16, %c0_17], %43 {strides = array<i32>} : memref<1x1x4x64xbf16, #tpu.memory_space<vmem>>, vector<1x1x4x64xbf16>,
    return
  }
  func.func @transform_0(%arg0: i32, %arg1: i32) -> (i32, i32, i32, i32) {
    %c0_i32 = arith.constant 0 : i32
    %c0_i32_0 = arith.constant 0 : i32
    %c0_i32_1 = arith.constant 0 : i32
    return %arg0, %arg1, %c0_i32, %c0_i32_0 : i32, i32, i32, i32
  }
  func.func @transform_1(%arg0: i32, %arg1: i32) -> (i32, i32) {
    %c0_i32 = arith.constant 0 : i32
    %c0_i32_0 = arith.constant 0 : i32
    %c0_i32_1 = arith.constant 0 : i32
    return %c0_i32, %c0_i32_0 : i32, i32
  }
  func.func @transform_2(%arg0: i32, %arg1: i32) -> (i32, i32) {
    %c0_i32 = arith.constant 0 : i32
    %c0_i32_0 = arith.constant 0 : i32
    %c0_i32_1 = arith.constant 0 : i32
    return %c0_i32, %c0_i32_0 : i32, i32
  }
  func.func @transform_3(%arg0: i32, %arg1: i32) -> (i32, i32) {
    %c0_i32 = arith.constant 0 : i32
    %c0_i32_0 = arith.constant 0 : i32
    %c0_i32_1 = arith.constant 0 : i32
    return %c0_i32, %c0_i32_0 : i32, i32
  }
  func.func @transform_4(%arg0: i32, %arg1: i32) -> (i32, i32, i32, i32) {
    %c0_i32 = arith.constant 0 : i32
    %c0_i32_0 = arith.constant 0 : i32
    %c0_i32_1 = arith.constant 0 : i32
    return %arg0, %arg1, %c0_i32, %c0_i32_0 : i32, i32, i32, i32
  }
}

module attributes {stable_mosaic.version = 11 : i64} {
  func.func @kernel(%arg0: i32, %arg1: memref<16x64xbf16, #tpu.memory_space<vmem>>, %arg2: memref<64x16xbf16, #tpu.memory_space<vmem>>, %arg3: memref<1x16xf32, #tpu.memory_space<vmem>>, %arg4: memref<1x16xf32, #tpu.memory_space<vmem>>, %arg5: memref<1x16xf32, #tpu.memory_space<vmem>>, %arg6: memref<16x16xbf16, #tpu.memory_space<vmem>>, %arg7: memref<16x1xf32, #tpu.memory_space<vmem>>) attributes {dimension_semantics = [#tpu.dimension_semantics<parallel>], iteration_bounds = array<i64: 1>, scalar_prefetch = 0 : i64, scratch_operands = 0 : i64, tpu.core_type = #tpu.core_type<tc>, window_params = [{transform_indices = @transform_0, window_bounds = array<i64: 16, 64>}, {pipeline_mode = #tpu.pipeline_mode<synchronous>, transform_indices = @transform_1, window_bounds = array<i64: 64, 16>}, {pipeline_mode = #tpu.pipeline_mode<synchronous>, transform_indices = @transform_2, window_bounds = array<i64: 1, 16>}, {pipeline_mode = #tpu.pipeline_mode<synchronous>, transform_indices = @transform_3, window_bounds = array<i64: 1, 16>}, {pipeline_mode = #tpu.pipeline_mode<synchronous>, transform_indices = @transform_4, window_bounds = array<i64: 1, 16>}, {transform_indices = @transform_5, window_bounds = array<i64: 16, 16>}, {transform_indices = @transform_6, window_bounds = array<i64: 16, 1>}]} {
    %c0 = arith.constant 0 : index
    %c0_0 = arith.constant 0 : index
    %0 = vector.load %arg1[%c0, %c0_0] : memref<16x64xbf16, #tpu.memory_space<vmem>>, vector<16x64xbf16>
    %c0_1 = arith.constant 0 : index
    %c0_2 = arith.constant 0 : index
    %1 = vector.load %arg2[%c0_1, %c0_2] : memref<64x16xbf16, #tpu.memory_space<vmem>>, vector<64x16xbf16>
    %cst = arith.constant dense<0.000000e+00> : vector<16x16xf32>
    %2 = tpu.matmul %0, %1, %cst {dimension_numbers = #tpu.dot_dimension_numbers<[1], [0], [0], [1], [0, 0, 1, 1], [], []>} : vector<16x64xbf16>, vector<64x16xbf16>, vector<16x16xf32> -> vector<16x16xf32>
    %c0_3 = arith.constant 0 : index
    %c0_4 = arith.constant 0 : index
    %3 = vector.load %arg3[%c0_3, %c0_4] : memref<1x16xf32, #tpu.memory_space<vmem>>, vector<1x16xf32>
    %4 = vector.broadcast %3 : vector<1x16xf32> to vector<16x16xf32>
    %5 = arith.addf %2, %4 : vector<16x16xf32>
    %c0_5 = arith.constant 0 : index
    %c0_6 = arith.constant 0 : index
    %6 = vector.load %arg4[%c0_5, %c0_6] : memref<1x16xf32, #tpu.memory_space<vmem>>, vector<1x16xf32>
    %c0_7 = arith.constant 0 : index
    %c0_8 = arith.constant 0 : index
    %7 = vector.load %arg5[%c0_7, %c0_8] : memref<1x16xf32, #tpu.memory_space<vmem>>, vector<1x16xf32>
    %cst_9 = arith.constant dense<0.000000e+00> : vector<16xf32>
    %8 = vector.multi_reduction <add>, %5, %cst_9 [1] : vector<16x16xf32> to vector<16xf32>
    %9 = vector.shape_cast %8 : vector<16xf32> to vector<16x1xf32>
    %cst_10 = arith.constant 1.600000e+01 : f32
    %10 = vector.broadcast %cst_10 : f32 to vector<16x1xf32>
    %11 = arith.divf %9, %10 : vector<16x1xf32>
    %12 = vector.broadcast %11 : vector<16x1xf32> to vector<16x16xf32>
    %13 = arith.subf %5, %12 : vector<16x16xf32>
    %14 = arith.mulf %13, %13 : vector<16x16xf32>
    %cst_11 = arith.constant dense<0.000000e+00> : vector<16xf32>
    %15 = vector.multi_reduction <add>, %14, %cst_11 [1] : vector<16x16xf32> to vector<16xf32>
    %16 = vector.shape_cast %15 : vector<16xf32> to vector<16x1xf32>
    %cst_12 = arith.constant 1.600000e+01 : f32
    %17 = vector.broadcast %cst_12 : f32 to vector<16x1xf32>
    %18 = arith.divf %16, %17 : vector<16x1xf32>
    %19 = vector.broadcast %11 : vector<16x1xf32> to vector<16x16xf32>
    %20 = arith.subf %5, %19 : vector<16x16xf32>
    %cst_13 = arith.constant 9.99999997E-7 : f32
    %21 = vector.broadcast %cst_13 : f32 to vector<16x1xf32>
    %22 = arith.addf %18, %21 : vector<16x1xf32>
    %23 = math.rsqrt %22 : vector<16x1xf32>
    %24 = vector.broadcast %23 : vector<16x1xf32> to vector<16x16xf32>
    %25 = arith.mulf %20, %24 : vector<16x16xf32>
    %26 = vector.broadcast %6 : vector<1x16xf32> to vector<16x16xf32>
    %27 = arith.mulf %25, %26 : vector<16x16xf32>
    %28 = vector.broadcast %7 : vector<1x16xf32> to vector<16x16xf32>
    %29 = arith.addf %27, %28 : vector<16x16xf32>
    %30 = arith.truncf %29 : vector<16x16xf32> to vector<16x16xbf16>
    %c0_14 = arith.constant 0 : index
    %c0_15 = arith.constant 0 : index
    %31 = vector.load %arg6[%c0_14, %c0_15] : memref<16x16xbf16, #tpu.memory_space<vmem>>, vector<16x16xbf16>
    tpu.vector_store %arg6[%c0_14, %c0_15], %30 {strides = array<i32>} : memref<16x16xbf16, #tpu.memory_space<vmem>>, vector<16x16xbf16>,
    %cst_16 = arith.constant dense<0.000000e+00> : vector<16xf32>
    %32 = vector.multi_reduction <add>, %29, %cst_16 [1] : vector<16x16xf32> to vector<16xf32>
    %33 = vector.shape_cast %32 : vector<16xf32> to vector<16x1xf32>
    %cst_17 = arith.constant 1.600000e+01 : f32
    %34 = vector.broadcast %cst_17 : f32 to vector<16x1xf32>
    %35 = arith.divf %33, %34 : vector<16x1xf32>
    %c0_18 = arith.constant 0 : index
    %c0_19 = arith.constant 0 : index
    %36 = vector.load %arg7[%c0_18, %c0_19] : memref<16x1xf32, #tpu.memory_space<vmem>>, vector<16x1xf32>
    tpu.vector_store %arg7[%c0_18, %c0_19], %35 {strides = array<i32>} : memref<16x1xf32, #tpu.memory_space<vmem>>, vector<16x1xf32>,
    return
  }
  func.func @transform_0(%arg0: i32) -> (i32, i32) {
    %c0_i32 = arith.constant 0 : i32
    %c0_i32_0 = arith.constant 0 : i32
    return %arg0, %c0_i32 : i32, i32
  }
  func.func @transform_1(%arg0: i32) -> (i32, i32) {
    %c0_i32 = arith.constant 0 : i32
    %c0_i32_0 = arith.constant 0 : i32
    %c0_i32_1 = arith.constant 0 : i32
    return %c0_i32, %c0_i32_0 : i32, i32
  }
  func.func @transform_2(%arg0: i32) -> (i32, i32) {
    %c0_i32 = arith.constant 0 : i32
    %c0_i32_0 = arith.constant 0 : i32
    %c0_i32_1 = arith.constant 0 : i32
    return %c0_i32, %c0_i32_0 : i32, i32
  }
  func.func @transform_3(%arg0: i32) -> (i32, i32) {
    %c0_i32 = arith.constant 0 : i32
    %c0_i32_0 = arith.constant 0 : i32
    %c0_i32_1 = arith.constant 0 : i32
    return %c0_i32, %c0_i32_0 : i32, i32
  }
  func.func @transform_4(%arg0: i32) -> (i32, i32) {
    %c0_i32 = arith.constant 0 : i32
    %c0_i32_0 = arith.constant 0 : i32
    %c0_i32_1 = arith.constant 0 : i32
    return %c0_i32, %c0_i32_0 : i32, i32
  }
  func.func @transform_5(%arg0: i32) -> (i32, i32) {
    %c0_i32 = arith.constant 0 : i32
    %c0_i32_0 = arith.constant 0 : i32
    return %arg0, %c0_i32 : i32, i32
  }
  func.func @transform_6(%arg0: i32) -> (i32, i32) {
    %c0_i32 = arith.constant 0 : i32
    %c0_i32_0 = arith.constant 0 : i32
    return %arg0, %c0_i32 : i32, i32
  }
}

module attributes {stable_mosaic.version = 11 : i64} {
  func.func @kernel(%arg0: i32, %arg1: memref<16x16xbf16, #tpu.memory_space<vmem>>, %arg2: memref<16x32xbf16, #tpu.memory_space<vmem>>, %arg3: memref<1x32xf32, #tpu.memory_space<vmem>>, %arg4: memref<16x32xbf16, #tpu.memory_space<vmem>>) attributes {dimension_semantics = [#tpu.dimension_semantics<parallel>], iteration_bounds = array<i64: 1>, scalar_prefetch = 0 : i64, scratch_operands = 0 : i64, tpu.core_type = #tpu.core_type<tc>, window_params = [{transform_indices = @transform_0, window_bounds = array<i64: 16, 16>}, {pipeline_mode = #tpu.pipeline_mode<synchronous>, transform_indices = @transform_1, window_bounds = array<i64: 16, 32>}, {pipeline_mode = #tpu.pipeline_mode<synchronous>, transform_indices = @transform_2, window_bounds = array<i64: 1, 32>}, {transform_indices = @transform_3, window_bounds = array<i64: 16, 32>}]} {
    %c0 = arith.constant 0 : index
    %c0_0 = arith.constant 0 : index
    %0 = vector.load %arg1[%c0, %c0_0] : memref<16x16xbf16, #tpu.memory_space<vmem>>, vector<16x16xbf16>
    %c0_1 = arith.constant 0 : index
    %c0_2 = arith.constant 0 : index
    %1 = vector.load %arg2[%c0_1, %c0_2] : memref<16x32xbf16, #tpu.memory_space<vmem>>, vector<16x32xbf16>
    %cst = arith.constant dense<0.000000e+00> : vector<16x32xf32>
    %2 = tpu.matmul %0, %1, %cst {dimension_numbers = #tpu.dot_dimension_numbers<[1], [0], [0], [1], [0, 0, 1, 1], [], []>} : vector<16x16xbf16>, vector<16x32xbf16>, vector<16x32xf32> -> vector<16x32xf32>
    %c0_3 = arith.constant 0 : index
    %c0_4 = arith.constant 0 : index
    %3 = vector.load %arg3[%c0_3, %c0_4] : memref<1x32xf32, #tpu.memory_space<vmem>>, vector<1x32xf32>
    %4 = vector.broadcast %3 : vector<1x32xf32> to vector<16x32xf32>
    %5 = arith.addf %2, %4 : vector<16x32xf32>
    %6 = arith.truncf %5 : vector<16x32xf32> to vector<16x32xbf16>
    %c0_5 = arith.constant 0 : index
    %c0_6 = arith.constant 0 : index
    %7 = vector.load %arg4[%c0_5, %c0_6] : memref<16x32xbf16, #tpu.memory_space<vmem>>, vector<16x32xbf16>
    tpu.vector_store %arg4[%c0_5, %c0_6], %6 {strides = array<i32>} : memref<16x32xbf16, #tpu.memory_space<vmem>>, vector<16x32xbf16>,
    return
  }
  func.func @transform_0(%arg0: i32) -> (i32, i32) {
    %c0_i32 = arith.constant 0 : i32
    %c0_i32_0 = arith.constant 0 : i32
    return %arg0, %c0_i32 : i32, i32
  }
  func.func @transform_1(%arg0: i32) -> (i32, i32) {
    %c0_i32 = arith.constant 0 : i32
    %c0_i32_0 = arith.constant 0 : i32
    %c0_i32_1 = arith.constant 0 : i32
    return %c0_i32, %c0_i32_0 : i32, i32
  }
  func.func @transform_2(%arg0: i32) -> (i32, i32) {
    %c0_i32 = arith.constant 0 : i32
    %c0_i32_0 = arith.constant 0 : i32
    %c0_i32_1 = arith.constant 0 : i32
    return %c0_i32, %c0_i32_0 : i32, i32
  }
  func.func @transform_3(%arg0: i32) -> (i32, i32) {
    %c0_i32 = arith.constant 0 : i32
    %c0_i32_0 = arith.constant 0 : i32
    return %arg0, %c0_i32 : i32, i32
  }
}

module attributes {stable_mosaic.version = 11 : i64} {
  func.func @kernel(%arg0: i32, %arg1: memref<1xi32, #tpu.memory_space<smem>>, %arg2: memref<1x1x16xbf16, #tpu.memory_space<vmem>>, %arg3: memref<1x6x16xbf16, #tpu.memory_space<vmem>>, %arg4: memref<1x6x16xbf16, #tpu.memory_space<vmem>>, %arg5: memref<1x8x16xbf16, #tpu.memory_space<vmem>>, %arg6: memref<1x8x16xbf16, #tpu.memory_space<vmem>>, %arg7: memref<1x16xf32, #tpu.memory_space<vmem>>, %arg8: memref<1x16xf32, #tpu.memory_space<vmem>>, %arg9: memref<16x48xbf16, #tpu.memory_space<vmem>>, %arg10: memref<1x48xf32, #tpu.memory_space<vmem>>, %arg11: memref<16x16xbf16, #tpu.memory_space<vmem>>, %arg12: memref<1x16xf32, #tpu.memory_space<vmem>>, %arg13: memref<1x16xf32, #tpu.memory_space<vmem>>, %arg14: memref<1x16xf32, #tpu.memory_space<vmem>>, %arg15: memref<16x16xbf16, #tpu.memory_space<vmem>>, %arg16: memref<1x16xf32, #tpu.memory_space<vmem>>, %arg17: memref<16x16xbf16, #tpu.memory_space<vmem>>, %arg18: memref<1x16xf32, #tpu.memory_space<vmem>>, %arg19: memref<1x16xf32, #tpu.memory_space<vmem>>, %arg20: memref<1x16xf32, #tpu.memory_space<vmem>>, %arg21: memref<16x64xbf16, #tpu.memory_space<vmem>>, %arg22: memref<1x64xf32, #tpu.memory_space<vmem>>, %arg23: memref<64x16xbf16, #tpu.memory_space<vmem>>, %arg24: memref<1x16xf32, #tpu.memory_space<vmem>>, %arg25: memref<1x16xf32, #tpu.memory_space<vmem>>, %arg26: memref<1x16xf32, #tpu.memory_space<vmem>>, %arg27: memref<16x16xbf16, #tpu.memory_space<vmem>>, %arg28: memref<1x16xf32, #tpu.memory_space<vmem>>, %arg29: memref<1x1x16xf32, #tpu.memory_space<vmem>>, %arg30: memref<1x1x16xbf16, #tpu.memory_space<vmem>>, %arg31: memref<1x1x16xbf16, #tpu.memory_space<vmem>>) attributes {dimension_semantics = [#tpu.dimension_semantics<parallel>], iteration_bounds = array<i64: 2>, scalar_prefetch = 1 : i64, scratch_operands = 0 : i64, tpu.core_type = #tpu.core_type<tc>, window_params = [{transform_indices = @transform_0, window_bounds = array<i64: 1, 1, 16>}, {transform_indices = @transform_1, window_bounds = array<i64: 1, 6, 16>}, {transform_indices = @transform_2, window_bounds = array<i64: 1, 6, 16>}, {transform_indices = @transform_3, window_bounds = array<i64: 1, 8, 16>}, {transform_indices = @transform_4, window_bounds = array<i64: 1, 8, 16>}, {pipeline_mode = #tpu.pipeline_mode<synchronous>, transform_indices = @transform_5, window_bounds = array<i64: 1, 16>}, {pipeline_mode = #tpu.pipeline_mode<synchronous>, transform_indices = @transform_6, window_bounds = array<i64: 1, 16>}, {pipeline_mode = #tpu.pipeline_mode<synchronous>, transform_indices = @transform_7, window_bounds = array<i64: 16, 48>}, {pipeline_mode = #tpu.pipeline_mode<synchronous>, transform_indices = @transform_8, window_bounds = array<i64: 1, 48>}, {pipeline_mode = #tpu.pipeline_mode<synchronous>, transform_indices = @transform_9, window_bounds = array<i64: 16, 16>}, {pipeline_mode = #tpu.pipeline_mode<synchronous>, transform_indices = @transform_10, window_bounds = array<i64: 1, 16>}, {pipeline_mode = #tpu.pipeline_mode<synchronous>, transform_indices = @transform_11, window_bounds = array<i64: 1, 16>}, {pipeline_mode = #tpu.pipeline_mode<synchronous>, transform_indices = @transform_12, window_bounds = array<i64: 1, 16>}, {pipeline_mode = #tpu.pipeline_mode<synchronous>, transform_indices = @transform_13, window_bounds = array<i64: 16, 16>}, {pipeline_mode = #tpu.pipeline_mode<synchronous>, transform_indices = @transform_14, window_bounds = array<i64: 1, 16>}, {pipeline_mode = #tpu.pipeline_mode<synchronous>, transform_indices = @transform_15, window_bounds = array<i64: 16, 16>}, {pipeline_mode = #tpu.pipeline_mode<synchronous>, transform_indices = @transform_16, window_bounds = array<i64: 1, 16>}, {pipeline_mode = #tpu.pipeline_mode<synchronous>, transform_indices = @transform_17, window_bounds = array<i64: 1, 16>}, {pipeline_mode = #tpu.pipeline_mode<synchronous>, transform_indices = @transform_18, window_bounds = array<i64: 1, 16>}, {pipeline_mode = #tpu.pipeline_mode<synchronous>, transform_indices = @transform_19, window_bounds = array<i64: 16, 64>}, {pipeline_mode = #tpu.pipeline_mode<synchronous>, transform_indices = @transform_20, window_bounds = array<i64: 1, 64>}, {pipeline_mode = #tpu.pipeline_mode<synchronous>, transform_indices = @transform_21, window_bounds = array<i64: 64, 16>}, {pipeline_mode = #tpu.pipeline_mode<synchronous>, transform_indices = @transform_22, window_bounds = array<i64: 1, 16>}, {pipeline_mode = #tpu.pipeline_mode<synchronous>, transform_indices = @transform_23, window_bounds = array<i64: 1, 16>}, {pipeline_mode = #tpu.pipeline_mode<synchronous>, transform_indices = @transform_24, window_bounds = array<i64: 1, 16>}, {pipeline_mode = #tpu.pipeline_mode<synchronous>, transform_indices = @transform_25, window_bounds = array<i64: 16, 16>}, {pipeline_mode = #tpu.pipeline_mode<synchronous>, transform_indices = @transform_26, window_bounds = array<i64: 1, 16>}, {transform_indices = @transform_27, window_bounds = array<i64: 1, 1, 16>}, {transform_indices = @transform_28, window_bounds = array<i64: 1, 1, 16>}, {transform_indices = @transform_29, window_bounds = array<i64: 1, 1, 16>}]} {
    %c0 = arith.constant 0 : index
    %0 = memref.load %arg1[%c0] : memref<1xi32, #tpu.memory_space<smem>>
    %c0_0 = arith.constant 0 : index
    %c0_1 = arith.constant 0 : index
    %c0_2 = arith.constant 0 : index
    %1 = vector.load %arg2[%c0_0, %c0_1, %c0_2] : memref<1x1x16xbf16, #tpu.memory_space<vmem>>, vector<1x1x16xbf16>
    %2 = vector.shape_cast %1 : vector<1x1x16xbf16> to vector<1x16xbf16>
    %3 = arith.extf %2 : vector<1x16xbf16> to vector<1x16xf32>
    %c0_3 = arith.constant 0 : index
    %c0_4 = arith.constant 0 : index
    %4 = vector.load %arg7[%c0_3, %c0_4] : memref<1x16xf32, #tpu.memory_space<vmem>>, vector<1x16xf32>
    %c0_5 = arith.constant 0 : index
    %c0_6 = arith.constant 0 : index
    %5 = vector.load %arg8[%c0_5, %c0_6] : memref<1x16xf32, #tpu.memory_space<vmem>>, vector<1x16xf32>
    %cst = arith.constant dense<0.000000e+00> : vector<1xf32>
    %6 = vector.multi_reduction <add>, %3, %cst [1] : vector<1x16xf32> to vector<1xf32>
    %7 = vector.shape_cast %6 : vector<1xf32> to vector<1x1xf32>
    %cst_7 = arith.constant 1.600000e+01 : f32
    %8 = vector.broadcast %cst_7 : f32 to vector<1x1xf32>
    %9 = arith.divf %7, %8 : vector<1x1xf32>
    %10 = vector.broadcast %9 : vector<1x1xf32> to vector<1x16xf32>
    %11 = arith.subf %3, %10 : vector<1x16xf32>
    %12 = arith.mulf %11, %11 : vector<1x16xf32>
    %cst_8 = arith.constant dense<0.000000e+00> : vector<1xf32>
    %13 = vector.multi_reduction <add>, %12, %cst_8 [1] : vector<1x16xf32> to vector<1xf32>
    %14 = vector.shape_cast %13 : vector<1xf32> to vector<1x1xf32>
    %cst_9 = arith.constant 1.600000e+01 : f32
    %15 = vector.broadcast %cst_9 : f32 to vector<1x1xf32>
    %16 = arith.divf %14, %15 : vector<1x1xf32>
    %17 = vector.broadcast %9 : vector<1x1xf32> to vector<1x16xf32>
    %18 = arith.subf %3, %17 : vector<1x16xf32>
    %cst_10 = arith.constant 9.99999974E-6 : f32
    %19 = vector.broadcast %cst_10 : f32 to vector<1x1xf32>
    %20 = arith.addf %16, %19 : vector<1x1xf32>
    %21 = math.rsqrt %20 : vector<1x1xf32>
    %22 = vector.broadcast %21 : vector<1x1xf32> to vector<1x16xf32>
    %23 = arith.mulf %18, %22 : vector<1x16xf32>
    %24 = arith.mulf %23, %4 : vector<1x16xf32>
    %25 = arith.addf %24, %5 : vector<1x16xf32>
    %26 = arith.truncf %25 : vector<1x16xf32> to vector<1x16xbf16>
    %c0_11 = arith.constant 0 : index
    %c0_12 = arith.constant 0 : index
    %27 = vector.load %arg9[%c0_11, %c0_12] : memref<16x48xbf16, #tpu.memory_space<vmem>>, vector<16x48xbf16>
    %cst_13 = arith.constant dense<0.000000e+00> : vector<1x48xf32>
    %28 = tpu.matmul %26, %27, %cst_13 {dimension_numbers = #tpu.dot_dimension_numbers<[1], [0], [0], [1], [0, 0, 1, 1], [], []>} : vector<1x16xbf16>, vector<16x48xbf16>, vector<1x48xf32> -> vector<1x48xf32>
    %c0_14 = arith.constant 0 : index
    %c0_15 = arith.constant 0 : index
    %29 = vector.load %arg10[%c0_14, %c0_15] : memref<1x48xf32, #tpu.memory_space<vmem>>, vector<1x48xf32>
    %30 = arith.addf %28, %29 : vector<1x48xf32>
    %31 = vector.extract_strided_slice %30 {offsets = [0, 0], sizes = [1, 16], strides = [1, 1]} : vector<1x48xf32> to vector<1x16xf32>
    %32 = vector.extract_strided_slice %30 {offsets = [0, 16], sizes = [1, 16], strides = [1, 1]} : vector<1x48xf32> to vector<1x16xf32>
    %33 = vector.extract_strided_slice %30 {offsets = [0, 32], sizes = [1, 16], strides = [1, 1]} : vector<1x48xf32> to vector<1x16xf32>
    %34 = arith.truncf %32 : vector<1x16xf32> to vector<1x16xbf16>
    %c0_16 = arith.constant 0 : index
    %c0_17 = arith.constant 0 : index
    %c0_18 = arith.constant 0 : index
    %35 = vector.load %arg30[%c0_16, %c0_17, %c0_18] : memref<1x1x16xbf16, #tpu.memory_space<vmem>>, vector<1x1x16xbf16>
    %36 = vector.shape_cast %35 : vector<1x1x16xbf16> to vector<1x16xbf16>
    %37 = vector.shape_cast %34 : vector<1x16xbf16> to vector<1x1x16xbf16>
    tpu.vector_store %arg30[%c0_16, %c0_17, %c0_18], %37 {strides = array<i32>} : memref<1x1x16xbf16, #tpu.memory_space<vmem>>, vector<1x1x16xbf16>,
    %38 = arith.truncf %33 : vector<1x16xf32> to vector<1x16xbf16>
    %c0_19 = arith.constant 0 : index
    %c0_20 = arith.constant 0 : index
    %c0_21 = arith.constant 0 : index
    %39 = vector.load %arg31[%c0_19, %c0_20, %c0_21] : memref<1x1x16xbf16, #tpu.memory_space<vmem>>, vector<1x1x16xbf16>
    %40 = vector.shape_cast %39 : vector<1x1x16xbf16> to vector<1x16xbf16>
    %41 = vector.shape_cast %38 : vector<1x16xbf16> to vector<1x1x16xbf16>
    tpu.vector_store %arg31[%c0_19, %c0_20, %c0_21], %41 {strides = array<i32>} : memref<1x1x16xbf16, #tpu.memory_space<vmem>>, vector<1x1x16xbf16>,
    %c0_22 = arith.constant 0 : index
    %c0_23 = arith.constant 0 : index
    %c0_24 = arith.constant 0 : index
    %42 = vector.load %arg3[%c0_22, %c0_23, %c0_24] : memref<1x6x16xbf16, #tpu.memory_space<vmem>>, vector<1x6x16xbf16>
    %43 = vector.shape_cast %42 : vector<1x6x16xbf16> to vector<6x16xbf16>
    %c0_25 = arith.constant 0 : index
    %c0_26 = arith.constant 0 : index
    %c0_27 = arith.constant 0 : index
    %44 = vector.load %arg4[%c0_25, %c0_26, %c0_27] : memref<1x6x16xbf16, #tpu.memory_space<vmem>>, vector<1x6x16xbf16>
    %45 = vector.shape_cast %44 : vector<1x6x16xbf16> to vector<6x16xbf16>
    %46 = tpu.iota {dimensions = array<i32: 1>} : vector<1x6xi32>
    %47 = vector.broadcast %0 : i32 to vector<1x6xi32>
    %48 = arith.cmpi slt, %46, %47 : vector<1x6xi32>
    %49 = vector.extract_strided_slice %31 {offsets = [0, 0], sizes = [1, 8], strides = [1, 1]} : vector<1x16xf32> to vector<1x8xf32>
    %50 = arith.truncf %49 : vector<1x8xf32> to vector<1x8xbf16>
    %51 = vector.extract_strided_slice %43 {offsets = [0, 0], sizes = [6, 8], strides = [1, 1]} : vector<6x16xbf16> to vector<6x8xbf16>
    %cst_28 = arith.constant dense<0.000000e+00> : vector<1x6xf32>
    %52 = tpu.matmul %50, %51, %cst_28 {dimension_numbers = #tpu.dot_dimension_numbers<[1], [1], [0], [0], [0, 0, 1, 0], [], []>} : vector<1x8xbf16>, vector<6x8xbf16>, vector<1x6xf32> -> vector<1x6xf32>
    %cst_29 = arith.constant 0.353553385 : f32
    %53 = vector.broadcast %cst_29 : f32 to vector<1x6xf32>
    %54 = arith.mulf %52, %53 : vector<1x6xf32>
    %cst_30 = arith.constant -1.000000e+09 : f32
    %55 = vector.broadcast %cst_30 : f32 to vector<1x6xf32>
    %56 = arith.select %48, %54, %55 : vector<1x6xi1>, vector<1x6xf32>
    %57 = vector.extract_strided_slice %31 {offsets = [0, 0], sizes = [1, 8], strides = [1, 1]} : vector<1x16xf32> to vector<1x8xf32>
    %58 = vector.extract_strided_slice %32 {offsets = [0, 0], sizes = [1, 8], strides = [1, 1]} : vector<1x16xf32> to vector<1x8xf32>
    %59 = arith.mulf %57, %58 : vector<1x8xf32>
    %cst_31 = arith.constant dense<0.000000e+00> : vector<1xf32>
    %60 = vector.multi_reduction <add>, %59, %cst_31 [1] : vector<1x8xf32> to vector<1xf32>
    %61 = vector.shape_cast %60 : vector<1xf32> to vector<1x1xf32>
    %cst_32 = arith.constant 0.353553385 : f32
    %62 = vector.broadcast %cst_32 : f32 to vector<1x1xf32>
    %63 = arith.mulf %61, %62 : vector<1x1xf32>
    %64 = tpu.concatenate %56, %63 in 1 : vector<1x6xf32>, vector<1x1xf32> -> vector<1x7xf32>
    %cst_33 = arith.constant dense<0xFF800000> : vector<1xf32>
    %65 = vector.multi_reduction <maximumf>, %64, %cst_33 [1] : vector<1x7xf32> to vector<1xf32>
    %66 = vector.shape_cast %65 : vector<1xf32> to vector<1x1xf32>
    %67 = vector.broadcast %66 : vector<1x1xf32> to vector<1x7xf32>
    %68 = arith.subf %64, %67 : vector<1x7xf32>
    %69 = math.exp %68 : vector<1x7xf32>
    %cst_34 = arith.constant dense<0.000000e+00> : vector<1xf32>
    %70 = vector.multi_reduction <add>, %69, %cst_34 [1] : vector<1x7xf32> to vector<1xf32>
    %71 = vector.shape_cast %70 : vector<1xf32> to vector<1x1xf32>
    %72 = vector.broadcast %71 : vector<1x1xf32> to vector<1x7xf32>
    %73 = arith.divf %69, %72 : vector<1x7xf32>
    %74 = vector.extract_strided_slice %73 {offsets = [0, 0], sizes = [1, 6], strides = [1, 1]} : vector<1x7xf32> to vector<1x6xf32>
    %75 = arith.truncf %74 : vector<1x6xf32> to vector<1x6xbf16>
    %76 = vector.extract_strided_slice %45 {offsets = [0, 0], sizes = [6, 8], strides = [1, 1]} : vector<6x16xbf16> to vector<6x8xbf16>
    %cst_35 = arith.constant dense<0.000000e+00> : vector<1x8xf32>
    %77 = tpu.matmul %75, %76, %cst_35 {dimension_numbers = #tpu.dot_dimension_numbers<[1], [0], [0], [1], [0, 0, 1, 1], [], []>} : vector<1x6xbf16>, vector<6x8xbf16>, vector<1x8xf32> -> vector<1x8xf32>
    %78 = vector.extract_strided_slice %73 {offsets = [0, 6], sizes = [1, 1], strides = [1, 1]} : vector<1x7xf32> to vector<1x1xf32>
    %79 = vector.extract_strided_slice %33 {offsets = [0, 0], sizes = [1, 8], strides = [1, 1]} : vector<1x16xf32> to vector<1x8xf32>
    %80 = vector.broadcast %78 : vector<1x1xf32> to vector<1x8xf32>
    %81 = arith.mulf %80, %79 : vector<1x8xf32>
    %82 = arith.addf %77, %81 : vector<1x8xf32>
    %83 = vector.extract_strided_slice %31 {offsets = [0, 8], sizes = [1, 8], strides = [1, 1]} : vector<1x16xf32> to vector<1x8xf32>
    %84 = arith.truncf %83 : vector<1x8xf32> to vector<1x8xbf16>
    %85 = vector.extract_strided_slice %43 {offsets = [0, 8], sizes = [6, 8], strides = [1, 1]} : vector<6x16xbf16> to vector<6x8xbf16>
    %cst_36 = arith.constant dense<0.000000e+00> : vector<1x6xf32>
    %86 = tpu.matmul %84, %85, %cst_36 {dimension_numbers = #tpu.dot_dimension_numbers<[1], [1], [0], [0], [0, 0, 1, 0], [], []>} : vector<1x8xbf16>, vector<6x8xbf16>, vector<1x6xf32> -> vector<1x6xf32>
    %cst_37 = arith.constant 0.353553385 : f32
    %87 = vector.broadcast %cst_37 : f32 to vector<1x6xf32>
    %88 = arith.mulf %86, %87 : vector<1x6xf32>
    %cst_38 = arith.constant -1.000000e+09 : f32
    %89 = vector.broadcast %cst_38 : f32 to vector<1x6xf32>
    %90 = arith.select %48, %88, %89 : vector<1x6xi1>, vector<1x6xf32>
    %91 = vector.extract_strided_slice %31 {offsets = [0, 8], sizes = [1, 8], strides = [1, 1]} : vector<1x16xf32> to vector<1x8xf32>
    %92 = vector.extract_strided_slice %32 {offsets = [0, 8], sizes = [1, 8], strides = [1, 1]} : vector<1x16xf32> to vector<1x8xf32>
    %93 = arith.mulf %91, %92 : vector<1x8xf32>
    %cst_39 = arith.constant dense<0.000000e+00> : vector<1xf32>
    %94 = vector.multi_reduction <add>, %93, %cst_39 [1] : vector<1x8xf32> to vector<1xf32>
    %95 = vector.shape_cast %94 : vector<1xf32> to vector<1x1xf32>
    %cst_40 = arith.constant 0.353553385 : f32
    %96 = vector.broadcast %cst_40 : f32 to vector<1x1xf32>
    %97 = arith.mulf %95, %96 : vector<1x1xf32>
    %98 = tpu.concatenate %90, %97 in 1 : vector<1x6xf32>, vector<1x1xf32> -> vector<1x7xf32>
    %cst_41 = arith.constant dense<0xFF800000> : vector<1xf32>
    %99 = vector.multi_reduction <maximumf>, %98, %cst_41 [1] : vector<1x7xf32> to vector<1xf32>
    %100 = vector.shape_cast %99 : vector<1xf32> to vector<1x1xf32>
    %101 = vector.broadcast %100 : vector<1x1xf32> to vector<1x7xf32>
    %102 = arith.subf %98, %101 : vector<1x7xf32>
    %103 = math.exp %102 : vector<1x7xf32>
    %cst_42 = arith.constant dense<0.000000e+00> : vector<1xf32>
    %104 = vector.multi_reduction <add>, %103, %cst_42 [1] : vector<1x7xf32> to vector<1xf32>
    %105 = vector.shape_cast %104 : vector<1xf32> to vector<1x1xf32>
    %106 = vector.broadcast %105 : vector<1x1xf32> to vector<1x7xf32>
    %107 = arith.divf %103, %106 : vector<1x7xf32>
    %108 = vector.extract_strided_slice %107 {offsets = [0, 0], sizes = [1, 6], strides = [1, 1]} : vector<1x7xf32> to vector<1x6xf32>
    %109 = arith.truncf %108 : vector<1x6xf32> to vector<1x6xbf16>
    %110 = vector.extract_strided_slice %45 {offsets = [0, 8], sizes = [6, 8], strides = [1, 1]} : vector<6x16xbf16> to vector<6x8xbf16>
    %cst_43 = arith.constant dense<0.000000e+00> : vector<1x8xf32>
    %111 = tpu.matmul %109, %110, %cst_43 {dimension_numbers = #tpu.dot_dimension_numbers<[1], [0], [0], [1], [0, 0, 1, 1], [], []>} : vector<1x6xbf16>, vector<6x8xbf16>, vector<1x8xf32> -> vector<1x8xf32>
    %112 = vector.extract_strided_slice %107 {offsets = [0, 6], sizes = [1, 1], strides = [1, 1]} : vector<1x7xf32> to vector<1x1xf32>
    %113 = vector.extract_strided_slice %33 {offsets = [0, 8], sizes = [1, 8], strides = [1, 1]} : vector<1x16xf32> to vector<1x8xf32>
    %114 = vector.broadcast %112 : vector<1x1xf32> to vector<1x8xf32>
    %115 = arith.mulf %114, %113 : vector<1x8xf32>
    %116 = arith.addf %111, %115 : vector<1x8xf32>
    %117 = tpu.concatenate %82, %116 in 1 : vector<1x8xf32>, vector<1x8xf32> -> vector<1x16xf32>
    %118 = arith.truncf %117 : vector<1x16xf32> to vector<1x16xbf16>
    %c0_44 = arith.constant 0 : index
    %c0_45 = arith.constant 0 : index
    %119 = vector.load %arg11[%c0_44, %c0_45] : memref<16x16xbf16, #tpu.memory_space<vmem>>, vector<16x16xbf16>
    %cst_46 = arith.constant dense<0.000000e+00> : vector<1x16xf32>
    %120 = tpu.matmul %118, %119, %cst_46 {dimension_numbers = #tpu.dot_dimension_numbers<[1], [0], [0], [1], [0, 0, 1, 1], [], []>} : vector<1x16xbf16>, vector<16x16xbf16>, vector<1x16xf32> -> vector<1x16xf32>
    %121 = arith.addf %3, %120 : vector<1x16xf32>
    %c0_47 = arith.constant 0 : index
    %c0_48 = arith.constant 0 : index
    %122 = vector.load %arg12[%c0_47, %c0_48] : memref<1x16xf32, #tpu.memory_space<vmem>>, vector<1x16xf32>
    %123 = arith.addf %121, %122 : vector<1x16xf32>
    %c0_49 = arith.constant 0 : index
    %c0_50 = arith.constant 0 : index
    %124 = vector.load %arg13[%c0_49, %c0_50] : memref<1x16xf32, #tpu.memory_space<vmem>>, vector<1x16xf32>
    %c0_51 = arith.constant 0 : index
    %c0_52 = arith.constant 0 : index
    %125 = vector.load %arg14[%c0_51, %c0_52] : memref<1x16xf32, #tpu.memory_space<vmem>>, vector<1x16xf32>
    %cst_53 = arith.constant dense<0.000000e+00> : vector<1xf32>
    %126 = vector.multi_reduction <add>, %123, %cst_53 [1] : vector<1x16xf32> to vector<1xf32>
    %127 = vector.shape_cast %126 : vector<1xf32> to vector<1x1xf32>
    %cst_54 = arith.constant 1.600000e+01 : f32
    %128 = vector.broadcast %cst_54 : f32 to vector<1x1xf32>
    %129 = arith.divf %127, %128 : vector<1x1xf32>
    %130 = vector.broadcast %129 : vector<1x1xf32> to vector<1x16xf32>
    %131 = arith.subf %123, %130 : vector<1x16xf32>
    %132 = arith.mulf %131, %131 : vector<1x16xf32>
    %cst_55 = arith.constant dense<0.000000e+00> : vector<1xf32>
    %133 = vector.multi_reduction <add>, %132, %cst_55 [1] : vector<1x16xf32> to vector<1xf32>
    %134 = vector.shape_cast %133 : vector<1xf32> to vector<1x1xf32>
    %cst_56 = arith.constant 1.600000e+01 : f32
    %135 = vector.broadcast %cst_56 : f32 to vector<1x1xf32>
    %136 = arith.divf %134, %135 : vector<1x1xf32>
    %137 = vector.broadcast %129 : vector<1x1xf32> to vector<1x16xf32>
    %138 = arith.subf %123, %137 : vector<1x16xf32>
    %cst_57 = arith.constant 9.99999974E-6 : f32
    %139 = vector.broadcast %cst_57 : f32 to vector<1x1xf32>
    %140 = arith.addf %136, %139 : vector<1x1xf32>
    %141 = math.rsqrt %140 : vector<1x1xf32>
    %142 = vector.broadcast %141 : vector<1x1xf32> to vector<1x16xf32>
    %143 = arith.mulf %138, %142 : vector<1x16xf32>
    %144 = arith.mulf %143, %124 : vector<1x16xf32>
    %145 = arith.addf %144, %125 : vector<1x16xf32>
    %146 = arith.truncf %145 : vector<1x16xf32> to vector<1x16xbf16>
    %c0_58 = arith.constant 0 : index
    %c0_59 = arith.constant 0 : index
    %147 = vector.load %arg15[%c0_58, %c0_59] : memref<16x16xbf16, #tpu.memory_space<vmem>>, vector<16x16xbf16>
    %cst_60 = arith.constant dense<0.000000e+00> : vector<1x16xf32>
    %148 = tpu.matmul %146, %147, %cst_60 {dimension_numbers = #tpu.dot_dimension_numbers<[1], [0], [0], [1], [0, 0, 1, 1], [], []>} : vector<1x16xbf16>, vector<16x16xbf16>, vector<1x16xf32> -> vector<1x16xf32>
    %c0_61 = arith.constant 0 : index
    %c0_62 = arith.constant 0 : index
    %149 = vector.load %arg16[%c0_61, %c0_62] : memref<1x16xf32, #tpu.memory_space<vmem>>, vector<1x16xf32>
    %150 = arith.addf %148, %149 : vector<1x16xf32>
    %c0_63 = arith.constant 0 : index
    %c0_64 = arith.constant 0 : index
    %c0_65 = arith.constant 0 : index
    %151 = vector.load %arg5[%c0_63, %c0_64, %c0_65] : memref<1x8x16xbf16, #tpu.memory_space<vmem>>, vector<1x8x16xbf16>
    %152 = vector.shape_cast %151 : vector<1x8x16xbf16> to vector<8x16xbf16>
    %c0_66 = arith.constant 0 : index
    %c0_67 = arith.constant 0 : index
    %c0_68 = arith.constant 0 : index
    %153 = vector.load %arg6[%c0_66, %c0_67, %c0_68] : memref<1x8x16xbf16, #tpu.memory_space<vmem>>, vector<1x8x16xbf16>
    %154 = vector.shape_cast %153 : vector<1x8x16xbf16> to vector<8x16xbf16>
    %155 = vector.extract_strided_slice %150 {offsets = [0, 0], sizes = [1, 8], strides = [1, 1]} : vector<1x16xf32> to vector<1x8xf32>
    %156 = arith.truncf %155 : vector<1x8xf32> to vector<1x8xbf16>
    %157 = vector.extract_strided_slice %152 {offsets = [0, 0], sizes = [8, 8], strides = [1, 1]} : vector<8x16xbf16> to vector<8x8xbf16>
    %cst_69 = arith.constant dense<0.000000e+00> : vector<1x8xf32>
    %158 = tpu.matmul %156, %157, %cst_69 {dimension_numbers = #tpu.dot_dimension_numbers<[1], [1], [0], [0], [0, 0, 1, 0], [], []>} : vector<1x8xbf16>, vector<8x8xbf16>, vector<1x8xf32> -> vector<1x8xf32>
    %cst_70 = arith.constant 0.353553385 : f32
    %159 = vector.broadcast %cst_70 : f32 to vector<1x8xf32>
    %160 = arith.mulf %158, %159 : vector<1x8xf32>
    %cst_71 = arith.constant dense<0xFF800000> : vector<1xf32>
    %161 = vector.multi_reduction <maximumf>, %160, %cst_71 [1] : vector<1x8xf32> to vector<1xf32>
    %162 = vector.shape_cast %161 : vector<1xf32> to vector<1x1xf32>
    %163 = vector.broadcast %162 : vector<1x1xf32> to vector<1x8xf32>
    %164 = arith.subf %160, %163 : vector<1x8xf32>
    %165 = math.exp %164 : vector<1x8xf32>
    %cst_72 = arith.constant dense<0.000000e+00> : vector<1xf32>
    %166 = vector.multi_reduction <add>, %165, %cst_72 [1] : vector<1x8xf32> to vector<1xf32>
    %167 = vector.shape_cast %166 : vector<1xf32> to vector<1x1xf32>
    %168 = vector.broadcast %167 : vector<1x1xf32> to vector<1x8xf32>
    %169 = arith.divf %165, %168 : vector<1x8xf32>
    %170 = arith.truncf %169 : vector<1x8xf32> to vector<1x8xbf16>
    %171 = vector.extract_strided_slice %154 {offsets = [0, 0], sizes = [8, 8], strides = [1, 1]} : vector<8x16xbf16> to vector<8x8xbf16>
    %cst_73 = arith.constant dense<0.000000e+00> : vector<1x8xf32>
    %172 = tpu.matmul %170, %171, %cst_73 {dimension_numbers = #tpu.dot_dimension_numbers<[1], [0], [0], [1], [0, 0, 1, 1], [], []>} : vector<1x8xbf16>, vector<8x8xbf16>, vector<1x8xf32> -> vector<1x8xf32>
    %173 = vector.extract_strided_slice %150 {offsets = [0, 8], sizes = [1, 8], strides = [1, 1]} : vector<1x16xf32> to vector<1x8xf32>
    %174 = arith.truncf %173 : vector<1x8xf32> to vector<1x8xbf16>
    %175 = vector.extract_strided_slice %152 {offsets = [0, 8], sizes = [8, 8], strides = [1, 1]} : vector<8x16xbf16> to vector<8x8xbf16>
    %cst_74 = arith.constant dense<0.000000e+00> : vector<1x8xf32>
    %176 = tpu.matmul %174, %175, %cst_74 {dimension_numbers = #tpu.dot_dimension_numbers<[1], [1], [0], [0], [0, 0, 1, 0], [], []>} : vector<1x8xbf16>, vector<8x8xbf16>, vector<1x8xf32> -> vector<1x8xf32>
    %cst_75 = arith.constant 0.353553385 : f32
    %177 = vector.broadcast %cst_75 : f32 to vector<1x8xf32>
    %178 = arith.mulf %176, %177 : vector<1x8xf32>
    %cst_76 = arith.constant dense<0xFF800000> : vector<1xf32>
    %179 = vector.multi_reduction <maximumf>, %178, %cst_76 [1] : vector<1x8xf32> to vector<1xf32>
    %180 = vector.shape_cast %179 : vector<1xf32> to vector<1x1xf32>
    %181 = vector.broadcast %180 : vector<1x1xf32> to vector<1x8xf32>
    %182 = arith.subf %178, %181 : vector<1x8xf32>
    %183 = math.exp %182 : vector<1x8xf32>
    %cst_77 = arith.constant dense<0.000000e+00> : vector<1xf32>
    %184 = vector.multi_reduction <add>, %183, %cst_77 [1] : vector<1x8xf32> to vector<1xf32>
    %185 = vector.shape_cast %184 : vector<1xf32> to vector<1x1xf32>
    %186 = vector.broadcast %185 : vector<1x1xf32> to vector<1x8xf32>
    %187 = arith.divf %183, %186 : vector<1x8xf32>
    %188 = arith.truncf %187 : vector<1x8xf32> to vector<1x8xbf16>
    %189 = vector.extract_strided_slice %154 {offsets = [0, 8], sizes = [8, 8], strides = [1, 1]} : vector<8x16xbf16> to vector<8x8xbf16>
    %cst_78 = arith.constant dense<0.000000e+00> : vector<1x8xf32>
    %190 = tpu.matmul %188, %189, %cst_78 {dimension_numbers = #tpu.dot_dimension_numbers<[1], [0], [0], [1], [0, 0, 1, 1], [], []>} : vector<1x8xbf16>, vector<8x8xbf16>, vector<1x8xf32> -> vector<1x8xf32>
    %191 = tpu.concatenate %172, %190 in 1 : vector<1x8xf32>, vector<1x8xf32> -> vector<1x16xf32>
    %192 = arith.truncf %191 : vector<1x16xf32> to vector<1x16xbf16>
    %c0_79 = arith.constant 0 : index
    %c0_80 = arith.constant 0 : index
    %193 = vector.load %arg17[%c0_79, %c0_80] : memref<16x16xbf16, #tpu.memory_space<vmem>>, vector<16x16xbf16>
    %cst_81 = arith.constant dense<0.000000e+00> : vector<1x16xf32>
    %194 = tpu.matmul %192, %193, %cst_81 {dimension_numbers = #tpu.dot_dimension_numbers<[1], [0], [0], [1], [0, 0, 1, 1], [], []>} : vector<1x16xbf16>, vector<16x16xbf16>, vector<1x16xf32> -> vector<1x16xf32>
    %195 = arith.addf %123, %194 : vector<1x16xf32>
    %c0_82 = arith.constant 0 : index
    %c0_83 = arith.constant 0 : index
    %196 = vector.load %arg18[%c0_82, %c0_83] : memref<1x16xf32, #tpu.memory_space<vmem>>, vector<1x16xf32>
    %197 = arith.addf %195, %196 : vector<1x16xf32>
    %c0_84 = arith.constant 0 : index
    %c0_85 = arith.constant 0 : index
    %198 = vector.load %arg19[%c0_84, %c0_85] : memref<1x16xf32, #tpu.memory_space<vmem>>, vector<1x16xf32>
    %c0_86 = arith.constant 0 : index
    %c0_87 = arith.constant 0 : index
    %199 = vector.load %arg20[%c0_86, %c0_87] : memref<1x16xf32, #tpu.memory_space<vmem>>, vector<1x16xf32>
    %cst_88 = arith.constant dense<0.000000e+00> : vector<1xf32>
    %200 = vector.multi_reduction <add>, %197, %cst_88 [1] : vector<1x16xf32> to vector<1xf32>
    %201 = vector.shape_cast %200 : vector<1xf32> to vector<1x1xf32>
    %cst_89 = arith.constant 1.600000e+01 : f32
    %202 = vector.broadcast %cst_89 : f32 to vector<1x1xf32>
    %203 = arith.divf %201, %202 : vector<1x1xf32>
    %204 = vector.broadcast %203 : vector<1x1xf32> to vector<1x16xf32>
    %205 = arith.subf %197, %204 : vector<1x16xf32>
    %206 = arith.mulf %205, %205 : vector<1x16xf32>
    %cst_90 = arith.constant dense<0.000000e+00> : vector<1xf32>
    %207 = vector.multi_reduction <add>, %206, %cst_90 [1] : vector<1x16xf32> to vector<1xf32>
    %208 = vector.shape_cast %207 : vector<1xf32> to vector<1x1xf32>
    %cst_91 = arith.constant 1.600000e+01 : f32
    %209 = vector.broadcast %cst_91 : f32 to vector<1x1xf32>
    %210 = arith.divf %208, %209 : vector<1x1xf32>
    %211 = vector.broadcast %203 : vector<1x1xf32> to vector<1x16xf32>
    %212 = arith.subf %197, %211 : vector<1x16xf32>
    %cst_92 = arith.constant 9.99999974E-6 : f32
    %213 = vector.broadcast %cst_92 : f32 to vector<1x1xf32>
    %214 = arith.addf %210, %213 : vector<1x1xf32>
    %215 = math.rsqrt %214 : vector<1x1xf32>
    %216 = vector.broadcast %215 : vector<1x1xf32> to vector<1x16xf32>
    %217 = arith.mulf %212, %216 : vector<1x16xf32>
    %218 = arith.mulf %217, %198 : vector<1x16xf32>
    %219 = arith.addf %218, %199 : vector<1x16xf32>
    %220 = arith.truncf %219 : vector<1x16xf32> to vector<1x16xbf16>
    %c0_93 = arith.constant 0 : index
    %c0_94 = arith.constant 0 : index
    %221 = vector.load %arg21[%c0_93, %c0_94] : memref<16x64xbf16, #tpu.memory_space<vmem>>, vector<16x64xbf16>
    %cst_95 = arith.constant dense<0.000000e+00> : vector<1x64xf32>
    %222 = tpu.matmul %220, %221, %cst_95 {dimension_numbers = #tpu.dot_dimension_numbers<[1], [0], [0], [1], [0, 0, 1, 1], [], []>} : vector<1x16xbf16>, vector<16x64xbf16>, vector<1x64xf32> -> vector<1x64xf32>
    %c0_96 = arith.constant 0 : index
    %c0_97 = arith.constant 0 : index
    %223 = vector.load %arg22[%c0_96, %c0_97] : memref<1x64xf32, #tpu.memory_space<vmem>>, vector<1x64xf32>
    %224 = arith.addf %222, %223 : vector<1x64xf32>
    %225 = arith.mulf %224, %224 : vector<1x64xf32>
    %226 = arith.mulf %224, %225 : vector<1x64xf32>
    %cst_98 = arith.constant 4.471500e-02 : f32
    %227 = vector.broadcast %cst_98 : f32 to vector<1x64xf32>
    %228 = arith.mulf %227, %226 : vector<1x64xf32>
    %229 = arith.addf %224, %228 : vector<1x64xf32>
    %cst_99 = arith.constant 0.797884583 : f32
    %230 = vector.broadcast %cst_99 : f32 to vector<1x64xf32>
    %231 = arith.mulf %230, %229 : vector<1x64xf32>
    %232 = math.tanh %231 : vector<1x64xf32>
    %cst_100 = arith.constant 1.000000e+00 : f32
    %233 = vector.broadcast %cst_100 : f32 to vector<1x64xf32>
    %234 = arith.addf %233, %232 : vector<1x64xf32>
    %cst_101 = arith.constant 5.000000e-01 : f32
    %235 = vector.broadcast %cst_101 : f32 to vector<1x64xf32>
    %236 = arith.mulf %235, %234 : vector<1x64xf32>
    %237 = arith.mulf %224, %236 : vector<1x64xf32>
    %238 = arith.truncf %237 : vector<1x64xf32> to vector<1x64xbf16>
    %c0_102 = arith.constant 0 : index
    %c0_103 = arith.constant 0 : index
    %239 = vector.load %arg23[%c0_102, %c0_103] : memref<64x16xbf16, #tpu.memory_space<vmem>>, vector<64x16xbf16>
    %cst_104 = arith.constant dense<0.000000e+00> : vector<1x16xf32>
    %240 = tpu.matmul %238, %239, %cst_104 {dimension_numbers = #tpu.dot_dimension_numbers<[1], [0], [0], [1], [0, 0, 1, 1], [], []>} : vector<1x64xbf16>, vector<64x16xbf16>, vector<1x16xf32> -> vector<1x16xf32>
    %241 = arith.addf %197, %240 : vector<1x16xf32>
    %c0_105 = arith.constant 0 : index
    %c0_106 = arith.constant 0 : index
    %242 = vector.load %arg24[%c0_105, %c0_106] : memref<1x16xf32, #tpu.memory_space<vmem>>, vector<1x16xf32>
    %243 = arith.addf %241, %242 : vector<1x16xf32>
    %c0_107 = arith.constant 0 : index
    %c0_108 = arith.constant 0 : index
    %244 = vector.load %arg25[%c0_107, %c0_108] : memref<1x16xf32, #tpu.memory_space<vmem>>, vector<1x16xf32>
    %c0_109 = arith.constant 0 : index
    %c0_110 = arith.constant 0 : index
    %245 = vector.load %arg26[%c0_109, %c0_110] : memref<1x16xf32, #tpu.memory_space<vmem>>, vector<1x16xf32>
    %cst_111 = arith.constant dense<0.000000e+00> : vector<1xf32>
    %246 = vector.multi_reduction <add>, %243, %cst_111 [1] : vector<1x16xf32> to vector<1xf32>
    %247 = vector.shape_cast %246 : vector<1xf32> to vector<1x1xf32>
    %cst_112 = arith.constant 1.600000e+01 : f32
    %248 = vector.broadcast %cst_112 : f32 to vector<1x1xf32>
    %249 = arith.divf %247, %248 : vector<1x1xf32>
    %250 = vector.broadcast %249 : vector<1x1xf32> to vector<1x16xf32>
    %251 = arith.subf %243, %250 : vector<1x16xf32>
    %252 = arith.mulf %251, %251 : vector<1x16xf32>
    %cst_113 = arith.constant dense<0.000000e+00> : vector<1xf32>
    %253 = vector.multi_reduction <add>, %252, %cst_113 [1] : vector<1x16xf32> to vector<1xf32>
    %254 = vector.shape_cast %253 : vector<1xf32> to vector<1x1xf32>
    %cst_114 = arith.constant 1.600000e+01 : f32
    %255 = vector.broadcast %cst_114 : f32 to vector<1x1xf32>
    %256 = arith.divf %254, %255 : vector<1x1xf32>
    %257 = vector.broadcast %249 : vector<1x1xf32> to vector<1x16xf32>
    %258 = arith.subf %243, %257 : vector<1x16xf32>
    %cst_115 = arith.constant 9.99999974E-6 : f32
    %259 = vector.broadcast %cst_115 : f32 to vector<1x1xf32>
    %260 = arith.addf %256, %259 : vector<1x1xf32>
    %261 = math.rsqrt %260 : vector<1x1xf32>
    %262 = vector.broadcast %261 : vector<1x1xf32> to vector<1x16xf32>
    %263 = arith.mulf %258, %262 : vector<1x16xf32>
    %264 = arith.mulf %263, %244 : vector<1x16xf32>
    %265 = arith.addf %264, %245 : vector<1x16xf32>
    %266 = arith.truncf %265 : vector<1x16xf32> to vector<1x16xbf16>
    %c0_116 = arith.constant 0 : index
    %c0_117 = arith.constant 0 : index
    %267 = vector.load %arg27[%c0_116, %c0_117] : memref<16x16xbf16, #tpu.memory_space<vmem>>, vector<16x16xbf16>
    %cst_118 = arith.constant dense<0.000000e+00> : vector<1x16xf32>
    %268 = tpu.matmul %266, %267, %cst_118 {dimension_numbers = #tpu.dot_dimension_numbers<[1], [0], [0], [1], [0, 0, 1, 1], [], []>} : vector<1x16xbf16>, vector<16x16xbf16>, vector<1x16xf32> -> vector<1x16xf32>
    %c0_119 = arith.constant 0 : index
    %c0_120 = arith.constant 0 : index
    %269 = vector.load %arg28[%c0_119, %c0_120] : memref<1x16xf32, #tpu.memory_space<vmem>>, vector<1x16xf32>
    %270 = arith.addf %268, %269 : vector<1x16xf32>
    %c0_121 = arith.constant 0 : index
    %c0_122 = arith.constant 0 : index
    %c0_123 = arith.constant 0 : index
    %271 = vector.load %arg29[%c0_121, %c0_122, %c0_123] : memref<1x1x16xf32, #tpu.memory_space<vmem>>, vector<1x1x16xf32>
    %272 = vector.shape_cast %271 : vector<1x1x16xf32> to vector<1x16xf32>
    %273 = vector.shape_cast %270 : vector<1x16xf32> to vector<1x1x16xf32>
    tpu.vector_store %arg29[%c0_121, %c0_122, %c0_123], %273 {strides = array<i32>} : memref<1x1x16xf32, #tpu.memory_space<vmem>>, vector<1x1x16xf32>,
    return
  }
  func.func @transform_0(%arg0: i32, %arg1: memref<1xi32, #tpu.memory_space<smem>>) -> (i32, i32, i32) {
    %c0_i32 = arith.constant 0 : i32
    %c0_i32_0 = arith.constant 0 : i32
    %c0_i32_1 = arith.constant 0 : i32
    return %arg0, %c0_i32, %c0_i32_0 : i32, i32, i32
  }
  func.func @transform_1(%arg0: i32, %arg1: memref<1xi32, #tpu.memory_space<smem>>) -> (i32, i32, i32) {
    %c0_i32 = arith.constant 0 : i32
    %c0_i32_0 = arith.constant 0 : i32
    %c0_i32_1 = arith.constant 0 : i32
    return %arg0, %c0_i32, %c0_i32_0 : i32, i32, i32
  }
  func.func @transform_2(%arg0: i32, %arg1: memref<1xi32, #tpu.memory_space<smem>>) -> (i32, i32, i32) {
    %c0_i32 = arith.constant 0 : i32
    %c0_i32_0 = arith.constant 0 : i32
    %c0_i32_1 = arith.constant 0 : i32
    return %arg0, %c0_i32, %c0_i32_0 : i32, i32, i32
  }
  func.func @transform_3(%arg0: i32, %arg1: memref<1xi32, #tpu.memory_space<smem>>) -> (i32, i32, i32) {
    %c0_i32 = arith.constant 0 : i32
    %c0_i32_0 = arith.constant 0 : i32
    %c0_i32_1 = arith.constant 0 : i32
    return %arg0, %c0_i32, %c0_i32_0 : i32, i32, i32
  }
  func.func @transform_4(%arg0: i32, %arg1: memref<1xi32, #tpu.memory_space<smem>>) -> (i32, i32, i32) {
    %c0_i32 = arith.constant 0 : i32
    %c0_i32_0 = arith.constant 0 : i32
    %c0_i32_1 = arith.constant 0 : i32
    return %arg0, %c0_i32, %c0_i32_0 : i32, i32, i32
  }
  func.func @transform_5(%arg0: i32, %arg1: memref<1xi32, #tpu.memory_space<smem>>) -> (i32, i32) {
    %c0_i32 = arith.constant 0 : i32
    %c0_i32_0 = arith.constant 0 : i32
    %c0_i32_1 = arith.constant 0 : i32
    return %c0_i32, %c0_i32_0 : i32, i32
  }
  func.func @transform_6(%arg0: i32, %arg1: memref<1xi32, #tpu.memory_space<smem>>) -> (i32, i32) {
    %c0_i32 = arith.constant 0 : i32
    %c0_i32_0 = arith.constant 0 : i32
    %c0_i32_1 = arith.constant 0 : i32
    return %c0_i32, %c0_i32_0 : i32, i32
  }
  func.func @transform_7(%arg0: i32, %arg1: memref<1xi32, #tpu.memory_space<smem>>) -> (i32, i32) {
    %c0_i32 = arith.constant 0 : i32
    %c0_i32_0 = arith.constant 0 : i32
    %c0_i32_1 = arith.constant 0 : i32
    return %c0_i32, %c0_i32_0 : i32, i32
  }
  func.func @transform_8(%arg0: i32, %arg1: memref<1xi32, #tpu.memory_space<smem>>) -> (i32, i32) {
    %c0_i32 = arith.constant 0 : i32
    %c0_i32_0 = arith.constant 0 : i32
    %c0_i32_1 = arith.constant 0 : i32
    return %c0_i32, %c0_i32_0 : i32, i32
  }
  func.func @transform_9(%arg0: i32, %arg1: memref<1xi32, #tpu.memory_space<smem>>) -> (i32, i32) {
    %c0_i32 = arith.constant 0 : i32
    %c0_i32_0 = arith.constant 0 : i32
    %c0_i32_1 = arith.constant 0 : i32
    return %c0_i32, %c0_i32_0 : i32, i32
  }
  func.func @transform_10(%arg0: i32, %arg1: memref<1xi32, #tpu.memory_space<smem>>) -> (i32, i32) {
    %c0_i32 = arith.constant 0 : i32
    %c0_i32_0 = arith.constant 0 : i32
    %c0_i32_1 = arith.constant 0 : i32
    return %c0_i32, %c0_i32_0 : i32, i32
  }
  func.func @transform_11(%arg0: i32, %arg1: memref<1xi32, #tpu.memory_space<smem>>) -> (i32, i32) {
    %c0_i32 = arith.constant 0 : i32
    %c0_i32_0 = arith.constant 0 : i32
    %c0_i32_1 = arith.constant 0 : i32
    return %c0_i32, %c0_i32_0 : i32, i32
  }
  func.func @transform_12(%arg0: i32, %arg1: memref<1xi32, #tpu.memory_space<smem>>) -> (i32, i32) {
    %c0_i32 = arith.constant 0 : i32
    %c0_i32_0 = arith.constant 0 : i32
    %c0_i32_1 = arith.constant 0 : i32
    return %c0_i32, %c0_i32_0 : i32, i32
  }
  func.func @transform_13(%arg0: i32, %arg1: memref<1xi32, #tpu.memory_space<smem>>) -> (i32, i32) {
    %c0_i32 = arith.constant 0 : i32
    %c0_i32_0 = arith.constant 0 : i32
    %c0_i32_1 = arith.constant 0 : i32
    return %c0_i32, %c0_i32_0 : i32, i32
  }
  func.func @transform_14(%arg0: i32, %arg1: memref<1xi32, #tpu.memory_space<smem>>) -> (i32, i32) {
    %c0_i32 = arith.constant 0 : i32
    %c0_i32_0 = arith.constant 0 : i32
    %c0_i32_1 = arith.constant 0 : i32
    return %c0_i32, %c0_i32_0 : i32, i32
  }
  func.func @transform_15(%arg0: i32, %arg1: memref<1xi32, #tpu.memory_space<smem>>) -> (i32, i32) {
    %c0_i32 = arith.constant 0 : i32
    %c0_i32_0 = arith.constant 0 : i32
    %c0_i32_1 = arith.constant 0 : i32
    return %c0_i32, %c0_i32_0 : i32, i32
  }
  func.func @transform_16(%arg0: i32, %arg1: memref<1xi32, #tpu.memory_space<smem>>) -> (i32, i32) {
    %c0_i32 = arith.constant 0 : i32
    %c0_i32_0 = arith.constant 0 : i32
    %c0_i32_1 = arith.constant 0 : i32
    return %c0_i32, %c0_i32_0 : i32, i32
  }
  func.func @transform_17(%arg0: i32, %arg1: memref<1xi32, #tpu.memory_space<smem>>) -> (i32, i32) {
    %c0_i32 = arith.constant 0 : i32
    %c0_i32_0 = arith.constant 0 : i32
    %c0_i32_1 = arith.constant 0 : i32
    return %c0_i32, %c0_i32_0 : i32, i32
  }
  func.func @transform_18(%arg0: i32, %arg1: memref<1xi32, #tpu.memory_space<smem>>) -> (i32, i32) {
    %c0_i32 = arith.constant 0 : i32
    %c0_i32_0 = arith.constant 0 : i32
    %c0_i32_1 = arith.constant 0 : i32
    return %c0_i32, %c0_i32_0 : i32, i32
  }
  func.func @transform_19(%arg0: i32, %arg1: memref<1xi32, #tpu.memory_space<smem>>) -> (i32, i32) {
    %c0_i32 = arith.constant 0 : i32
    %c0_i32_0 = arith.constant 0 : i32
    %c0_i32_1 = arith.constant 0 : i32
    return %c0_i32, %c0_i32_0 : i32, i32
  }
  func.func @transform_20(%arg0: i32, %arg1: memref<1xi32, #tpu.memory_space<smem>>) -> (i32, i32) {
    %c0_i32 = arith.constant 0 : i32
    %c0_i32_0 = arith.constant 0 : i32
    %c0_i32_1 = arith.constant 0 : i32
    return %c0_i32, %c0_i32_0 : i32, i32
  }
  func.func @transform_21(%arg0: i32, %arg1: memref<1xi32, #tpu.memory_space<smem>>) -> (i32, i32) {
    %c0_i32 = arith.constant 0 : i32
    %c0_i32_0 = arith.constant 0 : i32
    %c0_i32_1 = arith.constant 0 : i32
    return %c0_i32, %c0_i32_0 : i32, i32
  }
  func.func @transform_22(%arg0: i32, %arg1: memref<1xi32, #tpu.memory_space<smem>>) -> (i32, i32) {
    %c0_i32 = arith.constant 0 : i32
    %c0_i32_0 = arith.constant 0 : i32
    %c0_i32_1 = arith.constant 0 : i32
    return %c0_i32, %c0_i32_0 : i32, i32
  }
  func.func @transform_23(%arg0: i32, %arg1: memref<1xi32, #tpu.memory_space<smem>>) -> (i32, i32) {
    %c0_i32 = arith.constant 0 : i32
    %c0_i32_0 = arith.constant 0 : i32
    %c0_i32_1 = arith.constant 0 : i32
    return %c0_i32, %c0_i32_0 : i32, i32
  }
  func.func @transform_24(%arg0: i32, %arg1: memref<1xi32, #tpu.memory_space<smem>>) -> (i32, i32) {
    %c0_i32 = arith.constant 0 : i32
    %c0_i32_0 = arith.constant 0 : i32
    %c0_i32_1 = arith.constant 0 : i32
    return %c0_i32, %c0_i32_0 : i32, i32
  }
  func.func @transform_25(%arg0: i32, %arg1: memref<1xi32, #tpu.memory_space<smem>>) -> (i32, i32) {
    %c0_i32 = arith.constant 0 : i32
    %c0_i32_0 = arith.constant 0 : i32
    %c0_i32_1 = arith.constant 0 : i32
    return %c0_i32, %c0_i32_0 : i32, i32
  }
  func.func @transform_26(%arg0: i32, %arg1: memref<1xi32, #tpu.memory_space<smem>>) -> (i32, i32) {
    %c0_i32 = arith.constant 0 : i32
    %c0_i32_0 = arith.constant 0 : i32
    %c0_i32_1 = arith.constant 0 : i32
    return %c0_i32, %c0_i32_0 : i32, i32
  }
  func.func @transform_27(%arg0: i32, %arg1: memref<1xi32, #tpu.memory_space<smem>>) -> (i32, i32, i32) {
    %c0_i32 = arith.constant 0 : i32
    %c0_i32_0 = arith.constant 0 : i32
    %c0_i32_1 = arith.constant 0 : i32
    return %arg0, %c0_i32, %c0_i32_0 : i32, i32, i32
  }
  func.func @transform_28(%arg0: i32, %arg1: memref<1xi32, #tpu.memory_space<smem>>) -> (i32, i32, i32) {
    %c0_i32 = arith.constant 0 : i32
    %c0_i32_0 = arith.constant 0 : i32
    %c0_i32_1 = arith.constant 0 : i32
    return %arg0, %c0_i32, %c0_i32_0 : i32, i32, i32
  }
  func.func @transform_29(%arg0: i32, %arg1: memref<1xi32, #tpu.memory_space<smem>>) -> (i32, i32, i32) {
    %c0_i32 = arith.constant 0 : i32
    %c0_i32_0 = arith.constant 0 : i32
    %c0_i32_1 = arith.constant 0 : i32
    return %arg0, %c0_i32, %c0_i32_0 : i32, i32, i32
  }
}

</mosaic_0001>

<llo_original>
// kernel: swin_forward.6
$region0: #{swin_forward.6}
  #allocation0 [shape = 'u32[]', space=smem, size = 0x4, offset = 0x4, fixed_abs, tag = 'smem constant byte address 0x4 - core index']
  #allocation1 [shape = 'u32[144,128]{1,0:T(1,128)}', space=vmem, size = 0x12000, scoped, tag = 'internal scratch']
  %s0 = inlined_call_operand.hbm [shape: bf16[64,16], index: 0, kind: input, shape index: {}]
  %s1 = inlined_call_operand.hbm [shape: bf16[16,32], index: 1, kind: input, shape index: {}]
  %s2 = inlined_call_operand.hbm [shape: f32[1,32], index: 2, kind: input, shape index: {}]
  %s3 = inlined_call_operand.hbm [shape: bf16[64,32], index: 3, kind: output, shape index: {}]
  %s4 = sld [smem:[#allocation0]]
  $region34: #{swin_forward.6} parent=0
    _
  %s6 = ssub.s32 1, %s4
  %s7 = scalar_select 0, %s6, %s4
  $region1: #{swin_forward.6} parent=0
    #allocation2 [shape = 'u8[16384]{0}', space=vmem, size = 0x4000, scoped, tag = 'input window, operand 0, single buffered']
    #allocation3 [shape = 's32[1]{0}', space=sflag, size = 0x4, scoped, tag = 'scoped memory for swin_forward.6']
    #allocation4 [shape = 's32[1]{0}', space=sflag, size = 0x4, scoped, tag = 'scoped memory for swin_forward.6']
    #allocation5 [shape = 'u8[4096]{0}', space=vmem, size = 0x1000, scoped, tag = 'input window, operand 1, single buffered']
    #allocation6 [shape = 's32[1]{0}', space=sflag, size = 0x4, scoped, tag = 'scoped memory for swin_forward.6']
    #allocation7 [shape = 'u8[512]{0}', space=vmem, size = 0x400, scoped, tag = 'input window, operand 2, single buffered']
    #allocation8 [shape = 'u8[16384]{0}', space=vmem, size = 0x4000, scoped, tag = 'output window, operand 0, single buffered']
    %8 = vsyncpa [#allocation3], 0
    %9 = vsyncpa [#allocation6], 0
    %10 = vsyncpa [#allocation4], 0
    // Predicated region
    $region2: #{swin_forward.6} parent=1 // pred_check
      _
    $region3: #{swin_forward.6} parent=1 // pred_check_branch
      %12 = sbr.rel (0) target = $region5
    $region4: #{swin_forward.6} parent=1 // pred_region
      %s14 = ssub.s32 512, 512
      %15 = vsyncadd [#allocation3], %s14
      %s16 = sshll.u32 [#allocation2], 4
      %s17 = int_to_ptr.vmem [resolvable:$true] %s16
      %22 = dma.hbm_to_vmem [thread:$0]  %s0, 512, %s17, [#allocation3], 64, 64, 4
    $region5: #{swin_forward.6} parent=1 // pred_fallthru
      _
    // Predicated region
    $region6: #{swin_forward.6} parent=1 // pred_check
      _
    $region7: #{swin_forward.6} parent=1 // pred_check_branch
      %24 = sbr.rel (0) target = $region9
    $region8: #{swin_forward.6} parent=1 // pred_region
      %s26 = ssub.s32 128, 128
      %27 = vsyncadd [#allocation6], %s26
      %s28 = sshll.u32 [#allocation5], 4
      %s29 = int_to_ptr.vmem [resolvable:$true] %s28
      %34 = dma.hbm_to_vmem [thread:$0]  %s1, 128, %s29, [#allocation6], 64, 64, 4
    $region9: #{swin_forward.6} parent=1 // pred_fallthru
      _
    // Predicated region
    $region10: #{swin_forward.6} parent=1 // pred_check
      _
    $region11: #{swin_forward.6} parent=1 // pred_check_branch
      %36 = sbr.rel (0) target = $region13
    $region12: #{swin_forward.6} parent=1 // pred_region
      %s38 = ssub.s32 16, 16
      %39 = vsyncadd [#allocation6], %s38
      %s41 = sshll.u32 [#allocation7], 4
      %s42 = int_to_ptr.vmem [resolvable:$true] %s41
      %44 = dma.hbm_to_vmem [thread:$0]  %s2, 16, %s42, [#allocation6]
    $region13: #{swin_forward.6} parent=1 // pred_fallthru
      _
    // Predicated region
    $region14: #{swin_forward.6} parent=1 // pred_check
      _
    $region15: #{swin_forward.6} parent=1 // pred_check_branch
      %46 = sbr.rel (0) target = $region17
    $region16: #{swin_forward.6} parent=1 // pred_region
      %47 = dma.done [#allocation3], 512
    $region17: #{swin_forward.6} parent=1 // pred_fallthru
      _
    // Predicated region
    $region18: #{swin_forward.6} parent=1 // pred_check
      _
    $region19: #{swin_forward.6} parent=1 // pred_check_branch
      %49 = sbr.rel (0) target = $region21
    $region20: #{swin_forward.6} parent=1 // pred_region
      %50 = dma.done [#allocation6], 128
    $region21: #{swin_forward.6} parent=1 // pred_fallthru
      _
    // Predicated region
    $region22: #{swin_forward.6} parent=1 // pred_check
      _
    $region23: #{swin_forward.6} parent=1 // pred_check_branch
      %52 = sbr.rel (0) target = $region25
    $region24: #{swin_forward.6} parent=1 // pred_region
      %53 = dma.done [#allocation6], 16
    $region25: #{swin_forward.6} parent=1 // pred_fallthru
      _
    %v55 = vld [vmem:[#allocation2] sm:$0xf]
    %v56 = vld [vmem:[#allocation2 + $0x4] sm:$0xf]
    %v57 = vld [vmem:[#allocation2 + $0x8] sm:$0xf]
    %v58 = vld [vmem:[#allocation2 + $0xc] sm:$0xf]
    %v59 = vld [vmem:[#allocation2 + $0x10] sm:$0xf]
    %v60 = vld [vmem:[#allocation2 + $0x14] sm:$0xf]
    %v61 = vld [vmem:[#allocation2 + $0x18] sm:$0xf]
    %v62 = vld [vmem:[#allocation2 + $0x1c] sm:$0xf]
    %v63 = vld [vmem:[#allocation5] sm:$0xf]
    %v64 = vld [vmem:[#allocation5 + $0x4] sm:$0xf]
    %v65 = vld [vmem:[#allocation7] sm:$0x1]
    %v67 = vlaneseq
    %v68 = vshrl.u32 %v67, 7
    %v69 = vsub.s32 0, %v68
    %v70 = vrot.slane %v65, %v69
    %v80 = vunpack.c.l.b16 %v55
    %v81 = vunpack.c.l.b16 %v56
    %v82 = vunpack.c.l.b16 %v57
    %v83 = vunpack.c.l.b16 %v58
    %v84 = vunpack.c.l.b16 %v59
    %v85 = vunpack.c.l.b16 %v60
    %v86 = vunpack.c.l.b16 %v61
    %v87 = vunpack.c.l.b16 %v62
    %v88 = vpack.c.b16 %v81, %v80
    %v89 = vpack.c.b16 %v83, %v82
    %v90 = vpack.c.b16 %v85, %v84
    %v91 = vpack.c.b16 %v87, %v86
    %v94 = vunpack.c.l.b16 %v63
    %v95 = vunpack.c.l.b16 %v64
    %v96 = vpack.c.b16 %v95, %v94
    %vm98 = vcmask 130048
    %v100 = vsel %vm98, %v88, 0
    %v103 = vsel %vm98, %v89, 0
    %v106 = vsel %vm98, %v90, 0
    %v109 = vsel %vm98, %v91, 0
    %111 = vmatprep.subr.bf16.mxu0 0
    %112 = vmatpush1.bf16.msra.mxu0 %v96
    %113 = vmatprep.subr.bf16.mxu0 0
    %114 = vmatpush1.bf16.msra.mxu0 0
    %115 = vmatprep.subr.bf16.mxu0 0
    %116 = vmatpush1.bf16.msra.mxu0 0
    %117 = vmatprep.subr.bf16.mxu0 0
    %118 = vmatpush1.bf16.msra.mxu0 0
    %119 = vmatprep.subr.bf16.mxu0 0
    %120 = vmatpush1.bf16.msra.mxu0 0
    %121 = vmatprep.subr.bf16.mxu0 0
    %122 = vmatpush1.bf16.msra.mxu0 0
    %123 = vmatprep.subr.bf16.mxu0 0
    %124 = vmatpush1.bf16.msra.mxu0 0
    %125 = vmatprep.subr.bf16.mxu0 0
    %126 = vmatpush1.bf16.msra.mxu0 0
    %127 = vmatprep.subr.bf16.mxu0 0
    %128 = vmatpush1.bf16.msra.mxu0 0
    %129 = vmatprep.subr.bf16.mxu0 0
    %130 = vmatpush1.bf16.msra.mxu0 0
    %131 = vmatprep.subr.bf16.mxu0 0
    %132 = vmatpush1.bf16.msra.mxu0 0
    %133 = vmatprep.subr.bf16.mxu0 0
    %134 = vmatpush1.bf16.msra.mxu0 0
    %135 = vmatprep.subr.bf16.mxu0 0
    %136 = vmatpush1.bf16.msra.mxu0 0
    %137 = vmatprep.subr.bf16.mxu0 0
    %138 = vmatpush1.bf16.msra.mxu0 0
    %139 = vmatprep.subr.bf16.mxu0 0
    %140 = vmatpush1.bf16.msra.mxu0 0
    %141 = vmatprep.subr.bf16.mxu0 0
    %142 = vmatpush1.bf16.msra.mxu0 0
    %143 = vmatprep.mubr.bf16.mxu0 0
    %144 = vmatmul.mubr.bf16.gmra.mrb[0].mxu0 %v100
    %v145 = vpop.f32.mrb[0].mxu0
    %v146 = vadd.f32 %v70, %v145
    %v147 = vpop.f32.mrb[0].mxu0
    %v148 = vpop.f32.mrb[0].mxu0
    %v149 = vadd.f32 %v70, %v148
    %v150 = vpop.f32.mrb[0].mxu0
    %151 = vmatprep.mubr.bf16.mxu0 0
    %152 = vmatmul.mubr.bf16.gmra.mrb[0].mxu0 %v103
    %v153 = vpop.f32.mrb[0].mxu0
    %v154 = vadd.f32 %v70, %v153
    %v155 = vpop.f32.mrb[0].mxu0
    %v156 = vpop.f32.mrb[0].mxu0
    %v157 = vadd.f32 %v70, %v156
    %v158 = vpop.f32.mrb[0].mxu0
    %159 = vmatprep.mubr.bf16.mxu0 0
    %160 = vmatmul.mubr.bf16.gmra.mrb[0].mxu0 %v106
    %v161 = vpop.f32.mrb[0].mxu0
    %v162 = vadd.f32 %v70, %v161
    %v163 = vpop.f32.mrb[0].mxu0
    %v164 = vpop.f32.mrb[0].mxu0
    %v165 = vadd.f32 %v70, %v164
    %v166 = vpop.f32.mrb[0].mxu0
    %167 = vmatprep.mubr.bf16.mxu0 0
    %168 = vmatmul.mubr.bf16.gmra.mrb[0].mxu0 %v109
    %v169 = vpop.f32.mrb[0].mxu0
    %v170 = vadd.f32 %v70, %v169
    %v171 = vpop.f32.mrb[0].mxu0
    %v172 = vpop.f32.mrb[0].mxu0
    %v173 = vadd.f32 %v70, %v172
    %v174 = vpop.f32.mrb[0].mxu0
    %175 = vdwg.mxu0
    %v176 = vpack.c.bf16 %v149, %v146
    %v177 = vpack.c.bf16 %v157, %v154
    %v178 = vpack.c.bf16 %v165, %v162
    %v179 = vpack.c.bf16 %v173, %v170
    %v184 = vunpack.c.l.b16 %v176
    %v185 = vunpack.c.h.b16 %v176
    %v186 = vunpack.c.l.b16 %v177
    %v187 = vunpack.c.h.b16 %v177
    %v188 = vunpack.c.l.b16 %v178
    %v189 = vunpack.c.h.b16 %v178
    %v190 = vunpack.c.l.b16 %v179
    %v191 = vunpack.c.h.b16 %v179
    %v192 = vpack.c.b16 %v184, %v184
    %v193 = vpack.c.b16 %v185, %v185
    %v194 = vpack.c.b16 %v186, %v186
    %v195 = vpack.c.b16 %v187, %v187
    %v196 = vpack.c.b16 %v188, %v188
    %v197 = vpack.c.b16 %v189, %v189
    %v198 = vpack.c.b16 %v190, %v190
    %v199 = vpack.c.b16 %v191, %v191
    %vm208 = vcmask 257024
    %209 = vst.msk [vmem:[#allocation8] sm:$0xf] %vm208, %v192
    %210 = vst.msk [vmem:[#allocation8 + $0x4] sm:$0xf] %vm208, %v193
    %211 = vst.msk [vmem:[#allocation8 + $0x8] sm:$0xf] %vm208, %v194
    %212 = vst.msk [vmem:[#allocation8 + $0xc] sm:$0xf] %vm208, %v195
    %213 = vst.msk [vmem:[#allocation8 + $0x10] sm:$0xf] %vm208, %v196
    %214 = vst.msk [vmem:[#allocation8 + $0x14] sm:$0xf] %vm208, %v197
    %215 = vst.msk [vmem:[#allocation8 + $0x18] sm:$0xf] %vm208, %v198
    %216 = vst.msk [vmem:[#allocation8 + $0x1c] sm:$0xf] %vm208, %v199
    // Predicated region
    $region26: #{swin_forward.6} parent=1 // pred_check
      _
    $region27: #{swin_forward.6} parent=1 // pred_check_branch
      %218 = sbr.rel (0) target = $region29
    $region28: #{swin_forward.6} parent=1 // pred_region
      %s220 = ssub.s32 512, 512
      %221 = vsyncadd [#allocation4], %s220
      %s222 = sshll.u32 [#allocation8], 4
      %s223 = int_to_ptr.vmem [resolvable:$true] %s222
      %228 = dma.vmem_to_hbm [thread:$0]  %s223, 512, %s3, [#allocation4], 64, 64, 4
    $region29: #{swin_forward.6} parent=1 // pred_fallthru
      _
    // Predicated region
    $region30: #{swin_forward.6} parent=1 // pred_check
      _
    $region31: #{swin_forward.6} parent=1 // pred_check_branch
      %230 = sbr.rel (0) target = $region33
    $region32: #{swin_forward.6} parent=1 // pred_region
      %231 = dma.done [#allocation4], 512
    $region33: #{swin_forward.6} parent=1 // pred_fallthru
      _
    %232 = vsyncpa [#allocation3], 1
    %233 = vsyncpa [#allocation6], 1
    %234 = vsyncpa [#allocation4], 1

// kernel: swin_forward.9
$region0: #{swin_forward.9}
  #allocation0 [shape = 'u32[]', space=smem, size = 0x4, offset = 0x4, fixed_abs, tag = 'smem constant byte address 0x4 - core index']
  #allocation1 [shape = 'u32[144,128]{1,0:T(1,128)}', space=vmem, size = 0x12000, scoped, tag = 'internal scratch']
  %s0 = inlined_call_operand.hbm [shape: bf16[2,4,8,32], index: 0, kind: input, shape index: {}]
  %s1 = inlined_call_operand.hbm [shape: f32[1,128], index: 1, kind: input, shape index: {}]
  %s2 = inlined_call_operand.hbm [shape: f32[1,128], index: 2, kind: input, shape index: {}]
  %s3 = inlined_call_operand.hbm [shape: bf16[128,64], index: 3, kind: input, shape index: {}]
  %s4 = inlined_call_operand.hbm [shape: bf16[2,2,4,64], index: 4, kind: output, shape index: {}]
  %s5 = sld [smem:[#allocation0]]
  $region65: #{swin_forward.9} parent=0
    _
  %s7 = ssub.s32 1, %s5
  %s8 = scalar_select 0, %s7, %s5
  $region1: #{swin_forward.9} parent=0
    #allocation2 [shape = 'u8[8192]{0}', space=vmem, size = 0x2000, scoped, tag = 'input window, operand 0']
    #allocation3 [shape = 's32[2]{0}', space=sflag, size = 0x8, scoped, tag = 'scoped memory for swin_forward.9']
    #allocation4 [shape = 's32[2]{0}', space=sflag, size = 0x8, scoped, tag = 'scoped memory for swin_forward.9']
    #allocation5 [shape = 'u8[512]{0}', space=vmem, size = 0x400, scoped, tag = 'input window, operand 1, single buffered']
    #allocation6 [shape = 's32[1]{0}', space=sflag, size = 0x4, scoped, tag = 'scoped memory for swin_forward.9']
    #allocation7 [shape = 'u8[512]{0}', space=vmem, size = 0x400, scoped, tag = 'input window, operand 2, single buffered']
    #allocation8 [shape = 'u8[32768]{0}', space=vmem, size = 0x8000, scoped, tag = 'input window, operand 3, single buffered']
    #allocation9 [shape = 's32[1]{0}', space=sflag, size = 0x4, scoped, tag = 'scoped memory for swin_forward.9']
    #allocation10 [shape = 'u8[2048]{0}', space=vmem, size = 0x800, scoped, tag = 'output window, operand 0']
    %9 = vsyncpa [#allocation3], 0
    %s10 = scalar_lea.sflag [#allocation3], 1
    %11 = vsyncpa %s10, 0
    %12 = vsyncpa [#allocation6], 0
    %13 = vsyncpa [#allocation9], 0
    %14 = vsyncpa [#allocation4], 0
    %s15 = scalar_lea.sflag [#allocation4], 1
    %16 = vsyncpa %s15, 0
    loop: start=0, step=1, limit=6
    $region2: #{swin_forward.9} parent=1 // loop_pre_header
      _
    $region3: #{swin_forward.9} parent=1 // loop_header
      %s18 = sphi 0, %s22
      %p19 = scmp.ge.s32.totalorder %s18, 6
      %s25 = sphi 0, %s37
      %s26 = sphi 0, %s33
      %s27 = sphi 0, %s25
      %s28 = sphi 0, %s26
      %s29 = sphi 0, %s27
      %s30 = sphi 0, %s28
      %s42 = sphi 0, %s44
      %s45 = sphi 0, %s42
      %s46 = sphi 0, %s45
      %s62 = sphi 0, %s46
      %s66 = sphi 0, %s66
      %s68 = sphi 0, %s66
      %s69 = sphi 0, %s68
      %s83 = sphi 0, %s69
      %s87 = sphi 0, %s87
      %s89 = sphi 0, %s87
      %s90 = sphi 0, %s89
      %s104 = sphi 0, %s90
      %s108 = sphi 0, %s108
      %s110 = sphi 0, %s108
      %s111 = sphi 0, %s110
      %s125 = sphi 0, %s111
      %s133 = sphi 0, %s135
      %s136 = sphi 0, %s133
      %s137 = sphi 0, %s136
      %s153 = sphi 0, %s137
    $region4: #{swin_forward.9} parent=1 // loop_header_branch
      %21 = sbr.rel (%p19) target = $region8
    $region5: #{swin_forward.9} parent=1 // loop_body
      %s23 = ssub.s32 %s18, 1
      %s24 = ssub.s32 %s18, 2
      %s31 = sadd.s32 1, %s26
      %p32 = scmp.ge.s32.totalorder %s31, 2
      %s33 = scalar_select %p32, 0, %s31
      %s34 = sadd.s32 1, %s25
      %s35 = scalar_select %p32, %s34, %s25
      %p36 = scmp.ge.s32.totalorder %s35, 2
      %s37 = scalar_select %p36, 0, %s35
      %s38 = ssub.s32 %s25, %s37
      %s39 = ssub.s32 %s26, %s33
      %s40 = sor.u32 %s38, %s39
      %p41 = scmp.eq.s32.totalorder %s40, 0
      %s43 = sadd.s32 %s42, 1
      %s44 = scalar_select %p41, %s42, %s43
      %p47 = pneg %p41
      %p48 = scmp.eq.s32.totalorder %s18, 3
      %p49 = por %p47, %p48
      %p50 = scmp.ne.s32.totalorder %s42, %s45
      %p51 = scmp.eq.s32.totalorder %s18, 0
      %p52 = por %p50, %p51
      %p53 = scmp.ne.s32.totalorder %s42, %s45
      %p54 = scmp.eq.s32.totalorder %s23, 3
      %p55 = por %p53, %p54
      %p56 = scmp.ne.s32.totalorder %s45, %s46
      %p57 = scmp.eq.s32.totalorder %s23, 0
      %p58 = por %p56, %p57
      %p59 = scmp.ne.s32.totalorder %s45, %s46
      %p60 = scmp.eq.s32.totalorder %s24, 3
      %p61 = por %p59, %p60
      %p63 = scmp.ne.s32.totalorder %s46, %s62
      %p64 = scmp.eq.s32.totalorder %s24, 0
      %p65 = por %p63, %p64
      %s67 = sadd.s32 %s66, 1
      %p70 = scmp.eq.s32.totalorder %s18, 3
      %p71 = scmp.ne.s32.totalorder %s66, %s68
      %p72 = scmp.eq.s32.totalorder %s18, 0
      %p73 = por %p71, %p72
      %p74 = scmp.ne.s32.totalorder %s66, %s68
      %p75 = scmp.eq.s32.totalorder %s23, 3
      %p76 = por %p74, %p75
      %p77 = scmp.ne.s32.totalorder %s68, %s69
      %p78 = scmp.eq.s32.totalorder %s23, 0
      %p79 = por %p77, %p78
      %p80 = scmp.ne.s32.totalorder %s68, %s69
      %p81 = scmp.eq.s32.totalorder %s24, 3
      %p82 = por %p80, %p81
      %p84 = scmp.ne.s32.totalorder %s69, %s83
      %p85 = scmp.eq.s32.totalorder %s24, 0
      %p86 = por %p84, %p85
      %s88 = sadd.s32 %s87, 1
      %p91 = scmp.eq.s32.totalorder %s18, 3
      %p92 = scmp.ne.s32.totalorder %s87, %s89
      %p93 = scmp.eq.s32.totalorder %s18, 0
      %p94 = por %p92, %p93
      %p95 = scmp.ne.s32.totalorder %s87, %s89
      %p96 = scmp.eq.s32.totalorder %s23, 3
      %p97 = por %p95, %p96
      %p98 = scmp.ne.s32.totalorder %s89, %s90
      %p99 = scmp.eq.s32.totalorder %s23, 0
      %p100 = por %p98, %p99
      %p101 = scmp.ne.s32.totalorder %s89, %s90
      %p102 = scmp.eq.s32.totalorder %s24, 3
      %p103 = por %p101, %p102
      %p105 = scmp.ne.s32.totalorder %s90, %s104
      %p106 = scmp.eq.s32.totalorder %s24, 0
      %p107 = por %p105, %p106
      %s109 = sadd.s32 %s108, 1
      %p112 = scmp.eq.s32.totalorder %s18, 3
      %p113 = scmp.ne.s32.totalorder %s108, %s110
      %p114 = scmp.eq.s32.totalorder %s18, 0
      %p115 = por %p113, %p114
      %p116 = scmp.ne.s32.totalorder %s108, %s110
      %p117 = scmp.eq.s32.totalorder %s23, 3
      %p118 = por %p116, %p117
      %p119 = scmp.ne.s32.totalorder %s110, %s111
      %p120 = scmp.eq.s32.totalorder %s23, 0
      %p121 = por %p119, %p120
      %p122 = scmp.ne.s32.totalorder %s110, %s111
      %p123 = scmp.eq.s32.totalorder %s24, 3
      %p124 = por %p122, %p123
      %p126 = scmp.ne.s32.totalorder %s111, %s125
      %p127 = scmp.eq.s32.totalorder %s24, 0
      %p128 = por %p126, %p127
      %s129 = ssub.s32 %s25, %s37
      %s130 = ssub.s32 %s26, %s33
      %s131 = sor.u32 %s129, %s130
      %p132 = scmp.eq.s32.totalorder %s131, 0
      %s134 = sadd.s32 %s133, 1
      %s135 = scalar_select %p132, %s133, %s134
      %p138 = pneg %p132
      %p139 = scmp.eq.s32.totalorder %s18, 3
      %p140 = por %p138, %p139
      %p141 = scmp.ne.s32.totalorder %s133, %s136
      %p142 = scmp.eq.s32.totalorder %s18, 0
      %p143 = por %p141, %p142
      %p144 = scmp.ne.s32.totalorder %s133, %s136
      %p145 = scmp.eq.s32.totalorder %s23, 3
      %p146 = por %p144, %p145
      %p147 = scmp.ne.s32.totalorder %s136, %s137
      %p148 = scmp.eq.s32.totalorder %s23, 0
      %p149 = por %p147, %p148
      %p150 = scmp.ne.s32.totalorder %s136, %s137
      %p151 = scmp.eq.s32.totalorder %s24, 3
      %p152 = por %p150, %p151
      %p154 = scmp.ne.s32.totalorder %s137, %s153
      %p155 = scmp.eq.s32.totalorder %s24, 0
      %p156 = por %p154, %p155
      %p157 = scmp.le.s32.totalorder 1, %s18
      %p158 = scmp.lt.s32.totalorder %s18, 5
      %p159 = pnand %p157, %p158
      %p160 = pneg %p159
      // Predicated region
      $region9: #{swin_forward.9} parent=5 // pred_check
        _
      $region10: #{swin_forward.9} parent=5 // pred_check_branch
        %162 = sbr.rel (%p159) target = $region12
      $region11: #{swin_forward.9} parent=5 // pred_region
        %s163 = ssub.s32 %s18, 1
        // Predicated region
        $region13: #{swin_forward.9} parent=11 // pred_check
          %p164 = pneg %p79
        $region14: #{swin_forward.9} parent=11 // pred_check_branch
          %166 = sbr.rel (%p164) target = $region16
        $region15: #{swin_forward.9} parent=11 // pred_region
          %s168 = ssub.s32 16, 16
          %169 = vsyncadd [#allocation6], %s168
          %s171 = sshll.u32 [#allocation5], 4
          %s172 = int_to_ptr.vmem [resolvable:$true] %s171
          %174 = dma.hbm_to_vmem [thread:$0]  %s1, 16, %s172, [#allocation6]
        $region16: #{swin_forward.9} parent=11 // pred_fallthru
          _
        // Predicated region
        $region17: #{swin_forward.9} parent=11 // pred_check
          %p175 = pneg %p100
        $region18: #{swin_forward.9} parent=11 // pred_check_branch
          %177 = sbr.rel (%p175) target = $region20
        $region19: #{swin_forward.9} parent=11 // pred_region
          %s179 = ssub.s32 16, 16
          %180 = vsyncadd [#allocation6], %s179
          %s182 = sshll.u32 [#allocation7], 4
          %s183 = int_to_ptr.vmem [resolvable:$true] %s182
          %185 = dma.hbm_to_vmem [thread:$0]  %s2, 16, %s183, [#allocation6]
        $region20: #{swin_forward.9} parent=11 // pred_fallthru
          _
        // Predicated region
        $region21: #{swin_forward.9} parent=11 // pred_check
          %p186 = pneg %p121
        $region22: #{swin_forward.9} parent=11 // pred_check_branch
          %188 = sbr.rel (%p186) target = $region24
        $region23: #{swin_forward.9} parent=11 // pred_region
          %s190 = ssub.s32 1024, 1024
          %191 = vsyncadd [#allocation9], %s190
          %s192 = sshll.u32 [#allocation8], 4
          %s193 = int_to_ptr.vmem [resolvable:$true] %s192
          %198 = dma.hbm_to_vmem [thread:$0]  %s3, 1024, %s193, [#allocation9], 64, 64, 4
        $region24: #{swin_forward.9} parent=11 // pred_fallthru
          _
      $region12: #{swin_forward.9} parent=5 // pred_fallthru
        _
      %p199 = scmp.lt.s32.totalorder %s18, 4
      // Predicated region
      $region25: #{swin_forward.9} parent=5 // pred_check
        %p200 = pneg %p199
      $region26: #{swin_forward.9} parent=5 // pred_check_branch
        %202 = sbr.rel (%p200) target = $region28
      $region27: #{swin_forward.9} parent=5 // pred_region
        // Predicated region
        $region29: #{swin_forward.9} parent=27 // pred_check
          %p203 = pneg %p52
        $region30: #{swin_forward.9} parent=27 // pred_check_branch
          %205 = sbr.rel (%p203) target = $region32
        $region31: #{swin_forward.9} parent=27 // pred_region
          %s206 = sand.u32 %s42, 1
          %s207 = scalar_lea.sflag [#allocation3], %s206
          %s208 = sand.u32 %s42, 1
          %s209 = smul.addr %s208, 8
          %s210 = scalar_lea.vmem [#allocation2], %s209
          %s211 = smul.u32 2, %s26
          %s213 = ssub.s32 128, 128
          %214 = vsyncadd %s207, %s213
          %s215 = smul.addr %s25, 4
          %s216 = sadd.s32 %s211, %s215
          %s217 = smul.addr %s216, 64
          %s218 = scalar_lea.hbm %s0, %s217
          %s219 = sshll.u32 %s210, 4
          %s220 = int_to_ptr.vmem [resolvable:$true] %s219
          %225 = dma.hbm_to_vmem [thread:$0]  %s218, 128, %s220, %s207, 64, 64, 4
        $region32: #{swin_forward.9} parent=27 // pred_fallthru
          _
      $region28: #{swin_forward.9} parent=5 // pred_fallthru
        _
      %p226 = scmp.le.s32.totalorder 1, %s18
      %p227 = scmp.lt.s32.totalorder %s18, 5
      %p228 = pnand %p226, %p227
      %p229 = pneg %p228
      // Predicated region
      $region33: #{swin_forward.9} parent=5 // pred_check
        _
      $region34: #{swin_forward.9} parent=5 // pred_check_branch
        %231 = sbr.rel (%p228) target = $region36
      $region35: #{swin_forward.9} parent=5 // pred_region
        %s232 = ssub.s32 %s18, 1
        %s233 = sand.u32 %s45, 1
        %s234 = scalar_lea.sflag [#allocation3], %s233
        %s235 = sand.u32 %s45, 1
        %s236 = smul.addr %s235, 8
        %s237 = scalar_lea.vmem [#allocation2], %s236
        // Predicated region
        $region37: #{swin_forward.9} parent=35 // pred_check
          %p238 = pneg %p58
        $region38: #{swin_forward.9} parent=35 // pred_check_branch
          %240 = sbr.rel (%p238) target = $region40
        $region39: #{swin_forward.9} parent=35 // pred_region
          %241 = dma.done %s234, 128
        $region40: #{swin_forward.9} parent=35 // pred_fallthru
          _
        // Predicated region
        $region41: #{swin_forward.9} parent=35 // pred_check
          %p242 = pneg %p79
        $region42: #{swin_forward.9} parent=35 // pred_check_branch
          %244 = sbr.rel (%p242) target = $region44
        $region43: #{swin_forward.9} parent=35 // pred_region
          %245 = dma.done [#allocation6], 16
        $region44: #{swin_forward.9} parent=35 // pred_fallthru
          _
        // Predicated region
        $region45: #{swin_forward.9} parent=35 // pred_check
          %p246 = pneg %p100
        $region46: #{swin_forward.9} parent=35 // pred_check_branch
          %248 = sbr.rel (%p246) target = $region48
        $region47: #{swin_forward.9} parent=35 // pred_region
          %249 = dma.done [#allocation6], 16
        $region48: #{swin_forward.9} parent=35 // pred_fallthru
          _
        // Predicated region
        $region49: #{swin_forward.9} parent=35 // pred_check
          %p250 = pneg %p121
        $region50: #{swin_forward.9} parent=35 // pred_check_branch
          %252 = sbr.rel (%p250) target = $region52
        $region51: #{swin_forward.9} parent=35 // pred_region
          %253 = dma.done [#allocation9], 1024
        $region52: #{swin_forward.9} parent=35 // pred_fallthru
          _
        %s254 = sand.u32 %s45, 1
        %s255 = scalar_lea.sflag [#allocation3], %s254
        %s256 = sand.u32 %s45, 1
        %s257 = smul.addr %s256, 8
        %s258 = scalar_lea.vmem [#allocation2], %s257
        %p259 = pneg %p58
        %p260 = pneg %p55
        %p261 = pneg %p79
        %p262 = pneg %p76
        %p263 = pneg %p100
        %p264 = pneg %p97
        %p265 = pneg %p121
        %p266 = pneg %p118
        %p267 = pneg %p149
        %p268 = pneg %p146
        %s269 = sand.u32 %s136, 1
        %s270 = scalar_lea.sflag [#allocation4], %s269
        %s271 = sand.u32 %s136, 1
        %s272 = smul.addr %s271, 2
        %s273 = scalar_lea.vmem [#allocation10], %s272
        %s274 = smul.u32 2, %s28
        %v276 = vld [vmem:[%s237] sm:$0xf]
        %v277 = vld [vmem:[%s237 + $0x4] sm:$0xf]
        %v278 = vunpack.c.l.bf16 %v276
        %v279 = vunpack.c.l.bf16 %v277
        %v282 = vcombine.high %v278, %v278
        %v284 = vunpack.c.l.s4 1983009808
        %v285 = vunpack.c.0.s8 %v284
        %v286 = vlaneseq
        %v287 = vshrl.u32 %v286, 7
        %v288 = vsub.s32 %v285, %v287
        %v289 = vrot.slane %v278, %v288
        %v291 = vunpack.c.l.s4 1983009808
        %v292 = vunpack.c.0.s8 %v291
        %v293 = vlaneseq
        %v294 = vshrl.u32 %v293, 7
        %v295 = vsub.s32 %v292, %v294
        %v296 = vrot.slane %v282, %v295
        %v297 = vcombine.high %v289, %v289
        %v298 = vcombine.high %v296, %v296
        %v299 = vcombine.high %v279, %v279
        %v301 = vunpack.c.l.s4 1983009808
        %v302 = vunpack.c.0.s8 %v301
        %v303 = vlaneseq
        %v304 = vshrl.u32 %v303, 7
        %v305 = vsub.s32 %v302, %v304
        %v306 = vrot.slane %v279, %v305
        %v308 = vunpack.c.l.s4 1983009808
        %v309 = vunpack.c.0.s8 %v308
        %v310 = vlaneseq
        %v311 = vshrl.u32 %v310, 7
        %v312 = vsub.s32 %v309, %v311
        %v313 = vrot.slane %v299, %v312
        %v314 = vcombine.high %v306, %v306
        %v315 = vcombine.high %v313, %v313
        %v316 = vlaneseq
        %v317 = vshrl.u32 %v316, 7
        %v318 = vsub.s32 0, %v317
        %v319 = vrot.slane %v289, %v318
        %v320 = vlaneseq
        %v321 = vshrl.u32 %v320, 7
        %v322 = vsub.s32 0, %v321
        %v323 = vrot.slane %v297, %v322
        %v324 = vlaneseq
        %v325 = vshrl.u32 %v324, 7
        %v326 = vsub.s32 0, %v325
        %v327 = vrot.slane %v296, %v326
        %v328 = vlaneseq
        %v329 = vshrl.u32 %v328, 7
        %v330 = vsub.s32 0, %v329
        %v331 = vrot.slane %v298, %v330
        %vm332 = vcmask 1041409
        %v333 = vsel %vm332, %v323, %v319
        %vm334 = vcmask 1042434
        %v335 = vsel %vm334, %v327, %v333
        %vm336 = vcmask 1043459
        %v337 = vsel %vm336, %v331, %v335
        %v339 = vlaneseq
        %v340 = vshrl.u32 %v339, 7
        %v341 = vsub.s32 0, %v340
        %v342 = vrot.slane %v306, %v341
        %v343 = vlaneseq
        %v344 = vshrl.u32 %v343, 7
        %v345 = vsub.s32 0, %v344
        %v346 = vrot.slane %v314, %v345
        %v347 = vlaneseq
        %v348 = vshrl.u32 %v347, 7
        %v349 = vsub.s32 0, %v348
        %v350 = vrot.slane %v313, %v349
        %v351 = vlaneseq
        %v352 = vshrl.u32 %v351, 7
        %v353 = vsub.s32 0, %v352
        %v354 = vrot.slane %v315, %v353
        %v355 = vsel %vm332, %v346, %v342
        %v356 = vsel %vm334, %v350, %v355
        %v357 = vsel %vm336, %v354, %v356
        %358 = vrot.lane.b32.xlu0 %v357, 32
        %v359 = vpop.permute.xlu0 %358
        %v361 = vlaneseq
        %v362 = vshrl.u32 %v361, 7
        %v363 = vsub.s32 1, %v362
        %v364 = vrot.slane %v289, %v363
        %v365 = vlaneseq
        %v366 = vshrl.u32 %v365, 7
        %v367 = vsub.s32 1, %v366
        %v368 = vrot.slane %v297, %v367
        %v369 = vlaneseq
        %v370 = vshrl.u32 %v369, 7
        %v371 = vsub.s32 1, %v370
        %v372 = vrot.slane %v296, %v371
        %v373 = vlaneseq
        %v374 = vshrl.u32 %v373, 7
        %v375 = vsub.s32 1, %v374
        %v376 = vrot.slane %v298, %v375
        %v377 = vsel %vm332, %v368, %v364
        %v378 = vsel %vm334, %v372, %v377
        %v379 = vsel %vm336, %v376, %v378
        %380 = vrot.lane.b32.xlu0 %v379, 64
        %v381 = vpop.permute.xlu0 %380
        %v383 = vlaneseq
        %v384 = vshrl.u32 %v383, 7
        %v385 = vsub.s32 1, %v384
        %v386 = vrot.slane %v306, %v385
        %v387 = vlaneseq
        %v388 = vshrl.u32 %v387, 7
        %v389 = vsub.s32 1, %v388
        %v390 = vrot.slane %v314, %v389
        %v391 = vlaneseq
        %v392 = vshrl.u32 %v391, 7
        %v393 = vsub.s32 1, %v392
        %v394 = vrot.slane %v313, %v393
        %v395 = vlaneseq
        %v396 = vshrl.u32 %v395, 7
        %v397 = vsub.s32 1, %v396
        %v398 = vrot.slane %v315, %v397
        %v399 = vsel %vm332, %v390, %v386
        %v400 = vsel %vm334, %v394, %v399
        %v401 = vsel %vm336, %v398, %v400
        %402 = vrot.lane.b32.xlu0 %v401, 96
        %v403 = vpop.permute.xlu0 %402
        %vm405 = vcmask 261120
        %v406 = vsel %vm405, %v337, %v359
        %vm407 = vcmask 523264
        %v408 = vsel %vm407, %v406, %v381
        %vm409 = vcmask 785408
        %v410 = vsel %vm409, %v408, %v403
        %v411 = vld [vmem:[#allocation5] sm:$0x1]
        %v412 = vld [vmem:[#allocation7] sm:$0x1]
        %vm413 = vcmask 1043456
        %v414 = vsel %vm413, %v410, 0.0
        %415 = vadd.xlane.f32.xlu0 %v414
        %v416 = vpop.xlane.xlu0 %415
        %v417 = vrcp.pop 128.0
        %v418 = vmul.f32 %v416, %v417
        %v419 = vsub.f32 %v410, %v418
        %v420 = vmul.f32 %v419, %v419
        %v421 = vsel %vm413, %v420, 0.0
        %422 = vadd.xlane.f32.xlu0 %v421
        %v423 = vpop.xlane.xlu0 %422
        %v424 = vmul.f32 %v423, %v417
        %v425 = vadd.f32 %v424, 1e-05
        %v426 = vrsqrt.pop %v425
        %v427 = vmul.f32 %v419, %v426
        %v429 = vlaneseq
        %v430 = vshrl.u32 %v429, 7
        %v431 = vsub.s32 0, %v430
        %v432 = vrot.slane %v411, %v431
        %v434 = vmul.f32 %v427, %v432
        %v436 = vlaneseq
        %v437 = vshrl.u32 %v436, 7
        %v438 = vsub.s32 0, %v437
        %v439 = vrot.slane %v412, %v438
        %v441 = vadd.f32 %v434, %v439
        %v442 = vpack.c.bf16 %v441, %v441
        %v443 = vld [vmem:[#allocation8] sm:$0xf]
        %v444 = vld [vmem:[#allocation8 + $0x4] sm:$0xf]
        %v445 = vld [vmem:[#allocation8 + $0x8] sm:$0xf]
        %v446 = vld [vmem:[#allocation8 + $0xc] sm:$0xf]
        %v447 = vld [vmem:[#allocation8 + $0x10] sm:$0xf]
        %v448 = vld [vmem:[#allocation8 + $0x14] sm:$0xf]
        %v449 = vld [vmem:[#allocation8 + $0x18] sm:$0xf]
        %v450 = vld [vmem:[#allocation8 + $0x1c] sm:$0xf]
        %v451 = vld [vmem:[#allocation8 + $0x20] sm:$0xf]
        %v452 = vld [vmem:[#allocation8 + $0x24] sm:$0xf]
        %v453 = vld [vmem:[#allocation8 + $0x28] sm:$0xf]
        %v454 = vld [vmem:[#allocation8 + $0x2c] sm:$0xf]
        %v455 = vld [vmem:[#allocation8 + $0x30] sm:$0xf]
        %v456 = vld [vmem:[#allocation8 + $0x34] sm:$0xf]
        %v457 = vld [vmem:[#allocation8 + $0x38] sm:$0xf]
        %v458 = vld [vmem:[#allocation8 + $0x3c] sm:$0xf]
        %v475 = vunpack.c.l.b16 %v443
        %v476 = vunpack.c.l.b16 %v444
        %v477 = vunpack.c.l.b16 %v445
        %v478 = vunpack.c.l.b16 %v446
        %v479 = vunpack.c.l.b16 %v447
        %v480 = vunpack.c.l.b16 %v448
        %v481 = vunpack.c.l.b16 %v449
        %v482 = vunpack.c.l.b16 %v450
        %v483 = vunpack.c.l.b16 %v451
        %v484 = vunpack.c.l.b16 %v452
        %v485 = vunpack.c.l.b16 %v453
        %v486 = vunpack.c.l.b16 %v454
        %v487 = vunpack.c.l.b16 %v455
        %v488 = vunpack.c.l.b16 %v456
        %v489 = vunpack.c.l.b16 %v457
        %v490 = vunpack.c.l.b16 %v458
        %v491 = vpack.c.b16 %v476, %v475
        %v492 = vpack.c.b16 %v478, %v477
        %v493 = vpack.c.b16 %v480, %v479
        %v494 = vpack.c.b16 %v482, %v481
        %v495 = vpack.c.b16 %v484, %v483
        %v496 = vpack.c.b16 %v486, %v485
        %v497 = vpack.c.b16 %v488, %v487
        %v498 = vpack.c.b16 %v490, %v489
        %507 = vmatprep.subr.bf16.mxu0 0
        %508 = vmatpush1.bf16.msra.mxu0 %v491
        %509 = vmatprep.subr.bf16.mxu0 0
        %510 = vmatpush1.bf16.msra.mxu0 %v492
        %511 = vmatprep.subr.bf16.mxu0 0
        %512 = vmatpush1.bf16.msra.mxu0 %v493
        %513 = vmatprep.subr.bf16.mxu0 0
        %514 = vmatpush1.bf16.msra.mxu0 %v494
        %515 = vmatprep.subr.bf16.mxu0 0
        %516 = vmatpush1.bf16.msra.mxu0 %v495
        %517 = vmatprep.subr.bf16.mxu0 0
        %518 = vmatpush1.bf16.msra.mxu0 %v496
        %519 = vmatprep.subr.bf16.mxu0 0
        %520 = vmatpush1.bf16.msra.mxu0 %v497
        %521 = vmatprep.subr.bf16.mxu0 0
        %522 = vmatpush1.bf16.msra.mxu0 %v498
        %523 = vmatprep.subr.bf16.mxu0 0
        %524 = vmatpush1.bf16.msra.mxu0 0
        %525 = vmatprep.subr.bf16.mxu0 0
        %526 = vmatpush1.bf16.msra.mxu0 0
        %527 = vmatprep.subr.bf16.mxu0 0
        %528 = vmatpush1.bf16.msra.mxu0 0
        %529 = vmatprep.subr.bf16.mxu0 0
        %530 = vmatpush1.bf16.msra.mxu0 0
        %531 = vmatprep.subr.bf16.mxu0 0
        %532 = vmatpush1.bf16.msra.mxu0 0
        %533 = vmatprep.subr.bf16.mxu0 0
        %534 = vmatpush1.bf16.msra.mxu0 0
        %535 = vmatprep.subr.bf16.mxu0 0
        %536 = vmatpush1.bf16.msra.mxu0 0
        %537 = vmatprep.subr.bf16.mxu0 0
        %538 = vmatpush1.bf16.msra.mxu0 0
        %539 = vmatprep.mubr.bf16.mxu0 0
        %540 = vmatmul.mubr.bf16.gmra.mrb[0].mxu0 %v442
        %v541 = vpop.f32.mrb[0].mxu0
        %v542 = vadd.f32 0.0, %v541
        %v543 = vpop.f32.mrb[0].mxu0
        %v544 = vpop.f32.mrb[0].mxu0
        %v545 = vpop.f32.mrb[0].mxu0
        %546 = vdwg.mxu0
        %v547 = vpack.c.bf16 %v542, %v542
        %vm548 = vcmask 517120
        %549 = vst.msk [vmem:[%s273] sm:$0x3] %vm548, %v547
        %s550 = sand.u32 %s136, 1
        %s551 = scalar_lea.sflag [#allocation4], %s550
        %s552 = sand.u32 %s136, 1
        %s553 = smul.addr %s552, 2
        %s554 = scalar_lea.vmem [#allocation10], %s553
        // Predicated region
        $region53: #{swin_forward.9} parent=35 // pred_check
          %p555 = pneg %p146
        $region54: #{swin_forward.9} parent=35 // pred_check_branch
          %557 = sbr.rel (%p555) target = $region56
        $region55: #{swin_forward.9} parent=35 // pred_region
          %s559 = ssub.s32 32, 32
          %560 = vsyncadd %s551, %s559
          %s561 = smul.addr %s27, 2
          %s562 = sadd.s32 %s28, %s561
          %s563 = smul.addr %s562, 32
          %s564 = scalar_lea.hbm %s4, %s563
          %s566 = sshll.u32 %s554, 4
          %s567 = int_to_ptr.vmem [resolvable:$true] %s566
          %569 = dma.vmem_to_hbm [thread:$0]  %s567, 32, %s564, %s551
        $region56: #{swin_forward.9} parent=35 // pred_fallthru
          _
      $region36: #{swin_forward.9} parent=5 // pred_fallthru
        _
      %p570 = scmp.le.s32.totalorder 2, %s18
      // Predicated region
      $region57: #{swin_forward.9} parent=5 // pred_check
        %p571 = pneg %p570
      $region58: #{swin_forward.9} parent=5 // pred_check_branch
        %573 = sbr.rel (%p571) target = $region60
      $region59: #{swin_forward.9} parent=5 // pred_region
        %s574 = ssub.s32 %s18, 2
        // Predicated region
        $region61: #{swin_forward.9} parent=59 // pred_check
          %p575 = pneg %p152
        $region62: #{swin_forward.9} parent=59 // pred_check_branch
          %577 = sbr.rel (%p575) target = $region64
        $region63: #{swin_forward.9} parent=59 // pred_region
          %s578 = sand.u32 %s137, 1
          %s579 = scalar_lea.sflag [#allocation4], %s578
          %s580 = sand.u32 %s137, 1
          %s581 = smul.addr %s580, 2
          %s582 = scalar_lea.vmem [#allocation10], %s581
          %583 = dma.done %s579, 32
        $region64: #{swin_forward.9} parent=59 // pred_fallthru
          _
      $region60: #{swin_forward.9} parent=5 // pred_fallthru
        _
    $region6: #{swin_forward.9} parent=1 // loop_footer
      %s22 = sadd.s32 1, %s18
    $region7: #{swin_forward.9} parent=1 // loop_footer_branch
      %17 = sbr.rel target = $region3
    $region8: #{swin_forward.9} parent=1 // loop_exit
      _
    %584 = vsyncpa [#allocation3], 1
    %s585 = scalar_lea.sflag [#allocation3], 1
    %586 = vsyncpa %s585, 1
    %587 = vsyncpa [#allocation6], 1
    %588 = vsyncpa [#allocation9], 1
    %589 = vsyncpa [#allocation4], 1
    %s590 = scalar_lea.sflag [#allocation4], 1
    %591 = vsyncpa %s590, 1

// kernel: swin_forward.10
$region0: #{swin_forward.10}
  #allocation0 [shape = 'u32[]', space=smem, size = 0x4, offset = 0x4, fixed_abs, tag = 'smem constant byte address 0x4 - core index']
  #allocation1 [shape = 'u32[144,128]{1,0:T(1,128)}', space=vmem, size = 0x12000, scoped, tag = 'internal scratch']
  %s0 = inlined_call_operand.hbm [shape: bf16[16,64], index: 0, kind: input, shape index: {}]
  %s1 = inlined_call_operand.hbm [shape: bf16[64,16], index: 1, kind: input, shape index: {}]
  %s2 = inlined_call_operand.hbm [shape: f32[1,16], index: 2, kind: input, shape index: {}]
  %s3 = inlined_call_operand.hbm [shape: f32[1,16], index: 3, kind: input, shape index: {}]
  %s4 = inlined_call_operand.hbm [shape: f32[1,16], index: 4, kind: input, shape index: {}]
  %s5 = inlined_call_operand.hbm [shape: bf16[16,16], index: 5, kind: output, shape index: {0}]
  %s6 = inlined_call_operand.hbm [shape: f32[16,1], index: 6, kind: output, shape index: {1}]
  %7 = xla_tuple %s5, %s6
  %s8 = sld [smem:[#allocation0]]
  $region58: #{swin_forward.10} parent=0
    _
  %s10 = ssub.s32 1, %s8
  %s11 = scalar_select 0, %s10, %s8
  $region1: #{swin_forward.10} parent=0
    #allocation2 [shape = 'u8[4096]{0}', space=vmem, size = 0x1000, scoped, tag = 'input window, operand 0, single buffered']
    #allocation3 [shape = 's32[1]{0}', space=sflag, size = 0x4, scoped, tag = 'scoped memory for swin_forward.10']
    #allocation4 [shape = 's32[1]{0}', space=sflag, size = 0x4, scoped, tag = 'scoped memory for swin_forward.10']
    #allocation5 [shape = 'u8[16384]{0}', space=vmem, size = 0x4000, scoped, tag = 'input window, operand 1, single buffered']
    #allocation6 [shape = 's32[1]{0}', space=sflag, size = 0x4, scoped, tag = 'scoped memory for swin_forward.10']
    #allocation7 [shape = 'u8[512]{0}', space=vmem, size = 0x400, scoped, tag = 'input window, operand 2, single buffered']
    #allocation8 [shape = 'u8[512]{0}', space=vmem, size = 0x400, scoped, tag = 'input window, operand 3, single buffered']
    #allocation9 [shape = 's32[1]{0}', space=sflag, size = 0x4, scoped, tag = 'scoped memory for swin_forward.10']
    #allocation10 [shape = 'u8[512]{0}', space=vmem, size = 0x400, scoped, tag = 'input window, operand 4, single buffered']
    #allocation11 [shape = 'u8[4096]{0}', space=vmem, size = 0x1000, scoped, tag = 'output window, operand 0, single buffered']
    #allocation12 [shape = 'u8[8192]{0}', space=vmem, size = 0x2000, scoped, tag = 'output window, operand 1, single buffered']
    #allocation13 [shape = 's32[1]{0}', space=sflag, size = 0x4, scoped, tag = 'scoped memory for swin_forward.10']
    %12 = vsyncpa [#allocation3], 0
    %13 = vsyncpa [#allocation6], 0
    %14 = vsyncpa [#allocation9], 0
    %15 = vsyncpa [#allocation4], 0
    %16 = vsyncpa [#allocation13], 0
    // Predicated region
    $region2: #{swin_forward.10} parent=1 // pred_check
      _
    $region3: #{swin_forward.10} parent=1 // pred_check_branch
      %18 = sbr.rel (0) target = $region5
    $region4: #{swin_forward.10} parent=1 // pred_region
      %s20 = ssub.s32 128, 128
      %21 = vsyncadd [#allocation3], %s20
      %s22 = sshll.u32 [#allocation2], 4
      %s23 = int_to_ptr.vmem [resolvable:$true] %s22
      %28 = dma.hbm_to_vmem [thread:$0]  %s0, 128, %s23, [#allocation3], 64, 64, 4
    $region5: #{swin_forward.10} parent=1 // pred_fallthru
      _
    // Predicated region
    $region6: #{swin_forward.10} parent=1 // pred_check
      _
    $region7: #{swin_forward.10} parent=1 // pred_check_branch
      %30 = sbr.rel (0) target = $region9
    $region8: #{swin_forward.10} parent=1 // pred_region
      %s32 = ssub.s32 512, 512
      %33 = vsyncadd [#allocation6], %s32
      %s34 = sshll.u32 [#allocation5], 4
      %s35 = int_to_ptr.vmem [resolvable:$true] %s34
      %40 = dma.hbm_to_vmem [thread:$0]  %s1, 512, %s35, [#allocation6], 64, 64, 4
    $region9: #{swin_forward.10} parent=1 // pred_fallthru
      _
    // Predicated region
    $region10: #{swin_forward.10} parent=1 // pred_check
      _
    $region11: #{swin_forward.10} parent=1 // pred_check_branch
      %42 = sbr.rel (0) target = $region13
    $region12: #{swin_forward.10} parent=1 // pred_region
      %s44 = ssub.s32 16, 16
      %45 = vsyncadd [#allocation6], %s44
      %s47 = sshll.u32 [#allocation7], 4
      %s48 = int_to_ptr.vmem [resolvable:$true] %s47
      %50 = dma.hbm_to_vmem [thread:$0]  %s2, 16, %s48, [#allocation6]
    $region13: #{swin_forward.10} parent=1 // pred_fallthru
      _
    // Predicated region
    $region14: #{swin_forward.10} parent=1 // pred_check
      _
    $region15: #{swin_forward.10} parent=1 // pred_check_branch
      %52 = sbr.rel (0) target = $region17
    $region16: #{swin_forward.10} parent=1 // pred_region
      %s54 = ssub.s32 16, 16
      %55 = vsyncadd [#allocation9], %s54
      %s57 = sshll.u32 [#allocation8], 4
      %s58 = int_to_ptr.vmem [resolvable:$true] %s57
      %60 = dma.hbm_to_vmem [thread:$0]  %s3, 16, %s58, [#allocation9]
    $region17: #{swin_forward.10} parent=1 // pred_fallthru
      _
    // Predicated region
    $region18: #{swin_forward.10} parent=1 // pred_check
      _
    $region19: #{swin_forward.10} parent=1 // pred_check_branch
      %62 = sbr.rel (0) target = $region21
    $region20: #{swin_forward.10} parent=1 // pred_region
      %s64 = ssub.s32 16, 16
      %65 = vsyncadd [#allocation9], %s64
      %s67 = sshll.u32 [#allocation10], 4
      %s68 = int_to_ptr.vmem [resolvable:$true] %s67
      %70 = dma.hbm_to_vmem [thread:$0]  %s4, 16, %s68, [#allocation9]
    $region21: #{swin_forward.10} parent=1 // pred_fallthru
      _
    // Predicated region
    $region22: #{swin_forward.10} parent=1 // pred_check
      _
    $region23: #{swin_forward.10} parent=1 // pred_check_branch
      %72 = sbr.rel (0) target = $region25
    $region24: #{swin_forward.10} parent=1 // pred_region
      %73 = dma.done [#allocation3], 128
    $region25: #{swin_forward.10} parent=1 // pred_fallthru
      _
    // Predicated region
    $region26: #{swin_forward.10} parent=1 // pred_check
      _
    $region27: #{swin_forward.10} parent=1 // pred_check_branch
      %75 = sbr.rel (0) target = $region29
    $region28: #{swin_forward.10} parent=1 // pred_region
      %76 = dma.done [#allocation6], 512
    $region29: #{swin_forward.10} parent=1 // pred_fallthru
      _
    // Predicated region
    $region30: #{swin_forward.10} parent=1 // pred_check
      _
    $region31: #{swin_forward.10} parent=1 // pred_check_branch
      %78 = sbr.rel (0) target = $region33
    $region32: #{swin_forward.10} parent=1 // pred_region
      %79 = dma.done [#allocation6], 16
    $region33: #{swin_forward.10} parent=1 // pred_fallthru
      _
    // Predicated region
    $region34: #{swin_forward.10} parent=1 // pred_check
      _
    $region35: #{swin_forward.10} parent=1 // pred_check_branch
      %81 = sbr.rel (0) target = $region37
    $region36: #{swin_forward.10} parent=1 // pred_region
      %82 = dma.done [#allocation9], 16
    $region37: #{swin_forward.10} parent=1 // pred_fallthru
      _
    // Predicated region
    $region38: #{swin_forward.10} parent=1 // pred_check
      _
    $region39: #{swin_forward.10} parent=1 // pred_check_branch
      %84 = sbr.rel (0) target = $region41
    $region40: #{swin_forward.10} parent=1 // pred_region
      %85 = dma.done [#allocation9], 16
    $region41: #{swin_forward.10} parent=1 // pred_fallthru
      _
    %v87 = vld [vmem:[#allocation2] sm:$0xf]
    %v88 = vld [vmem:[#allocation2 + $0x4] sm:$0xf]
    %v89 = vld [vmem:[#allocation5] sm:$0xf]
    %v90 = vld [vmem:[#allocation5 + $0x4] sm:$0xf]
    %v91 = vld [vmem:[#allocation5 + $0x8] sm:$0xf]
    %v92 = vld [vmem:[#allocation5 + $0xc] sm:$0xf]
    %v93 = vld [vmem:[#allocation5 + $0x10] sm:$0xf]
    %v94 = vld [vmem:[#allocation5 + $0x14] sm:$0xf]
    %v95 = vld [vmem:[#allocation5 + $0x18] sm:$0xf]
    %v96 = vld [vmem:[#allocation5 + $0x1c] sm:$0xf]
    %v97 = vld [vmem:[#allocation7] sm:$0x1]
    %v99 = vlaneseq
    %v100 = vshrl.u32 %v99, 7
    %v101 = vsub.s32 0, %v100
    %v102 = vrot.slane %v97, %v101
    %v106 = vunpack.c.l.b16 %v87
    %v107 = vunpack.c.l.b16 %v88
    %v108 = vpack.c.b16 %v107, %v106
    %v117 = vunpack.c.l.b16 %v89
    %v118 = vunpack.c.l.b16 %v90
    %v119 = vunpack.c.l.b16 %v91
    %v120 = vunpack.c.l.b16 %v92
    %v121 = vunpack.c.l.b16 %v93
    %v122 = vunpack.c.l.b16 %v94
    %v123 = vunpack.c.l.b16 %v95
    %v124 = vunpack.c.l.b16 %v96
    %v125 = vpack.c.b16 %v118, %v117
    %v126 = vpack.c.b16 %v120, %v119
    %v127 = vpack.c.b16 %v122, %v121
    %v128 = vpack.c.b16 %v124, %v123
    %vm133 = vcmask 523264
    %v135 = vsel %vm133, %v108, 0
    %137 = vmatprep.subr.bf16.mxu0 0
    %138 = vmatpush1.bf16.msra.mxu0 %v125
    %139 = vmatprep.subr.bf16.mxu0 0
    %140 = vmatpush1.bf16.msra.mxu0 %v126
    %141 = vmatprep.subr.bf16.mxu0 0
    %142 = vmatpush1.bf16.msra.mxu0 %v127
    %143 = vmatprep.subr.bf16.mxu0 0
    %144 = vmatpush1.bf16.msra.mxu0 %v128
    %145 = vmatprep.subr.bf16.mxu0 0
    %146 = vmatpush1.bf16.msra.mxu0 0
    %147 = vmatprep.subr.bf16.mxu0 0
    %148 = vmatpush1.bf16.msra.mxu0 0
    %149 = vmatprep.subr.bf16.mxu0 0
    %150 = vmatpush1.bf16.msra.mxu0 0
    %151 = vmatprep.subr.bf16.mxu0 0
    %152 = vmatpush1.bf16.msra.mxu0 0
    %153 = vmatprep.subr.bf16.mxu0 0
    %154 = vmatpush1.bf16.msra.mxu0 0
    %155 = vmatprep.subr.bf16.mxu0 0
    %156 = vmatpush1.bf16.msra.mxu0 0
    %157 = vmatprep.subr.bf16.mxu0 0
    %158 = vmatpush1.bf16.msra.mxu0 0
    %159 = vmatprep.subr.bf16.mxu0 0
    %160 = vmatpush1.bf16.msra.mxu0 0
    %161 = vmatprep.subr.bf16.mxu0 0
    %162 = vmatpush1.bf16.msra.mxu0 0
    %163 = vmatprep.subr.bf16.mxu0 0
    %164 = vmatpush1.bf16.msra.mxu0 0
    %165 = vmatprep.subr.bf16.mxu0 0
    %166 = vmatpush1.bf16.msra.mxu0 0
    %167 = vmatprep.subr.bf16.mxu0 0
    %168 = vmatpush1.bf16.msra.mxu0 0
    %169 = vmatprep.mubr.bf16.mxu0 0
    %170 = vmatmul.mubr.bf16.gmra.mrb[0].mxu0 %v135
    %v171 = vpop.f32.mrb[0].mxu0
    %v172 = vadd.f32 %v102, %v171
    %v173 = vpop.f32.mrb[0].mxu0
    %v174 = vpop.f32.mrb[0].mxu0
    %v175 = vadd.f32 %v102, %v174
    %v176 = vpop.f32.mrb[0].mxu0
    %177 = vdwg.mxu0
    %v178 = vld [vmem:[#allocation8] sm:$0x1]
    %v179 = vld [vmem:[#allocation10] sm:$0x1]
    %vm180 = vcmask 130048
    %v181 = vsel %vm180, %v172, 0.0
    %182 = vadd.xlane.f32.xlu0 %v181
    %v183 = vpop.xlane.xlu0 %182
    %v184 = vsel %vm180, %v175, 0.0
    %185 = vadd.xlane.f32.xlu0 %v184
    %v186 = vpop.xlane.xlu0 %185
    %v187 = vrcp.pop 16.0
    %v188 = vmul.f32 %v183, %v187
    %v189 = vmul.f32 %v186, %v187
    %v190 = vsub.f32 %v172, %v188
    %v191 = vsub.f32 %v175, %v189
    %v192 = vmul.f32 %v190, %v190
    %v193 = vmul.f32 %v191, %v191
    %v194 = vsel %vm180, %v192, 0.0
    %195 = vadd.xlane.f32.xlu0 %v194
    %v196 = vpop.xlane.xlu0 %195
    %v197 = vsel %vm180, %v193, 0.0
    %198 = vadd.xlane.f32.xlu0 %v197
    %v199 = vpop.xlane.xlu0 %198
    %v200 = vmul.f32 %v196, %v187
    %v201 = vmul.f32 %v199, %v187
    %v202 = vadd.f32 %v200, 1e-06
    %v203 = vadd.f32 %v201, 1e-06
    %v204 = vrsqrt.pop %v202
    %v205 = vrsqrt.pop %v203
    %v206 = vmul.f32 %v190, %v204
    %v207 = vmul.f32 %v191, %v205
    %v209 = vlaneseq
    %v210 = vshrl.u32 %v209, 7
    %v211 = vsub.s32 0, %v210
    %v212 = vrot.slane %v178, %v211
    %v214 = vmul.f32 %v206, %v212
    %v215 = vmul.f32 %v207, %v212
    %v217 = vlaneseq
    %v218 = vshrl.u32 %v217, 7
    %v219 = vsub.s32 0, %v218
    %v220 = vrot.slane %v179, %v219
    %v222 = vadd.f32 %v214, %v220
    %v223 = vadd.f32 %v215, %v220
    %v224 = vpack.c.bf16 %v223, %v222
    %v226 = vunpack.c.l.b16 %v224
    %v227 = vunpack.c.h.b16 %v224
    %v228 = vpack.c.b16 %v226, %v226
    %v229 = vpack.c.b16 %v227, %v227
    %vm232 = vcmask 125952
    %233 = vst.msk [vmem:[#allocation11] sm:$0xf] %vm232, %v228
    %234 = vst.msk [vmem:[#allocation11 + $0x4] sm:$0xf] %vm232, %v229
    %v235 = vsel %vm180, %v222, 0.0
    %236 = vadd.xlane.f32.xlu0 %v235
    %v237 = vpop.xlane.xlu0 %236
    %v238 = vsel %vm180, %v223, 0.0
    %239 = vadd.xlane.f32.xlu0 %v238
    %v240 = vpop.xlane.xlu0 %239
    %v241 = vmul.f32 %v237, %v187
    %v242 = vmul.f32 %v240, %v187
    %vm243 = vcmask 7168
    %244 = vst.msk [vmem:[#allocation12] sm:$0xff] %vm243, %v241
    %245 = vst.msk [vmem:[#allocation12 + $0x8] sm:$0xff] %vm243, %v242
    // Predicated region
    $region42: #{swin_forward.10} parent=1 // pred_check
      _
    $region43: #{swin_forward.10} parent=1 // pred_check_branch
      %247 = sbr.rel (0) target = $region45
    $region44: #{swin_forward.10} parent=1 // pred_region
      %s249 = ssub.s32 128, 128
      %250 = vsyncadd [#allocation4], %s249
      %s251 = sshll.u32 [#allocation11], 4
      %s252 = int_to_ptr.vmem [resolvable:$true] %s251
      %257 = dma.vmem_to_hbm [thread:$0]  %s252, 128, %s5, [#allocation4], 64, 64, 4
    $region45: #{swin_forward.10} parent=1 // pred_fallthru
      _
    // Predicated region
    $region46: #{swin_forward.10} parent=1 // pred_check
      _
    $region47: #{swin_forward.10} parent=1 // pred_check_branch
      %259 = sbr.rel (0) target = $region49
    $region48: #{swin_forward.10} parent=1 // pred_region
      %s261 = ssub.s32 256, 256
      %262 = vsyncadd [#allocation13], %s261
      %s263 = sshll.u32 [#allocation12], 4
      %s264 = int_to_ptr.vmem [resolvable:$true] %s263
      %269 = dma.vmem_to_hbm [thread:$0]  %s264, 256, %s6, [#allocation13], 128, 128, 8
    $region49: #{swin_forward.10} parent=1 // pred_fallthru
      _
    // Predicated region
    $region50: #{swin_forward.10} parent=1 // pred_check
      _
    $region51: #{swin_forward.10} parent=1 // pred_check_branch
      %271 = sbr.rel (0) target = $region53
    $region52: #{swin_forward.10} parent=1 // pred_region
      %272 = dma.done [#allocation4], 128
    $region53: #{swin_forward.10} parent=1 // pred_fallthru
      _
    // Predicated region
    $region54: #{swin_forward.10} parent=1 // pred_check
      _
    $region55: #{swin_forward.10} parent=1 // pred_check_branch
      %274 = sbr.rel (0) target = $region57
    $region56: #{swin_forward.10} parent=1 // pred_region
      %275 = dma.done [#allocation13], 256
    $region57: #{swin_forward.10} parent=1 // pred_fallthru
      _
    %276 = vsyncpa [#allocation3], 1
    %277 = vsyncpa [#allocation6], 1
    %278 = vsyncpa [#allocation9], 1
    %279 = vsyncpa [#allocation4], 1
    %280 = vsyncpa [#allocation13], 1

// kernel: swin_forward.11
$region0: #{swin_forward.11}
  #allocation0 [shape = 'u32[]', space=smem, size = 0x4, offset = 0x4, fixed_abs, tag = 'smem constant byte address 0x4 - core index']
  #allocation1 [shape = 'u32[144,128]{1,0:T(1,128)}', space=vmem, size = 0x12000, scoped, tag = 'internal scratch']
  %s0 = inlined_call_operand.hbm [shape: bf16[16,16], index: 0, kind: input, shape index: {}]
  %s1 = inlined_call_operand.hbm [shape: bf16[16,32], index: 1, kind: input, shape index: {}]
  %s2 = inlined_call_operand.hbm [shape: f32[1,32], index: 2, kind: input, shape index: {}]
  %s3 = inlined_call_operand.hbm [shape: bf16[16,32], index: 3, kind: output, shape index: {}]
  %s4 = sld [smem:[#allocation0]]
  $region34: #{swin_forward.11} parent=0
    _
  %s6 = ssub.s32 1, %s4
  %s7 = scalar_select 0, %s6, %s4
  $region1: #{swin_forward.11} parent=0
    #allocation2 [shape = 'u8[4096]{0}', space=vmem, size = 0x1000, scoped, tag = 'input window, operand 0, single buffered']
    #allocation3 [shape = 's32[1]{0}', space=sflag, size = 0x4, scoped, tag = 'scoped memory for swin_forward.11']
    #allocation4 [shape = 's32[1]{0}', space=sflag, size = 0x4, scoped, tag = 'scoped memory for swin_forward.11']
    #allocation5 [shape = 'u8[4096]{0}', space=vmem, size = 0x1000, scoped, tag = 'input window, operand 1, single buffered']
    #allocation6 [shape = 's32[1]{0}', space=sflag, size = 0x4, scoped, tag = 'scoped memory for swin_forward.11']
    #allocation7 [shape = 'u8[512]{0}', space=vmem, size = 0x400, scoped, tag = 'input window, operand 2, single buffered']
    #allocation8 [shape = 'u8[4096]{0}', space=vmem, size = 0x1000, scoped, tag = 'output window, operand 0, single buffered']
    %8 = vsyncpa [#allocation3], 0
    %9 = vsyncpa [#allocation6], 0
    %10 = vsyncpa [#allocation4], 0
    // Predicated region
    $region2: #{swin_forward.11} parent=1 // pred_check
      _
    $region3: #{swin_forward.11} parent=1 // pred_check_branch
      %12 = sbr.rel (0) target = $region5
    $region4: #{swin_forward.11} parent=1 // pred_region
      %s14 = ssub.s32 128, 128
      %15 = vsyncadd [#allocation3], %s14
      %s16 = sshll.u32 [#allocation2], 4
      %s17 = int_to_ptr.vmem [resolvable:$true] %s16
      %22 = dma.hbm_to_vmem [thread:$0]  %s0, 128, %s17, [#allocation3], 64, 64, 4
    $region5: #{swin_forward.11} parent=1 // pred_fallthru
      _
    // Predicated region
    $region6: #{swin_forward.11} parent=1 // pred_check
      _
    $region7: #{swin_forward.11} parent=1 // pred_check_branch
      %24 = sbr.rel (0) target = $region9
    $region8: #{swin_forward.11} parent=1 // pred_region
      %s26 = ssub.s32 128, 128
      %27 = vsyncadd [#allocation6], %s26
      %s28 = sshll.u32 [#allocation5], 4
      %s29 = int_to_ptr.vmem [resolvable:$true] %s28
      %34 = dma.hbm_to_vmem [thread:$0]  %s1, 128, %s29, [#allocation6], 64, 64, 4
    $region9: #{swin_forward.11} parent=1 // pred_fallthru
      _
    // Predicated region
    $region10: #{swin_forward.11} parent=1 // pred_check
      _
    $region11: #{swin_forward.11} parent=1 // pred_check_branch
      %36 = sbr.rel (0) target = $region13
    $region12: #{swin_forward.11} parent=1 // pred_region
      %s38 = ssub.s32 16, 16
      %39 = vsyncadd [#allocation6], %s38
      %s41 = sshll.u32 [#allocation7], 4
      %s42 = int_to_ptr.vmem [resolvable:$true] %s41
      %44 = dma.hbm_to_vmem [thread:$0]  %s2, 16, %s42, [#allocation6]
    $region13: #{swin_forward.11} parent=1 // pred_fallthru
      _
    // Predicated region
    $region14: #{swin_forward.11} parent=1 // pred_check
      _
    $region15: #{swin_forward.11} parent=1 // pred_check_branch
      %46 = sbr.rel (0) target = $region17
    $region16: #{swin_forward.11} parent=1 // pred_region
      %47 = dma.done [#allocation3], 128
    $region17: #{swin_forward.11} parent=1 // pred_fallthru
      _
    // Predicated region
    $region18: #{swin_forward.11} parent=1 // pred_check
      _
    $region19: #{swin_forward.11} parent=1 // pred_check_branch
      %49 = sbr.rel (0) target = $region21
    $region20: #{swin_forward.11} parent=1 // pred_region
      %50 = dma.done [#allocation6], 128
    $region21: #{swin_forward.11} parent=1 // pred_fallthru
      _
    // Predicated region
    $region22: #{swin_forward.11} parent=1 // pred_check
      _
    $region23: #{swin_forward.11} parent=1 // pred_check_branch
      %52 = sbr.rel (0) target = $region25
    $region24: #{swin_forward.11} parent=1 // pred_region
      %53 = dma.done [#allocation6], 16
    $region25: #{swin_forward.11} parent=1 // pred_fallthru
      _
    %v55 = vld [vmem:[#allocation2] sm:$0xf]
    %v56 = vld [vmem:[#allocation2 + $0x4] sm:$0xf]
    %v57 = vld [vmem:[#allocation5] sm:$0xf]
    %v58 = vld [vmem:[#allocation5 + $0x4] sm:$0xf]
    %v59 = vld [vmem:[#allocation7] sm:$0x1]
    %v61 = vlaneseq
    %v62 = vshrl.u32 %v61, 7
    %v63 = vsub.s32 0, %v62
    %v64 = vrot.slane %v59, %v63
    %v68 = vunpack.c.l.b16 %v55
    %v69 = vunpack.c.l.b16 %v56
    %v70 = vpack.c.b16 %v69, %v68
    %v73 = vunpack.c.l.b16 %v57
    %v74 = vunpack.c.l.b16 %v58
    %v75 = vpack.c.b16 %v74, %v73
    %vm77 = vcmask 130048
    %v79 = vsel %vm77, %v70, 0
    %81 = vmatprep.subr.bf16.mxu0 0
    %82 = vmatpush1.bf16.msra.mxu0 %v75
    %83 = vmatprep.subr.bf16.mxu0 0
    %84 = vmatpush1.bf16.msra.mxu0 0
    %85 = vmatprep.subr.bf16.mxu0 0
    %86 = vmatpush1.bf16.msra.mxu0 0
    %87 = vmatprep.subr.bf16.mxu0 0
    %88 = vmatpush1.bf16.msra.mxu0 0
    %89 = vmatprep.subr.bf16.mxu0 0
    %90 = vmatpush1.bf16.msra.mxu0 0
    %91 = vmatprep.subr.bf16.mxu0 0
    %92 = vmatpush1.bf16.msra.mxu0 0
    %93 = vmatprep.subr.bf16.mxu0 0
    %94 = vmatpush1.bf16.msra.mxu0 0
    %95 = vmatprep.subr.bf16.mxu0 0
    %96 = vmatpush1.bf16.msra.mxu0 0
    %97 = vmatprep.subr.bf16.mxu0 0
    %98 = vmatpush1.bf16.msra.mxu0 0
    %99 = vmatprep.subr.bf16.mxu0 0
    %100 = vmatpush1.bf16.msra.mxu0 0
    %101 = vmatprep.subr.bf16.mxu0 0
    %102 = vmatpush1.bf16.msra.mxu0 0
    %103 = vmatprep.subr.bf16.mxu0 0
    %104 = vmatpush1.bf16.msra.mxu0 0
    %105 = vmatprep.subr.bf16.mxu0 0
    %106 = vmatpush1.bf16.msra.mxu0 0
    %107 = vmatprep.subr.bf16.mxu0 0
    %108 = vmatpush1.bf16.msra.mxu0 0
    %109 = vmatprep.subr.bf16.mxu0 0
    %110 = vmatpush1.bf16.msra.mxu0 0
    %111 = vmatprep.subr.bf16.mxu0 0
    %112 = vmatpush1.bf16.msra.mxu0 0
    %113 = vmatprep.mubr.bf16.mxu0 0
    %114 = vmatmul.mubr.bf16.gmra.mrb[0].mxu0 %v79
    %v115 = vpop.f32.mrb[0].mxu0
    %v116 = vadd.f32 %v64, %v115
    %v117 = vpop.f32.mrb[0].mxu0
    %v118 = vpop.f32.mrb[0].mxu0
    %v119 = vadd.f32 %v64, %v118
    %v120 = vpop.f32.mrb[0].mxu0
    %121 = vdwg.mxu0
    %v122 = vpack.c.bf16 %v119, %v116
    %v124 = vunpack.c.l.b16 %v122
    %v125 = vunpack.c.h.b16 %v122
    %v126 = vpack.c.b16 %v124, %v124
    %v127 = vpack.c.b16 %v125, %v125
    %vm130 = vcmask 257024
    %131 = vst.msk [vmem:[#allocation8] sm:$0xf] %vm130, %v126
    %132 = vst.msk [vmem:[#allocation8 + $0x4] sm:$0xf] %vm130, %v127
    // Predicated region
    $region26: #{swin_forward.11} parent=1 // pred_check
      _
    $region27: #{swin_forward.11} parent=1 // pred_check_branch
      %134 = sbr.rel (0) target = $region29
    $region28: #{swin_forward.11} parent=1 // pred_region
      %s136 = ssub.s32 128, 128
      %137 = vsyncadd [#allocation4], %s136
      %s138 = sshll.u32 [#allocation8], 4
      %s139 = int_to_ptr.vmem [resolvable:$true] %s138
      %144 = dma.vmem_to_hbm [thread:$0]  %s139, 128, %s3, [#allocation4], 64, 64, 4
    $region29: #{swin_forward.11} parent=1 // pred_fallthru
      _
    // Predicated region
    $region30: #{swin_forward.11} parent=1 // pred_check
      _
    $region31: #{swin_forward.11} parent=1 // pred_check_branch
      %146 = sbr.rel (0) target = $region33
    $region32: #{swin_forward.11} parent=1 // pred_region
      %147 = dma.done [#allocation4], 128
    $region33: #{swin_forward.11} parent=1 // pred_fallthru
      _
    %148 = vsyncpa [#allocation3], 1
    %149 = vsyncpa [#allocation6], 1
    %150 = vsyncpa [#allocation4], 1

// kernel: custom-call.2
$region0: #{custom-call.2}
  %s0 = inlined_call_operand.hbm [shape: s32[6,2], index: 0, kind: output, shape index: {}]

// kernel: swin_forward.7
$region0: #{swin_forward.7}
  #allocation0 [shape = 'u32[]', space=smem, size = 0x4, offset = 0x4, fixed_abs, tag = 'smem constant byte address 0x4 - core index']
  #allocation1 [shape = 'u32[144,128]{1,0:T(1,128)}', space=vmem, size = 0x12000, scoped, tag = 'internal scratch']
  %s0 = inlined_call_operand.hbm [shape: bf16[2,2,4,4,32], index: 0, kind: input, shape index: {}]
  %s1 = inlined_call_operand.hbm [shape: f32[1,32], index: 1, kind: input, shape index: {}]
  %s2 = inlined_call_operand.hbm [shape: f32[1,32], index: 2, kind: input, shape index: {}]
  %s3 = inlined_call_operand.hbm [shape: bf16[32,96], index: 3, kind: input, shape index: {}]
  %s4 = inlined_call_operand.hbm [shape: f32[1,96], index: 4, kind: input, shape index: {}]
  %s5 = inlined_call_operand.hbm [shape: f32[2,4,4], index: 5, kind: input, shape index: {}]
  %s6 = inlined_call_operand.hbm [shape: bf16[32,32], index: 6, kind: input, shape index: {}]
  %s7 = inlined_call_operand.hbm [shape: f32[1,32], index: 7, kind: input, shape index: {}]
  %s8 = inlined_call_operand.hbm [shape: f32[1,32], index: 8, kind: input, shape index: {}]
  %s9 = inlined_call_operand.hbm [shape: f32[1,32], index: 9, kind: input, shape index: {}]
  %s10 = inlined_call_operand.hbm [shape: bf16[32,128], index: 10, kind: input, shape index: {}]
  %s11 = inlined_call_operand.hbm [shape: f32[1,128], index: 11, kind: input, shape index: {}]
  %s12 = inlined_call_operand.hbm [shape: bf16[128,32], index: 12, kind: input, shape index: {}]
  %s13 = inlined_call_operand.hbm [shape: f32[1,32], index: 13, kind: input, shape index: {}]
  %s14 = inlined_call_operand.hbm [shape: bf16[2,2,4,4,32], index: 14, kind: output, shape index: {}]
  %s15 = sld [smem:[#allocation0]]
  $region145: #{swin_forward.7} parent=0
    _
  %s17 = ssub.s32 1, %s15
  %s18 = scalar_select 0, %s17, %s15
  $region1: #{swin_forward.7} parent=0
    #allocation2 [shape = 'u8[16384]{0}', space=vmem, size = 0x4000, scoped, tag = 'input window, operand 0']
    #allocation3 [shape = 's32[2]{0}', space=sflag, size = 0x8, scoped, tag = 'scoped memory for swin_forward.7']
    #allocation4 [shape = 's32[2]{0}', space=sflag, size = 0x8, scoped, tag = 'scoped memory for swin_forward.7']
    #allocation5 [shape = 'u8[512]{0}', space=vmem, size = 0x400, scoped, tag = 'input window, operand 1, single buffered']
    #allocation6 [shape = 's32[1]{0}', space=sflag, size = 0x4, scoped, tag = 'scoped memory for swin_forward.7']
    #allocation7 [shape = 'u8[512]{0}', space=vmem, size = 0x400, scoped, tag = 'input window, operand 2, single buffered']
    #allocation8 [shape = 'u8[8192]{0}', space=vmem, size = 0x2000, scoped, tag = 'input window, operand 3, single buffered']
    #allocation9 [shape = 's32[1]{0}', space=sflag, size = 0x4, scoped, tag = 'scoped memory for swin_forward.7']
    #allocation10 [shape = 'u8[512]{0}', space=vmem, size = 0x400, scoped, tag = 'input window, operand 4, single buffered']
    #allocation11 [shape = 'u8[4096]{0}', space=vmem, size = 0x1000, scoped, tag = 'input window, operand 5, single buffered']
    #allocation12 [shape = 's32[1]{0}', space=sflag, size = 0x4, scoped, tag = 'scoped memory for swin_forward.7']
    #allocation13 [shape = 'u8[8192]{0}', space=vmem, size = 0x2000, scoped, tag = 'input window, operand 6, single buffered']
    #allocation14 [shape = 'u8[512]{0}', space=vmem, size = 0x400, scoped, tag = 'input window, operand 7, single buffered']
    #allocation15 [shape = 's32[1]{0}', space=sflag, size = 0x4, scoped, tag = 'scoped memory for swin_forward.7']
    #allocation16 [shape = 'u8[512]{0}', space=vmem, size = 0x400, scoped, tag = 'input window, operand 8, single buffered']
    #allocation17 [shape = 'u8[512]{0}', space=vmem, size = 0x400, scoped, tag = 'input window, operand 9, single buffered']
    #allocation18 [shape = 's32[1]{0}', space=sflag, size = 0x4, scoped, tag = 'scoped memory for swin_forward.7']
    #allocation19 [shape = 'u8[8192]{0}', space=vmem, size = 0x2000, scoped, tag = 'input window, operand 10, single buffered']
    #allocation20 [shape = 'u8[512]{0}', space=vmem, size = 0x400, scoped, tag = 'input window, operand 11, single buffered']
    #allocation21 [shape = 's32[1]{0}', space=sflag, size = 0x4, scoped, tag = 'scoped memory for swin_forward.7']
    #allocation22 [shape = 'u8[32768]{0}', space=vmem, size = 0x8000, scoped, tag = 'input window, operand 12, single buffered']
    #allocation23 [shape = 'u8[512]{0}', space=vmem, size = 0x400, scoped, tag = 'input window, operand 13, single buffered']
    #allocation24 [shape = 's32[1]{0}', space=sflag, size = 0x4, scoped, tag = 'scoped memory for swin_forward.7']
    #allocation25 [shape = 'u8[16384]{0}', space=vmem, size = 0x4000, scoped, tag = 'output window, operand 0']
    %19 = vsyncpa [#allocation3], 0
    %s20 = scalar_lea.sflag [#allocation3], 1
    %21 = vsyncpa %s20, 0
    %22 = vsyncpa [#allocation6], 0
    %23 = vsyncpa [#allocation9], 0
    %24 = vsyncpa [#allocation12], 0
    %25 = vsyncpa [#allocation15], 0
    %26 = vsyncpa [#allocation18], 0
    %27 = vsyncpa [#allocation21], 0
    %28 = vsyncpa [#allocation24], 0
    %29 = vsyncpa [#allocation4], 0
    %s30 = scalar_lea.sflag [#allocation4], 1
    %31 = vsyncpa %s30, 0
    loop: start=0, step=1, limit=4
    $region2: #{swin_forward.7} parent=1 // loop_pre_header
      _
    $region3: #{swin_forward.7} parent=1 // loop_header
      %s33 = sphi 0, %s37
      %p34 = scmp.ge.s32.totalorder %s33, 4
      %s40 = sphi 0, %s52
      %s41 = sphi 0, %s48
      %s42 = sphi 0, %s40
      %s43 = sphi 0, %s41
      %s44 = sphi 0, %s42
      %s45 = sphi 0, %s43
      %s57 = sphi 0, %s59
      %s60 = sphi 0, %s57
      %s61 = sphi 0, %s60
      %s77 = sphi 0, %s61
      %s81 = sphi 0, %s81
      %s83 = sphi 0, %s81
      %s84 = sphi 0, %s83
      %s98 = sphi 0, %s84
      %s102 = sphi 0, %s102
      %s104 = sphi 0, %s102
      %s105 = sphi 0, %s104
      %s119 = sphi 0, %s105
      %s123 = sphi 0, %s123
      %s125 = sphi 0, %s123
      %s126 = sphi 0, %s125
      %s140 = sphi 0, %s126
      %s144 = sphi 0, %s144
      %s146 = sphi 0, %s144
      %s147 = sphi 0, %s146
      %s161 = sphi 0, %s147
      %s165 = sphi 0, %s165
      %s167 = sphi 0, %s165
      %s168 = sphi 0, %s167
      %s182 = sphi 0, %s168
      %s186 = sphi 0, %s186
      %s188 = sphi 0, %s186
      %s189 = sphi 0, %s188
      %s203 = sphi 0, %s189
      %s207 = sphi 0, %s207
      %s209 = sphi 0, %s207
      %s210 = sphi 0, %s209
      %s224 = sphi 0, %s210
      %s228 = sphi 0, %s228
      %s230 = sphi 0, %s228
      %s231 = sphi 0, %s230
      %s245 = sphi 0, %s231
      %s249 = sphi 0, %s249
      %s251 = sphi 0, %s249
      %s252 = sphi 0, %s251
      %s266 = sphi 0, %s252
      %s270 = sphi 0, %s270
      %s272 = sphi 0, %s270
      %s273 = sphi 0, %s272
      %s287 = sphi 0, %s273
      %s291 = sphi 0, %s291
      %s293 = sphi 0, %s291
      %s294 = sphi 0, %s293
      %s308 = sphi 0, %s294
      %s312 = sphi 0, %s312
      %s314 = sphi 0, %s312
      %s315 = sphi 0, %s314
      %s329 = sphi 0, %s315
      %s333 = sphi 0, %s333
      %s335 = sphi 0, %s333
      %s336 = sphi 0, %s335
      %s350 = sphi 0, %s336
      %s358 = sphi 0, %s360
      %s361 = sphi 0, %s358
      %s362 = sphi 0, %s361
      %s378 = sphi 0, %s362
    $region4: #{swin_forward.7} parent=1 // loop_header_branch
      %36 = sbr.rel (%p34) target = $region8
    $region5: #{swin_forward.7} parent=1 // loop_body
      %s38 = ssub.s32 %s33, 1
      %s39 = ssub.s32 %s33, 2
      %s46 = sadd.s32 1, %s41
      %p47 = scmp.ge.s32.totalorder %s46, 1
      %s48 = scalar_select %p47, 0, %s46
      %s49 = sadd.s32 1, %s40
      %s50 = scalar_select %p47, %s49, %s40
      %p51 = scmp.ge.s32.totalorder %s50, 2
      %s52 = scalar_select %p51, 0, %s50
      %s53 = ssub.s32 %s40, %s52
      %s54 = ssub.s32 %s41, %s48
      %s55 = sor.u32 %s53, %s54
      %p56 = scmp.eq.s32.totalorder %s55, 0
      %s58 = sadd.s32 %s57, 1
      %s59 = scalar_select %p56, %s57, %s58
      %p62 = pneg %p56
      %p63 = scmp.eq.s32.totalorder %s33, 1
      %p64 = por %p62, %p63
      %p65 = scmp.ne.s32.totalorder %s57, %s60
      %p66 = scmp.eq.s32.totalorder %s33, 0
      %p67 = por %p65, %p66
      %p68 = scmp.ne.s32.totalorder %s57, %s60
      %p69 = scmp.eq.s32.totalorder %s38, 1
      %p70 = por %p68, %p69
      %p71 = scmp.ne.s32.totalorder %s60, %s61
      %p72 = scmp.eq.s32.totalorder %s38, 0
      %p73 = por %p71, %p72
      %p74 = scmp.ne.s32.totalorder %s60, %s61
      %p75 = scmp.eq.s32.totalorder %s39, 1
      %p76 = por %p74, %p75
      %p78 = scmp.ne.s32.totalorder %s61, %s77
      %p79 = scmp.eq.s32.totalorder %s39, 0
      %p80 = por %p78, %p79
      %s82 = sadd.s32 %s81, 1
      %p85 = scmp.eq.s32.totalorder %s33, 1
      %p86 = scmp.ne.s32.totalorder %s81, %s83
      %p87 = scmp.eq.s32.totalorder %s33, 0
      %p88 = por %p86, %p87
      %p89 = scmp.ne.s32.totalorder %s81, %s83
      %p90 = scmp.eq.s32.totalorder %s38, 1
      %p91 = por %p89, %p90
      %p92 = scmp.ne.s32.totalorder %s83, %s84
      %p93 = scmp.eq.s32.totalorder %s38, 0
      %p94 = por %p92, %p93
      %p95 = scmp.ne.s32.totalorder %s83, %s84
      %p96 = scmp.eq.s32.totalorder %s39, 1
      %p97 = por %p95, %p96
      %p99 = scmp.ne.s32.totalorder %s84, %s98
      %p100 = scmp.eq.s32.totalorder %s39, 0
      %p101 = por %p99, %p100
      %s103 = sadd.s32 %s102, 1
      %p106 = scmp.eq.s32.totalorder %s33, 1
      %p107 = scmp.ne.s32.totalorder %s102, %s104
      %p108 = scmp.eq.s32.totalorder %s33, 0
      %p109 = por %p107, %p108
      %p110 = scmp.ne.s32.totalorder %s102, %s104
      %p111 = scmp.eq.s32.totalorder %s38, 1
      %p112 = por %p110, %p111
      %p113 = scmp.ne.s32.totalorder %s104, %s105
      %p114 = scmp.eq.s32.totalorder %s38, 0
      %p115 = por %p113, %p114
      %p116 = scmp.ne.s32.totalorder %s104, %s105
      %p117 = scmp.eq.s32.totalorder %s39, 1
      %p118 = por %p116, %p117
      %p120 = scmp.ne.s32.totalorder %s105, %s119
      %p121 = scmp.eq.s32.totalorder %s39, 0
      %p122 = por %p120, %p121
      %s124 = sadd.s32 %s123, 1
      %p127 = scmp.eq.s32.totalorder %s33, 1
      %p128 = scmp.ne.s32.totalorder %s123, %s125
      %p129 = scmp.eq.s32.totalorder %s33, 0
      %p130 = por %p128, %p129
      %p131 = scmp.ne.s32.totalorder %s123, %s125
      %p132 = scmp.eq.s32.totalorder %s38, 1
      %p133 = por %p131, %p132
      %p134 = scmp.ne.s32.totalorder %s125, %s126
      %p135 = scmp.eq.s32.totalorder %s38, 0
      %p136 = por %p134, %p135
      %p137 = scmp.ne.s32.totalorder %s125, %s126
      %p138 = scmp.eq.s32.totalorder %s39, 1
      %p139 = por %p137, %p138
      %p141 = scmp.ne.s32.totalorder %s126, %s140
      %p142 = scmp.eq.s32.totalorder %s39, 0
      %p143 = por %p141, %p142
      %s145 = sadd.s32 %s144, 1
      %p148 = scmp.eq.s32.totalorder %s33, 1
      %p149 = scmp.ne.s32.totalorder %s144, %s146
      %p150 = scmp.eq.s32.totalorder %s33, 0
      %p151 = por %p149, %p150
      %p152 = scmp.ne.s32.totalorder %s144, %s146
      %p153 = scmp.eq.s32.totalorder %s38, 1
      %p154 = por %p152, %p153
      %p155 = scmp.ne.s32.totalorder %s146, %s147
      %p156 = scmp.eq.s32.totalorder %s38, 0
      %p157 = por %p155, %p156
      %p158 = scmp.ne.s32.totalorder %s146, %s147
      %p159 = scmp.eq.s32.totalorder %s39, 1
      %p160 = por %p158, %p159
      %p162 = scmp.ne.s32.totalorder %s147, %s161
      %p163 = scmp.eq.s32.totalorder %s39, 0
      %p164 = por %p162, %p163
      %s166 = sadd.s32 %s165, 1
      %p169 = scmp.eq.s32.totalorder %s33, 1
      %p170 = scmp.ne.s32.totalorder %s165, %s167
      %p171 = scmp.eq.s32.totalorder %s33, 0
      %p172 = por %p170, %p171
      %p173 = scmp.ne.s32.totalorder %s165, %s167
      %p174 = scmp.eq.s32.totalorder %s38, 1
      %p175 = por %p173, %p174
      %p176 = scmp.ne.s32.totalorder %s167, %s168
      %p177 = scmp.eq.s32.totalorder %s38, 0
      %p178 = por %p176, %p177
      %p179 = scmp.ne.s32.totalorder %s167, %s168
      %p180 = scmp.eq.s32.totalorder %s39, 1
      %p181 = por %p179, %p180
      %p183 = scmp.ne.s32.totalorder %s168, %s182
      %p184 = scmp.eq.s32.totalorder %s39, 0
      %p185 = por %p183, %p184
      %s187 = sadd.s32 %s186, 1
      %p190 = scmp.eq.s32.totalorder %s33, 1
      %p191 = scmp.ne.s32.totalorder %s186, %s188
      %p192 = scmp.eq.s32.totalorder %s33, 0
      %p193 = por %p191, %p192
      %p194 = scmp.ne.s32.totalorder %s186, %s188
      %p195 = scmp.eq.s32.totalorder %s38, 1
      %p196 = por %p194, %p195
      %p197 = scmp.ne.s32.totalorder %s188, %s189
      %p198 = scmp.eq.s32.totalorder %s38, 0
      %p199 = por %p197, %p198
      %p200 = scmp.ne.s32.totalorder %s188, %s189
      %p201 = scmp.eq.s32.totalorder %s39, 1
      %p202 = por %p200, %p201
      %p204 = scmp.ne.s32.totalorder %s189, %s203
      %p205 = scmp.eq.s32.totalorder %s39, 0
      %p206 = por %p204, %p205
      %s208 = sadd.s32 %s207, 1
      %p211 = scmp.eq.s32.totalorder %s33, 1
      %p212 = scmp.ne.s32.totalorder %s207, %s209
      %p213 = scmp.eq.s32.totalorder %s33, 0
      %p214 = por %p212, %p213
      %p215 = scmp.ne.s32.totalorder %s207, %s209
      %p216 = scmp.eq.s32.totalorder %s38, 1
      %p217 = por %p215, %p216
      %p218 = scmp.ne.s32.totalorder %s209, %s210
      %p219 = scmp.eq.s32.totalorder %s38, 0
      %p220 = por %p218, %p219
      %p221 = scmp.ne.s32.totalorder %s209, %s210
      %p222 = scmp.eq.s32.totalorder %s39, 1
      %p223 = por %p221, %p222
      %p225 = scmp.ne.s32.totalorder %s210, %s224
      %p226 = scmp.eq.s32.totalorder %s39, 0
      %p227 = por %p225, %p226
      %s229 = sadd.s32 %s228, 1
      %p232 = scmp.eq.s32.totalorder %s33, 1
      %p233 = scmp.ne.s32.totalorder %s228, %s230
      %p234 = scmp.eq.s32.totalorder %s33, 0
      %p235 = por %p233, %p234
      %p236 = scmp.ne.s32.totalorder %s228, %s230
      %p237 = scmp.eq.s32.totalorder %s38, 1
      %p238 = por %p236, %p237
      %p239 = scmp.ne.s32.totalorder %s230, %s231
      %p240 = scmp.eq.s32.totalorder %s38, 0
      %p241 = por %p239, %p240
      %p242 = scmp.ne.s32.totalorder %s230, %s231
      %p243 = scmp.eq.s32.totalorder %s39, 1
      %p244 = por %p242, %p243
      %p246 = scmp.ne.s32.totalorder %s231, %s245
      %p247 = scmp.eq.s32.totalorder %s39, 0
      %p248 = por %p246, %p247
      %s250 = sadd.s32 %s249, 1
      %p253 = scmp.eq.s32.totalorder %s33, 1
      %p254 = scmp.ne.s32.totalorder %s249, %s251
      %p255 = scmp.eq.s32.totalorder %s33, 0
      %p256 = por %p254, %p255
      %p257 = scmp.ne.s32.totalorder %s249, %s251
      %p258 = scmp.eq.s32.totalorder %s38, 1
      %p259 = por %p257, %p258
      %p260 = scmp.ne.s32.totalorder %s251, %s252
      %p261 = scmp.eq.s32.totalorder %s38, 0
      %p262 = por %p260, %p261
      %p263 = scmp.ne.s32.totalorder %s251, %s252
      %p264 = scmp.eq.s32.totalorder %s39, 1
      %p265 = por %p263, %p264
      %p267 = scmp.ne.s32.totalorder %s252, %s266
      %p268 = scmp.eq.s32.totalorder %s39, 0
      %p269 = por %p267, %p268
      %s271 = sadd.s32 %s270, 1
      %p274 = scmp.eq.s32.totalorder %s33, 1
      %p275 = scmp.ne.s32.totalorder %s270, %s272
      %p276 = scmp.eq.s32.totalorder %s33, 0
      %p277 = por %p275, %p276
      %p278 = scmp.ne.s32.totalorder %s270, %s272
      %p279 = scmp.eq.s32.totalorder %s38, 1
      %p280 = por %p278, %p279
      %p281 = scmp.ne.s32.totalorder %s272, %s273
      %p282 = scmp.eq.s32.totalorder %s38, 0
      %p283 = por %p281, %p282
      %p284 = scmp.ne.s32.totalorder %s272, %s273
      %p285 = scmp.eq.s32.totalorder %s39, 1
      %p286 = por %p284, %p285
      %p288 = scmp.ne.s32.totalorder %s273, %s287
      %p289 = scmp.eq.s32.totalorder %s39, 0
      %p290 = por %p288, %p289
      %s292 = sadd.s32 %s291, 1
      %p295 = scmp.eq.s32.totalorder %s33, 1
      %p296 = scmp.ne.s32.totalorder %s291, %s293
      %p297 = scmp.eq.s32.totalorder %s33, 0
      %p298 = por %p296, %p297
      %p299 = scmp.ne.s32.totalorder %s291, %s293
      %p300 = scmp.eq.s32.totalorder %s38, 1
      %p301 = por %p299, %p300
      %p302 = scmp.ne.s32.totalorder %s293, %s294
      %p303 = scmp.eq.s32.totalorder %s38, 0
      %p304 = por %p302, %p303
      %p305 = scmp.ne.s32.totalorder %s293, %s294
      %p306 = scmp.eq.s32.totalorder %s39, 1
      %p307 = por %p305, %p306
      %p309 = scmp.ne.s32.totalorder %s294, %s308
      %p310 = scmp.eq.s32.totalorder %s39, 0
      %p311 = por %p309, %p310
      %s313 = sadd.s32 %s312, 1
      %p316 = scmp.eq.s32.totalorder %s33, 1
      %p317 = scmp.ne.s32.totalorder %s312, %s314
      %p318 = scmp.eq.s32.totalorder %s33, 0
      %p319 = por %p317, %p318
      %p320 = scmp.ne.s32.totalorder %s312, %s314
      %p321 = scmp.eq.s32.totalorder %s38, 1
      %p322 = por %p320, %p321
      %p323 = scmp.ne.s32.totalorder %s314, %s315
      %p324 = scmp.eq.s32.totalorder %s38, 0
      %p325 = por %p323, %p324
      %p326 = scmp.ne.s32.totalorder %s314, %s315
      %p327 = scmp.eq.s32.totalorder %s39, 1
      %p328 = por %p326, %p327
      %p330 = scmp.ne.s32.totalorder %s315, %s329
      %p331 = scmp.eq.s32.totalorder %s39, 0
      %p332 = por %p330, %p331
      %s334 = sadd.s32 %s333, 1
      %p337 = scmp.eq.s32.totalorder %s33, 1
      %p338 = scmp.ne.s32.totalorder %s333, %s335
      %p339 = scmp.eq.s32.totalorder %s33, 0
      %p340 = por %p338, %p339
      %p341 = scmp.ne.s32.totalorder %s333, %s335
      %p342 = scmp.eq.s32.totalorder %s38, 1
      %p343 = por %p341, %p342
      %p344 = scmp.ne.s32.totalorder %s335, %s336
      %p345 = scmp.eq.s32.totalorder %s38, 0
      %p346 = por %p344, %p345
      %p347 = scmp.ne.s32.totalorder %s335, %s336
      %p348 = scmp.eq.s32.totalorder %s39, 1
      %p349 = por %p347, %p348
      %p351 = scmp.ne.s32.totalorder %s336, %s350
      %p352 = scmp.eq.s32.totalorder %s39, 0
      %p353 = por %p351, %p352
      %s354 = ssub.s32 %s40, %s52
      %s355 = ssub.s32 %s41, %s48
      %s356 = sor.u32 %s354, %s355
      %p357 = scmp.eq.s32.totalorder %s356, 0
      %s359 = sadd.s32 %s358, 1
      %s360 = scalar_select %p357, %s358, %s359
      %p363 = pneg %p357
      %p364 = scmp.eq.s32.totalorder %s33, 1
      %p365 = por %p363, %p364
      %p366 = scmp.ne.s32.totalorder %s358, %s361
      %p367 = scmp.eq.s32.totalorder %s33, 0
      %p368 = por %p366, %p367
      %p369 = scmp.ne.s32.totalorder %s358, %s361
      %p370 = scmp.eq.s32.totalorder %s38, 1
      %p371 = por %p369, %p370
      %p372 = scmp.ne.s32.totalorder %s361, %s362
      %p373 = scmp.eq.s32.totalorder %s38, 0
      %p374 = por %p372, %p373
      %p375 = scmp.ne.s32.totalorder %s361, %s362
      %p376 = scmp.eq.s32.totalorder %s39, 1
      %p377 = por %p375, %p376
      %p379 = scmp.ne.s32.totalorder %s362, %s378
      %p380 = scmp.eq.s32.totalorder %s39, 0
      %p381 = por %p379, %p380
      %p382 = scmp.le.s32.totalorder 1, %s33
      %p383 = scmp.lt.s32.totalorder %s33, 3
      %p384 = pnand %p382, %p383
      %p385 = pneg %p384
      // Predicated region
      $region9: #{swin_forward.7} parent=5 // pred_check
        _
      $region10: #{swin_forward.7} parent=5 // pred_check_branch
        %387 = sbr.rel (%p384) target = $region12
      $region11: #{swin_forward.7} parent=5 // pred_region
        %s388 = ssub.s32 %s33, 1
        // Predicated region
        $region13: #{swin_forward.7} parent=11 // pred_check
          %p389 = pneg %p94
        $region14: #{swin_forward.7} parent=11 // pred_check_branch
          %391 = sbr.rel (%p389) target = $region16
        $region15: #{swin_forward.7} parent=11 // pred_region
          %s393 = ssub.s32 16, 16
          %394 = vsyncadd [#allocation6], %s393
          %s396 = sshll.u32 [#allocation5], 4
          %s397 = int_to_ptr.vmem [resolvable:$true] %s396
          %399 = dma.hbm_to_vmem [thread:$0]  %s1, 16, %s397, [#allocation6]
        $region16: #{swin_forward.7} parent=11 // pred_fallthru
          _
        // Predicated region
        $region17: #{swin_forward.7} parent=11 // pred_check
          %p400 = pneg %p115
        $region18: #{swin_forward.7} parent=11 // pred_check_branch
          %402 = sbr.rel (%p400) target = $region20
        $region19: #{swin_forward.7} parent=11 // pred_region
          %s404 = ssub.s32 16, 16
          %405 = vsyncadd [#allocation6], %s404
          %s407 = sshll.u32 [#allocation7], 4
          %s408 = int_to_ptr.vmem [resolvable:$true] %s407
          %410 = dma.hbm_to_vmem [thread:$0]  %s2, 16, %s408, [#allocation6]
        $region20: #{swin_forward.7} parent=11 // pred_fallthru
          _
        // Predicated region
        $region21: #{swin_forward.7} parent=11 // pred_check
          %p411 = pneg %p136
        $region22: #{swin_forward.7} parent=11 // pred_check_branch
          %413 = sbr.rel (%p411) target = $region24
        $region23: #{swin_forward.7} parent=11 // pred_region
          %s415 = ssub.s32 256, 256
          %416 = vsyncadd [#allocation9], %s415
          %s417 = sshll.u32 [#allocation8], 4
          %s418 = int_to_ptr.vmem [resolvable:$true] %s417
          %423 = dma.hbm_to_vmem [thread:$0]  %s3, 256, %s418, [#allocation9], 64, 64, 4
        $region24: #{swin_forward.7} parent=11 // pred_fallthru
          _
        // Predicated region
        $region25: #{swin_forward.7} parent=11 // pred_check
          %p424 = pneg %p157
        $region26: #{swin_forward.7} parent=11 // pred_check_branch
          %426 = sbr.rel (%p424) target = $region28
        $region27: #{swin_forward.7} parent=11 // pred_region
          %s428 = ssub.s32 16, 16
          %429 = vsyncadd [#allocation9], %s428
          %s431 = sshll.u32 [#allocation10], 4
          %s432 = int_to_ptr.vmem [resolvable:$true] %s431
          %434 = dma.hbm_to_vmem [thread:$0]  %s4, 16, %s432, [#allocation9]
        $region28: #{swin_forward.7} parent=11 // pred_fallthru
          _
        // Predicated region
        $region29: #{swin_forward.7} parent=11 // pred_check
          %p435 = pneg %p178
        $region30: #{swin_forward.7} parent=11 // pred_check_branch
          %437 = sbr.rel (%p435) target = $region32
        $region31: #{swin_forward.7} parent=11 // pred_region
          %s439 = ssub.s32 128, 128
          %440 = vsyncadd [#allocation12], %s439
          %s441 = sshll.u32 [#allocation11], 4
          %s442 = int_to_ptr.vmem [resolvable:$true] %s441
          %447 = dma.hbm_to_vmem [thread:$0]  %s5, 128, %s442, [#allocation12], 64, 64, 4
        $region32: #{swin_forward.7} parent=11 // pred_fallthru
          _
        // Predicated region
        $region33: #{swin_forward.7} parent=11 // pred_check
          %p448 = pneg %p199
        $region34: #{swin_forward.7} parent=11 // pred_check_branch
          %450 = sbr.rel (%p448) target = $region36
        $region35: #{swin_forward.7} parent=11 // pred_region
          %s452 = ssub.s32 256, 256
          %453 = vsyncadd [#allocation12], %s452
          %s454 = sshll.u32 [#allocation13], 4
          %s455 = int_to_ptr.vmem [resolvable:$true] %s454
          %460 = dma.hbm_to_vmem [thread:$0]  %s6, 256, %s455, [#allocation12], 64, 64, 4
        $region36: #{swin_forward.7} parent=11 // pred_fallthru
          _
        // Predicated region
        $region37: #{swin_forward.7} parent=11 // pred_check
          %p461 = pneg %p220
        $region38: #{swin_forward.7} parent=11 // pred_check_branch
          %463 = sbr.rel (%p461) target = $region40
        $region39: #{swin_forward.7} parent=11 // pred_region
          %s465 = ssub.s32 16, 16
          %466 = vsyncadd [#allocation15], %s465
          %s468 = sshll.u32 [#allocation14], 4
          %s469 = int_to_ptr.vmem [resolvable:$true] %s468
          %471 = dma.hbm_to_vmem [thread:$0]  %s7, 16, %s469, [#allocation15]
        $region40: #{swin_forward.7} parent=11 // pred_fallthru
          _
        // Predicated region
        $region41: #{swin_forward.7} parent=11 // pred_check
          %p472 = pneg %p241
        $region42: #{swin_forward.7} parent=11 // pred_check_branch
          %474 = sbr.rel (%p472) target = $region44
        $region43: #{swin_forward.7} parent=11 // pred_region
          %s476 = ssub.s32 16, 16
          %477 = vsyncadd [#allocation15], %s476
          %s479 = sshll.u32 [#allocation16], 4
          %s480 = int_to_ptr.vmem [resolvable:$true] %s479
          %482 = dma.hbm_to_vmem [thread:$0]  %s8, 16, %s480, [#allocation15]
        $region44: #{swin_forward.7} parent=11 // pred_fallthru
          _
        // Predicated region
        $region45: #{swin_forward.7} parent=11 // pred_check
          %p483 = pneg %p262
        $region46: #{swin_forward.7} parent=11 // pred_check_branch
          %485 = sbr.rel (%p483) target = $region48
        $region47: #{swin_forward.7} parent=11 // pred_region
          %s487 = ssub.s32 16, 16
          %488 = vsyncadd [#allocation18], %s487
          %s490 = sshll.u32 [#allocation17], 4
          %s491 = int_to_ptr.vmem [resolvable:$true] %s490
          %493 = dma.hbm_to_vmem [thread:$0]  %s9, 16, %s491, [#allocation18]
        $region48: #{swin_forward.7} parent=11 // pred_fallthru
          _
        // Predicated region
        $region49: #{swin_forward.7} parent=11 // pred_check
          %p494 = pneg %p283
        $region50: #{swin_forward.7} parent=11 // pred_check_branch
          %496 = sbr.rel (%p494) target = $region52
        $region51: #{swin_forward.7} parent=11 // pred_region
          %s498 = ssub.s32 256, 256
          %499 = vsyncadd [#allocation18], %s498
          %s500 = sshll.u32 [#allocation19], 4
          %s501 = int_to_ptr.vmem [resolvable:$true] %s500
          %506 = dma.hbm_to_vmem [thread:$0]  %s10, 256, %s501, [#allocation18], 64, 64, 4
        $region52: #{swin_forward.7} parent=11 // pred_fallthru
          _
        // Predicated region
        $region53: #{swin_forward.7} parent=11 // pred_check
          %p507 = pneg %p304
        $region54: #{swin_forward.7} parent=11 // pred_check_branch
          %509 = sbr.rel (%p507) target = $region56
        $region55: #{swin_forward.7} parent=11 // pred_region
          %s511 = ssub.s32 16, 16
          %512 = vsyncadd [#allocation21], %s511
          %s514 = sshll.u32 [#allocation20], 4
          %s515 = int_to_ptr.vmem [resolvable:$true] %s514
          %517 = dma.hbm_to_vmem [thread:$0]  %s11, 16, %s515, [#allocation21]
        $region56: #{swin_forward.7} parent=11 // pred_fallthru
          _
        // Predicated region
        $region57: #{swin_forward.7} parent=11 // pred_check
          %p518 = pneg %p325
        $region58: #{swin_forward.7} parent=11 // pred_check_branch
          %520 = sbr.rel (%p518) target = $region60
        $region59: #{swin_forward.7} parent=11 // pred_region
          %s522 = ssub.s32 1024, 1024
          %523 = vsyncadd [#allocation21], %s522
          %s524 = sshll.u32 [#allocation22], 4
          %s525 = int_to_ptr.vmem [resolvable:$true] %s524
          %530 = dma.hbm_to_vmem [thread:$0]  %s12, 1024, %s525, [#allocation21], 64, 64, 4
        $region60: #{swin_forward.7} parent=11 // pred_fallthru
          _
        // Predicated region
        $region61: #{swin_forward.7} parent=11 // pred_check
          %p531 = pneg %p346
        $region62: #{swin_forward.7} parent=11 // pred_check_branch
          %533 = sbr.rel (%p531) target = $region64
        $region63: #{swin_forward.7} parent=11 // pred_region
          %s535 = ssub.s32 16, 16
          %536 = vsyncadd [#allocation24], %s535
          %s538 = sshll.u32 [#allocation23], 4
          %s539 = int_to_ptr.vmem [resolvable:$true] %s538
          %541 = dma.hbm_to_vmem [thread:$0]  %s13, 16, %s539, [#allocation24]
        $region64: #{swin_forward.7} parent=11 // pred_fallthru
          _
      $region12: #{swin_forward.7} parent=5 // pred_fallthru
        _
      %p542 = scmp.lt.s32.totalorder %s33, 2
      // Predicated region
      $region65: #{swin_forward.7} parent=5 // pred_check
        %p543 = pneg %p542
      $region66: #{swin_forward.7} parent=5 // pred_check_branch
        %545 = sbr.rel (%p543) target = $region68
      $region67: #{swin_forward.7} parent=5 // pred_region
        // Predicated region
        $region69: #{swin_forward.7} parent=67 // pred_check
          %p546 = pneg %p67
        $region70: #{swin_forward.7} parent=67 // pred_check_branch
          %548 = sbr.rel (%p546) target = $region72
        $region71: #{swin_forward.7} parent=67 // pred_region
          %s549 = sand.u32 %s57, 1
          %s550 = scalar_lea.sflag [#allocation3], %s549
          %s551 = sand.u32 %s57, 1
          %s552 = smul.addr %s551, 16
          %s553 = scalar_lea.vmem [#allocation2], %s552
          %s554 = smul.u32 2, %s41
          %s556 = ssub.s32 256, 256
          %557 = vsyncadd %s550, %s556
          %s558 = smul.addr %s554, 4
          %s559 = smul.addr %s40, 8
          %s560 = sadd.s32 %s558, %s559
          %s561 = smul.addr %s560, 32
          %s562 = scalar_lea.hbm %s0, %s561
          %s563 = sshll.u32 %s553, 4
          %s564 = int_to_ptr.vmem [resolvable:$true] %s563
          %569 = dma.hbm_to_vmem [thread:$0]  %s562, 256, %s564, %s550, 32, 32, 2
        $region72: #{swin_forward.7} parent=67 // pred_fallthru
          _
      $region68: #{swin_forward.7} parent=5 // pred_fallthru
        _
      %p570 = scmp.le.s32.totalorder 1, %s33
      %p571 = scmp.lt.s32.totalorder %s33, 3
      %p572 = pnand %p570, %p571
      %p573 = pneg %p572
      // Predicated region
      $region73: #{swin_forward.7} parent=5 // pred_check
        _
      $region74: #{swin_forward.7} parent=5 // pred_check_branch
        %575 = sbr.rel (%p572) target = $region76
      $region75: #{swin_forward.7} parent=5 // pred_region
        %s576 = ssub.s32 %s33, 1
        %s577 = sand.u32 %s60, 1
        %s578 = scalar_lea.sflag [#allocation3], %s577
        %s579 = sand.u32 %s60, 1
        %s580 = smul.addr %s579, 16
        %s581 = scalar_lea.vmem [#allocation2], %s580
        // Predicated region
        $region77: #{swin_forward.7} parent=75 // pred_check
          %p582 = pneg %p73
        $region78: #{swin_forward.7} parent=75 // pred_check_branch
          %584 = sbr.rel (%p582) target = $region80
        $region79: #{swin_forward.7} parent=75 // pred_region
          %585 = dma.done %s578, 256
        $region80: #{swin_forward.7} parent=75 // pred_fallthru
          _
        // Predicated region
        $region81: #{swin_forward.7} parent=75 // pred_check
          %p586 = pneg %p94
        $region82: #{swin_forward.7} parent=75 // pred_check_branch
          %588 = sbr.rel (%p586) target = $region84
        $region83: #{swin_forward.7} parent=75 // pred_region
          %589 = dma.done [#allocation6], 16
        $region84: #{swin_forward.7} parent=75 // pred_fallthru
          _
        // Predicated region
        $region85: #{swin_forward.7} parent=75 // pred_check
          %p590 = pneg %p115
        $region86: #{swin_forward.7} parent=75 // pred_check_branch
          %592 = sbr.rel (%p590) target = $region88
        $region87: #{swin_forward.7} parent=75 // pred_region
          %593 = dma.done [#allocation6], 16
        $region88: #{swin_forward.7} parent=75 // pred_fallthru
          _
        // Predicated region
        $region89: #{swin_forward.7} parent=75 // pred_check
          %p594 = pneg %p136
        $region90: #{swin_forward.7} parent=75 // pred_check_branch
          %596 = sbr.rel (%p594) target = $region92
        $region91: #{swin_forward.7} parent=75 // pred_region
          %597 = dma.done [#allocation9], 256
        $region92: #{swin_forward.7} parent=75 // pred_fallthru
          _
        // Predicated region
        $region93: #{swin_forward.7} parent=75 // pred_check
          %p598 = pneg %p157
        $region94: #{swin_forward.7} parent=75 // pred_check_branch
          %600 = sbr.rel (%p598) target = $region96
        $region95: #{swin_forward.7} parent=75 // pred_region
          %601 = dma.done [#allocation9], 16
        $region96: #{swin_forward.7} parent=75 // pred_fallthru
          _
        // Predicated region
        $region97: #{swin_forward.7} parent=75 // pred_check
          %p602 = pneg %p178
        $region98: #{swin_forward.7} parent=75 // pred_check_branch
          %604 = sbr.rel (%p602) target = $region100
        $region99: #{swin_forward.7} parent=75 // pred_region
          %605 = dma.done [#allocation12], 128
        $region100: #{swin_forward.7} parent=75 // pred_fallthru
          _
        // Predicated region
        $region101: #{swin_forward.7} parent=75 // pred_check
          %p606 = pneg %p199
        $region102: #{swin_forward.7} parent=75 // pred_check_branch
          %608 = sbr.rel (%p606) target = $region104
        $region103: #{swin_forward.7} parent=75 // pred_region
          %609 = dma.done [#allocation12], 256
        $region104: #{swin_forward.7} parent=75 // pred_fallthru
          _
        // Predicated region
        $region105: #{swin_forward.7} parent=75 // pred_check
          %p610 = pneg %p220
        $region106: #{swin_forward.7} parent=75 // pred_check_branch
          %612 = sbr.rel (%p610) target = $region108
        $region107: #{swin_forward.7} parent=75 // pred_region
          %613 = dma.done [#allocation15], 16
        $region108: #{swin_forward.7} parent=75 // pred_fallthru
          _
        // Predicated region
        $region109: #{swin_forward.7} parent=75 // pred_check
          %p614 = pneg %p241
        $region110: #{swin_forward.7} parent=75 // pred_check_branch
          %616 = sbr.rel (%p614) target = $region112
        $region111: #{swin_forward.7} parent=75 // pred_region
          %617 = dma.done [#allocation15], 16
        $region112: #{swin_forward.7} parent=75 // pred_fallthru
          _
        // Predicated region
        $region113: #{swin_forward.7} parent=75 // pred_check
          %p618 = pneg %p262
        $region114: #{swin_forward.7} parent=75 // pred_check_branch
          %620 = sbr.rel (%p618) target = $region116
        $region115: #{swin_forward.7} parent=75 // pred_region
          %621 = dma.done [#allocation18], 16
        $region116: #{swin_forward.7} parent=75 // pred_fallthru
          _
        // Predicated region
        $region117: #{swin_forward.7} parent=75 // pred_check
          %p622 = pneg %p283
        $region118: #{swin_forward.7} parent=75 // pred_check_branch
          %624 = sbr.rel (%p622) target = $region120
        $region119: #{swin_forward.7} parent=75 // pred_region
          %625 = dma.done [#allocation18], 256
        $region120: #{swin_forward.7} parent=75 // pred_fallthru
          _
        // Predicated region
        $region121: #{swin_forward.7} parent=75 // pred_check
          %p626 = pneg %p304
        $region122: #{swin_forward.7} parent=75 // pred_check_branch
          %628 = sbr.rel (%p626) target = $region124
        $region123: #{swin_forward.7} parent=75 // pred_region
          %629 = dma.done [#allocation21], 16
        $region124: #{swin_forward.7} parent=75 // pred_fallthru
          _
        // Predicated region
        $region125: #{swin_forward.7} parent=75 // pred_check
          %p630 = pneg %p325
        $region126: #{swin_forward.7} parent=75 // pred_check_branch
          %632 = sbr.rel (%p630) target = $region128
        $region127: #{swin_forward.7} parent=75 // pred_region
          %633 = dma.done [#allocation21], 1024
        $region128: #{swin_forward.7} parent=75 // pred_fallthru
          _
        // Predicated region
        $region129: #{swin_forward.7} parent=75 // pred_check
          %p634 = pneg %p346
        $region130: #{swin_forward.7} parent=75 // pred_check_branch
          %636 = sbr.rel (%p634) target = $region132
        $region131: #{swin_forward.7} parent=75 // pred_region
          %637 = dma.done [#allocation24], 16
        $region132: #{swin_forward.7} parent=75 // pred_fallthru
          _
        %s638 = sand.u32 %s60, 1
        %s639 = scalar_lea.sflag [#allocation3], %s638
        %s640 = sand.u32 %s60, 1
        %s641 = smul.addr %s640, 16
        %s642 = scalar_lea.vmem [#allocation2], %s641
        %p643 = pneg %p73
        %p644 = pneg %p70
        %p645 = pneg %p94
        %p646 = pneg %p91
        %p647 = pneg %p115
        %p648 = pneg %p112
        %p649 = pneg %p136
        %p650 = pneg %p133
        %p651 = pneg %p157
        %p652 = pneg %p154
        %p653 = pneg %p178
        %p654 = pneg %p175
        %p655 = pneg %p199
        %p656 = pneg %p196
        %p657 = pneg %p220
        %p658 = pneg %p217
        %p659 = pneg %p241
        %p660 = pneg %p238
        %p661 = pneg %p262
        %p662 = pneg %p259
        %p663 = pneg %p283
        %p664 = pneg %p280
        %p665 = pneg %p304
        %p666 = pneg %p301
        %p667 = pneg %p325
        %p668 = pneg %p322
        %p669 = pneg %p346
        %p670 = pneg %p343
        %p671 = pneg %p374
        %p672 = pneg %p371
        %s673 = sand.u32 %s361, 1
        %s674 = scalar_lea.sflag [#allocation4], %s673
        %s675 = sand.u32 %s361, 1
        %s676 = smul.addr %s675, 16
        %s677 = scalar_lea.vmem [#allocation25], %s676
        %s678 = smul.u32 2, %s43
        %s679 = smul.u32 2, %s43
        %v681 = vld [vmem:[%s581] sm:$0x3]
        %v682 = vld [vmem:[%s581 + $0x2] sm:$0x3]
        %v683 = vld [vmem:[%s581 + $0x4] sm:$0x3]
        %v684 = vld [vmem:[%s581 + $0x6] sm:$0x3]
        %v685 = vld [vmem:[%s581 + $0x8] sm:$0x3]
        %v686 = vld [vmem:[%s581 + $0xa] sm:$0x3]
        %v687 = vld [vmem:[%s581 + $0xc] sm:$0x3]
        %v688 = vld [vmem:[%s581 + $0xe] sm:$0x3]
        %v689 = vunpack.c.l.bf16 %v681
        %v690 = vunpack.c.l.bf16 %v682
        %v691 = vunpack.c.l.bf16 %v683
        %v692 = vunpack.c.l.bf16 %v684
        %v693 = vunpack.c.l.bf16 %v685
        %v694 = vunpack.c.l.bf16 %v686
        %v695 = vunpack.c.l.bf16 %v687
        %v696 = vunpack.c.l.bf16 %v688
        %v697 = vld [vmem:[#allocation5] sm:$0x1]
        %v698 = vld [vmem:[#allocation7] sm:$0x1]
        %v707 = vcombine.low %v689, %v690
        %v708 = vcombine.low %v691, %v692
        %v709 = vcombine.low %v693, %v694
        %v710 = vcombine.low %v695, %v696
        %vm715 = vcmask 261120
        %v716 = vsel %vm715, %v707, 0.0
        %717 = vadd.xlane.f32.xlu0 %v716
        %v718 = vpop.xlane.xlu0 %717
        %v719 = vsel %vm715, %v708, 0.0
        %720 = vadd.xlane.f32.xlu0 %v719
        %v721 = vpop.xlane.xlu0 %720
        %v722 = vsel %vm715, %v709, 0.0
        %723 = vadd.xlane.f32.xlu0 %v722
        %v724 = vpop.xlane.xlu0 %723
        %v725 = vsel %vm715, %v710, 0.0
        %726 = vadd.xlane.f32.xlu0 %v725
        %v727 = vpop.xlane.xlu0 %726
        %v728 = vrcp.pop 32.0
        %v729 = vmul.f32 %v718, %v728
        %v730 = vmul.f32 %v721, %v728
        %v731 = vmul.f32 %v724, %v728
        %v732 = vmul.f32 %v727, %v728
        %v738 = vunpack.c.l.s4 839922192
        %v739 = vunpack.c.0.s8 %v738
        %v740 = vlaneseq
        %v741 = vshrl.u32 %v740, 7
        %v742 = vsub.s32 %v739, %v741
        %v743 = vrot.slane %v729, %v742
        %v745 = vunpack.c.l.s4 1985246804
        %v746 = vunpack.c.0.s8 %v745
        %v747 = vlaneseq
        %v748 = vshrl.u32 %v747, 7
        %v749 = vsub.s32 %v746, %v748
        %v750 = vrot.slane %v729, %v749
        %v752 = vunpack.c.l.s4 839922192
        %v753 = vunpack.c.0.s8 %v752
        %v754 = vlaneseq
        %v755 = vshrl.u32 %v754, 7
        %v756 = vsub.s32 %v753, %v755
        %v757 = vrot.slane %v730, %v756
        %v759 = vunpack.c.l.s4 1985246804
        %v760 = vunpack.c.0.s8 %v759
        %v761 = vlaneseq
        %v762 = vshrl.u32 %v761, 7
        %v763 = vsub.s32 %v760, %v762
        %v764 = vrot.slane %v730, %v763
        %v766 = vunpack.c.l.s4 839922192
        %v767 = vunpack.c.0.s8 %v766
        %v768 = vlaneseq
        %v769 = vshrl.u32 %v768, 7
        %v770 = vsub.s32 %v767, %v769
        %v771 = vrot.slane %v731, %v770
        %v773 = vunpack.c.l.s4 1985246804
        %v774 = vunpack.c.0.s8 %v773
        %v775 = vlaneseq
        %v776 = vshrl.u32 %v775, 7
        %v777 = vsub.s32 %v774, %v776
        %v778 = vrot.slane %v731, %v777
        %v780 = vunpack.c.l.s4 839922192
        %v781 = vunpack.c.0.s8 %v780
        %v782 = vlaneseq
        %v783 = vshrl.u32 %v782, 7
        %v784 = vsub.s32 %v781, %v783
        %v785 = vrot.slane %v732, %v784
        %v787 = vunpack.c.l.s4 1985246804
        %v788 = vunpack.c.0.s8 %v787
        %v789 = vlaneseq
        %v790 = vshrl.u32 %v789, 7
        %v791 = vsub.s32 %v788, %v790
        %v792 = vrot.slane %v732, %v791
        %v801 = vsub.f32 %v689, %v743
        %v802 = vsub.f32 %v690, %v750
        %v803 = vsub.f32 %v691, %v757
        %v804 = vsub.f32 %v692, %v764
        %v805 = vsub.f32 %v693, %v771
        %v806 = vsub.f32 %v694, %v778
        %v807 = vsub.f32 %v695, %v785
        %v808 = vsub.f32 %v696, %v792
        %v809 = vmul.f32 %v801, %v801
        %v810 = vmul.f32 %v802, %v802
        %v811 = vmul.f32 %v803, %v803
        %v812 = vmul.f32 %v804, %v804
        %v813 = vmul.f32 %v805, %v805
        %v814 = vmul.f32 %v806, %v806
        %v815 = vmul.f32 %v807, %v807
        %v816 = vmul.f32 %v808, %v808
        %v825 = vcombine.low %v809, %v810
        %v826 = vcombine.low %v811, %v812
        %v827 = vcombine.low %v813, %v814
        %v828 = vcombine.low %v815, %v816
        %v833 = vsel %vm715, %v825, 0.0
        %834 = vadd.xlane.f32.xlu0 %v833
        %v835 = vpop.xlane.xlu0 %834
        %v836 = vsel %vm715, %v826, 0.0
        %837 = vadd.xlane.f32.xlu0 %v836
        %v838 = vpop.xlane.xlu0 %837
        %v839 = vsel %vm715, %v827, 0.0
        %840 = vadd.xlane.f32.xlu0 %v839
        %v841 = vpop.xlane.xlu0 %840
        %v842 = vsel %vm715, %v828, 0.0
        %843 = vadd.xlane.f32.xlu0 %v842
        %v844 = vpop.xlane.xlu0 %843
        %v845 = vmul.f32 %v835, %v728
        %v846 = vmul.f32 %v838, %v728
        %v847 = vmul.f32 %v841, %v728
        %v848 = vmul.f32 %v844, %v728
        %v849 = vadd.f32 %v845, 1e-05
        %v850 = vadd.f32 %v846, 1e-05
        %v851 = vadd.f32 %v847, 1e-05
        %v852 = vadd.f32 %v848, 1e-05
        %v853 = vrsqrt.pop %v849
        %v854 = vrsqrt.pop %v850
        %v855 = vrsqrt.pop %v851
        %v856 = vrsqrt.pop %v852
        %v862 = vunpack.c.l.s4 839922192
        %v863 = vunpack.c.0.s8 %v862
        %v864 = vlaneseq
        %v865 = vshrl.u32 %v864, 7
        %v866 = vsub.s32 %v863, %v865
        %v867 = vrot.slane %v853, %v866
        %v869 = vunpack.c.l.s4 1985246804
        %v870 = vunpack.c.0.s8 %v869
        %v871 = vlaneseq
        %v872 = vshrl.u32 %v871, 7
        %v873 = vsub.s32 %v870, %v872
        %v874 = vrot.slane %v853, %v873
        %v876 = vunpack.c.l.s4 839922192
        %v877 = vunpack.c.0.s8 %v876
        %v878 = vlaneseq
        %v879 = vshrl.u32 %v878, 7
        %v880 = vsub.s32 %v877, %v879
        %v881 = vrot.slane %v854, %v880
        %v883 = vunpack.c.l.s4 1985246804
        %v884 = vunpack.c.0.s8 %v883
        %v885 = vlaneseq
        %v886 = vshrl.u32 %v885, 7
        %v887 = vsub.s32 %v884, %v886
        %v888 = vrot.slane %v854, %v887
        %v890 = vunpack.c.l.s4 839922192
        %v891 = vunpack.c.0.s8 %v890
        %v892 = vlaneseq
        %v893 = vshrl.u32 %v892, 7
        %v894 = vsub.s32 %v891, %v893
        %v895 = vrot.slane %v855, %v894
        %v897 = vunpack.c.l.s4 1985246804
        %v898 = vunpack.c.0.s8 %v897
        %v899 = vlaneseq
        %v900 = vshrl.u32 %v899, 7
        %v901 = vsub.s32 %v898, %v900
        %v902 = vrot.slane %v855, %v901
        %v904 = vunpack.c.l.s4 839922192
        %v905 = vunpack.c.0.s8 %v904
        %v906 = vlaneseq
        %v907 = vshrl.u32 %v906, 7
        %v908 = vsub.s32 %v905, %v907
        %v909 = vrot.slane %v856, %v908
        %v911 = vunpack.c.l.s4 1985246804
        %v912 = vunpack.c.0.s8 %v911
        %v913 = vlaneseq
        %v914 = vshrl.u32 %v913, 7
        %v915 = vsub.s32 %v912, %v914
        %v916 = vrot.slane %v856, %v915
        %v925 = vmul.f32 %v801, %v867
        %v926 = vmul.f32 %v802, %v874
        %v927 = vmul.f32 %v803, %v881
        %v928 = vmul.f32 %v804, %v888
        %v929 = vmul.f32 %v805, %v895
        %v930 = vmul.f32 %v806, %v902
        %v931 = vmul.f32 %v807, %v909
        %v932 = vmul.f32 %v808, %v916
        %v934 = vlaneseq
        %v935 = vshrl.u32 %v934, 7
        %v936 = vsub.s32 0, %v935
        %v937 = vrot.slane %v697, %v936
        %v939 = vcombine.high %v937, %v937
        %v941 = vmul.f32 %v925, %v937
        %v942 = vmul.f32 %v926, %v939
        %v943 = vmul.f32 %v927, %v937
        %v944 = vmul.f32 %v928, %v939
        %v945 = vmul.f32 %v929, %v937
        %v946 = vmul.f32 %v930, %v939
        %v947 = vmul.f32 %v931, %v937
        %v948 = vmul.f32 %v932, %v939
        %v950 = vlaneseq
        %v951 = vshrl.u32 %v950, 7
        %v952 = vsub.s32 0, %v951
        %v953 = vrot.slane %v698, %v952
        %v955 = vcombine.high %v953, %v953
        %v957 = vadd.f32 %v941, %v953
        %v958 = vadd.f32 %v942, %v955
        %v959 = vadd.f32 %v943, %v953
        %v960 = vadd.f32 %v944, %v955
        %v961 = vadd.f32 %v945, %v953
        %v962 = vadd.f32 %v946, %v955
        %v963 = vadd.f32 %v947, %v953
        %v964 = vadd.f32 %v948, %v955
        %v973 = vcombine.low %v957, %v958
        %v974 = vcombine.low %v959, %v960
        %v975 = vcombine.low %v961, %v962
        %v976 = vcombine.low %v963, %v964
        %v981 = vpack.c.bf16 %v974, %v973
        %v982 = vpack.c.bf16 %v976, %v975
        %v983 = vld [vmem:[#allocation8] sm:$0xf]
        %v984 = vld [vmem:[#allocation8 + $0x4] sm:$0xf]
        %v985 = vld [vmem:[#allocation8 + $0x8] sm:$0xf]
        %v986 = vld [vmem:[#allocation8 + $0xc] sm:$0xf]
        %v987 = vld [vmem:[#allocation10] sm:$0x1]
        %v989 = vlaneseq
        %v990 = vshrl.u32 %v989, 7
        %v991 = vsub.s32 0, %v990
        %v992 = vrot.slane %v987, %v991
        %v998 = vunpack.c.l.b16 %v983
        %v999 = vunpack.c.l.b16 %v984
        %v1000 = vunpack.c.l.b16 %v985
        %v1001 = vunpack.c.l.b16 %v986
        %v1002 = vpack.c.b16 %v999, %v998
        %v1003 = vpack.c.b16 %v1001, %v1000
        %v1007 = vsel %vm715, %v981, 0
        %v1010 = vsel %vm715, %v982, 0
        %1012 = vmatprep.subr.bf16.mxu0 0
        %1013 = vmatpush1.bf16.msra.mxu0 %v1002
        %1014 = vmatprep.subr.bf16.mxu0 0
        %1015 = vmatpush1.bf16.msra.mxu0 %v1003
        %1016 = vmatprep.subr.bf16.mxu0 0
        %1017 = vmatpush1.bf16.msra.mxu0 0
        %1018 = vmatprep.subr.bf16.mxu0 0
        %1019 = vmatpush1.bf16.msra.mxu0 0
        %1020 = vmatprep.subr.bf16.mxu0 0
        %1021 = vmatpush1.bf16.msra.mxu0 0
        %1022 = vmatprep.subr.bf16.mxu0 0
        %1023 = vmatpush1.bf16.msra.mxu0 0
        %1024 = vmatprep.subr.bf16.mxu0 0
        %1025 = vmatpush1.bf16.msra.mxu0 0
        %1026 = vmatprep.subr.bf16.mxu0 0
        %1027 = vmatpush1.bf16.msra.mxu0 0
        %1028 = vmatprep.subr.bf16.mxu0 0
        %1029 = vmatpush1.bf16.msra.mxu0 0
        %1030 = vmatprep.subr.bf16.mxu0 0
        %1031 = vmatpush1.bf16.msra.mxu0 0
        %1032 = vmatprep.subr.bf16.mxu0 0
        %1033 = vmatpush1.bf16.msra.mxu0 0
        %1034 = vmatprep.subr.bf16.mxu0 0
        %1035 = vmatpush1.bf16.msra.mxu0 0
        %1036 = vmatprep.subr.bf16.mxu0 0
        %1037 = vmatpush1.bf16.msra.mxu0 0
        %1038 = vmatprep.subr.bf16.mxu0 0
        %1039 = vmatpush1.bf16.msra.mxu0 0
        %1040 = vmatprep.subr.bf16.mxu0 0
        %1041 = vmatpush1.bf16.msra.mxu0 0
        %1042 = vmatprep.subr.bf16.mxu0 0
        %1043 = vmatpush1.bf16.msra.mxu0 0
        %1044 = vmatprep.mubr.bf16.mxu0 0
        %1045 = vmatmul.mubr.bf16.gmra.mrb[0].mxu0 %v1007
        %v1046 = vpop.f32.mrb[0].mxu0
        %v1047 = vadd.f32 %v992, %v1046
        %v1048 = vpop.f32.mrb[0].mxu0
        %v1049 = vpop.f32.mrb[0].mxu0
        %v1050 = vadd.f32 %v992, %v1049
        %v1051 = vpop.f32.mrb[0].mxu0
        %1052 = vmatprep.mubr.bf16.mxu0 0
        %1053 = vmatmul.mubr.bf16.gmra.mrb[0].mxu0 %v1010
        %v1054 = vpop.f32.mrb[0].mxu0
        %v1055 = vadd.f32 %v992, %v1054
        %v1056 = vpop.f32.mrb[0].mxu0
        %v1057 = vpop.f32.mrb[0].mxu0
        %v1058 = vadd.f32 %v992, %v1057
        %v1059 = vpop.f32.mrb[0].mxu0
        %1060 = vdwg.mxu0
        %v1061 = vld [vmem:[#allocation11] sm:$0xf]
        %v1062 = vld [vmem:[#allocation11 + $0x4] sm:$0xf]
        %v1067 = vcombine.high %v1047, %v1047
        %v1068 = vcombine.high %v1050, %v1050
        %v1069 = vcombine.high %v1055, %v1055
        %v1070 = vcombine.high %v1058, %v1058
        %v1075 = vpack.c.bf16 %v1047, %v1047
        %v1076 = vpack.c.bf16 %v1067, %v1067
        %v1077 = vpack.c.bf16 %v1050, %v1050
        %v1078 = vpack.c.bf16 %v1068, %v1068
        %v1079 = vpack.c.bf16 %v1055, %v1055
        %v1080 = vpack.c.bf16 %v1069, %v1069
        %v1081 = vpack.c.bf16 %v1058, %v1058
        %v1082 = vpack.c.bf16 %v1070, %v1070
        %1084 = vrot.lane.b32.xlu0 %v1075, 96
        %v1085 = vpop.permute.xlu0 %1084
        %vm1086 = vcmask 130048
        %v1088 = vsel %vm1086, %v1075, 0
        %v1091 = vsel %vm1086, %v1085, 0
        %1093 = vmatprep.subr.bf16.mxu0 0
        %1094 = vmatpush1.bf16.xpose.msra.mxu0 %v1091
        %1095 = vmatprep.subr.bf16.mxu0 0
        %1096 = vmatpush1.bf16.xpose.msra.mxu0 0
        %1097 = vmatprep.subr.bf16.mxu0 0
        %1098 = vmatpush1.bf16.xpose.msra.mxu0 0
        %1099 = vmatprep.subr.bf16.mxu0 0
        %1100 = vmatpush1.bf16.xpose.msra.mxu0 0
        %1101 = vmatprep.subr.bf16.mxu0 0
        %1102 = vmatpush1.bf16.xpose.msra.mxu0 0
        %1103 = vmatprep.subr.bf16.mxu0 0
        %1104 = vmatpush1.bf16.xpose.msra.mxu0 0
        %1105 = vmatprep.subr.bf16.mxu0 0
        %1106 = vmatpush1.bf16.xpose.msra.mxu0 0
        %1107 = vmatprep.subr.bf16.mxu0 0
        %1108 = vmatpush1.bf16.xpose.msra.mxu0 0
        %1109 = vmatprep.subr.bf16.mxu0 0
        %1110 = vmatpush1.bf16.xpose.msra.mxu0 0
        %1111 = vmatprep.subr.bf16.mxu0 0
        %1112 = vmatpush1.bf16.xpose.msra.mxu0 0
        %1113 = vmatprep.subr.bf16.mxu0 0
        %1114 = vmatpush1.bf16.xpose.msra.mxu0 0
        %1115 = vmatprep.subr.bf16.mxu0 0
        %1116 = vmatpush1.bf16.xpose.msra.mxu0 0
        %1117 = vmatprep.subr.bf16.mxu0 0
        %1118 = vmatpush1.bf16.xpose.msra.mxu0 0
        %1119 = vmatprep.subr.bf16.mxu0 0
        %1120 = vmatpush1.bf16.xpose.msra.mxu0 0
        %1121 = vmatprep.subr.bf16.mxu0 0
        %1122 = vmatpush1.bf16.xpose.msra.mxu0 0
        %1123 = vmatprep.subr.bf16.mxu0 0
        %1124 = vmatpush1.bf16.xpose.msra.mxu0 0
        %1125 = vmatprep.mubr.bf16.mxu0 0
        %1126 = vmatmul.mubr.bf16.gmra.mrb[0].mxu0 %v1088
        %v1127 = vpop.f32.mrb[0].mxu0
        %v1128 = vadd.f32 0.0, %v1127
        %v1129 = vpop.f32.mrb[0].mxu0
        %v1130 = vpop.f32.mrb[0].mxu0
        %v1131 = vpop.f32.mrb[0].mxu0
        %1132 = vdwg.mxu0
        %1134 = vrot.lane.b32.xlu0 %v1076, 96
        %v1135 = vpop.permute.xlu0 %1134
        %v1137 = vsel %vm1086, %v1076, 0
        %v1140 = vsel %vm1086, %v1135, 0
        %1142 = vmatprep.subr.bf16.mxu0 0
        %1143 = vmatpush1.bf16.xpose.msra.mxu0 %v1140
        %1144 = vmatprep.subr.bf16.mxu0 0
        %1145 = vmatpush1.bf16.xpose.msra.mxu0 0
        %1146 = vmatprep.subr.bf16.mxu0 0
        %1147 = vmatpush1.bf16.xpose.msra.mxu0 0
        %1148 = vmatprep.subr.bf16.mxu0 0
        %1149 = vmatpush1.bf16.xpose.msra.mxu0 0
        %1150 = vmatprep.subr.bf16.mxu0 0
        %1151 = vmatpush1.bf16.xpose.msra.mxu0 0
        %1152 = vmatprep.subr.bf16.mxu0 0
        %1153 = vmatpush1.bf16.xpose.msra.mxu0 0
        %1154 = vmatprep.subr.bf16.mxu0 0
        %1155 = vmatpush1.bf16.xpose.msra.mxu0 0
        %1156 = vmatprep.subr.bf16.mxu0 0
        %1157 = vmatpush1.bf16.xpose.msra.mxu0 0
        %1158 = vmatprep.subr.bf16.mxu0 0
        %1159 = vmatpush1.bf16.xpose.msra.mxu0 0
        %1160 = vmatprep.subr.bf16.mxu0 0
        %1161 = vmatpush1.bf16.xpose.msra.mxu0 0
        %1162 = vmatprep.subr.bf16.mxu0 0
        %1163 = vmatpush1.bf16.xpose.msra.mxu0 0
        %1164 = vmatprep.subr.bf16.mxu0 0
        %1165 = vmatpush1.bf16.xpose.msra.mxu0 0
        %1166 = vmatprep.subr.bf16.mxu0 0
        %1167 = vmatpush1.bf16.xpose.msra.mxu0 0
        %1168 = vmatprep.subr.bf16.mxu0 0
        %1169 = vmatpush1.bf16.xpose.msra.mxu0 0
        %1170 = vmatprep.subr.bf16.mxu0 0
        %1171 = vmatpush1.bf16.xpose.msra.mxu0 0
        %1172 = vmatprep.subr.bf16.mxu0 0
        %1173 = vmatpush1.bf16.xpose.msra.mxu0 0
        %1174 = vmatprep.mubr.bf16.mxu0 0
        %1175 = vmatmul.mubr.bf16.gmra.mrb[0].mxu0 %v1137
        %v1176 = vpop.f32.mrb[0].mxu0
        %v1177 = vadd.f32 0.0, %v1176
        %v1178 = vpop.f32.mrb[0].mxu0
        %v1179 = vpop.f32.mrb[0].mxu0
        %v1180 = vpop.f32.mrb[0].mxu0
        %1181 = vdwg.mxu0
        %1183 = vrot.lane.b32.xlu0 %v1077, 96
        %v1184 = vpop.permute.xlu0 %1183
        %v1186 = vsel %vm1086, %v1077, 0
        %v1189 = vsel %vm1086, %v1184, 0
        %1191 = vmatprep.subr.bf16.mxu0 0
        %1192 = vmatpush1.bf16.xpose.msra.mxu0 %v1189
        %1193 = vmatprep.subr.bf16.mxu0 0
        %1194 = vmatpush1.bf16.xpose.msra.mxu0 0
        %1195 = vmatprep.subr.bf16.mxu0 0
        %1196 = vmatpush1.bf16.xpose.msra.mxu0 0
        %1197 = vmatprep.subr.bf16.mxu0 0
        %1198 = vmatpush1.bf16.xpose.msra.mxu0 0
        %1199 = vmatprep.subr.bf16.mxu0 0
        %1200 = vmatpush1.bf16.xpose.msra.mxu0 0
        %1201 = vmatprep.subr.bf16.mxu0 0
        %1202 = vmatpush1.bf16.xpose.msra.mxu0 0
        %1203 = vmatprep.subr.bf16.mxu0 0
        %1204 = vmatpush1.bf16.xpose.msra.mxu0 0
        %1205 = vmatprep.subr.bf16.mxu0 0
        %1206 = vmatpush1.bf16.xpose.msra.mxu0 0
        %1207 = vmatprep.subr.bf16.mxu0 0
        %1208 = vmatpush1.bf16.xpose.msra.mxu0 0
        %1209 = vmatprep.subr.bf16.mxu0 0
        %1210 = vmatpush1.bf16.xpose.msra.mxu0 0
        %1211 = vmatprep.subr.bf16.mxu0 0
        %1212 = vmatpush1.bf16.xpose.msra.mxu0 0
        %1213 = vmatprep.subr.bf16.mxu0 0
        %1214 = vmatpush1.bf16.xpose.msra.mxu0 0
        %1215 = vmatprep.subr.bf16.mxu0 0
        %1216 = vmatpush1.bf16.xpose.msra.mxu0 0
        %1217 = vmatprep.subr.bf16.mxu0 0
        %1218 = vmatpush1.bf16.xpose.msra.mxu0 0
        %1219 = vmatprep.subr.bf16.mxu0 0
        %1220 = vmatpush1.bf16.xpose.msra.mxu0 0
        %1221 = vmatprep.subr.bf16.mxu0 0
        %1222 = vmatpush1.bf16.xpose.msra.mxu0 0
        %1223 = vmatprep.mubr.bf16.mxu0 0
        %1224 = vmatmul.mubr.bf16.gmra.mrb[0].mxu0 %v1186
        %v1225 = vpop.f32.mrb[0].mxu0
        %v1226 = vadd.f32 0.0, %v1225
        %v1227 = vpop.f32.mrb[0].mxu0
        %v1228 = vpop.f32.mrb[0].mxu0
        %v1229 = vpop.f32.mrb[0].mxu0
        %1230 = vdwg.mxu0
        %1232 = vrot.lane.b32.xlu0 %v1078, 96
        %v1233 = vpop.permute.xlu0 %1232
        %v1235 = vsel %vm1086, %v1078, 0
        %v1238 = vsel %vm1086, %v1233, 0
        %1240 = vmatprep.subr.bf16.mxu0 0
        %1241 = vmatpush1.bf16.xpose.msra.mxu0 %v1238
        %1242 = vmatprep.subr.bf16.mxu0 0
        %1243 = vmatpush1.bf16.xpose.msra.mxu0 0
        %1244 = vmatprep.subr.bf16.mxu0 0
        %1245 = vmatpush1.bf16.xpose.msra.mxu0 0
        %1246 = vmatprep.subr.bf16.mxu0 0
        %1247 = vmatpush1.bf16.xpose.msra.mxu0 0
        %1248 = vmatprep.subr.bf16.mxu0 0
        %1249 = vmatpush1.bf16.xpose.msra.mxu0 0
        %1250 = vmatprep.subr.bf16.mxu0 0
        %1251 = vmatpush1.bf16.xpose.msra.mxu0 0
        %1252 = vmatprep.subr.bf16.mxu0 0
        %1253 = vmatpush1.bf16.xpose.msra.mxu0 0
        %1254 = vmatprep.subr.bf16.mxu0 0
        %1255 = vmatpush1.bf16.xpose.msra.mxu0 0
        %1256 = vmatprep.subr.bf16.mxu0 0
        %1257 = vmatpush1.bf16.xpose.msra.mxu0 0
        %1258 = vmatprep.subr.bf16.mxu0 0
        %1259 = vmatpush1.bf16.xpose.msra.mxu0 0
        %1260 = vmatprep.subr.bf16.mxu0 0
        %1261 = vmatpush1.bf16.xpose.msra.mxu0 0
        %1262 = vmatprep.subr.bf16.mxu0 0
        %1263 = vmatpush1.bf16.xpose.msra.mxu0 0
        %1264 = vmatprep.subr.bf16.mxu0 0
        %1265 = vmatpush1.bf16.xpose.msra.mxu0 0
        %1266 = vmatprep.subr.bf16.mxu0 0
        %1267 = vmatpush1.bf16.xpose.msra.mxu0 0
        %1268 = vmatprep.subr.bf16.mxu0 0
        %1269 = vmatpush1.bf16.xpose.msra.mxu0 0
        %1270 = vmatprep.subr.bf16.mxu0 0
        %1271 = vmatpush1.bf16.xpose.msra.mxu0 0
        %1272 = vmatprep.mubr.bf16.mxu0 0
        %1273 = vmatmul.mubr.bf16.gmra.mrb[0].mxu0 %v1235
        %v1274 = vpop.f32.mrb[0].mxu0
        %v1275 = vadd.f32 0.0, %v1274
        %v1276 = vpop.f32.mrb[0].mxu0
        %v1277 = vpop.f32.mrb[0].mxu0
        %v1278 = vpop.f32.mrb[0].mxu0
        %1279 = vdwg.mxu0
        %1281 = vrot.lane.b32.xlu0 %v1079, 96
        %v1282 = vpop.permute.xlu0 %1281
        %v1284 = vsel %vm1086, %v1079, 0
        %v1287 = vsel %vm1086, %v1282, 0
        %1289 = vmatprep.subr.bf16.mxu0 0
        %1290 = vmatpush1.bf16.xpose.msra.mxu0 %v1287
        %1291 = vmatprep.subr.bf16.mxu0 0
        %1292 = vmatpush1.bf16.xpose.msra.mxu0 0
        %1293 = vmatprep.subr.bf16.mxu0 0
        %1294 = vmatpush1.bf16.xpose.msra.mxu0 0
        %1295 = vmatprep.subr.bf16.mxu0 0
        %1296 = vmatpush1.bf16.xpose.msra.mxu0 0
        %1297 = vmatprep.subr.bf16.mxu0 0
        %1298 = vmatpush1.bf16.xpose.msra.mxu0 0
        %1299 = vmatprep.subr.bf16.mxu0 0
        %1300 = vmatpush1.bf16.xpose.msra.mxu0 0
        %1301 = vmatprep.subr.bf16.mxu0 0
        %1302 = vmatpush1.bf16.xpose.msra.mxu0 0
        %1303 = vmatprep.subr.bf16.mxu0 0
        %1304 = vmatpush1.bf16.xpose.msra.mxu0 0
        %1305 = vmatprep.subr.bf16.mxu0 0
        %1306 = vmatpush1.bf16.xpose.msra.mxu0 0
        %1307 = vmatprep.subr.bf16.mxu0 0
        %1308 = vmatpush1.bf16.xpose.msra.mxu0 0
        %1309 = vmatprep.subr.bf16.mxu0 0
        %1310 = vmatpush1.bf16.xpose.msra.mxu0 0
        %1311 = vmatprep.subr.bf16.mxu0 0
        %1312 = vmatpush1.bf16.xpose.msra.mxu0 0
        %1313 = vmatprep.subr.bf16.mxu0 0
        %1314 = vmatpush1.bf16.xpose.msra.mxu0 0
        %1315 = vmatprep.subr.bf16.mxu0 0
        %1316 = vmatpush1.bf16.xpose.msra.mxu0 0
        %1317 = vmatprep.subr.bf16.mxu0 0
        %1318 = vmatpush1.bf16.xpose.msra.mxu0 0
        %1319 = vmatprep.subr.bf16.mxu0 0
        %1320 = vmatpush1.bf16.xpose.msra.mxu0 0
        %1321 = vmatprep.mubr.bf16.mxu0 0
        %1322 = vmatmul.mubr.bf16.gmra.mrb[0].mxu0 %v1284
        %v1323 = vpop.f32.mrb[0].mxu0
        %v1324 = vadd.f32 0.0, %v1323
        %v1325 = vpop.f32.mrb[0].mxu0
        %v1326 = vpop.f32.mrb[0].mxu0
        %v1327 = vpop.f32.mrb[0].mxu0
        %1328 = vdwg.mxu0
        %1330 = vrot.lane.b32.xlu0 %v1080, 96
        %v1331 = vpop.permute.xlu0 %1330
        %v1333 = vsel %vm1086, %v1080, 0
        %v1336 = vsel %vm1086, %v1331, 0
        %1338 = vmatprep.subr.bf16.mxu0 0
        %1339 = vmatpush1.bf16.xpose.msra.mxu0 %v1336
        %1340 = vmatprep.subr.bf16.mxu0 0
        %1341 = vmatpush1.bf16.xpose.msra.mxu0 0
        %1342 = vmatprep.subr.bf16.mxu0 0
        %1343 = vmatpush1.bf16.xpose.msra.mxu0 0
        %1344 = vmatprep.subr.bf16.mxu0 0
        %1345 = vmatpush1.bf16.xpose.msra.mxu0 0
        %1346 = vmatprep.subr.bf16.mxu0 0
        %1347 = vmatpush1.bf16.xpose.msra.mxu0 0
        %1348 = vmatprep.subr.bf16.mxu0 0
        %1349 = vmatpush1.bf16.xpose.msra.mxu0 0
        %1350 = vmatprep.subr.bf16.mxu0 0
        %1351 = vmatpush1.bf16.xpose.msra.mxu0 0
        %1352 = vmatprep.subr.bf16.mxu0 0
        %1353 = vmatpush1.bf16.xpose.msra.mxu0 0
        %1354 = vmatprep.subr.bf16.mxu0 0
        %1355 = vmatpush1.bf16.xpose.msra.mxu0 0
        %1356 = vmatprep.subr.bf16.mxu0 0
        %1357 = vmatpush1.bf16.xpose.msra.mxu0 0
        %1358 = vmatprep.subr.bf16.mxu0 0
        %1359 = vmatpush1.bf16.xpose.msra.mxu0 0
        %1360 = vmatprep.subr.bf16.mxu0 0
        %1361 = vmatpush1.bf16.xpose.msra.mxu0 0
        %1362 = vmatprep.subr.bf16.mxu0 0
        %1363 = vmatpush1.bf16.xpose.msra.mxu0 0
        %1364 = vmatprep.subr.bf16.mxu0 0
        %1365 = vmatpush1.bf16.xpose.msra.mxu0 0
        %1366 = vmatprep.subr.bf16.mxu0 0
        %1367 = vmatpush1.bf16.xpose.msra.mxu0 0
        %1368 = vmatprep.subr.bf16.mxu0 0
        %1369 = vmatpush1.bf16.xpose.msra.mxu0 0
        %1370 = vmatprep.mubr.bf16.mxu0 0
        %1371 = vmatmul.mubr.bf16.gmra.mrb[0].mxu0 %v1333
        %v1372 = vpop.f32.mrb[0].mxu0
        %v1373 = vadd.f32 0.0, %v1372
        %v1374 = vpop.f32.mrb[0].mxu0
        %v1375 = vpop.f32.mrb[0].mxu0
        %v1376 = vpop.f32.mrb[0].mxu0
        %1377 = vdwg.mxu0
        %1379 = vrot.lane.b32.xlu0 %v1081, 96
        %v1380 = vpop.permute.xlu0 %1379
        %v1382 = vsel %vm1086, %v1081, 0
        %v1385 = vsel %vm1086, %v1380, 0
        %1387 = vmatprep.subr.bf16.mxu0 0
        %1388 = vmatpush1.bf16.xpose.msra.mxu0 %v1385
        %1389 = vmatprep.subr.bf16.mxu0 0
        %1390 = vmatpush1.bf16.xpose.msra.mxu0 0
        %1391 = vmatprep.subr.bf16.mxu0 0
        %1392 = vmatpush1.bf16.xpose.msra.mxu0 0
        %1393 = vmatprep.subr.bf16.mxu0 0
        %1394 = vmatpush1.bf16.xpose.msra.mxu0 0
        %1395 = vmatprep.subr.bf16.mxu0 0
        %1396 = vmatpush1.bf16.xpose.msra.mxu0 0
        %1397 = vmatprep.subr.bf16.mxu0 0
        %1398 = vmatpush1.bf16.xpose.msra.mxu0 0
        %1399 = vmatprep.subr.bf16.mxu0 0
        %1400 = vmatpush1.bf16.xpose.msra.mxu0 0
        %1401 = vmatprep.subr.bf16.mxu0 0
        %1402 = vmatpush1.bf16.xpose.msra.mxu0 0
        %1403 = vmatprep.subr.bf16.mxu0 0
        %1404 = vmatpush1.bf16.xpose.msra.mxu0 0
        %1405 = vmatprep.subr.bf16.mxu0 0
        %1406 = vmatpush1.bf16.xpose.msra.mxu0 0
        %1407 = vmatprep.subr.bf16.mxu0 0
        %1408 = vmatpush1.bf16.xpose.msra.mxu0 0
        %1409 = vmatprep.subr.bf16.mxu0 0
        %1410 = vmatpush1.bf16.xpose.msra.mxu0 0
        %1411 = vmatprep.subr.bf16.mxu0 0
        %1412 = vmatpush1.bf16.xpose.msra.mxu0 0
        %1413 = vmatprep.subr.bf16.mxu0 0
        %1414 = vmatpush1.bf16.xpose.msra.mxu0 0
        %1415 = vmatprep.subr.bf16.mxu0 0
        %1416 = vmatpush1.bf16.xpose.msra.mxu0 0
        %1417 = vmatprep.subr.bf16.mxu0 0
        %1418 = vmatpush1.bf16.xpose.msra.mxu0 0
        %1419 = vmatprep.mubr.bf16.mxu0 0
        %1420 = vmatmul.mubr.bf16.gmra.mrb[0].mxu0 %v1382
        %v1421 = vpop.f32.mrb[0].mxu0
        %v1422 = vadd.f32 0.0, %v1421
        %v1423 = vpop.f32.mrb[0].mxu0
        %v1424 = vpop.f32.mrb[0].mxu0
        %v1425 = vpop.f32.mrb[0].mxu0
        %1426 = vdwg.mxu0
        %1428 = vrot.lane.b32.xlu0 %v1082, 96
        %v1429 = vpop.permute.xlu0 %1428
        %v1431 = vsel %vm1086, %v1082, 0
        %v1434 = vsel %vm1086, %v1429, 0
        %1436 = vmatprep.subr.bf16.mxu0 0
        %1437 = vmatpush1.bf16.xpose.msra.mxu0 %v1434
        %1438 = vmatprep.subr.bf16.mxu0 0
        %1439 = vmatpush1.bf16.xpose.msra.mxu0 0
        %1440 = vmatprep.subr.bf16.mxu0 0
        %1441 = vmatpush1.bf16.xpose.msra.mxu0 0
        %1442 = vmatprep.subr.bf16.mxu0 0
        %1443 = vmatpush1.bf16.xpose.msra.mxu0 0
        %1444 = vmatprep.subr.bf16.mxu0 0
        %1445 = vmatpush1.bf16.xpose.msra.mxu0 0
        %1446 = vmatprep.subr.bf16.mxu0 0
        %1447 = vmatpush1.bf16.xpose.msra.mxu0 0
        %1448 = vmatprep.subr.bf16.mxu0 0
        %1449 = vmatpush1.bf16.xpose.msra.mxu0 0
        %1450 = vmatprep.subr.bf16.mxu0 0
        %1451 = vmatpush1.bf16.xpose.msra.mxu0 0
        %1452 = vmatprep.subr.bf16.mxu0 0
        %1453 = vmatpush1.bf16.xpose.msra.mxu0 0
        %1454 = vmatprep.subr.bf16.mxu0 0
        %1455 = vmatpush1.bf16.xpose.msra.mxu0 0
        %1456 = vmatprep.subr.bf16.mxu0 0
        %1457 = vmatpush1.bf16.xpose.msra.mxu0 0
        %1458 = vmatprep.subr.bf16.mxu0 0
        %1459 = vmatpush1.bf16.xpose.msra.mxu0 0
        %1460 = vmatprep.subr.bf16.mxu0 0
        %1461 = vmatpush1.bf16.xpose.msra.mxu0 0
        %1462 = vmatprep.subr.bf16.mxu0 0
        %1463 = vmatpush1.bf16.xpose.msra.mxu0 0
        %1464 = vmatprep.subr.bf16.mxu0 0
        %1465 = vmatpush1.bf16.xpose.msra.mxu0 0
        %1466 = vmatprep.subr.bf16.mxu0 0
        %1467 = vmatpush1.bf16.xpose.msra.mxu0 0
        %1468 = vmatprep.mubr.bf16.mxu0 0
        %1469 = vmatmul.mubr.bf16.gmra.mrb[0].mxu0 %v1431
        %v1470 = vpop.f32.mrb[0].mxu0
        %v1471 = vadd.f32 0.0, %v1470
        %v1472 = vpop.f32.mrb[0].mxu0
        %v1473 = vpop.f32.mrb[0].mxu0
        %v1474 = vpop.f32.mrb[0].mxu0
        %1475 = vdwg.mxu0
        %v1476 = vmul.f32 %v1128, 0.25
        %v1477 = vmul.f32 %v1177, 0.25
        %v1478 = vmul.f32 %v1226, 0.25
        %v1479 = vmul.f32 %v1275, 0.25
        %v1480 = vmul.f32 %v1324, 0.25
        %v1481 = vmul.f32 %v1373, 0.25
        %v1482 = vmul.f32 %v1422, 0.25
        %v1483 = vmul.f32 %v1471, 0.25
        %v1484 = vadd.f32 %v1476, %v1061
        %v1485 = vadd.f32 %v1477, %v1061
        %v1486 = vadd.f32 %v1478, %v1061
        %v1487 = vadd.f32 %v1479, %v1061
        %v1488 = vadd.f32 %v1480, %v1061
        %v1489 = vadd.f32 %v1481, %v1061
        %v1490 = vadd.f32 %v1482, %v1061
        %v1491 = vadd.f32 %v1483, %v1061
        %vm1492 = vcmask 27648
        %v1493 = vsel %vm1492, %v1484, -inf
        %1494 = vmax.xlane.f32.xlu0 %v1493
        %v1495 = vpop.xlane.xlu0 %1494
        %v1496 = vsel %vm1492, %v1485, -inf
        %1497 = vmax.xlane.f32.xlu0 %v1496
        %v1498 = vpop.xlane.xlu0 %1497
        %v1499 = vsel %vm1492, %v1486, -inf
        %1500 = vmax.xlane.f32.xlu0 %v1499
        %v1501 = vpop.xlane.xlu0 %1500
        %v1502 = vsel %vm1492, %v1487, -inf
        %1503 = vmax.xlane.f32.xlu0 %v1502
        %v1504 = vpop.xlane.xlu0 %1503
        %v1505 = vsel %vm1492, %v1488, -inf
        %1506 = vmax.xlane.f32.xlu0 %v1505
        %v1507 = vpop.xlane.xlu0 %1506
        %v1508 = vsel %vm1492, %v1489, -inf
        %1509 = vmax.xlane.f32.xlu0 %v1508
        %v1510 = vpop.xlane.xlu0 %1509
        %v1511 = vsel %vm1492, %v1490, -inf
        %1512 = vmax.xlane.f32.xlu0 %v1511
        %v1513 = vpop.xlane.xlu0 %1512
        %v1514 = vsel %vm1492, %v1491, -inf
        %1515 = vmax.xlane.f32.xlu0 %v1514
        %v1516 = vpop.xlane.xlu0 %1515
        %v1517 = vsub.f32 %v1484, %v1495
        %v1518 = vsub.f32 %v1485, %v1498
        %v1519 = vsub.f32 %v1486, %v1501
        %v1520 = vsub.f32 %v1487, %v1504
        %v1521 = vsub.f32 %v1488, %v1507
        %v1522 = vsub.f32 %v1489, %v1510
        %v1523 = vsub.f32 %v1490, %v1513
        %v1524 = vsub.f32 %v1491, %v1516
        %v1525 = vmul.f32 %v1517, 1.442695
        %v1526 = vpow.pop %v1525
        %v1527 = vmul.f32 %v1518, 1.442695
        %v1528 = vpow.pop %v1527
        %v1529 = vmul.f32 %v1519, 1.442695
        %v1530 = vpow.pop %v1529
        %v1531 = vmul.f32 %v1520, 1.442695
        %v1532 = vpow.pop %v1531
        %v1533 = vmul.f32 %v1521, 1.442695
        %v1534 = vpow.pop %v1533
        %v1535 = vmul.f32 %v1522, 1.442695
        %v1536 = vpow.pop %v1535
        %v1537 = vmul.f32 %v1523, 1.442695
        %v1538 = vpow.pop %v1537
        %v1539 = vmul.f32 %v1524, 1.442695
        %v1540 = vpow.pop %v1539
        %v1541 = vsel %vm1492, %v1526, 0.0
        %1542 = vadd.xlane.f32.xlu0 %v1541
        %v1543 = vpop.xlane.xlu0 %1542
        %v1544 = vsel %vm1492, %v1528, 0.0
        %1545 = vadd.xlane.f32.xlu0 %v1544
        %v1546 = vpop.xlane.xlu0 %1545
        %v1547 = vsel %vm1492, %v1530, 0.0
        %1548 = vadd.xlane.f32.xlu0 %v1547
        %v1549 = vpop.xlane.xlu0 %1548
        %v1550 = vsel %vm1492, %v1532, 0.0
        %1551 = vadd.xlane.f32.xlu0 %v1550
        %v1552 = vpop.xlane.xlu0 %1551
        %v1553 = vsel %vm1492, %v1534, 0.0
        %1554 = vadd.xlane.f32.xlu0 %v1553
        %v1555 = vpop.xlane.xlu0 %1554
        %v1556 = vsel %vm1492, %v1536, 0.0
        %1557 = vadd.xlane.f32.xlu0 %v1556
        %v1558 = vpop.xlane.xlu0 %1557
        %v1559 = vsel %vm1492, %v1538, 0.0
        %1560 = vadd.xlane.f32.xlu0 %v1559
        %v1561 = vpop.xlane.xlu0 %1560
        %v1562 = vsel %vm1492, %v1540, 0.0
        %1563 = vadd.xlane.f32.xlu0 %v1562
        %v1564 = vpop.xlane.xlu0 %1563
        %v1565 = vrcp.pop %v1543
        %v1566 = vrcp.pop %v1546
        %v1567 = vrcp.pop %v1549
        %v1568 = vrcp.pop %v1552
        %v1569 = vrcp.pop %v1555
        %v1570 = vrcp.pop %v1558
        %v1571 = vrcp.pop %v1561
        %v1572 = vrcp.pop %v1564
        %v1573 = vmul.f32 %v1526, %v1565
        %v1574 = vmul.f32 %v1528, %v1566
        %v1575 = vmul.f32 %v1530, %v1567
        %v1576 = vmul.f32 %v1532, %v1568
        %v1577 = vmul.f32 %v1534, %v1569
        %v1578 = vmul.f32 %v1536, %v1570
        %v1579 = vmul.f32 %v1538, %v1571
        %v1580 = vmul.f32 %v1540, %v1572
        %v1581 = vpack.c.bf16 %v1573, %v1573
        %v1582 = vpack.c.bf16 %v1574, %v1574
        %v1583 = vpack.c.bf16 %v1575, %v1575
        %v1584 = vpack.c.bf16 %v1576, %v1576
        %v1585 = vpack.c.bf16 %v1577, %v1577
        %v1586 = vpack.c.bf16 %v1578, %v1578
        %v1587 = vpack.c.bf16 %v1579, %v1579
        %v1588 = vpack.c.bf16 %v1580, %v1580
        %1589 = vrot.lane.b32.xlu0 %v1075, 64
        %v1590 = vpop.permute.xlu0 %1589
        %vm1591 = vcmask 31744
        %v1593 = vsel %vm1591, %v1581, 0
        %vm1595 = vcmask 1041408
        %v1597 = vsel %vm1595, %v1590, 0
        %1599 = vmatprep.subr.bf16.mxu0 0
        %1600 = vmatpush1.bf16.msra.mxu0 %v1597
        %1601 = vmatprep.subr.bf16.mxu0 0
        %1602 = vmatpush1.bf16.msra.mxu0 0
        %1603 = vmatprep.subr.bf16.mxu0 0
        %1604 = vmatpush1.bf16.msra.mxu0 0
        %1605 = vmatprep.subr.bf16.mxu0 0
        %1606 = vmatpush1.bf16.msra.mxu0 0
        %1607 = vmatprep.subr.bf16.mxu0 0
        %1608 = vmatpush1.bf16.msra.mxu0 0
        %1609 = vmatprep.subr.bf16.mxu0 0
        %1610 = vmatpush1.bf16.msra.mxu0 0
        %1611 = vmatprep.subr.bf16.mxu0 0
        %1612 = vmatpush1.bf16.msra.mxu0 0
        %1613 = vmatprep.subr.bf16.mxu0 0
        %1614 = vmatpush1.bf16.msra.mxu0 0
        %1615 = vmatprep.subr.bf16.mxu0 0
        %1616 = vmatpush1.bf16.msra.mxu0 0
        %1617 = vmatprep.subr.bf16.mxu0 0
        %1618 = vmatpush1.bf16.msra.mxu0 0
        %1619 = vmatprep.subr.bf16.mxu0 0
        %1620 = vmatpush1.bf16.msra.mxu0 0
        %1621 = vmatprep.subr.bf16.mxu0 0
        %1622 = vmatpush1.bf16.msra.mxu0 0
        %1623 = vmatprep.subr.bf16.mxu0 0
        %1624 = vmatpush1.bf16.msra.mxu0 0
        %1625 = vmatprep.subr.bf16.mxu0 0
        %1626 = vmatpush1.bf16.msra.mxu0 0
        %1627 = vmatprep.subr.bf16.mxu0 0
        %1628 = vmatpush1.bf16.msra.mxu0 0
        %1629 = vmatprep.subr.bf16.mxu0 0
        %1630 = vmatpush1.bf16.msra.mxu0 0
        %1631 = vmatprep.mubr.bf16.mxu0 0
        %1632 = vmatmul.mubr.bf16.gmra.mrb[0].mxu0 %v1593
        %v1633 = vpop.f32.mrb[0].mxu0
        %v1634 = vadd.f32 0.0, %v1633
        %v1635 = vpop.f32.mrb[0].mxu0
        %v1636 = vpop.f32.mrb[0].mxu0
        %v1637 = vpop.f32.mrb[0].mxu0
        %1638 = vdwg.mxu0
        %1639 = vrot.lane.b32.xlu0 %v1076, 64
        %v1640 = vpop.permute.xlu0 %1639
        %v1642 = vsel %vm1591, %v1582, 0
        %v1645 = vsel %vm1595, %v1640, 0
        %1647 = vmatprep.subr.bf16.mxu0 0
        %1648 = vmatpush1.bf16.msra.mxu0 %v1645
        %1649 = vmatprep.subr.bf16.mxu0 0
        %1650 = vmatpush1.bf16.msra.mxu0 0
        %1651 = vmatprep.subr.bf16.mxu0 0
        %1652 = vmatpush1.bf16.msra.mxu0 0
        %1653 = vmatprep.subr.bf16.mxu0 0
        %1654 = vmatpush1.bf16.msra.mxu0 0
        %1655 = vmatprep.subr.bf16.mxu0 0
        %1656 = vmatpush1.bf16.msra.mxu0 0
        %1657 = vmatprep.subr.bf16.mxu0 0
        %1658 = vmatpush1.bf16.msra.mxu0 0
        %1659 = vmatprep.subr.bf16.mxu0 0
        %1660 = vmatpush1.bf16.msra.mxu0 0
        %1661 = vmatprep.subr.bf16.mxu0 0
        %1662 = vmatpush1.bf16.msra.mxu0 0
        %1663 = vmatprep.subr.bf16.mxu0 0
        %1664 = vmatpush1.bf16.msra.mxu0 0
        %1665 = vmatprep.subr.bf16.mxu0 0
        %1666 = vmatpush1.bf16.msra.mxu0 0
        %1667 = vmatprep.subr.bf16.mxu0 0
        %1668 = vmatpush1.bf16.msra.mxu0 0
        %1669 = vmatprep.subr.bf16.mxu0 0
        %1670 = vmatpush1.bf16.msra.mxu0 0
        %1671 = vmatprep.subr.bf16.mxu0 0
        %1672 = vmatpush1.bf16.msra.mxu0 0
        %1673 = vmatprep.subr.bf16.mxu0 0
        %1674 = vmatpush1.bf16.msra.mxu0 0
        %1675 = vmatprep.subr.bf16.mxu0 0
        %1676 = vmatpush1.bf16.msra.mxu0 0
        %1677 = vmatprep.subr.bf16.mxu0 0
        %1678 = vmatpush1.bf16.msra.mxu0 0
        %1679 = vmatprep.mubr.bf16.mxu0 0
        %1680 = vmatmul.mubr.bf16.gmra.mrb[0].mxu0 %v1642
        %v1681 = vpop.f32.mrb[0].mxu0
        %v1682 = vadd.f32 0.0, %v1681
        %v1683 = vpop.f32.mrb[0].mxu0
        %v1684 = vpop.f32.mrb[0].mxu0
        %v1685 = vpop.f32.mrb[0].mxu0
        %1686 = vdwg.mxu0
        %1687 = vrot.lane.b32.xlu0 %v1077, 64
        %v1688 = vpop.permute.xlu0 %1687
        %v1690 = vsel %vm1591, %v1583, 0
        %v1693 = vsel %vm1595, %v1688, 0
        %1695 = vmatprep.subr.bf16.mxu0 0
        %1696 = vmatpush1.bf16.msra.mxu0 %v1693
        %1697 = vmatprep.subr.bf16.mxu0 0
        %1698 = vmatpush1.bf16.msra.mxu0 0
        %1699 = vmatprep.subr.bf16.mxu0 0
        %1700 = vmatpush1.bf16.msra.mxu0 0
        %1701 = vmatprep.subr.bf16.mxu0 0
        %1702 = vmatpush1.bf16.msra.mxu0 0
        %1703 = vmatprep.subr.bf16.mxu0 0
        %1704 = vmatpush1.bf16.msra.mxu0 0
        %1705 = vmatprep.subr.bf16.mxu0 0
        %1706 = vmatpush1.bf16.msra.mxu0 0
        %1707 = vmatprep.subr.bf16.mxu0 0
        %1708 = vmatpush1.bf16.msra.mxu0 0
        %1709 = vmatprep.subr.bf16.mxu0 0
        %1710 = vmatpush1.bf16.msra.mxu0 0
        %1711 = vmatprep.subr.bf16.mxu0 0
        %1712 = vmatpush1.bf16.msra.mxu0 0
        %1713 = vmatprep.subr.bf16.mxu0 0
        %1714 = vmatpush1.bf16.msra.mxu0 0
        %1715 = vmatprep.subr.bf16.mxu0 0
        %1716 = vmatpush1.bf16.msra.mxu0 0
        %1717 = vmatprep.subr.bf16.mxu0 0
        %1718 = vmatpush1.bf16.msra.mxu0 0
        %1719 = vmatprep.subr.bf16.mxu0 0
        %1720 = vmatpush1.bf16.msra.mxu0 0
        %1721 = vmatprep.subr.bf16.mxu0 0
        %1722 = vmatpush1.bf16.msra.mxu0 0
        %1723 = vmatprep.subr.bf16.mxu0 0
        %1724 = vmatpush1.bf16.msra.mxu0 0
        %1725 = vmatprep.subr.bf16.mxu0 0
        %1726 = vmatpush1.bf16.msra.mxu0 0
        %1727 = vmatprep.mubr.bf16.mxu0 0
        %1728 = vmatmul.mubr.bf16.gmra.mrb[0].mxu0 %v1690
        %v1729 = vpop.f32.mrb[0].mxu0
        %v1730 = vadd.f32 0.0, %v1729
        %v1731 = vpop.f32.mrb[0].mxu0
        %v1732 = vpop.f32.mrb[0].mxu0
        %v1733 = vpop.f32.mrb[0].mxu0
        %1734 = vdwg.mxu0
        %1735 = vrot.lane.b32.xlu0 %v1078, 64
        %v1736 = vpop.permute.xlu0 %1735
        %v1738 = vsel %vm1591, %v1584, 0
        %v1741 = vsel %vm1595, %v1736, 0
        %1743 = vmatprep.subr.bf16.mxu0 0
        %1744 = vmatpush1.bf16.msra.mxu0 %v1741
        %1745 = vmatprep.subr.bf16.mxu0 0
        %1746 = vmatpush1.bf16.msra.mxu0 0
        %1747 = vmatprep.subr.bf16.mxu0 0
        %1748 = vmatpush1.bf16.msra.mxu0 0
        %1749 = vmatprep.subr.bf16.mxu0 0
        %1750 = vmatpush1.bf16.msra.mxu0 0
        %1751 = vmatprep.subr.bf16.mxu0 0
        %1752 = vmatpush1.bf16.msra.mxu0 0
        %1753 = vmatprep.subr.bf16.mxu0 0
        %1754 = vmatpush1.bf16.msra.mxu0 0
        %1755 = vmatprep.subr.bf16.mxu0 0
        %1756 = vmatpush1.bf16.msra.mxu0 0
        %1757 = vmatprep.subr.bf16.mxu0 0
        %1758 = vmatpush1.bf16.msra.mxu0 0
        %1759 = vmatprep.subr.bf16.mxu0 0
        %1760 = vmatpush1.bf16.msra.mxu0 0
        %1761 = vmatprep.subr.bf16.mxu0 0
        %1762 = vmatpush1.bf16.msra.mxu0 0
        %1763 = vmatprep.subr.bf16.mxu0 0
        %1764 = vmatpush1.bf16.msra.mxu0 0
        %1765 = vmatprep.subr.bf16.mxu0 0
        %1766 = vmatpush1.bf16.msra.mxu0 0
        %1767 = vmatprep.subr.bf16.mxu0 0
        %1768 = vmatpush1.bf16.msra.mxu0 0
        %1769 = vmatprep.subr.bf16.mxu0 0
        %1770 = vmatpush1.bf16.msra.mxu0 0
        %1771 = vmatprep.subr.bf16.mxu0 0
        %1772 = vmatpush1.bf16.msra.mxu0 0
        %1773 = vmatprep.subr.bf16.mxu0 0
        %1774 = vmatpush1.bf16.msra.mxu0 0
        %1775 = vmatprep.mubr.bf16.mxu0 0
        %1776 = vmatmul.mubr.bf16.gmra.mrb[0].mxu0 %v1738
        %v1777 = vpop.f32.mrb[0].mxu0
        %v1778 = vadd.f32 0.0, %v1777
        %v1779 = vpop.f32.mrb[0].mxu0
        %v1780 = vpop.f32.mrb[0].mxu0
        %v1781 = vpop.f32.mrb[0].mxu0
        %1782 = vdwg.mxu0
        %1783 = vrot.lane.b32.xlu0 %v1079, 64
        %v1784 = vpop.permute.xlu0 %1783
        %v1786 = vsel %vm1591, %v1585, 0
        %v1789 = vsel %vm1595, %v1784, 0
        %1791 = vmatprep.subr.bf16.mxu0 0
        %1792 = vmatpush1.bf16.msra.mxu0 %v1789
        %1793 = vmatprep.subr.bf16.mxu0 0
        %1794 = vmatpush1.bf16.msra.mxu0 0
        %1795 = vmatprep.subr.bf16.mxu0 0
        %1796 = vmatpush1.bf16.msra.mxu0 0
        %1797 = vmatprep.subr.bf16.mxu0 0
        %1798 = vmatpush1.bf16.msra.mxu0 0
        %1799 = vmatprep.subr.bf16.mxu0 0
        %1800 = vmatpush1.bf16.msra.mxu0 0
        %1801 = vmatprep.subr.bf16.mxu0 0
        %1802 = vmatpush1.bf16.msra.mxu0 0
        %1803 = vmatprep.subr.bf16.mxu0 0
        %1804 = vmatpush1.bf16.msra.mxu0 0
        %1805 = vmatprep.subr.bf16.mxu0 0
        %1806 = vmatpush1.bf16.msra.mxu0 0
        %1807 = vmatprep.subr.bf16.mxu0 0
        %1808 = vmatpush1.bf16.msra.mxu0 0
        %1809 = vmatprep.subr.bf16.mxu0 0
        %1810 = vmatpush1.bf16.msra.mxu0 0
        %1811 = vmatprep.subr.bf16.mxu0 0
        %1812 = vmatpush1.bf16.msra.mxu0 0
        %1813 = vmatprep.subr.bf16.mxu0 0
        %1814 = vmatpush1.bf16.msra.mxu0 0
        %1815 = vmatprep.subr.bf16.mxu0 0
        %1816 = vmatpush1.bf16.msra.mxu0 0
        %1817 = vmatprep.subr.bf16.mxu0 0
        %1818 = vmatpush1.bf16.msra.mxu0 0
        %1819 = vmatprep.subr.bf16.mxu0 0
        %1820 = vmatpush1.bf16.msra.mxu0 0
        %1821 = vmatprep.subr.bf16.mxu0 0
        %1822 = vmatpush1.bf16.msra.mxu0 0
        %1823 = vmatprep.mubr.bf16.mxu0 0
        %1824 = vmatmul.mubr.bf16.gmra.mrb[0].mxu0 %v1786
        %v1825 = vpop.f32.mrb[0].mxu0
        %v1826 = vadd.f32 0.0, %v1825
        %v1827 = vpop.f32.mrb[0].mxu0
        %v1828 = vpop.f32.mrb[0].mxu0
        %v1829 = vpop.f32.mrb[0].mxu0
        %1830 = vdwg.mxu0
        %1831 = vrot.lane.b32.xlu0 %v1080, 64
        %v1832 = vpop.permute.xlu0 %1831
        %v1834 = vsel %vm1591, %v1586, 0
        %v1837 = vsel %vm1595, %v1832, 0
        %1839 = vmatprep.subr.bf16.mxu0 0
        %1840 = vmatpush1.bf16.msra.mxu0 %v1837
        %1841 = vmatprep.subr.bf16.mxu0 0
        %1842 = vmatpush1.bf16.msra.mxu0 0
        %1843 = vmatprep.subr.bf16.mxu0 0
        %1844 = vmatpush1.bf16.msra.mxu0 0
        %1845 = vmatprep.subr.bf16.mxu0 0
        %1846 = vmatpush1.bf16.msra.mxu0 0
        %1847 = vmatprep.subr.bf16.mxu0 0
        %1848 = vmatpush1.bf16.msra.mxu0 0
        %1849 = vmatprep.subr.bf16.mxu0 0
        %1850 = vmatpush1.bf16.msra.mxu0 0
        %1851 = vmatprep.subr.bf16.mxu0 0
        %1852 = vmatpush1.bf16.msra.mxu0 0
        %1853 = vmatprep.subr.bf16.mxu0 0
        %1854 = vmatpush1.bf16.msra.mxu0 0
        %1855 = vmatprep.subr.bf16.mxu0 0
        %1856 = vmatpush1.bf16.msra.mxu0 0
        %1857 = vmatprep.subr.bf16.mxu0 0
        %1858 = vmatpush1.bf16.msra.mxu0 0
        %1859 = vmatprep.subr.bf16.mxu0 0
        %1860 = vmatpush1.bf16.msra.mxu0 0
        %1861 = vmatprep.subr.bf16.mxu0 0
        %1862 = vmatpush1.bf16.msra.mxu0 0
        %1863 = vmatprep.subr.bf16.mxu0 0
        %1864 = vmatpush1.bf16.msra.mxu0 0
        %1865 = vmatprep.subr.bf16.mxu0 0
        %1866 = vmatpush1.bf16.msra.mxu0 0
        %1867 = vmatprep.subr.bf16.mxu0 0
        %1868 = vmatpush1.bf16.msra.mxu0 0
        %1869 = vmatprep.subr.bf16.mxu0 0
        %1870 = vmatpush1.bf16.msra.mxu0 0
        %1871 = vmatprep.mubr.bf16.mxu0 0
        %1872 = vmatmul.mubr.bf16.gmra.mrb[0].mxu0 %v1834
        %v1873 = vpop.f32.mrb[0].mxu0
        %v1874 = vadd.f32 0.0, %v1873
        %v1875 = vpop.f32.mrb[0].mxu0
        %v1876 = vpop.f32.mrb[0].mxu0
        %v1877 = vpop.f32.mrb[0].mxu0
        %1878 = vdwg.mxu0
        %1879 = vrot.lane.b32.xlu0 %v1081, 64
        %v1880 = vpop.permute.xlu0 %1879
        %v1882 = vsel %vm1591, %v1587, 0
        %v1885 = vsel %vm1595, %v1880, 0
        %1887 = vmatprep.subr.bf16.mxu0 0
        %1888 = vmatpush1.bf16.msra.mxu0 %v1885
        %1889 = vmatprep.subr.bf16.mxu0 0
        %1890 = vmatpush1.bf16.msra.mxu0 0
        %1891 = vmatprep.subr.bf16.mxu0 0
        %1892 = vmatpush1.bf16.msra.mxu0 0
        %1893 = vmatprep.subr.bf16.mxu0 0
        %1894 = vmatpush1.bf16.msra.mxu0 0
        %1895 = vmatprep.subr.bf16.mxu0 0
        %1896 = vmatpush1.bf16.msra.mxu0 0
        %1897 = vmatprep.subr.bf16.mxu0 0
        %1898 = vmatpush1.bf16.msra.mxu0 0
        %1899 = vmatprep.subr.bf16.mxu0 0
        %1900 = vmatpush1.bf16.msra.mxu0 0
        %1901 = vmatprep.subr.bf16.mxu0 0
        %1902 = vmatpush1.bf16.msra.mxu0 0
        %1903 = vmatprep.subr.bf16.mxu0 0
        %1904 = vmatpush1.bf16.msra.mxu0 0
        %1905 = vmatprep.subr.bf16.mxu0 0
        %1906 = vmatpush1.bf16.msra.mxu0 0
        %1907 = vmatprep.subr.bf16.mxu0 0
        %1908 = vmatpush1.bf16.msra.mxu0 0
        %1909 = vmatprep.subr.bf16.mxu0 0
        %1910 = vmatpush1.bf16.msra.mxu0 0
        %1911 = vmatprep.subr.bf16.mxu0 0
        %1912 = vmatpush1.bf16.msra.mxu0 0
        %1913 = vmatprep.subr.bf16.mxu0 0
        %1914 = vmatpush1.bf16.msra.mxu0 0
        %1915 = vmatprep.subr.bf16.mxu0 0
        %1916 = vmatpush1.bf16.msra.mxu0 0
        %1917 = vmatprep.subr.bf16.mxu0 0
        %1918 = vmatpush1.bf16.msra.mxu0 0
        %1919 = vmatprep.mubr.bf16.mxu0 0
        %1920 = vmatmul.mubr.bf16.gmra.mrb[0].mxu0 %v1882
        %v1921 = vpop.f32.mrb[0].mxu0
        %v1922 = vadd.f32 0.0, %v1921
        %v1923 = vpop.f32.mrb[0].mxu0
        %v1924 = vpop.f32.mrb[0].mxu0
        %v1925 = vpop.f32.mrb[0].mxu0
        %1926 = vdwg.mxu0
        %1927 = vrot.lane.b32.xlu0 %v1082, 64
        %v1928 = vpop.permute.xlu0 %1927
        %v1930 = vsel %vm1591, %v1588, 0
        %v1933 = vsel %vm1595, %v1928, 0
        %1935 = vmatprep.subr.bf16.mxu0 0
        %1936 = vmatpush1.bf16.msra.mxu0 %v1933
        %1937 = vmatprep.subr.bf16.mxu0 0
        %1938 = vmatpush1.bf16.msra.mxu0 0
        %1939 = vmatprep.subr.bf16.mxu0 0
        %1940 = vmatpush1.bf16.msra.mxu0 0
        %1941 = vmatprep.subr.bf16.mxu0 0
        %1942 = vmatpush1.bf16.msra.mxu0 0
        %1943 = vmatprep.subr.bf16.mxu0 0
        %1944 = vmatpush1.bf16.msra.mxu0 0
        %1945 = vmatprep.subr.bf16.mxu0 0
        %1946 = vmatpush1.bf16.msra.mxu0 0
        %1947 = vmatprep.subr.bf16.mxu0 0
        %1948 = vmatpush1.bf16.msra.mxu0 0
        %1949 = vmatprep.subr.bf16.mxu0 0
        %1950 = vmatpush1.bf16.msra.mxu0 0
        %1951 = vmatprep.subr.bf16.mxu0 0
        %1952 = vmatpush1.bf16.msra.mxu0 0
        %1953 = vmatprep.subr.bf16.mxu0 0
        %1954 = vmatpush1.bf16.msra.mxu0 0
        %1955 = vmatprep.subr.bf16.mxu0 0
        %1956 = vmatpush1.bf16.msra.mxu0 0
        %1957 = vmatprep.subr.bf16.mxu0 0
        %1958 = vmatpush1.bf16.msra.mxu0 0
        %1959 = vmatprep.subr.bf16.mxu0 0
        %1960 = vmatpush1.bf16.msra.mxu0 0
        %1961 = vmatprep.subr.bf16.mxu0 0
        %1962 = vmatpush1.bf16.msra.mxu0 0
        %1963 = vmatprep.subr.bf16.mxu0 0
        %1964 = vmatpush1.bf16.msra.mxu0 0
        %1965 = vmatprep.subr.bf16.mxu0 0
        %1966 = vmatpush1.bf16.msra.mxu0 0
        %1967 = vmatprep.mubr.bf16.mxu0 0
        %1968 = vmatmul.mubr.bf16.gmra.mrb[0].mxu0 %v1930
        %v1969 = vpop.f32.mrb[0].mxu0
        %v1970 = vadd.f32 0.0, %v1969
        %v1971 = vpop.f32.mrb[0].mxu0
        %v1972 = vpop.f32.mrb[0].mxu0
        %v1973 = vpop.f32.mrb[0].mxu0
        %1974 = vdwg.mxu0
        %1975 = vrot.lane.b32.xlu0 %v1075, 112
        %v1976 = vpop.permute.xlu0 %1975
        %1977 = vrot.lane.b32.xlu0 %v1075, 80
        %v1978 = vpop.permute.xlu0 %1977
        %v1980 = vsel %vm1086, %v1976, 0
        %v1983 = vsel %vm1086, %v1978, 0
        %1985 = vmatprep.subr.bf16.mxu0 0
        %1986 = vmatpush1.bf16.xpose.msra.mxu0 %v1983
        %1987 = vmatprep.subr.bf16.mxu0 0
        %1988 = vmatpush1.bf16.xpose.msra.mxu0 0
        %1989 = vmatprep.subr.bf16.mxu0 0
        %1990 = vmatpush1.bf16.xpose.msra.mxu0 0
        %1991 = vmatprep.subr.bf16.mxu0 0
        %1992 = vmatpush1.bf16.xpose.msra.mxu0 0
        %1993 = vmatprep.subr.bf16.mxu0 0
        %1994 = vmatpush1.bf16.xpose.msra.mxu0 0
        %1995 = vmatprep.subr.bf16.mxu0 0
        %1996 = vmatpush1.bf16.xpose.msra.mxu0 0
        %1997 = vmatprep.subr.bf16.mxu0 0
        %1998 = vmatpush1.bf16.xpose.msra.mxu0 0
        %1999 = vmatprep.subr.bf16.mxu0 0
        %2000 = vmatpush1.bf16.xpose.msra.mxu0 0
        %2001 = vmatprep.subr.bf16.mxu0 0
        %2002 = vmatpush1.bf16.xpose.msra.mxu0 0
        %2003 = vmatprep.subr.bf16.mxu0 0
        %2004 = vmatpush1.bf16.xpose.msra.mxu0 0
        %2005 = vmatprep.subr.bf16.mxu0 0
        %2006 = vmatpush1.bf16.xpose.msra.mxu0 0
        %2007 = vmatprep.subr.bf16.mxu0 0
        %2008 = vmatpush1.bf16.xpose.msra.mxu0 0
        %2009 = vmatprep.subr.bf16.mxu0 0
        %2010 = vmatpush1.bf16.xpose.msra.mxu0 0
        %2011 = vmatprep.subr.bf16.mxu0 0
        %2012 = vmatpush1.bf16.xpose.msra.mxu0 0
        %2013 = vmatprep.subr.bf16.mxu0 0
        %2014 = vmatpush1.bf16.xpose.msra.mxu0 0
        %2015 = vmatprep.subr.bf16.mxu0 0
        %2016 = vmatpush1.bf16.xpose.msra.mxu0 0
        %2017 = vmatprep.mubr.bf16.mxu0 0
        %2018 = vmatmul.mubr.bf16.gmra.mrb[0].mxu0 %v1980
        %v2019 = vpop.f32.mrb[0].mxu0
        %v2020 = vadd.f32 0.0, %v2019
        %v2021 = vpop.f32.mrb[0].mxu0
        %v2022 = vpop.f32.mrb[0].mxu0
        %v2023 = vpop.f32.mrb[0].mxu0
        %2024 = vdwg.mxu0
        %2025 = vrot.lane.b32.xlu0 %v1076, 112
        %v2026 = vpop.permute.xlu0 %2025
        %2027 = vrot.lane.b32.xlu0 %v1076, 80
        %v2028 = vpop.permute.xlu0 %2027
        %v2030 = vsel %vm1086, %v2026, 0
        %v2033 = vsel %vm1086, %v2028, 0
        %2035 = vmatprep.subr.bf16.mxu0 0
        %2036 = vmatpush1.bf16.xpose.msra.mxu0 %v2033
        %2037 = vmatprep.subr.bf16.mxu0 0
        %2038 = vmatpush1.bf16.xpose.msra.mxu0 0
        %2039 = vmatprep.subr.bf16.mxu0 0
        %2040 = vmatpush1.bf16.xpose.msra.mxu0 0
        %2041 = vmatprep.subr.bf16.mxu0 0
        %2042 = vmatpush1.bf16.xpose.msra.mxu0 0
        %2043 = vmatprep.subr.bf16.mxu0 0
        %2044 = vmatpush1.bf16.xpose.msra.mxu0 0
        %2045 = vmatprep.subr.bf16.mxu0 0
        %2046 = vmatpush1.bf16.xpose.msra.mxu0 0
        %2047 = vmatprep.subr.bf16.mxu0 0
        %2048 = vmatpush1.bf16.xpose.msra.mxu0 0
        %2049 = vmatprep.subr.bf16.mxu0 0
        %2050 = vmatpush1.bf16.xpose.msra.mxu0 0
        %2051 = vmatprep.subr.bf16.mxu0 0
        %2052 = vmatpush1.bf16.xpose.msra.mxu0 0
        %2053 = vmatprep.subr.bf16.mxu0 0
        %2054 = vmatpush1.bf16.xpose.msra.mxu0 0
        %2055 = vmatprep.subr.bf16.mxu0 0
        %2056 = vmatpush1.bf16.xpose.msra.mxu0 0
        %2057 = vmatprep.subr.bf16.mxu0 0
        %2058 = vmatpush1.bf16.xpose.msra.mxu0 0
        %2059 = vmatprep.subr.bf16.mxu0 0
        %2060 = vmatpush1.bf16.xpose.msra.mxu0 0
        %2061 = vmatprep.subr.bf16.mxu0 0
        %2062 = vmatpush1.bf16.xpose.msra.mxu0 0
        %2063 = vmatprep.subr.bf16.mxu0 0
        %2064 = vmatpush1.bf16.xpose.msra.mxu0 0
        %2065 = vmatprep.subr.bf16.mxu0 0
        %2066 = vmatpush1.bf16.xpose.msra.mxu0 0
        %2067 = vmatprep.mubr.bf16.mxu0 0
        %2068 = vmatmul.mubr.bf16.gmra.mrb[0].mxu0 %v2030
        %v2069 = vpop.f32.mrb[0].mxu0
        %v2070 = vadd.f32 0.0, %v2069
        %v2071 = vpop.f32.mrb[0].mxu0
        %v2072 = vpop.f32.mrb[0].mxu0
        %v2073 = vpop.f32.mrb[0].mxu0
        %2074 = vdwg.mxu0
        %2075 = vrot.lane.b32.xlu0 %v1077, 112
        %v2076 = vpop.permute.xlu0 %2075
        %2077 = vrot.lane.b32.xlu0 %v1077, 80
        %v2078 = vpop.permute.xlu0 %2077
        %v2080 = vsel %vm1086, %v2076, 0
        %v2083 = vsel %vm1086, %v2078, 0
        %2085 = vmatprep.subr.bf16.mxu0 0
        %2086 = vmatpush1.bf16.xpose.msra.mxu0 %v2083
        %2087 = vmatprep.subr.bf16.mxu0 0
        %2088 = vmatpush1.bf16.xpose.msra.mxu0 0
        %2089 = vmatprep.subr.bf16.mxu0 0
        %2090 = vmatpush1.bf16.xpose.msra.mxu0 0
        %2091 = vmatprep.subr.bf16.mxu0 0
        %2092 = vmatpush1.bf16.xpose.msra.mxu0 0
        %2093 = vmatprep.subr.bf16.mxu0 0
        %2094 = vmatpush1.bf16.xpose.msra.mxu0 0
        %2095 = vmatprep.subr.bf16.mxu0 0
        %2096 = vmatpush1.bf16.xpose.msra.mxu0 0
        %2097 = vmatprep.subr.bf16.mxu0 0
        %2098 = vmatpush1.bf16.xpose.msra.mxu0 0
        %2099 = vmatprep.subr.bf16.mxu0 0
        %2100 = vmatpush1.bf16.xpose.msra.mxu0 0
        %2101 = vmatprep.subr.bf16.mxu0 0
        %2102 = vmatpush1.bf16.xpose.msra.mxu0 0
        %2103 = vmatprep.subr.bf16.mxu0 0
        %2104 = vmatpush1.bf16.xpose.msra.mxu0 0
        %2105 = vmatprep.subr.bf16.mxu0 0
        %2106 = vmatpush1.bf16.xpose.msra.mxu0 0
        %2107 = vmatprep.subr.bf16.mxu0 0
        %2108 = vmatpush1.bf16.xpose.msra.mxu0 0
        %2109 = vmatprep.subr.bf16.mxu0 0
        %2110 = vmatpush1.bf16.xpose.msra.mxu0 0
        %2111 = vmatprep.subr.bf16.mxu0 0
        %2112 = vmatpush1.bf16.xpose.msra.mxu0 0
        %2113 = vmatprep.subr.bf16.mxu0 0
        %2114 = vmatpush1.bf16.xpose.msra.mxu0 0
        %2115 = vmatprep.subr.bf16.mxu0 0
        %2116 = vmatpush1.bf16.xpose.msra.mxu0 0
        %2117 = vmatprep.mubr.bf16.mxu0 0
        %2118 = vmatmul.mubr.bf16.gmra.mrb[0].mxu0 %v2080
        %v2119 = vpop.f32.mrb[0].mxu0
        %v2120 = vadd.f32 0.0, %v2119
        %v2121 = vpop.f32.mrb[0].mxu0
        %v2122 = vpop.f32.mrb[0].mxu0
        %v2123 = vpop.f32.mrb[0].mxu0
        %2124 = vdwg.mxu0
        %2125 = vrot.lane.b32.xlu0 %v1078, 112
        %v2126 = vpop.permute.xlu0 %2125
        %2127 = vrot.lane.b32.xlu0 %v1078, 80
        %v2128 = vpop.permute.xlu0 %2127
        %v2130 = vsel %vm1086, %v2126, 0
        %v2133 = vsel %vm1086, %v2128, 0
        %2135 = vmatprep.subr.bf16.mxu0 0
        %2136 = vmatpush1.bf16.xpose.msra.mxu0 %v2133
        %2137 = vmatprep.subr.bf16.mxu0 0
        %2138 = vmatpush1.bf16.xpose.msra.mxu0 0
        %2139 = vmatprep.subr.bf16.mxu0 0
        %2140 = vmatpush1.bf16.xpose.msra.mxu0 0
        %2141 = vmatprep.subr.bf16.mxu0 0
        %2142 = vmatpush1.bf16.xpose.msra.mxu0 0
        %2143 = vmatprep.subr.bf16.mxu0 0
        %2144 = vmatpush1.bf16.xpose.msra.mxu0 0
        %2145 = vmatprep.subr.bf16.mxu0 0
        %2146 = vmatpush1.bf16.xpose.msra.mxu0 0
        %2147 = vmatprep.subr.bf16.mxu0 0
        %2148 = vmatpush1.bf16.xpose.msra.mxu0 0
        %2149 = vmatprep.subr.bf16.mxu0 0
        %2150 = vmatpush1.bf16.xpose.msra.mxu0 0
        %2151 = vmatprep.subr.bf16.mxu0 0
        %2152 = vmatpush1.bf16.xpose.msra.mxu0 0
        %2153 = vmatprep.subr.bf16.mxu0 0
        %2154 = vmatpush1.bf16.xpose.msra.mxu0 0
        %2155 = vmatprep.subr.bf16.mxu0 0
        %2156 = vmatpush1.bf16.xpose.msra.mxu0 0
        %2157 = vmatprep.subr.bf16.mxu0 0
        %2158 = vmatpush1.bf16.xpose.msra.mxu0 0
        %2159 = vmatprep.subr.bf16.mxu0 0
        %2160 = vmatpush1.bf16.xpose.msra.mxu0 0
        %2161 = vmatprep.subr.bf16.mxu0 0
        %2162 = vmatpush1.bf16.xpose.msra.mxu0 0
        %2163 = vmatprep.subr.bf16.mxu0 0
        %2164 = vmatpush1.bf16.xpose.msra.mxu0 0
        %2165 = vmatprep.subr.bf16.mxu0 0
        %2166 = vmatpush1.bf16.xpose.msra.mxu0 0
        %2167 = vmatprep.mubr.bf16.mxu0 0
        %2168 = vmatmul.mubr.bf16.gmra.mrb[0].mxu0 %v2130
        %v2169 = vpop.f32.mrb[0].mxu0
        %v2170 = vadd.f32 0.0, %v2169
        %v2171 = vpop.f32.mrb[0].mxu0
        %v2172 = vpop.f32.mrb[0].mxu0
        %v2173 = vpop.f32.mrb[0].mxu0
        %2174 = vdwg.mxu0
        %2175 = vrot.lane.b32.xlu0 %v1079, 112
        %v2176 = vpop.permute.xlu0 %2175
        %2177 = vrot.lane.b32.xlu0 %v1079, 80
        %v2178 = vpop.permute.xlu0 %2177
        %v2180 = vsel %vm1086, %v2176, 0
        %v2183 = vsel %vm1086, %v2178, 0
        %2185 = vmatprep.subr.bf16.mxu0 0
        %2186 = vmatpush1.bf16.xpose.msra.mxu0 %v2183
        %2187 = vmatprep.subr.bf16.mxu0 0
        %2188 = vmatpush1.bf16.xpose.msra.mxu0 0
        %2189 = vmatprep.subr.bf16.mxu0 0
        %2190 = vmatpush1.bf16.xpose.msra.mxu0 0
        %2191 = vmatprep.subr.bf16.mxu0 0
        %2192 = vmatpush1.bf16.xpose.msra.mxu0 0
        %2193 = vmatprep.subr.bf16.mxu0 0
        %2194 = vmatpush1.bf16.xpose.msra.mxu0 0
        %2195 = vmatprep.subr.bf16.mxu0 0
        %2196 = vmatpush1.bf16.xpose.msra.mxu0 0
        %2197 = vmatprep.subr.bf16.mxu0 0
        %2198 = vmatpush1.bf16.xpose.msra.mxu0 0
        %2199 = vmatprep.subr.bf16.mxu0 0
        %2200 = vmatpush1.bf16.xpose.msra.mxu0 0
        %2201 = vmatprep.subr.bf16.mxu0 0
        %2202 = vmatpush1.bf16.xpose.msra.mxu0 0
        %2203 = vmatprep.subr.bf16.mxu0 0
        %2204 = vmatpush1.bf16.xpose.msra.mxu0 0
        %2205 = vmatprep.subr.bf16.mxu0 0
        %2206 = vmatpush1.bf16.xpose.msra.mxu0 0
        %2207 = vmatprep.subr.bf16.mxu0 0
        %2208 = vmatpush1.bf16.xpose.msra.mxu0 0
        %2209 = vmatprep.subr.bf16.mxu0 0
        %2210 = vmatpush1.bf16.xpose.msra.mxu0 0
        %2211 = vmatprep.subr.bf16.mxu0 0
        %2212 = vmatpush1.bf16.xpose.msra.mxu0 0
        %2213 = vmatprep.subr.bf16.mxu0 0
        %2214 = vmatpush1.bf16.xpose.msra.mxu0 0
        %2215 = vmatprep.subr.bf16.mxu0 0
        %2216 = vmatpush1.bf16.xpose.msra.mxu0 0
        %2217 = vmatprep.mubr.bf16.mxu0 0
        %2218 = vmatmul.mubr.bf16.gmra.mrb[0].mxu0 %v2180
        %v2219 = vpop.f32.mrb[0].mxu0
        %v2220 = vadd.f32 0.0, %v2219
        %v2221 = vpop.f32.mrb[0].mxu0
        %v2222 = vpop.f32.mrb[0].mxu0
        %v2223 = vpop.f32.mrb[0].mxu0
        %2224 = vdwg.mxu0
        %2225 = vrot.lane.b32.xlu0 %v1080, 112
        %v2226 = vpop.permute.xlu0 %2225
        %2227 = vrot.lane.b32.xlu0 %v1080, 80
        %v2228 = vpop.permute.xlu0 %2227
        %v2230 = vsel %vm1086, %v2226, 0
        %v2233 = vsel %vm1086, %v2228, 0
        %2235 = vmatprep.subr.bf16.mxu0 0
        %2236 = vmatpush1.bf16.xpose.msra.mxu0 %v2233
        %2237 = vmatprep.subr.bf16.mxu0 0
        %2238 = vmatpush1.bf16.xpose.msra.mxu0 0
        %2239 = vmatprep.subr.bf16.mxu0 0
        %2240 = vmatpush1.bf16.xpose.msra.mxu0 0
        %2241 = vmatprep.subr.bf16.mxu0 0
        %2242 = vmatpush1.bf16.xpose.msra.mxu0 0
        %2243 = vmatprep.subr.bf16.mxu0 0
        %2244 = vmatpush1.bf16.xpose.msra.mxu0 0
        %2245 = vmatprep.subr.bf16.mxu0 0
        %2246 = vmatpush1.bf16.xpose.msra.mxu0 0
        %2247 = vmatprep.subr.bf16.mxu0 0
        %2248 = vmatpush1.bf16.xpose.msra.mxu0 0
        %2249 = vmatprep.subr.bf16.mxu0 0
        %2250 = vmatpush1.bf16.xpose.msra.mxu0 0
        %2251 = vmatprep.subr.bf16.mxu0 0
        %2252 = vmatpush1.bf16.xpose.msra.mxu0 0
        %2253 = vmatprep.subr.bf16.mxu0 0
        %2254 = vmatpush1.bf16.xpose.msra.mxu0 0
        %2255 = vmatprep.subr.bf16.mxu0 0
        %2256 = vmatpush1.bf16.xpose.msra.mxu0 0
        %2257 = vmatprep.subr.bf16.mxu0 0
        %2258 = vmatpush1.bf16.xpose.msra.mxu0 0
        %2259 = vmatprep.subr.bf16.mxu0 0
        %2260 = vmatpush1.bf16.xpose.msra.mxu0 0
        %2261 = vmatprep.subr.bf16.mxu0 0
        %2262 = vmatpush1.bf16.xpose.msra.mxu0 0
        %2263 = vmatprep.subr.bf16.mxu0 0
        %2264 = vmatpush1.bf16.xpose.msra.mxu0 0
        %2265 = vmatprep.subr.bf16.mxu0 0
        %2266 = vmatpush1.bf16.xpose.msra.mxu0 0
        %2267 = vmatprep.mubr.bf16.mxu0 0
        %2268 = vmatmul.mubr.bf16.gmra.mrb[0].mxu0 %v2230
        %v2269 = vpop.f32.mrb[0].mxu0
        %v2270 = vadd.f32 0.0, %v2269
        %v2271 = vpop.f32.mrb[0].mxu0
        %v2272 = vpop.f32.mrb[0].mxu0
        %v2273 = vpop.f32.mrb[0].mxu0
        %2274 = vdwg.mxu0
        %2275 = vrot.lane.b32.xlu0 %v1081, 112
        %v2276 = vpop.permute.xlu0 %2275
        %2277 = vrot.lane.b32.xlu0 %v1081, 80
        %v2278 = vpop.permute.xlu0 %2277
        %v2280 = vsel %vm1086, %v2276, 0
        %v2283 = vsel %vm1086, %v2278, 0
        %2285 = vmatprep.subr.bf16.mxu0 0
        %2286 = vmatpush1.bf16.xpose.msra.mxu0 %v2283
        %2287 = vmatprep.subr.bf16.mxu0 0
        %2288 = vmatpush1.bf16.xpose.msra.mxu0 0
        %2289 = vmatprep.subr.bf16.mxu0 0
        %2290 = vmatpush1.bf16.xpose.msra.mxu0 0
        %2291 = vmatprep.subr.bf16.mxu0 0
        %2292 = vmatpush1.bf16.xpose.msra.mxu0 0
        %2293 = vmatprep.subr.bf16.mxu0 0
        %2294 = vmatpush1.bf16.xpose.msra.mxu0 0
        %2295 = vmatprep.subr.bf16.mxu0 0
        %2296 = vmatpush1.bf16.xpose.msra.mxu0 0
        %2297 = vmatprep.subr.bf16.mxu0 0
        %2298 = vmatpush1.bf16.xpose.msra.mxu0 0
        %2299 = vmatprep.subr.bf16.mxu0 0
        %2300 = vmatpush1.bf16.xpose.msra.mxu0 0
        %2301 = vmatprep.subr.bf16.mxu0 0
        %2302 = vmatpush1.bf16.xpose.msra.mxu0 0
        %2303 = vmatprep.subr.bf16.mxu0 0
        %2304 = vmatpush1.bf16.xpose.msra.mxu0 0
        %2305 = vmatprep.subr.bf16.mxu0 0
        %2306 = vmatpush1.bf16.xpose.msra.mxu0 0
        %2307 = vmatprep.subr.bf16.mxu0 0
        %2308 = vmatpush1.bf16.xpose.msra.mxu0 0
        %2309 = vmatprep.subr.bf16.mxu0 0
        %2310 = vmatpush1.bf16.xpose.msra.mxu0 0
        %2311 = vmatprep.subr.bf16.mxu0 0
        %2312 = vmatpush1.bf16.xpose.msra.mxu0 0
        %2313 = vmatprep.subr.bf16.mxu0 0
        %2314 = vmatpush1.bf16.xpose.msra.mxu0 0
        %2315 = vmatprep.subr.bf16.mxu0 0
        %2316 = vmatpush1.bf16.xpose.msra.mxu0 0
        %2317 = vmatprep.mubr.bf16.mxu0 0
        %2318 = vmatmul.mubr.bf16.gmra.mrb[0].mxu0 %v2280
        %v2319 = vpop.f32.mrb[0].mxu0
        %v2320 = vadd.f32 0.0, %v2319
        %v2321 = vpop.f32.mrb[0].mxu0
        %v2322 = vpop.f32.mrb[0].mxu0
        %v2323 = vpop.f32.mrb[0].mxu0
        %2324 = vdwg.mxu0
        %2325 = vrot.lane.b32.xlu0 %v1082, 112
        %v2326 = vpop.permute.xlu0 %2325
        %2327 = vrot.lane.b32.xlu0 %v1082, 80
        %v2328 = vpop.permute.xlu0 %2327
        %v2330 = vsel %vm1086, %v2326, 0
        %v2333 = vsel %vm1086, %v2328, 0
        %2335 = vmatprep.subr.bf16.mxu0 0
        %2336 = vmatpush1.bf16.xpose.msra.mxu0 %v2333
        %2337 = vmatprep.subr.bf16.mxu0 0
        %2338 = vmatpush1.bf16.xpose.msra.mxu0 0
        %2339 = vmatprep.subr.bf16.mxu0 0
        %2340 = vmatpush1.bf16.xpose.msra.mxu0 0
        %2341 = vmatprep.subr.bf16.mxu0 0
        %2342 = vmatpush1.bf16.xpose.msra.mxu0 0
        %2343 = vmatprep.subr.bf16.mxu0 0
        %2344 = vmatpush1.bf16.xpose.msra.mxu0 0
        %2345 = vmatprep.subr.bf16.mxu0 0
        %2346 = vmatpush1.bf16.xpose.msra.mxu0 0
        %2347 = vmatprep.subr.bf16.mxu0 0
        %2348 = vmatpush1.bf16.xpose.msra.mxu0 0
        %2349 = vmatprep.subr.bf16.mxu0 0
        %2350 = vmatpush1.bf16.xpose.msra.mxu0 0
        %2351 = vmatprep.subr.bf16.mxu0 0
        %2352 = vmatpush1.bf16.xpose.msra.mxu0 0
        %2353 = vmatprep.subr.bf16.mxu0 0
        %2354 = vmatpush1.bf16.xpose.msra.mxu0 0
        %2355 = vmatprep.subr.bf16.mxu0 0
        %2356 = vmatpush1.bf16.xpose.msra.mxu0 0
        %2357 = vmatprep.subr.bf16.mxu0 0
        %2358 = vmatpush1.bf16.xpose.msra.mxu0 0
        %2359 = vmatprep.subr.bf16.mxu0 0
        %2360 = vmatpush1.bf16.xpose.msra.mxu0 0
        %2361 = vmatprep.subr.bf16.mxu0 0
        %2362 = vmatpush1.bf16.xpose.msra.mxu0 0
        %2363 = vmatprep.subr.bf16.mxu0 0
        %2364 = vmatpush1.bf16.xpose.msra.mxu0 0
        %2365 = vmatprep.subr.bf16.mxu0 0
        %2366 = vmatpush1.bf16.xpose.msra.mxu0 0
        %2367 = vmatprep.mubr.bf16.mxu0 0
        %2368 = vmatmul.mubr.bf16.gmra.mrb[0].mxu0 %v2330
        %v2369 = vpop.f32.mrb[0].mxu0
        %v2370 = vadd.f32 0.0, %v2369
        %v2371 = vpop.f32.mrb[0].mxu0
        %v2372 = vpop.f32.mrb[0].mxu0
        %v2373 = vpop.f32.mrb[0].mxu0
        %2374 = vdwg.mxu0
        %v2375 = vmul.f32 %v2020, 0.25
        %v2376 = vmul.f32 %v2070, 0.25
        %v2377 = vmul.f32 %v2120, 0.25
        %v2378 = vmul.f32 %v2170, 0.25
        %v2379 = vmul.f32 %v2220, 0.25
        %v2380 = vmul.f32 %v2270, 0.25
        %v2381 = vmul.f32 %v2320, 0.25
        %v2382 = vmul.f32 %v2370, 0.25
        %v2383 = vadd.f32 %v2375, %v1062
        %v2384 = vadd.f32 %v2376, %v1062
        %v2385 = vadd.f32 %v2377, %v1062
        %v2386 = vadd.f32 %v2378, %v1062
        %v2387 = vadd.f32 %v2379, %v1062
        %v2388 = vadd.f32 %v2380, %v1062
        %v2389 = vadd.f32 %v2381, %v1062
        %v2390 = vadd.f32 %v2382, %v1062
        %v2391 = vsel %vm1492, %v2383, -inf
        %2392 = vmax.xlane.f32.xlu0 %v2391
        %v2393 = vpop.xlane.xlu0 %2392
        %v2394 = vsel %vm1492, %v2384, -inf
        %2395 = vmax.xlane.f32.xlu0 %v2394
        %v2396 = vpop.xlane.xlu0 %2395
        %v2397 = vsel %vm1492, %v2385, -inf
        %2398 = vmax.xlane.f32.xlu0 %v2397
        %v2399 = vpop.xlane.xlu0 %2398
        %v2400 = vsel %vm1492, %v2386, -inf
        %2401 = vmax.xlane.f32.xlu0 %v2400
        %v2402 = vpop.xlane.xlu0 %2401
        %v2403 = vsel %vm1492, %v2387, -inf
        %2404 = vmax.xlane.f32.xlu0 %v2403
        %v2405 = vpop.xlane.xlu0 %2404
        %v2406 = vsel %vm1492, %v2388, -inf
        %2407 = vmax.xlane.f32.xlu0 %v2406
        %v2408 = vpop.xlane.xlu0 %2407
        %v2409 = vsel %vm1492, %v2389, -inf
        %2410 = vmax.xlane.f32.xlu0 %v2409
        %v2411 = vpop.xlane.xlu0 %2410
        %v2412 = vsel %vm1492, %v2390, -inf
        %2413 = vmax.xlane.f32.xlu0 %v2412
        %v2414 = vpop.xlane.xlu0 %2413
        %v2415 = vsub.f32 %v2383, %v2393
        %v2416 = vsub.f32 %v2384, %v2396
        %v2417 = vsub.f32 %v2385, %v2399
        %v2418 = vsub.f32 %v2386, %v2402
        %v2419 = vsub.f32 %v2387, %v2405
        %v2420 = vsub.f32 %v2388, %v2408
        %v2421 = vsub.f32 %v2389, %v2411
        %v2422 = vsub.f32 %v2390, %v2414
        %v2423 = vmul.f32 %v2415, 1.442695
        %v2424 = vpow.pop %v2423
        %v2425 = vmul.f32 %v2416, 1.442695
        %v2426 = vpow.pop %v2425
        %v2427 = vmul.f32 %v2417, 1.442695
        %v2428 = vpow.pop %v2427
        %v2429 = vmul.f32 %v2418, 1.442695
        %v2430 = vpow.pop %v2429
        %v2431 = vmul.f32 %v2419, 1.442695
        %v2432 = vpow.pop %v2431
        %v2433 = vmul.f32 %v2420, 1.442695
        %v2434 = vpow.pop %v2433
        %v2435 = vmul.f32 %v2421, 1.442695
        %v2436 = vpow.pop %v2435
        %v2437 = vmul.f32 %v2422, 1.442695
        %v2438 = vpow.pop %v2437
        %v2439 = vsel %vm1492, %v2424, 0.0
        %2440 = vadd.xlane.f32.xlu0 %v2439
        %v2441 = vpop.xlane.xlu0 %2440
        %v2442 = vsel %vm1492, %v2426, 0.0
        %2443 = vadd.xlane.f32.xlu0 %v2442
        %v2444 = vpop.xlane.xlu0 %2443
        %v2445 = vsel %vm1492, %v2428, 0.0
        %2446 = vadd.xlane.f32.xlu0 %v2445
        %v2447 = vpop.xlane.xlu0 %2446
        %v2448 = vsel %vm1492, %v2430, 0.0
        %2449 = vadd.xlane.f32.xlu0 %v2448
        %v2450 = vpop.xlane.xlu0 %2449
        %v2451 = vsel %vm1492, %v2432, 0.0
        %2452 = vadd.xlane.f32.xlu0 %v2451
        %v2453 = vpop.xlane.xlu0 %2452
        %v2454 = vsel %vm1492, %v2434, 0.0
        %2455 = vadd.xlane.f32.xlu0 %v2454
        %v2456 = vpop.xlane.xlu0 %2455
        %v2457 = vsel %vm1492, %v2436, 0.0
        %2458 = vadd.xlane.f32.xlu0 %v2457
        %v2459 = vpop.xlane.xlu0 %2458
        %v2460 = vsel %vm1492, %v2438, 0.0
        %2461 = vadd.xlane.f32.xlu0 %v2460
        %v2462 = vpop.xlane.xlu0 %2461
        %v2463 = vrcp.pop %v2441
        %v2464 = vrcp.pop %v2444
        %v2465 = vrcp.pop %v2447
        %v2466 = vrcp.pop %v2450
        %v2467 = vrcp.pop %v2453
        %v2468 = vrcp.pop %v2456
        %v2469 = vrcp.pop %v2459
        %v2470 = vrcp.pop %v2462
        %v2471 = vmul.f32 %v2424, %v2463
        %v2472 = vmul.f32 %v2426, %v2464
        %v2473 = vmul.f32 %v2428, %v2465
        %v2474 = vmul.f32 %v2430, %v2466
        %v2475 = vmul.f32 %v2432, %v2467
        %v2476 = vmul.f32 %v2434, %v2468
        %v2477 = vmul.f32 %v2436, %v2469
        %v2478 = vmul.f32 %v2438, %v2470
        %v2479 = vpack.c.bf16 %v2471, %v2471
        %v2480 = vpack.c.bf16 %v2472, %v2472
        %v2481 = vpack.c.bf16 %v2473, %v2473
        %v2482 = vpack.c.bf16 %v2474, %v2474
        %v2483 = vpack.c.bf16 %v2475, %v2475
        %v2484 = vpack.c.bf16 %v2476, %v2476
        %v2485 = vpack.c.bf16 %v2477, %v2477
        %v2486 = vpack.c.bf16 %v2478, %v2478
        %2487 = vrot.lane.b32.xlu0 %v1075, 48
        %v2488 = vpop.permute.xlu0 %2487
        %v2490 = vsel %vm1591, %v2479, 0
        %v2493 = vsel %vm1595, %v2488, 0
        %2495 = vmatprep.subr.bf16.mxu0 0
        %2496 = vmatpush1.bf16.msra.mxu0 %v2493
        %2497 = vmatprep.subr.bf16.mxu0 0
        %2498 = vmatpush1.bf16.msra.mxu0 0
        %2499 = vmatprep.subr.bf16.mxu0 0
        %2500 = vmatpush1.bf16.msra.mxu0 0
        %2501 = vmatprep.subr.bf16.mxu0 0
        %2502 = vmatpush1.bf16.msra.mxu0 0
        %2503 = vmatprep.subr.bf16.mxu0 0
        %2504 = vmatpush1.bf16.msra.mxu0 0
        %2505 = vmatprep.subr.bf16.mxu0 0
        %2506 = vmatpush1.bf16.msra.mxu0 0
        %2507 = vmatprep.subr.bf16.mxu0 0
        %2508 = vmatpush1.bf16.msra.mxu0 0
        %2509 = vmatprep.subr.bf16.mxu0 0
        %2510 = vmatpush1.bf16.msra.mxu0 0
        %2511 = vmatprep.subr.bf16.mxu0 0
        %2512 = vmatpush1.bf16.msra.mxu0 0
        %2513 = vmatprep.subr.bf16.mxu0 0
        %2514 = vmatpush1.bf16.msra.mxu0 0
        %2515 = vmatprep.subr.bf16.mxu0 0
        %2516 = vmatpush1.bf16.msra.mxu0 0
        %2517 = vmatprep.subr.bf16.mxu0 0
        %2518 = vmatpush1.bf16.msra.mxu0 0
        %2519 = vmatprep.subr.bf16.mxu0 0
        %2520 = vmatpush1.bf16.msra.mxu0 0
        %2521 = vmatprep.subr.bf16.mxu0 0
        %2522 = vmatpush1.bf16.msra.mxu0 0
        %2523 = vmatprep.subr.bf16.mxu0 0
        %2524 = vmatpush1.bf16.msra.mxu0 0
        %2525 = vmatprep.subr.bf16.mxu0 0
        %2526 = vmatpush1.bf16.msra.mxu0 0
        %2527 = vmatprep.mubr.bf16.mxu0 0
        %2528 = vmatmul.mubr.bf16.gmra.mrb[0].mxu0 %v2490
        %v2529 = vpop.f32.mrb[0].mxu0
        %v2530 = vadd.f32 0.0, %v2529
        %v2531 = vpop.f32.mrb[0].mxu0
        %v2532 = vpop.f32.mrb[0].mxu0
        %v2533 = vpop.f32.mrb[0].mxu0
        %2534 = vdwg.mxu0
        %2535 = vrot.lane.b32.xlu0 %v1076, 48
        %v2536 = vpop.permute.xlu0 %2535
        %v2538 = vsel %vm1591, %v2480, 0
        %v2541 = vsel %vm1595, %v2536, 0
        %2543 = vmatprep.subr.bf16.mxu0 0
        %2544 = vmatpush1.bf16.msra.mxu0 %v2541
        %2545 = vmatprep.subr.bf16.mxu0 0
        %2546 = vmatpush1.bf16.msra.mxu0 0
        %2547 = vmatprep.subr.bf16.mxu0 0
        %2548 = vmatpush1.bf16.msra.mxu0 0
        %2549 = vmatprep.subr.bf16.mxu0 0
        %2550 = vmatpush1.bf16.msra.mxu0 0
        %2551 = vmatprep.subr.bf16.mxu0 0
        %2552 = vmatpush1.bf16.msra.mxu0 0
        %2553 = vmatprep.subr.bf16.mxu0 0
        %2554 = vmatpush1.bf16.msra.mxu0 0
        %2555 = vmatprep.subr.bf16.mxu0 0
        %2556 = vmatpush1.bf16.msra.mxu0 0
        %2557 = vmatprep.subr.bf16.mxu0 0
        %2558 = vmatpush1.bf16.msra.mxu0 0
        %2559 = vmatprep.subr.bf16.mxu0 0
        %2560 = vmatpush1.bf16.msra.mxu0 0
        %2561 = vmatprep.subr.bf16.mxu0 0
        %2562 = vmatpush1.bf16.msra.mxu0 0
        %2563 = vmatprep.subr.bf16.mxu0 0
        %2564 = vmatpush1.bf16.msra.mxu0 0
        %2565 = vmatprep.subr.bf16.mxu0 0
        %2566 = vmatpush1.bf16.msra.mxu0 0
        %2567 = vmatprep.subr.bf16.mxu0 0
        %2568 = vmatpush1.bf16.msra.mxu0 0
        %2569 = vmatprep.subr.bf16.mxu0 0
        %2570 = vmatpush1.bf16.msra.mxu0 0
        %2571 = vmatprep.subr.bf16.mxu0 0
        %2572 = vmatpush1.bf16.msra.mxu0 0
        %2573 = vmatprep.subr.bf16.mxu0 0
        %2574 = vmatpush1.bf16.msra.mxu0 0
        %2575 = vmatprep.mubr.bf16.mxu0 0
        %2576 = vmatmul.mubr.bf16.gmra.mrb[0].mxu0 %v2538
        %v2577 = vpop.f32.mrb[0].mxu0
        %v2578 = vadd.f32 0.0, %v2577
        %v2579 = vpop.f32.mrb[0].mxu0
        %v2580 = vpop.f32.mrb[0].mxu0
        %v2581 = vpop.f32.mrb[0].mxu0
        %2582 = vdwg.mxu0
        %2583 = vrot.lane.b32.xlu0 %v1077, 48
        %v2584 = vpop.permute.xlu0 %2583
        %v2586 = vsel %vm1591, %v2481, 0
        %v2589 = vsel %vm1595, %v2584, 0
        %2591 = vmatprep.subr.bf16.mxu0 0
        %2592 = vmatpush1.bf16.msra.mxu0 %v2589
        %2593 = vmatprep.subr.bf16.mxu0 0
        %2594 = vmatpush1.bf16.msra.mxu0 0
        %2595 = vmatprep.subr.bf16.mxu0 0
        %2596 = vmatpush1.bf16.msra.mxu0 0
        %2597 = vmatprep.subr.bf16.mxu0 0
        %2598 = vmatpush1.bf16.msra.mxu0 0
        %2599 = vmatprep.subr.bf16.mxu0 0
        %2600 = vmatpush1.bf16.msra.mxu0 0
        %2601 = vmatprep.subr.bf16.mxu0 0
        %2602 = vmatpush1.bf16.msra.mxu0 0
        %2603 = vmatprep.subr.bf16.mxu0 0
        %2604 = vmatpush1.bf16.msra.mxu0 0
        %2605 = vmatprep.subr.bf16.mxu0 0
        %2606 = vmatpush1.bf16.msra.mxu0 0
        %2607 = vmatprep.subr.bf16.mxu0 0
        %2608 = vmatpush1.bf16.msra.mxu0 0
        %2609 = vmatprep.subr.bf16.mxu0 0
        %2610 = vmatpush1.bf16.msra.mxu0 0
        %2611 = vmatprep.subr.bf16.mxu0 0
        %2612 = vmatpush1.bf16.msra.mxu0 0
        %2613 = vmatprep.subr.bf16.mxu0 0
        %2614 = vmatpush1.bf16.msra.mxu0 0
        %2615 = vmatprep.subr.bf16.mxu0 0
        %2616 = vmatpush1.bf16.msra.mxu0 0
        %2617 = vmatprep.subr.bf16.mxu0 0
        %2618 = vmatpush1.bf16.msra.mxu0 0
        %2619 = vmatprep.subr.bf16.mxu0 0
        %2620 = vmatpush1.bf16.msra.mxu0 0
        %2621 = vmatprep.subr.bf16.mxu0 0
        %2622 = vmatpush1.bf16.msra.mxu0 0
        %2623 = vmatprep.mubr.bf16.mxu0 0
        %2624 = vmatmul.mubr.bf16.gmra.mrb[0].mxu0 %v2586
        %v2625 = vpop.f32.mrb[0].mxu0
        %v2626 = vadd.f32 0.0, %v2625
        %v2627 = vpop.f32.mrb[0].mxu0
        %v2628 = vpop.f32.mrb[0].mxu0
        %v2629 = vpop.f32.mrb[0].mxu0
        %2630 = vdwg.mxu0
        %2631 = vrot.lane.b32.xlu0 %v1078, 48
        %v2632 = vpop.permute.xlu0 %2631
        %v2634 = vsel %vm1591, %v2482, 0
        %v2637 = vsel %vm1595, %v2632, 0
        %2639 = vmatprep.subr.bf16.mxu0 0
        %2640 = vmatpush1.bf16.msra.mxu0 %v2637
        %2641 = vmatprep.subr.bf16.mxu0 0
        %2642 = vmatpush1.bf16.msra.mxu0 0
        %2643 = vmatprep.subr.bf16.mxu0 0
        %2644 = vmatpush1.bf16.msra.mxu0 0
        %2645 = vmatprep.subr.bf16.mxu0 0
        %2646 = vmatpush1.bf16.msra.mxu0 0
        %2647 = vmatprep.subr.bf16.mxu0 0
        %2648 = vmatpush1.bf16.msra.mxu0 0
        %2649 = vmatprep.subr.bf16.mxu0 0
        %2650 = vmatpush1.bf16.msra.mxu0 0
        %2651 = vmatprep.subr.bf16.mxu0 0
        %2652 = vmatpush1.bf16.msra.mxu0 0
        %2653 = vmatprep.subr.bf16.mxu0 0
        %2654 = vmatpush1.bf16.msra.mxu0 0
        %2655 = vmatprep.subr.bf16.mxu0 0
        %2656 = vmatpush1.bf16.msra.mxu0 0
        %2657 = vmatprep.subr.bf16.mxu0 0
        %2658 = vmatpush1.bf16.msra.mxu0 0
        %2659 = vmatprep.subr.bf16.mxu0 0
        %2660 = vmatpush1.bf16.msra.mxu0 0
        %2661 = vmatprep.subr.bf16.mxu0 0
        %2662 = vmatpush1.bf16.msra.mxu0 0
        %2663 = vmatprep.subr.bf16.mxu0 0
        %2664 = vmatpush1.bf16.msra.mxu0 0
        %2665 = vmatprep.subr.bf16.mxu0 0
        %2666 = vmatpush1.bf16.msra.mxu0 0
        %2667 = vmatprep.subr.bf16.mxu0 0
        %2668 = vmatpush1.bf16.msra.mxu0 0
        %2669 = vmatprep.subr.bf16.mxu0 0
        %2670 = vmatpush1.bf16.msra.mxu0 0
        %2671 = vmatprep.mubr.bf16.mxu0 0
        %2672 = vmatmul.mubr.bf16.gmra.mrb[0].mxu0 %v2634
        %v2673 = vpop.f32.mrb[0].mxu0
        %v2674 = vadd.f32 0.0, %v2673
        %v2675 = vpop.f32.mrb[0].mxu0
        %v2676 = vpop.f32.mrb[0].mxu0
        %v2677 = vpop.f32.mrb[0].mxu0
        %2678 = vdwg.mxu0
        %2679 = vrot.lane.b32.xlu0 %v1079, 48
        %v2680 = vpop.permute.xlu0 %2679
        %v2682 = vsel %vm1591, %v2483, 0
        %v2685 = vsel %vm1595, %v2680, 0
        %2687 = vmatprep.subr.bf16.mxu0 0
        %2688 = vmatpush1.bf16.msra.mxu0 %v2685
        %2689 = vmatprep.subr.bf16.mxu0 0
        %2690 = vmatpush1.bf16.msra.mxu0 0
        %2691 = vmatprep.subr.bf16.mxu0 0
        %2692 = vmatpush1.bf16.msra.mxu0 0
        %2693 = vmatprep.subr.bf16.mxu0 0
        %2694 = vmatpush1.bf16.msra.mxu0 0
        %2695 = vmatprep.subr.bf16.mxu0 0
        %2696 = vmatpush1.bf16.msra.mxu0 0
        %2697 = vmatprep.subr.bf16.mxu0 0
        %2698 = vmatpush1.bf16.msra.mxu0 0
        %2699 = vmatprep.subr.bf16.mxu0 0
        %2700 = vmatpush1.bf16.msra.mxu0 0
        %2701 = vmatprep.subr.bf16.mxu0 0
        %2702 = vmatpush1.bf16.msra.mxu0 0
        %2703 = vmatprep.subr.bf16.mxu0 0
        %2704 = vmatpush1.bf16.msra.mxu0 0
        %2705 = vmatprep.subr.bf16.mxu0 0
        %2706 = vmatpush1.bf16.msra.mxu0 0
        %2707 = vmatprep.subr.bf16.mxu0 0
        %2708 = vmatpush1.bf16.msra.mxu0 0
        %2709 = vmatprep.subr.bf16.mxu0 0
        %2710 = vmatpush1.bf16.msra.mxu0 0
        %2711 = vmatprep.subr.bf16.mxu0 0
        %2712 = vmatpush1.bf16.msra.mxu0 0
        %2713 = vmatprep.subr.bf16.mxu0 0
        %2714 = vmatpush1.bf16.msra.mxu0 0
        %2715 = vmatprep.subr.bf16.mxu0 0
        %2716 = vmatpush1.bf16.msra.mxu0 0
        %2717 = vmatprep.subr.bf16.mxu0 0
        %2718 = vmatpush1.bf16.msra.mxu0 0
        %2719 = vmatprep.mubr.bf16.mxu0 0
        %2720 = vmatmul.mubr.bf16.gmra.mrb[0].mxu0 %v2682
        %v2721 = vpop.f32.mrb[0].mxu0
        %v2722 = vadd.f32 0.0, %v2721
        %v2723 = vpop.f32.mrb[0].mxu0
        %v2724 = vpop.f32.mrb[0].mxu0
        %v2725 = vpop.f32.mrb[0].mxu0
        %2726 = vdwg.mxu0
        %2727 = vrot.lane.b32.xlu0 %v1080, 48
        %v2728 = vpop.permute.xlu0 %2727
        %v2730 = vsel %vm1591, %v2484, 0
        %v2733 = vsel %vm1595, %v2728, 0
        %2735 = vmatprep.subr.bf16.mxu0 0
        %2736 = vmatpush1.bf16.msra.mxu0 %v2733
        %2737 = vmatprep.subr.bf16.mxu0 0
        %2738 = vmatpush1.bf16.msra.mxu0 0
        %2739 = vmatprep.subr.bf16.mxu0 0
        %2740 = vmatpush1.bf16.msra.mxu0 0
        %2741 = vmatprep.subr.bf16.mxu0 0
        %2742 = vmatpush1.bf16.msra.mxu0 0
        %2743 = vmatprep.subr.bf16.mxu0 0
        %2744 = vmatpush1.bf16.msra.mxu0 0
        %2745 = vmatprep.subr.bf16.mxu0 0
        %2746 = vmatpush1.bf16.msra.mxu0 0
        %2747 = vmatprep.subr.bf16.mxu0 0
        %2748 = vmatpush1.bf16.msra.mxu0 0
        %2749 = vmatprep.subr.bf16.mxu0 0
        %2750 = vmatpush1.bf16.msra.mxu0 0
        %2751 = vmatprep.subr.bf16.mxu0 0
        %2752 = vmatpush1.bf16.msra.mxu0 0
        %2753 = vmatprep.subr.bf16.mxu0 0
        %2754 = vmatpush1.bf16.msra.mxu0 0
        %2755 = vmatprep.subr.bf16.mxu0 0
        %2756 = vmatpush1.bf16.msra.mxu0 0
        %2757 = vmatprep.subr.bf16.mxu0 0
        %2758 = vmatpush1.bf16.msra.mxu0 0
        %2759 = vmatprep.subr.bf16.mxu0 0
        %2760 = vmatpush1.bf16.msra.mxu0 0
        %2761 = vmatprep.subr.bf16.mxu0 0
        %2762 = vmatpush1.bf16.msra.mxu0 0
        %2763 = vmatprep.subr.bf16.mxu0 0
        %2764 = vmatpush1.bf16.msra.mxu0 0
        %2765 = vmatprep.subr.bf16.mxu0 0
        %2766 = vmatpush1.bf16.msra.mxu0 0
        %2767 = vmatprep.mubr.bf16.mxu0 0
        %2768 = vmatmul.mubr.bf16.gmra.mrb[0].mxu0 %v2730
        %v2769 = vpop.f32.mrb[0].mxu0
        %v2770 = vadd.f32 0.0, %v2769
        %v2771 = vpop.f32.mrb[0].mxu0
        %v2772 = vpop.f32.mrb[0].mxu0
        %v2773 = vpop.f32.mrb[0].mxu0
        %2774 = vdwg.mxu0
        %2775 = vrot.lane.b32.xlu0 %v1081, 48
        %v2776 = vpop.permute.xlu0 %2775
        %v2778 = vsel %vm1591, %v2485, 0
        %v2781 = vsel %vm1595, %v2776, 0
        %2783 = vmatprep.subr.bf16.mxu0 0
        %2784 = vmatpush1.bf16.msra.mxu0 %v2781
        %2785 = vmatprep.subr.bf16.mxu0 0
        %2786 = vmatpush1.bf16.msra.mxu0 0
        %2787 = vmatprep.subr.bf16.mxu0 0
        %2788 = vmatpush1.bf16.msra.mxu0 0
        %2789 = vmatprep.subr.bf16.mxu0 0
        %2790 = vmatpush1.bf16.msra.mxu0 0
        %2791 = vmatprep.subr.bf16.mxu0 0
        %2792 = vmatpush1.bf16.msra.mxu0 0
        %2793 = vmatprep.subr.bf16.mxu0 0
        %2794 = vmatpush1.bf16.msra.mxu0 0
        %2795 = vmatprep.subr.bf16.mxu0 0
        %2796 = vmatpush1.bf16.msra.mxu0 0
        %2797 = vmatprep.subr.bf16.mxu0 0
        %2798 = vmatpush1.bf16.msra.mxu0 0
        %2799 = vmatprep.subr.bf16.mxu0 0
        %2800 = vmatpush1.bf16.msra.mxu0 0
        %2801 = vmatprep.subr.bf16.mxu0 0
        %2802 = vmatpush1.bf16.msra.mxu0 0
        %2803 = vmatprep.subr.bf16.mxu0 0
        %2804 = vmatpush1.bf16.msra.mxu0 0
        %2805 = vmatprep.subr.bf16.mxu0 0
        %2806 = vmatpush1.bf16.msra.mxu0 0
        %2807 = vmatprep.subr.bf16.mxu0 0
        %2808 = vmatpush1.bf16.msra.mxu0 0
        %2809 = vmatprep.subr.bf16.mxu0 0
        %2810 = vmatpush1.bf16.msra.mxu0 0
        %2811 = vmatprep.subr.bf16.mxu0 0
        %2812 = vmatpush1.bf16.msra.mxu0 0
        %2813 = vmatprep.subr.bf16.mxu0 0
        %2814 = vmatpush1.bf16.msra.mxu0 0
        %2815 = vmatprep.mubr.bf16.mxu0 0
        %2816 = vmatmul.mubr.bf16.gmra.mrb[0].mxu0 %v2778
        %v2817 = vpop.f32.mrb[0].mxu0
        %v2818 = vadd.f32 0.0, %v2817
        %v2819 = vpop.f32.mrb[0].mxu0
        %v2820 = vpop.f32.mrb[0].mxu0
        %v2821 = vpop.f32.mrb[0].mxu0
        %2822 = vdwg.mxu0
        %2823 = vrot.lane.b32.xlu0 %v1082, 48
        %v2824 = vpop.permute.xlu0 %2823
        %v2826 = vsel %vm1591, %v2486, 0
        %v2829 = vsel %vm1595, %v2824, 0
        %2831 = vmatprep.subr.bf16.mxu0 0
        %2832 = vmatpush1.bf16.msra.mxu0 %v2829
        %2833 = vmatprep.subr.bf16.mxu0 0
        %2834 = vmatpush1.bf16.msra.mxu0 0
        %2835 = vmatprep.subr.bf16.mxu0 0
        %2836 = vmatpush1.bf16.msra.mxu0 0
        %2837 = vmatprep.subr.bf16.mxu0 0
        %2838 = vmatpush1.bf16.msra.mxu0 0
        %2839 = vmatprep.subr.bf16.mxu0 0
        %2840 = vmatpush1.bf16.msra.mxu0 0
        %2841 = vmatprep.subr.bf16.mxu0 0
        %2842 = vmatpush1.bf16.msra.mxu0 0
        %2843 = vmatprep.subr.bf16.mxu0 0
        %2844 = vmatpush1.bf16.msra.mxu0 0
        %2845 = vmatprep.subr.bf16.mxu0 0
        %2846 = vmatpush1.bf16.msra.mxu0 0
        %2847 = vmatprep.subr.bf16.mxu0 0
        %2848 = vmatpush1.bf16.msra.mxu0 0
        %2849 = vmatprep.subr.bf16.mxu0 0
        %2850 = vmatpush1.bf16.msra.mxu0 0
        %2851 = vmatprep.subr.bf16.mxu0 0
        %2852 = vmatpush1.bf16.msra.mxu0 0
        %2853 = vmatprep.subr.bf16.mxu0 0
        %2854 = vmatpush1.bf16.msra.mxu0 0
        %2855 = vmatprep.subr.bf16.mxu0 0
        %2856 = vmatpush1.bf16.msra.mxu0 0
        %2857 = vmatprep.subr.bf16.mxu0 0
        %2858 = vmatpush1.bf16.msra.mxu0 0
        %2859 = vmatprep.subr.bf16.mxu0 0
        %2860 = vmatpush1.bf16.msra.mxu0 0
        %2861 = vmatprep.subr.bf16.mxu0 0
        %2862 = vmatpush1.bf16.msra.mxu0 0
        %2863 = vmatprep.mubr.bf16.mxu0 0
        %2864 = vmatmul.mubr.bf16.gmra.mrb[0].mxu0 %v2826
        %v2865 = vpop.f32.mrb[0].mxu0
        %v2866 = vadd.f32 0.0, %v2865
        %v2867 = vpop.f32.mrb[0].mxu0
        %v2868 = vpop.f32.mrb[0].mxu0
        %v2869 = vpop.f32.mrb[0].mxu0
        %2870 = vdwg.mxu0
        %v2879 = vcombine.low %v1634, %v1682
        %v2880 = vcombine.low %v1730, %v1778
        %v2881 = vcombine.low %v1826, %v1874
        %v2882 = vcombine.low %v1922, %v1970
        %v2895 = vcombine.low %v2530, %v2578
        %v2896 = vcombine.low %v2626, %v2674
        %v2897 = vcombine.low %v2722, %v2770
        %v2898 = vcombine.low %v2818, %v2866
        %2899 = vrot.lane.b32.xlu0 %v2895, 16
        %v2900 = vpop.permute.xlu0 %2899
        %2901 = vrot.lane.b32.xlu0 %v2896, 16
        %v2902 = vpop.permute.xlu0 %2901
        %2903 = vrot.lane.b32.xlu0 %v2897, 16
        %v2904 = vpop.permute.xlu0 %2903
        %2905 = vrot.lane.b32.xlu0 %v2898, 16
        %v2906 = vpop.permute.xlu0 %2905
        %v2911 = vsel %vm1086, %v2879, %v2900
        %v2912 = vsel %vm1086, %v2880, %v2902
        %v2913 = vsel %vm1086, %v2881, %v2904
        %v2914 = vsel %vm1086, %v2882, %v2906
        %v2915 = vpack.c.bf16 %v2912, %v2911
        %v2916 = vpack.c.bf16 %v2914, %v2913
        %v2917 = vld [vmem:[#allocation13] sm:$0xf]
        %v2918 = vld [vmem:[#allocation13 + $0x4] sm:$0xf]
        %v2919 = vld [vmem:[#allocation13 + $0x8] sm:$0xf]
        %v2920 = vld [vmem:[#allocation13 + $0xc] sm:$0xf]
        %v2925 = vunpack.c.l.b16 %v2917
        %v2926 = vunpack.c.l.b16 %v2918
        %v2927 = vunpack.c.l.b16 %v2919
        %v2928 = vunpack.c.l.b16 %v2920
        %v2929 = vpack.c.b16 %v2926, %v2925
        %v2930 = vpack.c.b16 %v2928, %v2927
        %v2934 = vsel %vm715, %v2915, 0
        %v2937 = vsel %vm715, %v2916, 0
        %2939 = vmatprep.subr.bf16.mxu0 0
        %2940 = vmatpush1.bf16.msra.mxu0 %v2929
        %2941 = vmatprep.subr.bf16.mxu0 0
        %2942 = vmatpush1.bf16.msra.mxu0 %v2930
        %2943 = vmatprep.subr.bf16.mxu0 0
        %2944 = vmatpush1.bf16.msra.mxu0 0
        %2945 = vmatprep.subr.bf16.mxu0 0
        %2946 = vmatpush1.bf16.msra.mxu0 0
        %2947 = vmatprep.subr.bf16.mxu0 0
        %2948 = vmatpush1.bf16.msra.mxu0 0
        %2949 = vmatprep.subr.bf16.mxu0 0
        %2950 = vmatpush1.bf16.msra.mxu0 0
        %2951 = vmatprep.subr.bf16.mxu0 0
        %2952 = vmatpush1.bf16.msra.mxu0 0
        %2953 = vmatprep.subr.bf16.mxu0 0
        %2954 = vmatpush1.bf16.msra.mxu0 0
        %2955 = vmatprep.subr.bf16.mxu0 0
        %2956 = vmatpush1.bf16.msra.mxu0 0
        %2957 = vmatprep.subr.bf16.mxu0 0
        %2958 = vmatpush1.bf16.msra.mxu0 0
        %2959 = vmatprep.subr.bf16.mxu0 0
        %2960 = vmatpush1.bf16.msra.mxu0 0
        %2961 = vmatprep.subr.bf16.mxu0 0
        %2962 = vmatpush1.bf16.msra.mxu0 0
        %2963 = vmatprep.subr.bf16.mxu0 0
        %2964 = vmatpush1.bf16.msra.mxu0 0
        %2965 = vmatprep.subr.bf16.mxu0 0
        %2966 = vmatpush1.bf16.msra.mxu0 0
        %2967 = vmatprep.subr.bf16.mxu0 0
        %2968 = vmatpush1.bf16.msra.mxu0 0
        %2969 = vmatprep.subr.bf16.mxu0 0
        %2970 = vmatpush1.bf16.msra.mxu0 0
        %2971 = vmatprep.mubr.bf16.mxu0 0
        %2972 = vmatmul.mubr.bf16.gmra.mrb[0].mxu0 %v2934
        %v2973 = vpop.f32.mrb[0].mxu0
        %v2974 = vadd.f32 0.0, %v2973
        %v2975 = vpop.f32.mrb[0].mxu0
        %v2976 = vpop.f32.mrb[0].mxu0
        %v2977 = vadd.f32 0.0, %v2976
        %v2978 = vpop.f32.mrb[0].mxu0
        %2979 = vmatprep.mubr.bf16.mxu0 0
        %2980 = vmatmul.mubr.bf16.gmra.mrb[0].mxu0 %v2937
        %v2981 = vpop.f32.mrb[0].mxu0
        %v2982 = vadd.f32 0.0, %v2981
        %v2983 = vpop.f32.mrb[0].mxu0
        %v2984 = vpop.f32.mrb[0].mxu0
        %v2985 = vadd.f32 0.0, %v2984
        %v2986 = vpop.f32.mrb[0].mxu0
        %2987 = vdwg.mxu0
        %v2992 = vcombine.high %v2974, %v2974
        %v2993 = vcombine.high %v2977, %v2977
        %v2994 = vcombine.high %v2982, %v2982
        %v2995 = vcombine.high %v2985, %v2985
        %v3000 = vadd.f32 %v689, %v2974
        %v3001 = vadd.f32 %v690, %v2992
        %v3002 = vadd.f32 %v691, %v2977
        %v3003 = vadd.f32 %v692, %v2993
        %v3004 = vadd.f32 %v693, %v2982
        %v3005 = vadd.f32 %v694, %v2994
        %v3006 = vadd.f32 %v695, %v2985
        %v3007 = vadd.f32 %v696, %v2995
        %v3008 = vld [vmem:[#allocation14] sm:$0x1]
        %v3010 = vlaneseq
        %v3011 = vshrl.u32 %v3010, 7
        %v3012 = vsub.s32 0, %v3011
        %v3013 = vrot.slane %v3008, %v3012
        %v3015 = vcombine.high %v3013, %v3013
        %v3017 = vadd.f32 %v3000, %v3013
        %v3018 = vadd.f32 %v3001, %v3015
        %v3019 = vadd.f32 %v3002, %v3013
        %v3020 = vadd.f32 %v3003, %v3015
        %v3021 = vadd.f32 %v3004, %v3013
        %v3022 = vadd.f32 %v3005, %v3015
        %v3023 = vadd.f32 %v3006, %v3013
        %v3024 = vadd.f32 %v3007, %v3015
        %v3025 = vld [vmem:[#allocation16] sm:$0x1]
        %v3026 = vld [vmem:[#allocation17] sm:$0x1]
        %v3035 = vcombine.low %v3017, %v3018
        %v3036 = vcombine.low %v3019, %v3020
        %v3037 = vcombine.low %v3021, %v3022
        %v3038 = vcombine.low %v3023, %v3024
        %v3043 = vsel %vm715, %v3035, 0.0
        %3044 = vadd.xlane.f32.xlu0 %v3043
        %v3045 = vpop.xlane.xlu0 %3044
        %v3046 = vsel %vm715, %v3036, 0.0
        %3047 = vadd.xlane.f32.xlu0 %v3046
        %v3048 = vpop.xlane.xlu0 %3047
        %v3049 = vsel %vm715, %v3037, 0.0
        %3050 = vadd.xlane.f32.xlu0 %v3049
        %v3051 = vpop.xlane.xlu0 %3050
        %v3052 = vsel %vm715, %v3038, 0.0
        %3053 = vadd.xlane.f32.xlu0 %v3052
        %v3054 = vpop.xlane.xlu0 %3053
        %v3055 = vmul.f32 %v3045, %v728
        %v3056 = vmul.f32 %v3048, %v728
        %v3057 = vmul.f32 %v3051, %v728
        %v3058 = vmul.f32 %v3054, %v728
        %v3064 = vunpack.c.l.s4 839922192
        %v3065 = vunpack.c.0.s8 %v3064
        %v3066 = vlaneseq
        %v3067 = vshrl.u32 %v3066, 7
        %v3068 = vsub.s32 %v3065, %v3067
        %v3069 = vrot.slane %v3055, %v3068
        %v3071 = vunpack.c.l.s4 1985246804
        %v3072 = vunpack.c.0.s8 %v3071
        %v3073 = vlaneseq
        %v3074 = vshrl.u32 %v3073, 7
        %v3075 = vsub.s32 %v3072, %v3074
        %v3076 = vrot.slane %v3055, %v3075
        %v3078 = vunpack.c.l.s4 839922192
        %v3079 = vunpack.c.0.s8 %v3078
        %v3080 = vlaneseq
        %v3081 = vshrl.u32 %v3080, 7
        %v3082 = vsub.s32 %v3079, %v3081
        %v3083 = vrot.slane %v3056, %v3082
        %v3085 = vunpack.c.l.s4 1985246804
        %v3086 = vunpack.c.0.s8 %v3085
        %v3087 = vlaneseq
        %v3088 = vshrl.u32 %v3087, 7
        %v3089 = vsub.s32 %v3086, %v3088
        %v3090 = vrot.slane %v3056, %v3089
        %v3092 = vunpack.c.l.s4 839922192
        %v3093 = vunpack.c.0.s8 %v3092
        %v3094 = vlaneseq
        %v3095 = vshrl.u32 %v3094, 7
        %v3096 = vsub.s32 %v3093, %v3095
        %v3097 = vrot.slane %v3057, %v3096
        %v3099 = vunpack.c.l.s4 1985246804
        %v3100 = vunpack.c.0.s8 %v3099
        %v3101 = vlaneseq
        %v3102 = vshrl.u32 %v3101, 7
        %v3103 = vsub.s32 %v3100, %v3102
        %v3104 = vrot.slane %v3057, %v3103
        %v3106 = vunpack.c.l.s4 839922192
        %v3107 = vunpack.c.0.s8 %v3106
        %v3108 = vlaneseq
        %v3109 = vshrl.u32 %v3108, 7
        %v3110 = vsub.s32 %v3107, %v3109
        %v3111 = vrot.slane %v3058, %v3110
        %v3113 = vunpack.c.l.s4 1985246804
        %v3114 = vunpack.c.0.s8 %v3113
        %v3115 = vlaneseq
        %v3116 = vshrl.u32 %v3115, 7
        %v3117 = vsub.s32 %v3114, %v3116
        %v3118 = vrot.slane %v3058, %v3117
        %v3127 = vsub.f32 %v3017, %v3069
        %v3128 = vsub.f32 %v3018, %v3076
        %v3129 = vsub.f32 %v3019, %v3083
        %v3130 = vsub.f32 %v3020, %v3090
        %v3131 = vsub.f32 %v3021, %v3097
        %v3132 = vsub.f32 %v3022, %v3104
        %v3133 = vsub.f32 %v3023, %v3111
        %v3134 = vsub.f32 %v3024, %v3118
        %v3135 = vmul.f32 %v3127, %v3127
        %v3136 = vmul.f32 %v3128, %v3128
        %v3137 = vmul.f32 %v3129, %v3129
        %v3138 = vmul.f32 %v3130, %v3130
        %v3139 = vmul.f32 %v3131, %v3131
        %v3140 = vmul.f32 %v3132, %v3132
        %v3141 = vmul.f32 %v3133, %v3133
        %v3142 = vmul.f32 %v3134, %v3134
        %v3151 = vcombine.low %v3135, %v3136
        %v3152 = vcombine.low %v3137, %v3138
        %v3153 = vcombine.low %v3139, %v3140
        %v3154 = vcombine.low %v3141, %v3142
        %v3159 = vsel %vm715, %v3151, 0.0
        %3160 = vadd.xlane.f32.xlu0 %v3159
        %v3161 = vpop.xlane.xlu0 %3160
        %v3162 = vsel %vm715, %v3152, 0.0
        %3163 = vadd.xlane.f32.xlu0 %v3162
        %v3164 = vpop.xlane.xlu0 %3163
        %v3165 = vsel %vm715, %v3153, 0.0
        %3166 = vadd.xlane.f32.xlu0 %v3165
        %v3167 = vpop.xlane.xlu0 %3166
        %v3168 = vsel %vm715, %v3154, 0.0
        %3169 = vadd.xlane.f32.xlu0 %v3168
        %v3170 = vpop.xlane.xlu0 %3169
        %v3171 = vmul.f32 %v3161, %v728
        %v3172 = vmul.f32 %v3164, %v728
        %v3173 = vmul.f32 %v3167, %v728
        %v3174 = vmul.f32 %v3170, %v728
        %v3175 = vadd.f32 %v3171, 1e-05
        %v3176 = vadd.f32 %v3172, 1e-05
        %v3177 = vadd.f32 %v3173, 1e-05
        %v3178 = vadd.f32 %v3174, 1e-05
        %v3179 = vrsqrt.pop %v3175
        %v3180 = vrsqrt.pop %v3176
        %v3181 = vrsqrt.pop %v3177
        %v3182 = vrsqrt.pop %v3178
        %v3188 = vunpack.c.l.s4 839922192
        %v3189 = vunpack.c.0.s8 %v3188
        %v3190 = vlaneseq
        %v3191 = vshrl.u32 %v3190, 7
        %v3192 = vsub.s32 %v3189, %v3191
        %v3193 = vrot.slane %v3179, %v3192
        %v3195 = vunpack.c.l.s4 1985246804
        %v3196 = vunpack.c.0.s8 %v3195
        %v3197 = vlaneseq
        %v3198 = vshrl.u32 %v3197, 7
        %v3199 = vsub.s32 %v3196, %v3198
        %v3200 = vrot.slane %v3179, %v3199
        %v3202 = vunpack.c.l.s4 839922192
        %v3203 = vunpack.c.0.s8 %v3202
        %v3204 = vlaneseq
        %v3205 = vshrl.u32 %v3204, 7
        %v3206 = vsub.s32 %v3203, %v3205
        %v3207 = vrot.slane %v3180, %v3206
        %v3209 = vunpack.c.l.s4 1985246804
        %v3210 = vunpack.c.0.s8 %v3209
        %v3211 = vlaneseq
        %v3212 = vshrl.u32 %v3211, 7
        %v3213 = vsub.s32 %v3210, %v3212
        %v3214 = vrot.slane %v3180, %v3213
        %v3216 = vunpack.c.l.s4 839922192
        %v3217 = vunpack.c.0.s8 %v3216
        %v3218 = vlaneseq
        %v3219 = vshrl.u32 %v3218, 7
        %v3220 = vsub.s32 %v3217, %v3219
        %v3221 = vrot.slane %v3181, %v3220
        %v3223 = vunpack.c.l.s4 1985246804
        %v3224 = vunpack.c.0.s8 %v3223
        %v3225 = vlaneseq
        %v3226 = vshrl.u32 %v3225, 7
        %v3227 = vsub.s32 %v3224, %v3226
        %v3228 = vrot.slane %v3181, %v3227
        %v3230 = vunpack.c.l.s4 839922192
        %v3231 = vunpack.c.0.s8 %v3230
        %v3232 = vlaneseq
        %v3233 = vshrl.u32 %v3232, 7
        %v3234 = vsub.s32 %v3231, %v3233
        %v3235 = vrot.slane %v3182, %v3234
        %v3237 = vunpack.c.l.s4 1985246804
        %v3238 = vunpack.c.0.s8 %v3237
        %v3239 = vlaneseq
        %v3240 = vshrl.u32 %v3239, 7
        %v3241 = vsub.s32 %v3238, %v3240
        %v3242 = vrot.slane %v3182, %v3241
        %v3251 = vmul.f32 %v3127, %v3193
        %v3252 = vmul.f32 %v3128, %v3200
        %v3253 = vmul.f32 %v3129, %v3207
        %v3254 = vmul.f32 %v3130, %v3214
        %v3255 = vmul.f32 %v3131, %v3221
        %v3256 = vmul.f32 %v3132, %v3228
        %v3257 = vmul.f32 %v3133, %v3235
        %v3258 = vmul.f32 %v3134, %v3242
        %v3260 = vlaneseq
        %v3261 = vshrl.u32 %v3260, 7
        %v3262 = vsub.s32 0, %v3261
        %v3263 = vrot.slane %v3025, %v3262
        %v3265 = vcombine.high %v3263, %v3263
        %v3267 = vmul.f32 %v3251, %v3263
        %v3268 = vmul.f32 %v3252, %v3265
        %v3269 = vmul.f32 %v3253, %v3263
        %v3270 = vmul.f32 %v3254, %v3265
        %v3271 = vmul.f32 %v3255, %v3263
        %v3272 = vmul.f32 %v3256, %v3265
        %v3273 = vmul.f32 %v3257, %v3263
        %v3274 = vmul.f32 %v3258, %v3265
        %v3276 = vlaneseq
        %v3277 = vshrl.u32 %v3276, 7
        %v3278 = vsub.s32 0, %v3277
        %v3279 = vrot.slane %v3026, %v3278
        %v3281 = vcombine.high %v3279, %v3279
        %v3283 = vadd.f32 %v3267, %v3279
        %v3284 = vadd.f32 %v3268, %v3281
        %v3285 = vadd.f32 %v3269, %v3279
        %v3286 = vadd.f32 %v3270, %v3281
        %v3287 = vadd.f32 %v3271, %v3279
        %v3288 = vadd.f32 %v3272, %v3281
        %v3289 = vadd.f32 %v3273, %v3279
        %v3290 = vadd.f32 %v3274, %v3281
        %v3299 = vcombine.low %v3283, %v3284
        %v3300 = vcombine.low %v3285, %v3286
        %v3301 = vcombine.low %v3287, %v3288
        %v3302 = vcombine.low %v3289, %v3290
        %v3307 = vpack.c.bf16 %v3300, %v3299
        %v3308 = vpack.c.bf16 %v3302, %v3301
        %v3309 = vld [vmem:[#allocation19] sm:$0xf]
        %v3310 = vld [vmem:[#allocation19 + $0x4] sm:$0xf]
        %v3311 = vld [vmem:[#allocation19 + $0x8] sm:$0xf]
        %v3312 = vld [vmem:[#allocation19 + $0xc] sm:$0xf]
        %v3313 = vld [vmem:[#allocation20] sm:$0x1]
        %v3315 = vlaneseq
        %v3316 = vshrl.u32 %v3315, 7
        %v3317 = vsub.s32 0, %v3316
        %v3318 = vrot.slane %v3313, %v3317
        %v3324 = vunpack.c.l.b16 %v3309
        %v3325 = vunpack.c.l.b16 %v3310
        %v3326 = vunpack.c.l.b16 %v3311
        %v3327 = vunpack.c.l.b16 %v3312
        %v3328 = vpack.c.b16 %v3325, %v3324
        %v3329 = vpack.c.b16 %v3327, %v3326
        %v3333 = vsel %vm715, %v3307, 0
        %v3336 = vsel %vm715, %v3308, 0
        %3338 = vmatprep.subr.bf16.mxu0 0
        %3339 = vmatpush1.bf16.msra.mxu0 %v3328
        %3340 = vmatprep.subr.bf16.mxu0 0
        %3341 = vmatpush1.bf16.msra.mxu0 %v3329
        %3342 = vmatprep.subr.bf16.mxu0 0
        %3343 = vmatpush1.bf16.msra.mxu0 0
        %3344 = vmatprep.subr.bf16.mxu0 0
        %3345 = vmatpush1.bf16.msra.mxu0 0
        %3346 = vmatprep.subr.bf16.mxu0 0
        %3347 = vmatpush1.bf16.msra.mxu0 0
        %3348 = vmatprep.subr.bf16.mxu0 0
        %3349 = vmatpush1.bf16.msra.mxu0 0
        %3350 = vmatprep.subr.bf16.mxu0 0
        %3351 = vmatpush1.bf16.msra.mxu0 0
        %3352 = vmatprep.subr.bf16.mxu0 0
        %3353 = vmatpush1.bf16.msra.mxu0 0
        %3354 = vmatprep.subr.bf16.mxu0 0
        %3355 = vmatpush1.bf16.msra.mxu0 0
        %3356 = vmatprep.subr.bf16.mxu0 0
        %3357 = vmatpush1.bf16.msra.mxu0 0
        %3358 = vmatprep.subr.bf16.mxu0 0
        %3359 = vmatpush1.bf16.msra.mxu0 0
        %3360 = vmatprep.subr.bf16.mxu0 0
        %3361 = vmatpush1.bf16.msra.mxu0 0
        %3362 = vmatprep.subr.bf16.mxu0 0
        %3363 = vmatpush1.bf16.msra.mxu0 0
        %3364 = vmatprep.subr.bf16.mxu0 0
        %3365 = vmatpush1.bf16.msra.mxu0 0
        %3366 = vmatprep.subr.bf16.mxu0 0
        %3367 = vmatpush1.bf16.msra.mxu0 0
        %3368 = vmatprep.subr.bf16.mxu0 0
        %3369 = vmatpush1.bf16.msra.mxu0 0
        %3370 = vmatprep.mubr.bf16.mxu0 0
        %3371 = vmatmul.mubr.bf16.gmra.mrb[0].mxu0 %v3333
        %v3372 = vpop.f32.mrb[0].mxu0
        %v3373 = vadd.f32 %v3318, %v3372
        %v3374 = vpop.f32.mrb[0].mxu0
        %v3375 = vpop.f32.mrb[0].mxu0
        %v3376 = vadd.f32 %v3318, %v3375
        %v3377 = vpop.f32.mrb[0].mxu0
        %3378 = vmatprep.mubr.bf16.mxu0 0
        %3379 = vmatmul.mubr.bf16.gmra.mrb[0].mxu0 %v3336
        %v3380 = vpop.f32.mrb[0].mxu0
        %v3381 = vadd.f32 %v3318, %v3380
        %v3382 = vpop.f32.mrb[0].mxu0
        %v3383 = vpop.f32.mrb[0].mxu0
        %v3384 = vadd.f32 %v3318, %v3383
        %v3385 = vpop.f32.mrb[0].mxu0
        %3386 = vdwg.mxu0
        %v3387 = vmul.f32 %v3373, %v3373
        %v3388 = vmul.f32 %v3376, %v3376
        %v3389 = vmul.f32 %v3381, %v3381
        %v3390 = vmul.f32 %v3384, %v3384
        %v3391 = vmul.f32 %v3373, %v3387
        %v3392 = vmul.f32 %v3376, %v3388
        %v3393 = vmul.f32 %v3381, %v3389
        %v3394 = vmul.f32 %v3384, %v3390
        %v3395 = vmul.f32 %v3391, 0.044715
        %v3396 = vmul.f32 %v3392, 0.044715
        %v3397 = vmul.f32 %v3393, 0.044715
        %v3398 = vmul.f32 %v3394, 0.044715
        %v3399 = vadd.f32 %v3373, %v3395
        %v3400 = vadd.f32 %v3376, %v3396
        %v3401 = vadd.f32 %v3381, %v3397
        %v3402 = vadd.f32 %v3384, %v3398
        %v3403 = vmul.f32 %v3399, 0.7978846
        %v3404 = vmul.f32 %v3400, 0.7978846
        %v3405 = vmul.f32 %v3401, 0.7978846
        %v3406 = vmul.f32 %v3402, 0.7978846
        %v3407 = vtanh.pop %v3403
        %v3408 = vtanh.pop %v3404
        %v3409 = vtanh.pop %v3405
        %v3410 = vtanh.pop %v3406
        %v3411 = vadd.f32 %v3407, 1.0
        %v3412 = vadd.f32 %v3408, 1.0
        %v3413 = vadd.f32 %v3409, 1.0
        %v3414 = vadd.f32 %v3410, 1.0
        %v3415 = vmul.f32 %v3411, 0.5
        %v3416 = vmul.f32 %v3412, 0.5
        %v3417 = vmul.f32 %v3413, 0.5
        %v3418 = vmul.f32 %v3414, 0.5
        %v3419 = vmul.f32 %v3373, %v3415
        %v3420 = vmul.f32 %v3376, %v3416
        %v3421 = vmul.f32 %v3381, %v3417
        %v3422 = vmul.f32 %v3384, %v3418
        %v3423 = vpack.c.bf16 %v3420, %v3419
        %v3424 = vpack.c.bf16 %v3422, %v3421
        %v3425 = vld [vmem:[#allocation22] sm:$0xf]
        %v3426 = vld [vmem:[#allocation22 + $0x4] sm:$0xf]
        %v3427 = vld [vmem:[#allocation22 + $0x8] sm:$0xf]
        %v3428 = vld [vmem:[#allocation22 + $0xc] sm:$0xf]
        %v3429 = vld [vmem:[#allocation22 + $0x10] sm:$0xf]
        %v3430 = vld [vmem:[#allocation22 + $0x14] sm:$0xf]
        %v3431 = vld [vmem:[#allocation22 + $0x18] sm:$0xf]
        %v3432 = vld [vmem:[#allocation22 + $0x1c] sm:$0xf]
        %v3433 = vld [vmem:[#allocation22 + $0x20] sm:$0xf]
        %v3434 = vld [vmem:[#allocation22 + $0x24] sm:$0xf]
        %v3435 = vld [vmem:[#allocation22 + $0x28] sm:$0xf]
        %v3436 = vld [vmem:[#allocation22 + $0x2c] sm:$0xf]
        %v3437 = vld [vmem:[#allocation22 + $0x30] sm:$0xf]
        %v3438 = vld [vmem:[#allocation22 + $0x34] sm:$0xf]
        %v3439 = vld [vmem:[#allocation22 + $0x38] sm:$0xf]
        %v3440 = vld [vmem:[#allocation22 + $0x3c] sm:$0xf]
        %v3457 = vunpack.c.l.b16 %v3425
        %v3458 = vunpack.c.l.b16 %v3426
        %v3459 = vunpack.c.l.b16 %v3427
        %v3460 = vunpack.c.l.b16 %v3428
        %v3461 = vunpack.c.l.b16 %v3429
        %v3462 = vunpack.c.l.b16 %v3430
        %v3463 = vunpack.c.l.b16 %v3431
        %v3464 = vunpack.c.l.b16 %v3432
        %v3465 = vunpack.c.l.b16 %v3433
        %v3466 = vunpack.c.l.b16 %v3434
        %v3467 = vunpack.c.l.b16 %v3435
        %v3468 = vunpack.c.l.b16 %v3436
        %v3469 = vunpack.c.l.b16 %v3437
        %v3470 = vunpack.c.l.b16 %v3438
        %v3471 = vunpack.c.l.b16 %v3439
        %v3472 = vunpack.c.l.b16 %v3440
        %v3473 = vpack.c.b16 %v3458, %v3457
        %v3474 = vpack.c.b16 %v3460, %v3459
        %v3475 = vpack.c.b16 %v3462, %v3461
        %v3476 = vpack.c.b16 %v3464, %v3463
        %v3477 = vpack.c.b16 %v3466, %v3465
        %v3478 = vpack.c.b16 %v3468, %v3467
        %v3479 = vpack.c.b16 %v3470, %v3469
        %v3480 = vpack.c.b16 %v3472, %v3471
        %3489 = vmatprep.subr.bf16.mxu0 0
        %3490 = vmatpush1.bf16.msra.mxu0 %v3473
        %3491 = vmatprep.subr.bf16.mxu0 0
        %3492 = vmatpush1.bf16.msra.mxu0 %v3474
        %3493 = vmatprep.subr.bf16.mxu0 0
        %3494 = vmatpush1.bf16.msra.mxu0 %v3475
        %3495 = vmatprep.subr.bf16.mxu0 0
        %3496 = vmatpush1.bf16.msra.mxu0 %v3476
        %3497 = vmatprep.subr.bf16.mxu0 0
        %3498 = vmatpush1.bf16.msra.mxu0 %v3477
        %3499 = vmatprep.subr.bf16.mxu0 0
        %3500 = vmatpush1.bf16.msra.mxu0 %v3478
        %3501 = vmatprep.subr.bf16.mxu0 0
        %3502 = vmatpush1.bf16.msra.mxu0 %v3479
        %3503 = vmatprep.subr.bf16.mxu0 0
        %3504 = vmatpush1.bf16.msra.mxu0 %v3480
        %3505 = vmatprep.subr.bf16.mxu0 0
        %3506 = vmatpush1.bf16.msra.mxu0 0
        %3507 = vmatprep.subr.bf16.mxu0 0
        %3508 = vmatpush1.bf16.msra.mxu0 0
        %3509 = vmatprep.subr.bf16.mxu0 0
        %3510 = vmatpush1.bf16.msra.mxu0 0
        %3511 = vmatprep.subr.bf16.mxu0 0
        %3512 = vmatpush1.bf16.msra.mxu0 0
        %3513 = vmatprep.subr.bf16.mxu0 0
        %3514 = vmatpush1.bf16.msra.mxu0 0
        %3515 = vmatprep.subr.bf16.mxu0 0
        %3516 = vmatpush1.bf16.msra.mxu0 0
        %3517 = vmatprep.subr.bf16.mxu0 0
        %3518 = vmatpush1.bf16.msra.mxu0 0
        %3519 = vmatprep.subr.bf16.mxu0 0
        %3520 = vmatpush1.bf16.msra.mxu0 0
        %3521 = vmatprep.mubr.bf16.mxu0 0
        %3522 = vmatmul.mubr.bf16.gmra.mrb[0].mxu0 %v3423
        %v3523 = vpop.f32.mrb[0].mxu0
        %v3524 = vadd.f32 0.0, %v3523
        %v3525 = vpop.f32.mrb[0].mxu0
        %v3526 = vpop.f32.mrb[0].mxu0
        %v3527 = vadd.f32 0.0, %v3526
        %v3528 = vpop.f32.mrb[0].mxu0
        %3529 = vmatprep.mubr.bf16.mxu0 0
        %3530 = vmatmul.mubr.bf16.gmra.mrb[0].mxu0 %v3424
        %v3531 = vpop.f32.mrb[0].mxu0
        %v3532 = vadd.f32 0.0, %v3531
        %v3533 = vpop.f32.mrb[0].mxu0
        %v3534 = vpop.f32.mrb[0].mxu0
        %v3535 = vadd.f32 0.0, %v3534
        %v3536 = vpop.f32.mrb[0].mxu0
        %3537 = vdwg.mxu0
        %v3542 = vcombine.high %v3524, %v3524
        %v3543 = vcombine.high %v3527, %v3527
        %v3544 = vcombine.high %v3532, %v3532
        %v3545 = vcombine.high %v3535, %v3535
        %v3550 = vadd.f32 %v3017, %v3524
        %v3551 = vadd.f32 %v3018, %v3542
        %v3552 = vadd.f32 %v3019, %v3527
        %v3553 = vadd.f32 %v3020, %v3543
        %v3554 = vadd.f32 %v3021, %v3532
        %v3555 = vadd.f32 %v3022, %v3544
        %v3556 = vadd.f32 %v3023, %v3535
        %v3557 = vadd.f32 %v3024, %v3545
        %v3558 = vld [vmem:[#allocation23] sm:$0x1]
        %v3560 = vlaneseq
        %v3561 = vshrl.u32 %v3560, 7
        %v3562 = vsub.s32 0, %v3561
        %v3563 = vrot.slane %v3558, %v3562
        %v3565 = vcombine.high %v3563, %v3563
        %v3567 = vadd.f32 %v3550, %v3563
        %v3568 = vadd.f32 %v3551, %v3565
        %v3569 = vadd.f32 %v3552, %v3563
        %v3570 = vadd.f32 %v3553, %v3565
        %v3571 = vadd.f32 %v3554, %v3563
        %v3572 = vadd.f32 %v3555, %v3565
        %v3573 = vadd.f32 %v3556, %v3563
        %v3574 = vadd.f32 %v3557, %v3565
        %v3575 = vpack.c.bf16 %v3567, %v3567
        %v3576 = vpack.c.bf16 %v3568, %v3568
        %v3577 = vpack.c.bf16 %v3569, %v3569
        %v3578 = vpack.c.bf16 %v3570, %v3570
        %v3579 = vpack.c.bf16 %v3571, %v3571
        %v3580 = vpack.c.bf16 %v3572, %v3572
        %v3581 = vpack.c.bf16 %v3573, %v3573
        %v3582 = vpack.c.bf16 %v3574, %v3574
        %vm3583 = vcmask 254976
        %3584 = vst.msk [vmem:[%s677] sm:$0x3] %vm3583, %v3575
        %3585 = vst.msk [vmem:[%s677 + $0x2] sm:$0x3] %vm3583, %v3576
        %3586 = vst.msk [vmem:[%s677 + $0x4] sm:$0x3] %vm3583, %v3577
        %3587 = vst.msk [vmem:[%s677 + $0x6] sm:$0x3] %vm3583, %v3578
        %3588 = vst.msk [vmem:[%s677 + $0x8] sm:$0x3] %vm3583, %v3579
        %3589 = vst.msk [vmem:[%s677 + $0xa] sm:$0x3] %vm3583, %v3580
        %3590 = vst.msk [vmem:[%s677 + $0xc] sm:$0x3] %vm3583, %v3581
        %3591 = vst.msk [vmem:[%s677 + $0xe] sm:$0x3] %vm3583, %v3582
        %s3592 = sand.u32 %s361, 1
        %s3593 = scalar_lea.sflag [#allocation4], %s3592
        %s3594 = sand.u32 %s361, 1
        %s3595 = smul.addr %s3594, 16
        %s3596 = scalar_lea.vmem [#allocation25], %s3595
        // Predicated region
        $region133: #{swin_forward.7} parent=75 // pred_check
          %p3597 = pneg %p371
        $region134: #{swin_forward.7} parent=75 // pred_check_branch
          %3599 = sbr.rel (%p3597) target = $region136
        $region135: #{swin_forward.7} parent=75 // pred_region
          %s3600 = smul.u32 2, %s43
          %s3602 = ssub.s32 256, 256
          %3603 = vsyncadd %s3593, %s3602
          %s3604 = smul.addr %s3600, 4
          %s3605 = smul.addr %s42, 8
          %s3606 = sadd.s32 %s3604, %s3605
          %s3607 = smul.addr %s3606, 32
          %s3608 = scalar_lea.hbm %s14, %s3607
          %s3609 = sshll.u32 %s3596, 4
          %s3610 = int_to_ptr.vmem [resolvable:$true] %s3609
          %3615 = dma.vmem_to_hbm [thread:$0]  %s3610, 256, %s3608, %s3593, 32, 32, 2
        $region136: #{swin_forward.7} parent=75 // pred_fallthru
          _
      $region76: #{swin_forward.7} parent=5 // pred_fallthru
        _
      %p3616 = scmp.le.s32.totalorder 2, %s33
      // Predicated region
      $region137: #{swin_forward.7} parent=5 // pred_check
        %p3617 = pneg %p3616
      $region138: #{swin_forward.7} parent=5 // pred_check_branch
        %3619 = sbr.rel (%p3617) target = $region140
      $region139: #{swin_forward.7} parent=5 // pred_region
        %s3620 = ssub.s32 %s33, 2
        // Predicated region
        $region141: #{swin_forward.7} parent=139 // pred_check
          %p3621 = pneg %p377
        $region142: #{swin_forward.7} parent=139 // pred_check_branch
          %3623 = sbr.rel (%p3621) target = $region144
        $region143: #{swin_forward.7} parent=139 // pred_region
          %s3624 = sand.u32 %s362, 1
          %s3625 = scalar_lea.sflag [#allocation4], %s3624
          %s3626 = sand.u32 %s362, 1
          %s3627 = smul.addr %s3626, 16
          %s3628 = scalar_lea.vmem [#allocation25], %s3627
          %3629 = dma.done %s3625, 256
        $region144: #{swin_forward.7} parent=139 // pred_fallthru
          _
      $region140: #{swin_forward.7} parent=5 // pred_fallthru
        _
    $region6: #{swin_forward.7} parent=1 // loop_footer
      %s37 = sadd.s32 1, %s33
    $region7: #{swin_forward.7} parent=1 // loop_footer_branch
      %32 = sbr.rel target = $region3
    $region8: #{swin_forward.7} parent=1 // loop_exit
      _
    %3630 = vsyncpa [#allocation3], 1
    %s3631 = scalar_lea.sflag [#allocation3], 1
    %3632 = vsyncpa %s3631, 1
    %3633 = vsyncpa [#allocation6], 1
    %3634 = vsyncpa [#allocation9], 1
    %3635 = vsyncpa [#allocation12], 1
    %3636 = vsyncpa [#allocation15], 1
    %3637 = vsyncpa [#allocation18], 1
    %3638 = vsyncpa [#allocation21], 1
    %3639 = vsyncpa [#allocation24], 1
    %3640 = vsyncpa [#allocation4], 1
    %s3641 = scalar_lea.sflag [#allocation4], 1
    %3642 = vsyncpa %s3641, 1

// kernel: closed_call.16
$region0: #{closed_call.16}
  #allocation0 [shape = 'u32[]', space=smem, size = 0x4, offset = 0x4, fixed_abs, tag = 'smem constant byte address 0x4 - core index']
  #allocation1 [shape = 'u32[144,128]{1,0:T(1,128)}', space=vmem, size = 0x12000, scoped, tag = 'internal scratch']
  #allocation2 [shape = 's32[1]{0}', space=sflag, size = 0x4, scoped, tag = 'scoped memory for closed_call.16']
  #allocation3 [shape = 's32[1]{0:T(128)S(6)}', space=smem, size = 0x200, scoped, tag = 'prefetched SMEM operand 0']
  %s0 = inlined_call_operand.smem [shape: u32[31], index: -1, kind: input, shape index: {}]
  %s1 = sld [smem:[%s0]]
  %s2 = scalar_lea.smem %s0, 1
  %s3 = sld [smem:[%s2]]
  %s4 = scalar_lea.smem %s0, 2
  %s5 = sld [smem:[%s4]]
  %s6 = scalar_lea.smem %s0, 3
  %s7 = sld [smem:[%s6]]
  %s8 = scalar_lea.smem %s0, 4
  %s9 = sld [smem:[%s8]]
  %s10 = scalar_lea.smem %s0, 5
  %s11 = sld [smem:[%s10]]
  %s12 = scalar_lea.smem %s0, 6
  %s13 = sld [smem:[%s12]]
  %s14 = scalar_lea.smem %s0, 7
  %s15 = sld [smem:[%s14]]
  %s16 = scalar_lea.smem %s0, 8
  %s17 = sld [smem:[%s16]]
  %s18 = scalar_lea.smem %s0, 9
  %s19 = sld [smem:[%s18]]
  %s20 = scalar_lea.smem %s0, 10
  %s21 = sld [smem:[%s20]]
  %s22 = scalar_lea.smem %s0, 11
  %s23 = sld [smem:[%s22]]
  %s24 = scalar_lea.smem %s0, 12
  %s25 = sld [smem:[%s24]]
  %s26 = scalar_lea.smem %s0, 13
  %s27 = sld [smem:[%s26]]
  %s28 = scalar_lea.smem %s0, 14
  %s29 = sld [smem:[%s28]]
  %s30 = scalar_lea.smem %s0, 15
  %s31 = sld [smem:[%s30]]
  %s32 = scalar_lea.smem %s0, 16
  %s33 = sld [smem:[%s32]]
  %s34 = scalar_lea.smem %s0, 17
  %s35 = sld [smem:[%s34]]
  %s36 = scalar_lea.smem %s0, 18
  %s37 = sld [smem:[%s36]]
  %s38 = scalar_lea.smem %s0, 19
  %s39 = sld [smem:[%s38]]
  %s40 = scalar_lea.smem %s0, 20
  %s41 = sld [smem:[%s40]]
  %s42 = scalar_lea.smem %s0, 21
  %s43 = sld [smem:[%s42]]
  %s44 = scalar_lea.smem %s0, 22
  %s45 = sld [smem:[%s44]]
  %s46 = scalar_lea.smem %s0, 23
  %s47 = sld [smem:[%s46]]
  %s48 = scalar_lea.smem %s0, 24
  %s49 = sld [smem:[%s48]]
  %s50 = scalar_lea.smem %s0, 25
  %s51 = sld [smem:[%s50]]
  %s52 = scalar_lea.smem %s0, 26
  %s53 = sld [smem:[%s52]]
  %s54 = scalar_lea.smem %s0, 27
  %s55 = sld [smem:[%s54]]
  %s56 = scalar_lea.smem %s0, 28
  %s57 = sld [smem:[%s56]]
  %s58 = scalar_lea.smem %s0, 29
  %s59 = sld [smem:[%s58]]
  %s60 = scalar_lea.smem %s0, 30
  %s61 = sld [smem:[%s60]]
  %62 = xla_tuple %s57, %s59, %s61
  %s63 = sld [smem:[#allocation0]]
  $region265: #{closed_call.16} parent=0
    _
  %s65 = ssub.s32 1, %s63
  %s66 = scalar_select 0, %s65, %s63
  %67 = sst [smem:[#allocation3]] %s1
  $region1: #{closed_call.16} parent=0
    #allocation4 [shape = 'u8[1024]{0}', space=vmem, size = 0x400, scoped, tag = 'input window, operand 1']
    #allocation5 [shape = 's32[2]{0}', space=sflag, size = 0x8, scoped, tag = 'scoped memory for closed_call.16']
    #allocation6 [shape = 's32[2]{0}', space=sflag, size = 0x8, scoped, tag = 'scoped memory for closed_call.16']
    #allocation7 [shape = 'u8[4096]{0}', space=vmem, size = 0x1000, scoped, tag = 'input window, operand 2']
    #allocation8 [shape = 's32[2]{0}', space=sflag, size = 0x8, scoped, tag = 'scoped memory for closed_call.16']
    #allocation9 [shape = 'u8[4096]{0}', space=vmem, size = 0x1000, scoped, tag = 'input window, operand 3']
    #allocation10 [shape = 'u8[4096]{0}', space=vmem, size = 0x1000, scoped, tag = 'input window, operand 4']
    #allocation11 [shape = 's32[2]{0}', space=sflag, size = 0x8, scoped, tag = 'scoped memory for closed_call.16']
    #allocation12 [shape = 'u8[4096]{0}', space=vmem, size = 0x1000, scoped, tag = 'input window, operand 5']
    #allocation13 [shape = 'u8[512]{0}', space=vmem, size = 0x400, scoped, tag = 'input window, operand 6, single buffered']
    #allocation14 [shape = 's32[1]{0}', space=sflag, size = 0x4, scoped, tag = 'scoped memory for closed_call.16']
    #allocation15 [shape = 'u8[512]{0}', space=vmem, size = 0x400, scoped, tag = 'input window, operand 7, single buffered']
    #allocation16 [shape = 'u8[4096]{0}', space=vmem, size = 0x1000, scoped, tag = 'input window, operand 8, single buffered']
    #allocation17 [shape = 's32[1]{0}', space=sflag, size = 0x4, scoped, tag = 'scoped memory for closed_call.16']
    #allocation18 [shape = 'u8[512]{0}', space=vmem, size = 0x400, scoped, tag = 'input window, operand 9, single buffered']
    #allocation19 [shape = 'u8[4096]{0}', space=vmem, size = 0x1000, scoped, tag = 'input window, operand 10, single buffered']
    #allocation20 [shape = 's32[1]{0}', space=sflag, size = 0x4, scoped, tag = 'scoped memory for closed_call.16']
    #allocation21 [shape = 'u8[512]{0}', space=vmem, size = 0x400, scoped, tag = 'input window, operand 11, single buffered']
    #allocation22 [shape = 'u8[512]{0}', space=vmem, size = 0x400, scoped, tag = 'input window, operand 12, single buffered']
    #allocation23 [shape = 's32[1]{0}', space=sflag, size = 0x4, scoped, tag = 'scoped memory for closed_call.16']
    #allocation24 [shape = 'u8[512]{0}', space=vmem, size = 0x400, scoped, tag = 'input window, operand 13, single buffered']
    #allocation25 [shape = 'u8[4096]{0}', space=vmem, size = 0x1000, scoped, tag = 'input window, operand 14, single buffered']
    #allocation26 [shape = 's32[1]{0}', space=sflag, size = 0x4, scoped, tag = 'scoped memory for closed_call.16']
    #allocation27 [shape = 'u8[512]{0}', space=vmem, size = 0x400, scoped, tag = 'input window, operand 15, single buffered']
    #allocation28 [shape = 'u8[4096]{0}', space=vmem, size = 0x1000, scoped, tag = 'input window, operand 16, single buffered']
    #allocation29 [shape = 's32[1]{0}', space=sflag, size = 0x4, scoped, tag = 'scoped memory for closed_call.16']
    #allocation30 [shape = 'u8[512]{0}', space=vmem, size = 0x400, scoped, tag = 'input window, operand 17, single buffered']
    #allocation31 [shape = 'u8[512]{0}', space=vmem, size = 0x400, scoped, tag = 'input window, operand 18, single buffered']
    #allocation32 [shape = 's32[1]{0}', space=sflag, size = 0x4, scoped, tag = 'scoped memory for closed_call.16']
    #allocation33 [shape = 'u8[512]{0}', space=vmem, size = 0x400, scoped, tag = 'input window, operand 19, single buffered']
    #allocation34 [shape = 'u8[4096]{0}', space=vmem, size = 0x1000, scoped, tag = 'input window, operand 20, single buffered']
    #allocation35 [shape = 's32[1]{0}', space=sflag, size = 0x4, scoped, tag = 'scoped memory for closed_call.16']
    #allocation36 [shape = 'u8[512]{0}', space=vmem, size = 0x400, scoped, tag = 'input window, operand 21, single buffered']
    #allocation37 [shape = 'u8[16384]{0}', space=vmem, size = 0x4000, scoped, tag = 'input window, operand 22, single buffered']
    #allocation38 [shape = 's32[1]{0}', space=sflag, size = 0x4, scoped, tag = 'scoped memory for closed_call.16']
    #allocation39 [shape = 'u8[512]{0}', space=vmem, size = 0x400, scoped, tag = 'input window, operand 23, single buffered']
    #allocation40 [shape = 'u8[512]{0}', space=vmem, size = 0x400, scoped, tag = 'input window, operand 24, single buffered']
    #allocation41 [shape = 's32[1]{0}', space=sflag, size = 0x4, scoped, tag = 'scoped memory for closed_call.16']
    #allocation42 [shape = 'u8[512]{0}', space=vmem, size = 0x400, scoped, tag = 'input window, operand 25, single buffered']
    #allocation43 [shape = 'u8[4096]{0}', space=vmem, size = 0x1000, scoped, tag = 'input window, operand 26, single buffered']
    #allocation44 [shape = 's32[1]{0}', space=sflag, size = 0x4, scoped, tag = 'scoped memory for closed_call.16']
    #allocation45 [shape = 'u8[512]{0}', space=vmem, size = 0x400, scoped, tag = 'input window, operand 27, single buffered']
    #allocation46 [shape = 'u8[1024]{0}', space=vmem, size = 0x400, scoped, tag = 'output window, operand 0']
    #allocation47 [shape = 'u8[1024]{0}', space=vmem, size = 0x400, scoped, tag = 'output window, operand 1']
    #allocation48 [shape = 's32[2]{0}', space=sflag, size = 0x8, scoped, tag = 'scoped memory for closed_call.16']
    #allocation49 [shape = 'u8[1024]{0}', space=vmem, size = 0x400, scoped, tag = 'output window, operand 2']
    %68 = vsyncpa [#allocation5], 0
    %s69 = scalar_lea.sflag [#allocation5], 1
    %70 = vsyncpa %s69, 0
    %71 = vsyncpa [#allocation8], 0
    %s72 = scalar_lea.sflag [#allocation8], 1
    %73 = vsyncpa %s72, 0
    %74 = vsyncpa [#allocation11], 0
    %s75 = scalar_lea.sflag [#allocation11], 1
    %76 = vsyncpa %s75, 0
    %77 = vsyncpa [#allocation14], 0
    %78 = vsyncpa [#allocation17], 0
    %79 = vsyncpa [#allocation20], 0
    %80 = vsyncpa [#allocation23], 0
    %81 = vsyncpa [#allocation26], 0
    %82 = vsyncpa [#allocation29], 0
    %83 = vsyncpa [#allocation32], 0
    %84 = vsyncpa [#allocation35], 0
    %85 = vsyncpa [#allocation38], 0
    %86 = vsyncpa [#allocation41], 0
    %87 = vsyncpa [#allocation44], 0
    %88 = vsyncpa [#allocation6], 0
    %s89 = scalar_lea.sflag [#allocation6], 1
    %90 = vsyncpa %s89, 0
    %91 = vsyncpa [#allocation48], 0
    %s92 = scalar_lea.sflag [#allocation48], 1
    %93 = vsyncpa %s92, 0
    loop: start=0, step=1, limit=4
    $region2: #{closed_call.16} parent=1 // loop_pre_header
      _
    $region3: #{closed_call.16} parent=1 // loop_header
      %s95 = sphi 0, %s99
      %p96 = scmp.ge.s32.totalorder %s95, 4
      %s105 = sphi 0, %s107
      %s108 = sphi 0, %s105
      %s109 = sphi 0, %s108
      %s125 = sphi 0, %s109
      %s131 = sphi 0, %s133
      %s134 = sphi 0, %s131
      %s135 = sphi 0, %s134
      %s151 = sphi 0, %s135
      %s157 = sphi 0, %s159
      %s160 = sphi 0, %s157
      %s161 = sphi 0, %s160
      %s177 = sphi 0, %s161
      %s183 = sphi 0, %s185
      %s186 = sphi 0, %s183
      %s187 = sphi 0, %s186
      %s203 = sphi 0, %s187
      %s209 = sphi 0, %s211
      %s212 = sphi 0, %s209
      %s213 = sphi 0, %s212
      %s229 = sphi 0, %s213
      %s233 = sphi 0, %s233
      %s235 = sphi 0, %s233
      %s236 = sphi 0, %s235
      %s250 = sphi 0, %s236
      %s254 = sphi 0, %s254
      %s256 = sphi 0, %s254
      %s257 = sphi 0, %s256
      %s271 = sphi 0, %s257
      %s275 = sphi 0, %s275
      %s277 = sphi 0, %s275
      %s278 = sphi 0, %s277
      %s292 = sphi 0, %s278
      %s296 = sphi 0, %s296
      %s298 = sphi 0, %s296
      %s299 = sphi 0, %s298
      %s313 = sphi 0, %s299
      %s317 = sphi 0, %s317
      %s319 = sphi 0, %s317
      %s320 = sphi 0, %s319
      %s334 = sphi 0, %s320
      %s338 = sphi 0, %s338
      %s340 = sphi 0, %s338
      %s341 = sphi 0, %s340
      %s355 = sphi 0, %s341
      %s359 = sphi 0, %s359
      %s361 = sphi 0, %s359
      %s362 = sphi 0, %s361
      %s376 = sphi 0, %s362
      %s380 = sphi 0, %s380
      %s382 = sphi 0, %s380
      %s383 = sphi 0, %s382
      %s397 = sphi 0, %s383
      %s401 = sphi 0, %s401
      %s403 = sphi 0, %s401
      %s404 = sphi 0, %s403
      %s418 = sphi 0, %s404
      %s422 = sphi 0, %s422
      %s424 = sphi 0, %s422
      %s425 = sphi 0, %s424
      %s439 = sphi 0, %s425
      %s443 = sphi 0, %s443
      %s445 = sphi 0, %s443
      %s446 = sphi 0, %s445
      %s460 = sphi 0, %s446
      %s464 = sphi 0, %s464
      %s466 = sphi 0, %s464
      %s467 = sphi 0, %s466
      %s481 = sphi 0, %s467
      %s485 = sphi 0, %s485
      %s487 = sphi 0, %s485
      %s488 = sphi 0, %s487
      %s502 = sphi 0, %s488
      %s506 = sphi 0, %s506
      %s508 = sphi 0, %s506
      %s509 = sphi 0, %s508
      %s523 = sphi 0, %s509
      %s527 = sphi 0, %s527
      %s529 = sphi 0, %s527
      %s530 = sphi 0, %s529
      %s544 = sphi 0, %s530
      %s548 = sphi 0, %s548
      %s550 = sphi 0, %s548
      %s551 = sphi 0, %s550
      %s565 = sphi 0, %s551
      %s569 = sphi 0, %s569
      %s571 = sphi 0, %s569
      %s572 = sphi 0, %s571
      %s586 = sphi 0, %s572
      %s590 = sphi 0, %s590
      %s592 = sphi 0, %s590
      %s593 = sphi 0, %s592
      %s607 = sphi 0, %s593
      %s611 = sphi 0, %s611
      %s613 = sphi 0, %s611
      %s614 = sphi 0, %s613
      %s628 = sphi 0, %s614
      %s632 = sphi 0, %s632
      %s634 = sphi 0, %s632
      %s635 = sphi 0, %s634
      %s649 = sphi 0, %s635
      %s653 = sphi 0, %s653
      %s655 = sphi 0, %s653
      %s656 = sphi 0, %s655
      %s670 = sphi 0, %s656
      %s674 = sphi 0, %s674
      %s676 = sphi 0, %s674
      %s677 = sphi 0, %s676
      %s691 = sphi 0, %s677
      %s697 = sphi 0, %s699
      %s700 = sphi 0, %s697
      %s701 = sphi 0, %s700
      %s717 = sphi 0, %s701
      %s723 = sphi 0, %s725
      %s726 = sphi 0, %s723
      %s727 = sphi 0, %s726
      %s743 = sphi 0, %s727
      %s749 = sphi 0, %s751
      %s752 = sphi 0, %s749
      %s753 = sphi 0, %s752
      %s769 = sphi 0, %s753
    $region4: #{closed_call.16} parent=1 // loop_header_branch
      %98 = sbr.rel (%p96) target = $region8
    $region5: #{closed_call.16} parent=1 // loop_body
      %s100 = ssub.s32 %s95, 1
      %s101 = ssub.s32 %s95, 2
      %s102 = sadd.s32 %s95, 1
      %s103 = ssub.s32 %s95, %s102
      %p104 = scmp.eq.s32.totalorder %s103, 0
      %s106 = sadd.s32 %s105, 1
      %s107 = scalar_select %p104, %s105, %s106
      %p110 = pneg %p104
      %p111 = scmp.eq.s32.totalorder %s95, 1
      %p112 = por %p110, %p111
      %p113 = scmp.ne.s32.totalorder %s105, %s108
      %p114 = scmp.eq.s32.totalorder %s95, 0
      %p115 = por %p113, %p114
      %p116 = scmp.ne.s32.totalorder %s105, %s108
      %p117 = scmp.eq.s32.totalorder %s100, 1
      %p118 = por %p116, %p117
      %p119 = scmp.ne.s32.totalorder %s108, %s109
      %p120 = scmp.eq.s32.totalorder %s100, 0
      %p121 = por %p119, %p120
      %p122 = scmp.ne.s32.totalorder %s108, %s109
      %p123 = scmp.eq.s32.totalorder %s101, 1
      %p124 = por %p122, %p123
      %p126 = scmp.ne.s32.totalorder %s109, %s125
      %p127 = scmp.eq.s32.totalorder %s101, 0
      %p128 = por %p126, %p127
      %s129 = ssub.s32 %s95, %s102
      %p130 = scmp.eq.s32.totalorder %s129, 0
      %s132 = sadd.s32 %s131, 1
      %s133 = scalar_select %p130, %s131, %s132
      %p136 = pneg %p130
      %p137 = scmp.eq.s32.totalorder %s95, 1
      %p138 = por %p136, %p137
      %p139 = scmp.ne.s32.totalorder %s131, %s134
      %p140 = scmp.eq.s32.totalorder %s95, 0
      %p141 = por %p139, %p140
      %p142 = scmp.ne.s32.totalorder %s131, %s134
      %p143 = scmp.eq.s32.totalorder %s100, 1
      %p144 = por %p142, %p143
      %p145 = scmp.ne.s32.totalorder %s134, %s135
      %p146 = scmp.eq.s32.totalorder %s100, 0
      %p147 = por %p145, %p146
      %p148 = scmp.ne.s32.totalorder %s134, %s135
      %p149 = scmp.eq.s32.totalorder %s101, 1
      %p150 = por %p148, %p149
      %p152 = scmp.ne.s32.totalorder %s135, %s151
      %p153 = scmp.eq.s32.totalorder %s101, 0
      %p154 = por %p152, %p153
      %s155 = ssub.s32 %s95, %s102
      %p156 = scmp.eq.s32.totalorder %s155, 0
      %s158 = sadd.s32 %s157, 1
      %s159 = scalar_select %p156, %s157, %s158
      %p162 = pneg %p156
      %p163 = scmp.eq.s32.totalorder %s95, 1
      %p164 = por %p162, %p163
      %p165 = scmp.ne.s32.totalorder %s157, %s160
      %p166 = scmp.eq.s32.totalorder %s95, 0
      %p167 = por %p165, %p166
      %p168 = scmp.ne.s32.totalorder %s157, %s160
      %p169 = scmp.eq.s32.totalorder %s100, 1
      %p170 = por %p168, %p169
      %p171 = scmp.ne.s32.totalorder %s160, %s161
      %p172 = scmp.eq.s32.totalorder %s100, 0
      %p173 = por %p171, %p172
      %p174 = scmp.ne.s32.totalorder %s160, %s161
      %p175 = scmp.eq.s32.totalorder %s101, 1
      %p176 = por %p174, %p175
      %p178 = scmp.ne.s32.totalorder %s161, %s177
      %p179 = scmp.eq.s32.totalorder %s101, 0
      %p180 = por %p178, %p179
      %s181 = ssub.s32 %s95, %s102
      %p182 = scmp.eq.s32.totalorder %s181, 0
      %s184 = sadd.s32 %s183, 1
      %s185 = scalar_select %p182, %s183, %s184
      %p188 = pneg %p182
      %p189 = scmp.eq.s32.totalorder %s95, 1
      %p190 = por %p188, %p189
      %p191 = scmp.ne.s32.totalorder %s183, %s186
      %p192 = scmp.eq.s32.totalorder %s95, 0
      %p193 = por %p191, %p192
      %p194 = scmp.ne.s32.totalorder %s183, %s186
      %p195 = scmp.eq.s32.totalorder %s100, 1
      %p196 = por %p194, %p195
      %p197 = scmp.ne.s32.totalorder %s186, %s187
      %p198 = scmp.eq.s32.totalorder %s100, 0
      %p199 = por %p197, %p198
      %p200 = scmp.ne.s32.totalorder %s186, %s187
      %p201 = scmp.eq.s32.totalorder %s101, 1
      %p202 = por %p200, %p201
      %p204 = scmp.ne.s32.totalorder %s187, %s203
      %p205 = scmp.eq.s32.totalorder %s101, 0
      %p206 = por %p204, %p205
      %s207 = ssub.s32 %s95, %s102
      %p208 = scmp.eq.s32.totalorder %s207, 0
      %s210 = sadd.s32 %s209, 1
      %s211 = scalar_select %p208, %s209, %s210
      %p214 = pneg %p208
      %p215 = scmp.eq.s32.totalorder %s95, 1
      %p216 = por %p214, %p215
      %p217 = scmp.ne.s32.totalorder %s209, %s212
      %p218 = scmp.eq.s32.totalorder %s95, 0
      %p219 = por %p217, %p218
      %p220 = scmp.ne.s32.totalorder %s209, %s212
      %p221 = scmp.eq.s32.totalorder %s100, 1
      %p222 = por %p220, %p221
      %p223 = scmp.ne.s32.totalorder %s212, %s213
      %p224 = scmp.eq.s32.totalorder %s100, 0
      %p225 = por %p223, %p224
      %p226 = scmp.ne.s32.totalorder %s212, %s213
      %p227 = scmp.eq.s32.totalorder %s101, 1
      %p228 = por %p226, %p227
      %p230 = scmp.ne.s32.totalorder %s213, %s229
      %p231 = scmp.eq.s32.totalorder %s101, 0
      %p232 = por %p230, %p231
      %s234 = sadd.s32 %s233, 1
      %p237 = scmp.eq.s32.totalorder %s95, 1
      %p238 = scmp.ne.s32.totalorder %s233, %s235
      %p239 = scmp.eq.s32.totalorder %s95, 0
      %p240 = por %p238, %p239
      %p241 = scmp.ne.s32.totalorder %s233, %s235
      %p242 = scmp.eq.s32.totalorder %s100, 1
      %p243 = por %p241, %p242
      %p244 = scmp.ne.s32.totalorder %s235, %s236
      %p245 = scmp.eq.s32.totalorder %s100, 0
      %p246 = por %p244, %p245
      %p247 = scmp.ne.s32.totalorder %s235, %s236
      %p248 = scmp.eq.s32.totalorder %s101, 1
      %p249 = por %p247, %p248
      %p251 = scmp.ne.s32.totalorder %s236, %s250
      %p252 = scmp.eq.s32.totalorder %s101, 0
      %p253 = por %p251, %p252
      %s255 = sadd.s32 %s254, 1
      %p258 = scmp.eq.s32.totalorder %s95, 1
      %p259 = scmp.ne.s32.totalorder %s254, %s256
      %p260 = scmp.eq.s32.totalorder %s95, 0
      %p261 = por %p259, %p260
      %p262 = scmp.ne.s32.totalorder %s254, %s256
      %p263 = scmp.eq.s32.totalorder %s100, 1
      %p264 = por %p262, %p263
      %p265 = scmp.ne.s32.totalorder %s256, %s257
      %p266 = scmp.eq.s32.totalorder %s100, 0
      %p267 = por %p265, %p266
      %p268 = scmp.ne.s32.totalorder %s256, %s257
      %p269 = scmp.eq.s32.totalorder %s101, 1
      %p270 = por %p268, %p269
      %p272 = scmp.ne.s32.totalorder %s257, %s271
      %p273 = scmp.eq.s32.totalorder %s101, 0
      %p274 = por %p272, %p273
      %s276 = sadd.s32 %s275, 1
      %p279 = scmp.eq.s32.totalorder %s95, 1
      %p280 = scmp.ne.s32.totalorder %s275, %s277
      %p281 = scmp.eq.s32.totalorder %s95, 0
      %p282 = por %p280, %p281
      %p283 = scmp.ne.s32.totalorder %s275, %s277
      %p284 = scmp.eq.s32.totalorder %s100, 1
      %p285 = por %p283, %p284
      %p286 = scmp.ne.s32.totalorder %s277, %s278
      %p287 = scmp.eq.s32.totalorder %s100, 0
      %p288 = por %p286, %p287
      %p289 = scmp.ne.s32.totalorder %s277, %s278
      %p290 = scmp.eq.s32.totalorder %s101, 1
      %p291 = por %p289, %p290
      %p293 = scmp.ne.s32.totalorder %s278, %s292
      %p294 = scmp.eq.s32.totalorder %s101, 0
      %p295 = por %p293, %p294
      %s297 = sadd.s32 %s296, 1
      %p300 = scmp.eq.s32.totalorder %s95, 1
      %p301 = scmp.ne.s32.totalorder %s296, %s298
      %p302 = scmp.eq.s32.totalorder %s95, 0
      %p303 = por %p301, %p302
      %p304 = scmp.ne.s32.totalorder %s296, %s298
      %p305 = scmp.eq.s32.totalorder %s100, 1
      %p306 = por %p304, %p305
      %p307 = scmp.ne.s32.totalorder %s298, %s299
      %p308 = scmp.eq.s32.totalorder %s100, 0
      %p309 = por %p307, %p308
      %p310 = scmp.ne.s32.totalorder %s298, %s299
      %p311 = scmp.eq.s32.totalorder %s101, 1
      %p312 = por %p310, %p311
      %p314 = scmp.ne.s32.totalorder %s299, %s313
      %p315 = scmp.eq.s32.totalorder %s101, 0
      %p316 = por %p314, %p315
      %s318 = sadd.s32 %s317, 1
      %p321 = scmp.eq.s32.totalorder %s95, 1
      %p322 = scmp.ne.s32.totalorder %s317, %s319
      %p323 = scmp.eq.s32.totalorder %s95, 0
      %p324 = por %p322, %p323
      %p325 = scmp.ne.s32.totalorder %s317, %s319
      %p326 = scmp.eq.s32.totalorder %s100, 1
      %p327 = por %p325, %p326
      %p328 = scmp.ne.s32.totalorder %s319, %s320
      %p329 = scmp.eq.s32.totalorder %s100, 0
      %p330 = por %p328, %p329
      %p331 = scmp.ne.s32.totalorder %s319, %s320
      %p332 = scmp.eq.s32.totalorder %s101, 1
      %p333 = por %p331, %p332
      %p335 = scmp.ne.s32.totalorder %s320, %s334
      %p336 = scmp.eq.s32.totalorder %s101, 0
      %p337 = por %p335, %p336
      %s339 = sadd.s32 %s338, 1
      %p342 = scmp.eq.s32.totalorder %s95, 1
      %p343 = scmp.ne.s32.totalorder %s338, %s340
      %p344 = scmp.eq.s32.totalorder %s95, 0
      %p345 = por %p343, %p344
      %p346 = scmp.ne.s32.totalorder %s338, %s340
      %p347 = scmp.eq.s32.totalorder %s100, 1
      %p348 = por %p346, %p347
      %p349 = scmp.ne.s32.totalorder %s340, %s341
      %p350 = scmp.eq.s32.totalorder %s100, 0
      %p351 = por %p349, %p350
      %p352 = scmp.ne.s32.totalorder %s340, %s341
      %p353 = scmp.eq.s32.totalorder %s101, 1
      %p354 = por %p352, %p353
      %p356 = scmp.ne.s32.totalorder %s341, %s355
      %p357 = scmp.eq.s32.totalorder %s101, 0
      %p358 = por %p356, %p357
      %s360 = sadd.s32 %s359, 1
      %p363 = scmp.eq.s32.totalorder %s95, 1
      %p364 = scmp.ne.s32.totalorder %s359, %s361
      %p365 = scmp.eq.s32.totalorder %s95, 0
      %p366 = por %p364, %p365
      %p367 = scmp.ne.s32.totalorder %s359, %s361
      %p368 = scmp.eq.s32.totalorder %s100, 1
      %p369 = por %p367, %p368
      %p370 = scmp.ne.s32.totalorder %s361, %s362
      %p371 = scmp.eq.s32.totalorder %s100, 0
      %p372 = por %p370, %p371
      %p373 = scmp.ne.s32.totalorder %s361, %s362
      %p374 = scmp.eq.s32.totalorder %s101, 1
      %p375 = por %p373, %p374
      %p377 = scmp.ne.s32.totalorder %s362, %s376
      %p378 = scmp.eq.s32.totalorder %s101, 0
      %p379 = por %p377, %p378
      %s381 = sadd.s32 %s380, 1
      %p384 = scmp.eq.s32.totalorder %s95, 1
      %p385 = scmp.ne.s32.totalorder %s380, %s382
      %p386 = scmp.eq.s32.totalorder %s95, 0
      %p387 = por %p385, %p386
      %p388 = scmp.ne.s32.totalorder %s380, %s382
      %p389 = scmp.eq.s32.totalorder %s100, 1
      %p390 = por %p388, %p389
      %p391 = scmp.ne.s32.totalorder %s382, %s383
      %p392 = scmp.eq.s32.totalorder %s100, 0
      %p393 = por %p391, %p392
      %p394 = scmp.ne.s32.totalorder %s382, %s383
      %p395 = scmp.eq.s32.totalorder %s101, 1
      %p396 = por %p394, %p395
      %p398 = scmp.ne.s32.totalorder %s383, %s397
      %p399 = scmp.eq.s32.totalorder %s101, 0
      %p400 = por %p398, %p399
      %s402 = sadd.s32 %s401, 1
      %p405 = scmp.eq.s32.totalorder %s95, 1
      %p406 = scmp.ne.s32.totalorder %s401, %s403
      %p407 = scmp.eq.s32.totalorder %s95, 0
      %p408 = por %p406, %p407
      %p409 = scmp.ne.s32.totalorder %s401, %s403
      %p410 = scmp.eq.s32.totalorder %s100, 1
      %p411 = por %p409, %p410
      %p412 = scmp.ne.s32.totalorder %s403, %s404
      %p413 = scmp.eq.s32.totalorder %s100, 0
      %p414 = por %p412, %p413
      %p415 = scmp.ne.s32.totalorder %s403, %s404
      %p416 = scmp.eq.s32.totalorder %s101, 1
      %p417 = por %p415, %p416
      %p419 = scmp.ne.s32.totalorder %s404, %s418
      %p420 = scmp.eq.s32.totalorder %s101, 0
      %p421 = por %p419, %p420
      %s423 = sadd.s32 %s422, 1
      %p426 = scmp.eq.s32.totalorder %s95, 1
      %p427 = scmp.ne.s32.totalorder %s422, %s424
      %p428 = scmp.eq.s32.totalorder %s95, 0
      %p429 = por %p427, %p428
      %p430 = scmp.ne.s32.totalorder %s422, %s424
      %p431 = scmp.eq.s32.totalorder %s100, 1
      %p432 = por %p430, %p431
      %p433 = scmp.ne.s32.totalorder %s424, %s425
      %p434 = scmp.eq.s32.totalorder %s100, 0
      %p435 = por %p433, %p434
      %p436 = scmp.ne.s32.totalorder %s424, %s425
      %p437 = scmp.eq.s32.totalorder %s101, 1
      %p438 = por %p436, %p437
      %p440 = scmp.ne.s32.totalorder %s425, %s439
      %p441 = scmp.eq.s32.totalorder %s101, 0
      %p442 = por %p440, %p441
      %s444 = sadd.s32 %s443, 1
      %p447 = scmp.eq.s32.totalorder %s95, 1
      %p448 = scmp.ne.s32.totalorder %s443, %s445
      %p449 = scmp.eq.s32.totalorder %s95, 0
      %p450 = por %p448, %p449
      %p451 = scmp.ne.s32.totalorder %s443, %s445
      %p452 = scmp.eq.s32.totalorder %s100, 1
      %p453 = por %p451, %p452
      %p454 = scmp.ne.s32.totalorder %s445, %s446
      %p455 = scmp.eq.s32.totalorder %s100, 0
      %p456 = por %p454, %p455
      %p457 = scmp.ne.s32.totalorder %s445, %s446
      %p458 = scmp.eq.s32.totalorder %s101, 1
      %p459 = por %p457, %p458
      %p461 = scmp.ne.s32.totalorder %s446, %s460
      %p462 = scmp.eq.s32.totalorder %s101, 0
      %p463 = por %p461, %p462
      %s465 = sadd.s32 %s464, 1
      %p468 = scmp.eq.s32.totalorder %s95, 1
      %p469 = scmp.ne.s32.totalorder %s464, %s466
      %p470 = scmp.eq.s32.totalorder %s95, 0
      %p471 = por %p469, %p470
      %p472 = scmp.ne.s32.totalorder %s464, %s466
      %p473 = scmp.eq.s32.totalorder %s100, 1
      %p474 = por %p472, %p473
      %p475 = scmp.ne.s32.totalorder %s466, %s467
      %p476 = scmp.eq.s32.totalorder %s100, 0
      %p477 = por %p475, %p476
      %p478 = scmp.ne.s32.totalorder %s466, %s467
      %p479 = scmp.eq.s32.totalorder %s101, 1
      %p480 = por %p478, %p479
      %p482 = scmp.ne.s32.totalorder %s467, %s481
      %p483 = scmp.eq.s32.totalorder %s101, 0
      %p484 = por %p482, %p483
      %s486 = sadd.s32 %s485, 1
      %p489 = scmp.eq.s32.totalorder %s95, 1
      %p490 = scmp.ne.s32.totalorder %s485, %s487
      %p491 = scmp.eq.s32.totalorder %s95, 0
      %p492 = por %p490, %p491
      %p493 = scmp.ne.s32.totalorder %s485, %s487
      %p494 = scmp.eq.s32.totalorder %s100, 1
      %p495 = por %p493, %p494
      %p496 = scmp.ne.s32.totalorder %s487, %s488
      %p497 = scmp.eq.s32.totalorder %s100, 0
      %p498 = por %p496, %p497
      %p499 = scmp.ne.s32.totalorder %s487, %s488
      %p500 = scmp.eq.s32.totalorder %s101, 1
      %p501 = por %p499, %p500
      %p503 = scmp.ne.s32.totalorder %s488, %s502
      %p504 = scmp.eq.s32.totalorder %s101, 0
      %p505 = por %p503, %p504
      %s507 = sadd.s32 %s506, 1
      %p510 = scmp.eq.s32.totalorder %s95, 1
      %p511 = scmp.ne.s32.totalorder %s506, %s508
      %p512 = scmp.eq.s32.totalorder %s95, 0
      %p513 = por %p511, %p512
      %p514 = scmp.ne.s32.totalorder %s506, %s508
      %p515 = scmp.eq.s32.totalorder %s100, 1
      %p516 = por %p514, %p515
      %p517 = scmp.ne.s32.totalorder %s508, %s509
      %p518 = scmp.eq.s32.totalorder %s100, 0
      %p519 = por %p517, %p518
      %p520 = scmp.ne.s32.totalorder %s508, %s509
      %p521 = scmp.eq.s32.totalorder %s101, 1
      %p522 = por %p520, %p521
      %p524 = scmp.ne.s32.totalorder %s509, %s523
      %p525 = scmp.eq.s32.totalorder %s101, 0
      %p526 = por %p524, %p525
      %s528 = sadd.s32 %s527, 1
      %p531 = scmp.eq.s32.totalorder %s95, 1
      %p532 = scmp.ne.s32.totalorder %s527, %s529
      %p533 = scmp.eq.s32.totalorder %s95, 0
      %p534 = por %p532, %p533
      %p535 = scmp.ne.s32.totalorder %s527, %s529
      %p536 = scmp.eq.s32.totalorder %s100, 1
      %p537 = por %p535, %p536
      %p538 = scmp.ne.s32.totalorder %s529, %s530
      %p539 = scmp.eq.s32.totalorder %s100, 0
      %p540 = por %p538, %p539
      %p541 = scmp.ne.s32.totalorder %s529, %s530
      %p542 = scmp.eq.s32.totalorder %s101, 1
      %p543 = por %p541, %p542
      %p545 = scmp.ne.s32.totalorder %s530, %s544
      %p546 = scmp.eq.s32.totalorder %s101, 0
      %p547 = por %p545, %p546
      %s549 = sadd.s32 %s548, 1
      %p552 = scmp.eq.s32.totalorder %s95, 1
      %p553 = scmp.ne.s32.totalorder %s548, %s550
      %p554 = scmp.eq.s32.totalorder %s95, 0
      %p555 = por %p553, %p554
      %p556 = scmp.ne.s32.totalorder %s548, %s550
      %p557 = scmp.eq.s32.totalorder %s100, 1
      %p558 = por %p556, %p557
      %p559 = scmp.ne.s32.totalorder %s550, %s551
      %p560 = scmp.eq.s32.totalorder %s100, 0
      %p561 = por %p559, %p560
      %p562 = scmp.ne.s32.totalorder %s550, %s551
      %p563 = scmp.eq.s32.totalorder %s101, 1
      %p564 = por %p562, %p563
      %p566 = scmp.ne.s32.totalorder %s551, %s565
      %p567 = scmp.eq.s32.totalorder %s101, 0
      %p568 = por %p566, %p567
      %s570 = sadd.s32 %s569, 1
      %p573 = scmp.eq.s32.totalorder %s95, 1
      %p574 = scmp.ne.s32.totalorder %s569, %s571
      %p575 = scmp.eq.s32.totalorder %s95, 0
      %p576 = por %p574, %p575
      %p577 = scmp.ne.s32.totalorder %s569, %s571
      %p578 = scmp.eq.s32.totalorder %s100, 1
      %p579 = por %p577, %p578
      %p580 = scmp.ne.s32.totalorder %s571, %s572
      %p581 = scmp.eq.s32.totalorder %s100, 0
      %p582 = por %p580, %p581
      %p583 = scmp.ne.s32.totalorder %s571, %s572
      %p584 = scmp.eq.s32.totalorder %s101, 1
      %p585 = por %p583, %p584
      %p587 = scmp.ne.s32.totalorder %s572, %s586
      %p588 = scmp.eq.s32.totalorder %s101, 0
      %p589 = por %p587, %p588
      %s591 = sadd.s32 %s590, 1
      %p594 = scmp.eq.s32.totalorder %s95, 1
      %p595 = scmp.ne.s32.totalorder %s590, %s592
      %p596 = scmp.eq.s32.totalorder %s95, 0
      %p597 = por %p595, %p596
      %p598 = scmp.ne.s32.totalorder %s590, %s592
      %p599 = scmp.eq.s32.totalorder %s100, 1
      %p600 = por %p598, %p599
      %p601 = scmp.ne.s32.totalorder %s592, %s593
      %p602 = scmp.eq.s32.totalorder %s100, 0
      %p603 = por %p601, %p602
      %p604 = scmp.ne.s32.totalorder %s592, %s593
      %p605 = scmp.eq.s32.totalorder %s101, 1
      %p606 = por %p604, %p605
      %p608 = scmp.ne.s32.totalorder %s593, %s607
      %p609 = scmp.eq.s32.totalorder %s101, 0
      %p610 = por %p608, %p609
      %s612 = sadd.s32 %s611, 1
      %p615 = scmp.eq.s32.totalorder %s95, 1
      %p616 = scmp.ne.s32.totalorder %s611, %s613
      %p617 = scmp.eq.s32.totalorder %s95, 0
      %p618 = por %p616, %p617
      %p619 = scmp.ne.s32.totalorder %s611, %s613
      %p620 = scmp.eq.s32.totalorder %s100, 1
      %p621 = por %p619, %p620
      %p622 = scmp.ne.s32.totalorder %s613, %s614
      %p623 = scmp.eq.s32.totalorder %s100, 0
      %p624 = por %p622, %p623
      %p625 = scmp.ne.s32.totalorder %s613, %s614
      %p626 = scmp.eq.s32.totalorder %s101, 1
      %p627 = por %p625, %p626
      %p629 = scmp.ne.s32.totalorder %s614, %s628
      %p630 = scmp.eq.s32.totalorder %s101, 0
      %p631 = por %p629, %p630
      %s633 = sadd.s32 %s632, 1
      %p636 = scmp.eq.s32.totalorder %s95, 1
      %p637 = scmp.ne.s32.totalorder %s632, %s634
      %p638 = scmp.eq.s32.totalorder %s95, 0
      %p639 = por %p637, %p638
      %p640 = scmp.ne.s32.totalorder %s632, %s634
      %p641 = scmp.eq.s32.totalorder %s100, 1
      %p642 = por %p640, %p641
      %p643 = scmp.ne.s32.totalorder %s634, %s635
      %p644 = scmp.eq.s32.totalorder %s100, 0
      %p645 = por %p643, %p644
      %p646 = scmp.ne.s32.totalorder %s634, %s635
      %p647 = scmp.eq.s32.totalorder %s101, 1
      %p648 = por %p646, %p647
      %p650 = scmp.ne.s32.totalorder %s635, %s649
      %p651 = scmp.eq.s32.totalorder %s101, 0
      %p652 = por %p650, %p651
      %s654 = sadd.s32 %s653, 1
      %p657 = scmp.eq.s32.totalorder %s95, 1
      %p658 = scmp.ne.s32.totalorder %s653, %s655
      %p659 = scmp.eq.s32.totalorder %s95, 0
      %p660 = por %p658, %p659
      %p661 = scmp.ne.s32.totalorder %s653, %s655
      %p662 = scmp.eq.s32.totalorder %s100, 1
      %p663 = por %p661, %p662
      %p664 = scmp.ne.s32.totalorder %s655, %s656
      %p665 = scmp.eq.s32.totalorder %s100, 0
      %p666 = por %p664, %p665
      %p667 = scmp.ne.s32.totalorder %s655, %s656
      %p668 = scmp.eq.s32.totalorder %s101, 1
      %p669 = por %p667, %p668
      %p671 = scmp.ne.s32.totalorder %s656, %s670
      %p672 = scmp.eq.s32.totalorder %s101, 0
      %p673 = por %p671, %p672
      %s675 = sadd.s32 %s674, 1
      %p678 = scmp.eq.s32.totalorder %s95, 1
      %p679 = scmp.ne.s32.totalorder %s674, %s676
      %p680 = scmp.eq.s32.totalorder %s95, 0
      %p681 = por %p679, %p680
      %p682 = scmp.ne.s32.totalorder %s674, %s676
      %p683 = scmp.eq.s32.totalorder %s100, 1
      %p684 = por %p682, %p683
      %p685 = scmp.ne.s32.totalorder %s676, %s677
      %p686 = scmp.eq.s32.totalorder %s100, 0
      %p687 = por %p685, %p686
      %p688 = scmp.ne.s32.totalorder %s676, %s677
      %p689 = scmp.eq.s32.totalorder %s101, 1
      %p690 = por %p688, %p689
      %p692 = scmp.ne.s32.totalorder %s677, %s691
      %p693 = scmp.eq.s32.totalorder %s101, 0
      %p694 = por %p692, %p693
      %s695 = ssub.s32 %s95, %s102
      %p696 = scmp.eq.s32.totalorder %s695, 0
      %s698 = sadd.s32 %s697, 1
      %s699 = scalar_select %p696, %s697, %s698
      %p702 = pneg %p696
      %p703 = scmp.eq.s32.totalorder %s95, 1
      %p704 = por %p702, %p703
      %p705 = scmp.ne.s32.totalorder %s697, %s700
      %p706 = scmp.eq.s32.totalorder %s95, 0
      %p707 = por %p705, %p706
      %p708 = scmp.ne.s32.totalorder %s697, %s700
      %p709 = scmp.eq.s32.totalorder %s100, 1
      %p710 = por %p708, %p709
      %p711 = scmp.ne.s32.totalorder %s700, %s701
      %p712 = scmp.eq.s32.totalorder %s100, 0
      %p713 = por %p711, %p712
      %p714 = scmp.ne.s32.totalorder %s700, %s701
      %p715 = scmp.eq.s32.totalorder %s101, 1
      %p716 = por %p714, %p715
      %p718 = scmp.ne.s32.totalorder %s701, %s717
      %p719 = scmp.eq.s32.totalorder %s101, 0
      %p720 = por %p718, %p719
      %s721 = ssub.s32 %s95, %s102
      %p722 = scmp.eq.s32.totalorder %s721, 0
      %s724 = sadd.s32 %s723, 1
      %s725 = scalar_select %p722, %s723, %s724
      %p728 = pneg %p722
      %p729 = scmp.eq.s32.totalorder %s95, 1
      %p730 = por %p728, %p729
      %p731 = scmp.ne.s32.totalorder %s723, %s726
      %p732 = scmp.eq.s32.totalorder %s95, 0
      %p733 = por %p731, %p732
      %p734 = scmp.ne.s32.totalorder %s723, %s726
      %p735 = scmp.eq.s32.totalorder %s100, 1
      %p736 = por %p734, %p735
      %p737 = scmp.ne.s32.totalorder %s726, %s727
      %p738 = scmp.eq.s32.totalorder %s100, 0
      %p739 = por %p737, %p738
      %p740 = scmp.ne.s32.totalorder %s726, %s727
      %p741 = scmp.eq.s32.totalorder %s101, 1
      %p742 = por %p740, %p741
      %p744 = scmp.ne.s32.totalorder %s727, %s743
      %p745 = scmp.eq.s32.totalorder %s101, 0
      %p746 = por %p744, %p745
      %s747 = ssub.s32 %s95, %s102
      %p748 = scmp.eq.s32.totalorder %s747, 0
      %s750 = sadd.s32 %s749, 1
      %s751 = scalar_select %p748, %s749, %s750
      %p754 = pneg %p748
      %p755 = scmp.eq.s32.totalorder %s95, 1
      %p756 = por %p754, %p755
      %p757 = scmp.ne.s32.totalorder %s749, %s752
      %p758 = scmp.eq.s32.totalorder %s95, 0
      %p759 = por %p757, %p758
      %p760 = scmp.ne.s32.totalorder %s749, %s752
      %p761 = scmp.eq.s32.totalorder %s100, 1
      %p762 = por %p760, %p761
      %p763 = scmp.ne.s32.totalorder %s752, %s753
      %p764 = scmp.eq.s32.totalorder %s100, 0
      %p765 = por %p763, %p764
      %p766 = scmp.ne.s32.totalorder %s752, %s753
      %p767 = scmp.eq.s32.totalorder %s101, 1
      %p768 = por %p766, %p767
      %p770 = scmp.ne.s32.totalorder %s753, %s769
      %p771 = scmp.eq.s32.totalorder %s101, 0
      %p772 = por %p770, %p771
      %p773 = scmp.le.s32.totalorder 1, %s95
      %p774 = scmp.lt.s32.totalorder %s95, 3
      %p775 = pnand %p773, %p774
      %p776 = pneg %p775
      // Predicated region
      $region9: #{closed_call.16} parent=5 // pred_check
        _
      $region10: #{closed_call.16} parent=5 // pred_check_branch
        %778 = sbr.rel (%p775) target = $region12
      $region11: #{closed_call.16} parent=5 // pred_region
        %s779 = ssub.s32 %s95, 1
        // Predicated region
        $region13: #{closed_call.16} parent=11 // pred_check
          %p780 = pneg %p246
        $region14: #{closed_call.16} parent=11 // pred_check_branch
          %782 = sbr.rel (%p780) target = $region16
        $region15: #{closed_call.16} parent=11 // pred_region
          %s784 = ssub.s32 16, 16
          %785 = vsyncadd [#allocation14], %s784
          %s787 = sshll.u32 [#allocation13], 4
          %s788 = int_to_ptr.vmem [resolvable:$true] %s787
          %790 = dma.hbm_to_vmem [thread:$0]  %s13, 16, %s788, [#allocation14]
        $region16: #{closed_call.16} parent=11 // pred_fallthru
          _
        // Predicated region
        $region17: #{closed_call.16} parent=11 // pred_check
          %p791 = pneg %p267
        $region18: #{closed_call.16} parent=11 // pred_check_branch
          %793 = sbr.rel (%p791) target = $region20
        $region19: #{closed_call.16} parent=11 // pred_region
          %s795 = ssub.s32 16, 16
          %796 = vsyncadd [#allocation14], %s795
          %s798 = sshll.u32 [#allocation15], 4
          %s799 = int_to_ptr.vmem [resolvable:$true] %s798
          %801 = dma.hbm_to_vmem [thread:$0]  %s15, 16, %s799, [#allocation14]
        $region20: #{closed_call.16} parent=11 // pred_fallthru
          _
        // Predicated region
        $region21: #{closed_call.16} parent=11 // pred_check
          %p802 = pneg %p288
        $region22: #{closed_call.16} parent=11 // pred_check_branch
          %804 = sbr.rel (%p802) target = $region24
        $region23: #{closed_call.16} parent=11 // pred_region
          %s806 = ssub.s32 128, 128
          %807 = vsyncadd [#allocation17], %s806
          %s808 = sshll.u32 [#allocation16], 4
          %s809 = int_to_ptr.vmem [resolvable:$true] %s808
          %814 = dma.hbm_to_vmem [thread:$0]  %s17, 128, %s809, [#allocation17], 64, 64, 4
        $region24: #{closed_call.16} parent=11 // pred_fallthru
          _
        // Predicated region
        $region25: #{closed_call.16} parent=11 // pred_check
          %p815 = pneg %p309
        $region26: #{closed_call.16} parent=11 // pred_check_branch
          %817 = sbr.rel (%p815) target = $region28
        $region27: #{closed_call.16} parent=11 // pred_region
          %s819 = ssub.s32 16, 16
          %820 = vsyncadd [#allocation17], %s819
          %s822 = sshll.u32 [#allocation18], 4
          %s823 = int_to_ptr.vmem [resolvable:$true] %s822
          %825 = dma.hbm_to_vmem [thread:$0]  %s19, 16, %s823, [#allocation17]
        $region28: #{closed_call.16} parent=11 // pred_fallthru
          _
        // Predicated region
        $region29: #{closed_call.16} parent=11 // pred_check
          %p826 = pneg %p330
        $region30: #{closed_call.16} parent=11 // pred_check_branch
          %828 = sbr.rel (%p826) target = $region32
        $region31: #{closed_call.16} parent=11 // pred_region
          %s830 = ssub.s32 128, 128
          %831 = vsyncadd [#allocation20], %s830
          %s832 = sshll.u32 [#allocation19], 4
          %s833 = int_to_ptr.vmem [resolvable:$true] %s832
          %838 = dma.hbm_to_vmem [thread:$0]  %s21, 128, %s833, [#allocation20], 64, 64, 4
        $region32: #{closed_call.16} parent=11 // pred_fallthru
          _
        // Predicated region
        $region33: #{closed_call.16} parent=11 // pred_check
          %p839 = pneg %p351
        $region34: #{closed_call.16} parent=11 // pred_check_branch
          %841 = sbr.rel (%p839) target = $region36
        $region35: #{closed_call.16} parent=11 // pred_region
          %s843 = ssub.s32 16, 16
          %844 = vsyncadd [#allocation20], %s843
          %s846 = sshll.u32 [#allocation21], 4
          %s847 = int_to_ptr.vmem [resolvable:$true] %s846
          %849 = dma.hbm_to_vmem [thread:$0]  %s23, 16, %s847, [#allocation20]
        $region36: #{closed_call.16} parent=11 // pred_fallthru
          _
        // Predicated region
        $region37: #{closed_call.16} parent=11 // pred_check
          %p850 = pneg %p372
        $region38: #{closed_call.16} parent=11 // pred_check_branch
          %852 = sbr.rel (%p850) target = $region40
        $region39: #{closed_call.16} parent=11 // pred_region
          %s854 = ssub.s32 16, 16
          %855 = vsyncadd [#allocation23], %s854
          %s857 = sshll.u32 [#allocation22], 4
          %s858 = int_to_ptr.vmem [resolvable:$true] %s857
          %860 = dma.hbm_to_vmem [thread:$0]  %s25, 16, %s858, [#allocation23]
        $region40: #{closed_call.16} parent=11 // pred_fallthru
          _
        // Predicated region
        $region41: #{closed_call.16} parent=11 // pred_check
          %p861 = pneg %p393
        $region42: #{closed_call.16} parent=11 // pred_check_branch
          %863 = sbr.rel (%p861) target = $region44
        $region43: #{closed_call.16} parent=11 // pred_region
          %s865 = ssub.s32 16, 16
          %866 = vsyncadd [#allocation23], %s865
          %s868 = sshll.u32 [#allocation24], 4
          %s869 = int_to_ptr.vmem [resolvable:$true] %s868
          %871 = dma.hbm_to_vmem [thread:$0]  %s27, 16, %s869, [#allocation23]
        $region44: #{closed_call.16} parent=11 // pred_fallthru
          _
        // Predicated region
        $region45: #{closed_call.16} parent=11 // pred_check
          %p872 = pneg %p414
        $region46: #{closed_call.16} parent=11 // pred_check_branch
          %874 = sbr.rel (%p872) target = $region48
        $region47: #{closed_call.16} parent=11 // pred_region
          %s876 = ssub.s32 128, 128
          %877 = vsyncadd [#allocation26], %s876
          %s878 = sshll.u32 [#allocation25], 4
          %s879 = int_to_ptr.vmem [resolvable:$true] %s878
          %884 = dma.hbm_to_vmem [thread:$0]  %s29, 128, %s879, [#allocation26], 64, 64, 4
        $region48: #{closed_call.16} parent=11 // pred_fallthru
          _
        // Predicated region
        $region49: #{closed_call.16} parent=11 // pred_check
          %p885 = pneg %p435
        $region50: #{closed_call.16} parent=11 // pred_check_branch
          %887 = sbr.rel (%p885) target = $region52
        $region51: #{closed_call.16} parent=11 // pred_region
          %s889 = ssub.s32 16, 16
          %890 = vsyncadd [#allocation26], %s889
          %s892 = sshll.u32 [#allocation27], 4
          %s893 = int_to_ptr.vmem [resolvable:$true] %s892
          %895 = dma.hbm_to_vmem [thread:$0]  %s31, 16, %s893, [#allocation26]
        $region52: #{closed_call.16} parent=11 // pred_fallthru
          _
        // Predicated region
        $region53: #{closed_call.16} parent=11 // pred_check
          %p896 = pneg %p456
        $region54: #{closed_call.16} parent=11 // pred_check_branch
          %898 = sbr.rel (%p896) target = $region56
        $region55: #{closed_call.16} parent=11 // pred_region
          %s900 = ssub.s32 128, 128
          %901 = vsyncadd [#allocation29], %s900
          %s902 = sshll.u32 [#allocation28], 4
          %s903 = int_to_ptr.vmem [resolvable:$true] %s902
          %908 = dma.hbm_to_vmem [thread:$0]  %s33, 128, %s903, [#allocation29], 64, 64, 4
        $region56: #{closed_call.16} parent=11 // pred_fallthru
          _
        // Predicated region
        $region57: #{closed_call.16} parent=11 // pred_check
          %p909 = pneg %p477
        $region58: #{closed_call.16} parent=11 // pred_check_branch
          %911 = sbr.rel (%p909) target = $region60
        $region59: #{closed_call.16} parent=11 // pred_region
          %s913 = ssub.s32 16, 16
          %914 = vsyncadd [#allocation29], %s913
          %s916 = sshll.u32 [#allocation30], 4
          %s917 = int_to_ptr.vmem [resolvable:$true] %s916
          %919 = dma.hbm_to_vmem [thread:$0]  %s35, 16, %s917, [#allocation29]
        $region60: #{closed_call.16} parent=11 // pred_fallthru
          _
        // Predicated region
        $region61: #{closed_call.16} parent=11 // pred_check
          %p920 = pneg %p498
        $region62: #{closed_call.16} parent=11 // pred_check_branch
          %922 = sbr.rel (%p920) target = $region64
        $region63: #{closed_call.16} parent=11 // pred_region
          %s924 = ssub.s32 16, 16
          %925 = vsyncadd [#allocation32], %s924
          %s927 = sshll.u32 [#allocation31], 4
          %s928 = int_to_ptr.vmem [resolvable:$true] %s927
          %930 = dma.hbm_to_vmem [thread:$0]  %s37, 16, %s928, [#allocation32]
        $region64: #{closed_call.16} parent=11 // pred_fallthru
          _
        // Predicated region
        $region65: #{closed_call.16} parent=11 // pred_check
          %p931 = pneg %p519
        $region66: #{closed_call.16} parent=11 // pred_check_branch
          %933 = sbr.rel (%p931) target = $region68
        $region67: #{closed_call.16} parent=11 // pred_region
          %s935 = ssub.s32 16, 16
          %936 = vsyncadd [#allocation32], %s935
          %s938 = sshll.u32 [#allocation33], 4
          %s939 = int_to_ptr.vmem [resolvable:$true] %s938
          %941 = dma.hbm_to_vmem [thread:$0]  %s39, 16, %s939, [#allocation32]
        $region68: #{closed_call.16} parent=11 // pred_fallthru
          _
        // Predicated region
        $region69: #{closed_call.16} parent=11 // pred_check
          %p942 = pneg %p540
        $region70: #{closed_call.16} parent=11 // pred_check_branch
          %944 = sbr.rel (%p942) target = $region72
        $region71: #{closed_call.16} parent=11 // pred_region
          %s946 = ssub.s32 128, 128
          %947 = vsyncadd [#allocation35], %s946
          %s948 = sshll.u32 [#allocation34], 4
          %s949 = int_to_ptr.vmem [resolvable:$true] %s948
          %954 = dma.hbm_to_vmem [thread:$0]  %s41, 128, %s949, [#allocation35], 64, 64, 4
        $region72: #{closed_call.16} parent=11 // pred_fallthru
          _
        // Predicated region
        $region73: #{closed_call.16} parent=11 // pred_check
          %p955 = pneg %p561
        $region74: #{closed_call.16} parent=11 // pred_check_branch
          %957 = sbr.rel (%p955) target = $region76
        $region75: #{closed_call.16} parent=11 // pred_region
          %s959 = ssub.s32 16, 16
          %960 = vsyncadd [#allocation35], %s959
          %s962 = sshll.u32 [#allocation36], 4
          %s963 = int_to_ptr.vmem [resolvable:$true] %s962
          %965 = dma.hbm_to_vmem [thread:$0]  %s43, 16, %s963, [#allocation35]
        $region76: #{closed_call.16} parent=11 // pred_fallthru
          _
        // Predicated region
        $region77: #{closed_call.16} parent=11 // pred_check
          %p966 = pneg %p582
        $region78: #{closed_call.16} parent=11 // pred_check_branch
          %968 = sbr.rel (%p966) target = $region80
        $region79: #{closed_call.16} parent=11 // pred_region
          %s970 = ssub.s32 512, 512
          %971 = vsyncadd [#allocation38], %s970
          %s972 = sshll.u32 [#allocation37], 4
          %s973 = int_to_ptr.vmem [resolvable:$true] %s972
          %978 = dma.hbm_to_vmem [thread:$0]  %s45, 512, %s973, [#allocation38], 64, 64, 4
        $region80: #{closed_call.16} parent=11 // pred_fallthru
          _
        // Predicated region
        $region81: #{closed_call.16} parent=11 // pred_check
          %p979 = pneg %p603
        $region82: #{closed_call.16} parent=11 // pred_check_branch
          %981 = sbr.rel (%p979) target = $region84
        $region83: #{closed_call.16} parent=11 // pred_region
          %s983 = ssub.s32 16, 16
          %984 = vsyncadd [#allocation38], %s983
          %s986 = sshll.u32 [#allocation39], 4
          %s987 = int_to_ptr.vmem [resolvable:$true] %s986
          %989 = dma.hbm_to_vmem [thread:$0]  %s47, 16, %s987, [#allocation38]
        $region84: #{closed_call.16} parent=11 // pred_fallthru
          _
        // Predicated region
        $region85: #{closed_call.16} parent=11 // pred_check
          %p990 = pneg %p624
        $region86: #{closed_call.16} parent=11 // pred_check_branch
          %992 = sbr.rel (%p990) target = $region88
        $region87: #{closed_call.16} parent=11 // pred_region
          %s994 = ssub.s32 16, 16
          %995 = vsyncadd [#allocation41], %s994
          %s997 = sshll.u32 [#allocation40], 4
          %s998 = int_to_ptr.vmem [resolvable:$true] %s997
          %1000 = dma.hbm_to_vmem [thread:$0]  %s49, 16, %s998, [#allocation41]
        $region88: #{closed_call.16} parent=11 // pred_fallthru
          _
        // Predicated region
        $region89: #{closed_call.16} parent=11 // pred_check
          %p1001 = pneg %p645
        $region90: #{closed_call.16} parent=11 // pred_check_branch
          %1003 = sbr.rel (%p1001) target = $region92
        $region91: #{closed_call.16} parent=11 // pred_region
          %s1005 = ssub.s32 16, 16
          %1006 = vsyncadd [#allocation41], %s1005
          %s1008 = sshll.u32 [#allocation42], 4
          %s1009 = int_to_ptr.vmem [resolvable:$true] %s1008
          %1011 = dma.hbm_to_vmem [thread:$0]  %s51, 16, %s1009, [#allocation41]
        $region92: #{closed_call.16} parent=11 // pred_fallthru
          _
        // Predicated region
        $region93: #{closed_call.16} parent=11 // pred_check
          %p1012 = pneg %p666
        $region94: #{closed_call.16} parent=11 // pred_check_branch
          %1014 = sbr.rel (%p1012) target = $region96
        $region95: #{closed_call.16} parent=11 // pred_region
          %s1016 = ssub.s32 128, 128
          %1017 = vsyncadd [#allocation44], %s1016
          %s1018 = sshll.u32 [#allocation43], 4
          %s1019 = int_to_ptr.vmem [resolvable:$true] %s1018
          %1024 = dma.hbm_to_vmem [thread:$0]  %s53, 128, %s1019, [#allocation44], 64, 64, 4
        $region96: #{closed_call.16} parent=11 // pred_fallthru
          _
        // Predicated region
        $region97: #{closed_call.16} parent=11 // pred_check
          %p1025 = pneg %p687
        $region98: #{closed_call.16} parent=11 // pred_check_branch
          %1027 = sbr.rel (%p1025) target = $region100
        $region99: #{closed_call.16} parent=11 // pred_region
          %s1029 = ssub.s32 16, 16
          %1030 = vsyncadd [#allocation44], %s1029
          %s1032 = sshll.u32 [#allocation45], 4
          %s1033 = int_to_ptr.vmem [resolvable:$true] %s1032
          %1035 = dma.hbm_to_vmem [thread:$0]  %s55, 16, %s1033, [#allocation44]
        $region100: #{closed_call.16} parent=11 // pred_fallthru
          _
      $region12: #{closed_call.16} parent=5 // pred_fallthru
        _
      %p1036 = scmp.lt.s32.totalorder %s95, 2
      // Predicated region
      $region101: #{closed_call.16} parent=5 // pred_check
        %p1037 = pneg %p1036
      $region102: #{closed_call.16} parent=5 // pred_check_branch
        %1039 = sbr.rel (%p1037) target = $region104
      $region103: #{closed_call.16} parent=5 // pred_region
        // Predicated region
        $region105: #{closed_call.16} parent=103 // pred_check
          %p1040 = pneg %p115
        $region106: #{closed_call.16} parent=103 // pred_check_branch
          %1042 = sbr.rel (%p1040) target = $region108
        $region107: #{closed_call.16} parent=103 // pred_region
          %s1043 = sand.u32 %s105, 1
          %s1044 = scalar_lea.sflag [#allocation5], %s1043
          %s1045 = sand.u32 %s105, 1
          %s1046 = scalar_lea.vmem [#allocation4], %s1045
          %s1048 = ssub.s32 16, 16
          %1049 = vsyncadd %s1044, %s1048
          %s1050 = smul.addr %s95, 16
          %s1051 = scalar_lea.hbm %s3, %s1050
          %s1053 = sshll.u32 %s1046, 4
          %s1054 = int_to_ptr.vmem [resolvable:$true] %s1053
          %1056 = dma.hbm_to_vmem [thread:$0]  %s1051, 16, %s1054, %s1044
        $region108: #{closed_call.16} parent=103 // pred_fallthru
          _
        // Predicated region
        $region109: #{closed_call.16} parent=103 // pred_check
          %p1057 = pneg %p141
        $region110: #{closed_call.16} parent=103 // pred_check_branch
          %1059 = sbr.rel (%p1057) target = $region112
        $region111: #{closed_call.16} parent=103 // pred_region
          %s1060 = sand.u32 %s95, 1
          %s1061 = scalar_lea.sflag [#allocation8], %s1060
          %s1062 = sand.u32 %s131, 1
          %s1063 = smul.addr %s1062, 4
          %s1064 = scalar_lea.vmem [#allocation7], %s1063
          %s1066 = ssub.s32 64, 64
          %1067 = vsyncadd %s1061, %s1066
          %s1068 = smul.addr %s95, 64
          %s1069 = scalar_lea.hbm %s5, %s1068
          %s1071 = sshll.u32 %s1064, 4
          %s1072 = int_to_ptr.vmem [resolvable:$true] %s1071
          %1074 = dma.hbm_to_vmem [thread:$0]  %s1069, 64, %s1072, %s1061
        $region112: #{closed_call.16} parent=103 // pred_fallthru
          _
        // Predicated region
        $region113: #{closed_call.16} parent=103 // pred_check
          %p1075 = pneg %p167
        $region114: #{closed_call.16} parent=103 // pred_check_branch
          %1077 = sbr.rel (%p1075) target = $region116
        $region115: #{closed_call.16} parent=103 // pred_region
          %s1078 = sand.u32 %s95, 1
          %s1079 = scalar_lea.sflag [#allocation8], %s1078
          %s1080 = sand.u32 %s157, 1
          %s1081 = smul.addr %s1080, 4
          %s1082 = scalar_lea.vmem [#allocation9], %s1081
          %s1084 = ssub.s32 64, 64
          %1085 = vsyncadd %s1079, %s1084
          %s1086 = smul.addr %s95, 64
          %s1087 = scalar_lea.hbm %s7, %s1086
          %s1089 = sshll.u32 %s1082, 4
          %s1090 = int_to_ptr.vmem [resolvable:$true] %s1089
          %1092 = dma.hbm_to_vmem [thread:$0]  %s1087, 64, %s1090, %s1079
        $region116: #{closed_call.16} parent=103 // pred_fallthru
          _
        // Predicated region
        $region117: #{closed_call.16} parent=103 // pred_check
          %p1093 = pneg %p193
        $region118: #{closed_call.16} parent=103 // pred_check_branch
          %1095 = sbr.rel (%p1093) target = $region120
        $region119: #{closed_call.16} parent=103 // pred_region
          %s1096 = sand.u32 %s95, 1
          %s1097 = scalar_lea.sflag [#allocation11], %s1096
          %s1098 = sand.u32 %s183, 1
          %s1099 = smul.addr %s1098, 4
          %s1100 = scalar_lea.vmem [#allocation10], %s1099
          %s1102 = ssub.s32 64, 64
          %1103 = vsyncadd %s1097, %s1102
          %s1104 = smul.addr %s95, 64
          %s1105 = scalar_lea.hbm %s9, %s1104
          %s1107 = sshll.u32 %s1100, 4
          %s1108 = int_to_ptr.vmem [resolvable:$true] %s1107
          %1110 = dma.hbm_to_vmem [thread:$0]  %s1105, 64, %s1108, %s1097
        $region120: #{closed_call.16} parent=103 // pred_fallthru
          _
        // Predicated region
        $region121: #{closed_call.16} parent=103 // pred_check
          %p1111 = pneg %p219
        $region122: #{closed_call.16} parent=103 // pred_check_branch
          %1113 = sbr.rel (%p1111) target = $region124
        $region123: #{closed_call.16} parent=103 // pred_region
          %s1114 = sand.u32 %s95, 1
          %s1115 = scalar_lea.sflag [#allocation11], %s1114
          %s1116 = sand.u32 %s209, 1
          %s1117 = smul.addr %s1116, 4
          %s1118 = scalar_lea.vmem [#allocation12], %s1117
          %s1120 = ssub.s32 64, 64
          %1121 = vsyncadd %s1115, %s1120
          %s1122 = smul.addr %s95, 64
          %s1123 = scalar_lea.hbm %s11, %s1122
          %s1125 = sshll.u32 %s1118, 4
          %s1126 = int_to_ptr.vmem [resolvable:$true] %s1125
          %1128 = dma.hbm_to_vmem [thread:$0]  %s1123, 64, %s1126, %s1115
        $region124: #{closed_call.16} parent=103 // pred_fallthru
          _
      $region104: #{closed_call.16} parent=5 // pred_fallthru
        _
      %p1129 = scmp.le.s32.totalorder 1, %s95
      %p1130 = scmp.lt.s32.totalorder %s95, 3
      %p1131 = pnand %p1129, %p1130
      %p1132 = pneg %p1131
      // Predicated region
      $region125: #{closed_call.16} parent=5 // pred_check
        _
      $region126: #{closed_call.16} parent=5 // pred_check_branch
        %1134 = sbr.rel (%p1131) target = $region128
      $region127: #{closed_call.16} parent=5 // pred_region
        %s1135 = ssub.s32 %s95, 1
        %s1136 = sand.u32 %s108, 1
        %s1137 = scalar_lea.sflag [#allocation5], %s1136
        %s1138 = sand.u32 %s108, 1
        %s1139 = scalar_lea.vmem [#allocation4], %s1138
        // Predicated region
        $region129: #{closed_call.16} parent=127 // pred_check
          %p1140 = pneg %p121
        $region130: #{closed_call.16} parent=127 // pred_check_branch
          %1142 = sbr.rel (%p1140) target = $region132
        $region131: #{closed_call.16} parent=127 // pred_region
          %1143 = dma.done %s1137, 16
        $region132: #{closed_call.16} parent=127 // pred_fallthru
          _
        %s1144 = sand.u32 %s100, 1
        %s1145 = scalar_lea.sflag [#allocation8], %s1144
        %s1146 = sand.u32 %s134, 1
        %s1147 = smul.addr %s1146, 4
        %s1148 = scalar_lea.vmem [#allocation7], %s1147
        // Predicated region
        $region133: #{closed_call.16} parent=127 // pred_check
          %p1149 = pneg %p147
        $region134: #{closed_call.16} parent=127 // pred_check_branch
          %1151 = sbr.rel (%p1149) target = $region136
        $region135: #{closed_call.16} parent=127 // pred_region
          %1152 = dma.done %s1145, 64
        $region136: #{closed_call.16} parent=127 // pred_fallthru
          _
        %s1153 = sand.u32 %s100, 1
        %s1154 = scalar_lea.sflag [#allocation8], %s1153
        %s1155 = sand.u32 %s160, 1
        %s1156 = smul.addr %s1155, 4
        %s1157 = scalar_lea.vmem [#allocation9], %s1156
        // Predicated region
        $region137: #{closed_call.16} parent=127 // pred_check
          %p1158 = pneg %p173
        $region138: #{closed_call.16} parent=127 // pred_check_branch
          %1160 = sbr.rel (%p1158) target = $region140
        $region139: #{closed_call.16} parent=127 // pred_region
          %1161 = dma.done %s1154, 64
        $region140: #{closed_call.16} parent=127 // pred_fallthru
          _
        %s1162 = sand.u32 %s100, 1
        %s1163 = scalar_lea.sflag [#allocation11], %s1162
        %s1164 = sand.u32 %s186, 1
        %s1165 = smul.addr %s1164, 4
        %s1166 = scalar_lea.vmem [#allocation10], %s1165
        // Predicated region
        $region141: #{closed_call.16} parent=127 // pred_check
          %p1167 = pneg %p199
        $region142: #{closed_call.16} parent=127 // pred_check_branch
          %1169 = sbr.rel (%p1167) target = $region144
        $region143: #{closed_call.16} parent=127 // pred_region
          %1170 = dma.done %s1163, 64
        $region144: #{closed_call.16} parent=127 // pred_fallthru
          _
        %s1171 = sand.u32 %s100, 1
        %s1172 = scalar_lea.sflag [#allocation11], %s1171
        %s1173 = sand.u32 %s212, 1
        %s1174 = smul.addr %s1173, 4
        %s1175 = scalar_lea.vmem [#allocation12], %s1174
        // Predicated region
        $region145: #{closed_call.16} parent=127 // pred_check
          %p1176 = pneg %p225
        $region146: #{closed_call.16} parent=127 // pred_check_branch
          %1178 = sbr.rel (%p1176) target = $region148
        $region147: #{closed_call.16} parent=127 // pred_region
          %1179 = dma.done %s1172, 64
        $region148: #{closed_call.16} parent=127 // pred_fallthru
          _
        // Predicated region
        $region149: #{closed_call.16} parent=127 // pred_check
          %p1180 = pneg %p246
        $region150: #{closed_call.16} parent=127 // pred_check_branch
          %1182 = sbr.rel (%p1180) target = $region152
        $region151: #{closed_call.16} parent=127 // pred_region
          %1183 = dma.done [#allocation14], 16
        $region152: #{closed_call.16} parent=127 // pred_fallthru
          _
        // Predicated region
        $region153: #{closed_call.16} parent=127 // pred_check
          %p1184 = pneg %p267
        $region154: #{closed_call.16} parent=127 // pred_check_branch
          %1186 = sbr.rel (%p1184) target = $region156
        $region155: #{closed_call.16} parent=127 // pred_region
          %1187 = dma.done [#allocation14], 16
        $region156: #{closed_call.16} parent=127 // pred_fallthru
          _
        // Predicated region
        $region157: #{closed_call.16} parent=127 // pred_check
          %p1188 = pneg %p288
        $region158: #{closed_call.16} parent=127 // pred_check_branch
          %1190 = sbr.rel (%p1188) target = $region160
        $region159: #{closed_call.16} parent=127 // pred_region
          %1191 = dma.done [#allocation17], 128
        $region160: #{closed_call.16} parent=127 // pred_fallthru
          _
        // Predicated region
        $region161: #{closed_call.16} parent=127 // pred_check
          %p1192 = pneg %p309
        $region162: #{closed_call.16} parent=127 // pred_check_branch
          %1194 = sbr.rel (%p1192) target = $region164
        $region163: #{closed_call.16} parent=127 // pred_region
          %1195 = dma.done [#allocation17], 16
        $region164: #{closed_call.16} parent=127 // pred_fallthru
          _
        // Predicated region
        $region165: #{closed_call.16} parent=127 // pred_check
          %p1196 = pneg %p330
        $region166: #{closed_call.16} parent=127 // pred_check_branch
          %1198 = sbr.rel (%p1196) target = $region168
        $region167: #{closed_call.16} parent=127 // pred_region
          %1199 = dma.done [#allocation20], 128
        $region168: #{closed_call.16} parent=127 // pred_fallthru
          _
        // Predicated region
        $region169: #{closed_call.16} parent=127 // pred_check
          %p1200 = pneg %p351
        $region170: #{closed_call.16} parent=127 // pred_check_branch
          %1202 = sbr.rel (%p1200) target = $region172
        $region171: #{closed_call.16} parent=127 // pred_region
          %1203 = dma.done [#allocation20], 16
        $region172: #{closed_call.16} parent=127 // pred_fallthru
          _
        // Predicated region
        $region173: #{closed_call.16} parent=127 // pred_check
          %p1204 = pneg %p372
        $region174: #{closed_call.16} parent=127 // pred_check_branch
          %1206 = sbr.rel (%p1204) target = $region176
        $region175: #{closed_call.16} parent=127 // pred_region
          %1207 = dma.done [#allocation23], 16
        $region176: #{closed_call.16} parent=127 // pred_fallthru
          _
        // Predicated region
        $region177: #{closed_call.16} parent=127 // pred_check
          %p1208 = pneg %p393
        $region178: #{closed_call.16} parent=127 // pred_check_branch
          %1210 = sbr.rel (%p1208) target = $region180
        $region179: #{closed_call.16} parent=127 // pred_region
          %1211 = dma.done [#allocation23], 16
        $region180: #{closed_call.16} parent=127 // pred_fallthru
          _
        // Predicated region
        $region181: #{closed_call.16} parent=127 // pred_check
          %p1212 = pneg %p414
        $region182: #{closed_call.16} parent=127 // pred_check_branch
          %1214 = sbr.rel (%p1212) target = $region184
        $region183: #{closed_call.16} parent=127 // pred_region
          %1215 = dma.done [#allocation26], 128
        $region184: #{closed_call.16} parent=127 // pred_fallthru
          _
        // Predicated region
        $region185: #{closed_call.16} parent=127 // pred_check
          %p1216 = pneg %p435
        $region186: #{closed_call.16} parent=127 // pred_check_branch
          %1218 = sbr.rel (%p1216) target = $region188
        $region187: #{closed_call.16} parent=127 // pred_region
          %1219 = dma.done [#allocation26], 16
        $region188: #{closed_call.16} parent=127 // pred_fallthru
          _
        // Predicated region
        $region189: #{closed_call.16} parent=127 // pred_check
          %p1220 = pneg %p456
        $region190: #{closed_call.16} parent=127 // pred_check_branch
          %1222 = sbr.rel (%p1220) target = $region192
        $region191: #{closed_call.16} parent=127 // pred_region
          %1223 = dma.done [#allocation29], 128
        $region192: #{closed_call.16} parent=127 // pred_fallthru
          _
        // Predicated region
        $region193: #{closed_call.16} parent=127 // pred_check
          %p1224 = pneg %p477
        $region194: #{closed_call.16} parent=127 // pred_check_branch
          %1226 = sbr.rel (%p1224) target = $region196
        $region195: #{closed_call.16} parent=127 // pred_region
          %1227 = dma.done [#allocation29], 16
        $region196: #{closed_call.16} parent=127 // pred_fallthru
          _
        // Predicated region
        $region197: #{closed_call.16} parent=127 // pred_check
          %p1228 = pneg %p498
        $region198: #{closed_call.16} parent=127 // pred_check_branch
          %1230 = sbr.rel (%p1228) target = $region200
        $region199: #{closed_call.16} parent=127 // pred_region
          %1231 = dma.done [#allocation32], 16
        $region200: #{closed_call.16} parent=127 // pred_fallthru
          _
        // Predicated region
        $region201: #{closed_call.16} parent=127 // pred_check
          %p1232 = pneg %p519
        $region202: #{closed_call.16} parent=127 // pred_check_branch
          %1234 = sbr.rel (%p1232) target = $region204
        $region203: #{closed_call.16} parent=127 // pred_region
          %1235 = dma.done [#allocation32], 16
        $region204: #{closed_call.16} parent=127 // pred_fallthru
          _
        // Predicated region
        $region205: #{closed_call.16} parent=127 // pred_check
          %p1236 = pneg %p540
        $region206: #{closed_call.16} parent=127 // pred_check_branch
          %1238 = sbr.rel (%p1236) target = $region208
        $region207: #{closed_call.16} parent=127 // pred_region
          %1239 = dma.done [#allocation35], 128
        $region208: #{closed_call.16} parent=127 // pred_fallthru
          _
        // Predicated region
        $region209: #{closed_call.16} parent=127 // pred_check
          %p1240 = pneg %p561
        $region210: #{closed_call.16} parent=127 // pred_check_branch
          %1242 = sbr.rel (%p1240) target = $region212
        $region211: #{closed_call.16} parent=127 // pred_region
          %1243 = dma.done [#allocation35], 16
        $region212: #{closed_call.16} parent=127 // pred_fallthru
          _
        // Predicated region
        $region213: #{closed_call.16} parent=127 // pred_check
          %p1244 = pneg %p582
        $region214: #{closed_call.16} parent=127 // pred_check_branch
          %1246 = sbr.rel (%p1244) target = $region216
        $region215: #{closed_call.16} parent=127 // pred_region
          %1247 = dma.done [#allocation38], 512
        $region216: #{closed_call.16} parent=127 // pred_fallthru
          _
        // Predicated region
        $region217: #{closed_call.16} parent=127 // pred_check
          %p1248 = pneg %p603
        $region218: #{closed_call.16} parent=127 // pred_check_branch
          %1250 = sbr.rel (%p1248) target = $region220
        $region219: #{closed_call.16} parent=127 // pred_region
          %1251 = dma.done [#allocation38], 16
        $region220: #{closed_call.16} parent=127 // pred_fallthru
          _
        // Predicated region
        $region221: #{closed_call.16} parent=127 // pred_check
          %p1252 = pneg %p624
        $region222: #{closed_call.16} parent=127 // pred_check_branch
          %1254 = sbr.rel (%p1252) target = $region224
        $region223: #{closed_call.16} parent=127 // pred_region
          %1255 = dma.done [#allocation41], 16
        $region224: #{closed_call.16} parent=127 // pred_fallthru
          _
        // Predicated region
        $region225: #{closed_call.16} parent=127 // pred_check
          %p1256 = pneg %p645
        $region226: #{closed_call.16} parent=127 // pred_check_branch
          %1258 = sbr.rel (%p1256) target = $region228
        $region227: #{closed_call.16} parent=127 // pred_region
          %1259 = dma.done [#allocation41], 16
        $region228: #{closed_call.16} parent=127 // pred_fallthru
          _
        // Predicated region
        $region229: #{closed_call.16} parent=127 // pred_check
          %p1260 = pneg %p666
        $region230: #{closed_call.16} parent=127 // pred_check_branch
          %1262 = sbr.rel (%p1260) target = $region232
        $region231: #{closed_call.16} parent=127 // pred_region
          %1263 = dma.done [#allocation44], 128
        $region232: #{closed_call.16} parent=127 // pred_fallthru
          _
        // Predicated region
        $region233: #{closed_call.16} parent=127 // pred_check
          %p1264 = pneg %p687
        $region234: #{closed_call.16} parent=127 // pred_check_branch
          %1266 = sbr.rel (%p1264) target = $region236
        $region235: #{closed_call.16} parent=127 // pred_region
          %1267 = dma.done [#allocation44], 16
        $region236: #{closed_call.16} parent=127 // pred_fallthru
          _
        %s1268 = sand.u32 %s108, 1
        %s1269 = scalar_lea.sflag [#allocation5], %s1268
        %s1270 = sand.u32 %s108, 1
        %s1271 = scalar_lea.vmem [#allocation4], %s1270
        %p1272 = pneg %p121
        %p1273 = pneg %p118
        %s1274 = sand.u32 %s100, 1
        %s1275 = scalar_lea.sflag [#allocation8], %s1274
        %s1276 = sand.u32 %s134, 1
        %s1277 = smul.addr %s1276, 4
        %s1278 = scalar_lea.vmem [#allocation7], %s1277
        %p1279 = pneg %p147
        %p1280 = pneg %p144
        %s1281 = sand.u32 %s100, 1
        %s1282 = scalar_lea.sflag [#allocation8], %s1281
        %s1283 = sand.u32 %s160, 1
        %s1284 = smul.addr %s1283, 4
        %s1285 = scalar_lea.vmem [#allocation9], %s1284
        %p1286 = pneg %p173
        %p1287 = pneg %p170
        %s1288 = sand.u32 %s100, 1
        %s1289 = scalar_lea.sflag [#allocation11], %s1288
        %s1290 = sand.u32 %s186, 1
        %s1291 = smul.addr %s1290, 4
        %s1292 = scalar_lea.vmem [#allocation10], %s1291
        %p1293 = pneg %p199
        %p1294 = pneg %p196
        %s1295 = sand.u32 %s100, 1
        %s1296 = scalar_lea.sflag [#allocation11], %s1295
        %s1297 = sand.u32 %s212, 1
        %s1298 = smul.addr %s1297, 4
        %s1299 = scalar_lea.vmem [#allocation12], %s1298
        %p1300 = pneg %p225
        %p1301 = pneg %p222
        %p1302 = pneg %p246
        %p1303 = pneg %p243
        %p1304 = pneg %p267
        %p1305 = pneg %p264
        %p1306 = pneg %p288
        %p1307 = pneg %p285
        %p1308 = pneg %p309
        %p1309 = pneg %p306
        %p1310 = pneg %p330
        %p1311 = pneg %p327
        %p1312 = pneg %p351
        %p1313 = pneg %p348
        %p1314 = pneg %p372
        %p1315 = pneg %p369
        %p1316 = pneg %p393
        %p1317 = pneg %p390
        %p1318 = pneg %p414
        %p1319 = pneg %p411
        %p1320 = pneg %p435
        %p1321 = pneg %p432
        %p1322 = pneg %p456
        %p1323 = pneg %p453
        %p1324 = pneg %p477
        %p1325 = pneg %p474
        %p1326 = pneg %p498
        %p1327 = pneg %p495
        %p1328 = pneg %p519
        %p1329 = pneg %p516
        %p1330 = pneg %p540
        %p1331 = pneg %p537
        %p1332 = pneg %p561
        %p1333 = pneg %p558
        %p1334 = pneg %p582
        %p1335 = pneg %p579
        %p1336 = pneg %p603
        %p1337 = pneg %p600
        %p1338 = pneg %p624
        %p1339 = pneg %p621
        %p1340 = pneg %p645
        %p1341 = pneg %p642
        %p1342 = pneg %p666
        %p1343 = pneg %p663
        %p1344 = pneg %p687
        %p1345 = pneg %p684
        %p1346 = pneg %p713
        %p1347 = pneg %p710
        %s1348 = sand.u32 %s700, 1
        %s1349 = scalar_lea.sflag [#allocation6], %s1348
        %s1350 = sand.u32 %s700, 1
        %s1351 = scalar_lea.vmem [#allocation46], %s1350
        %p1352 = pneg %p739
        %p1353 = pneg %p736
        %s1354 = sand.u32 %s100, 1
        %s1355 = scalar_lea.sflag [#allocation48], %s1354
        %s1356 = sand.u32 %s726, 1
        %s1357 = scalar_lea.vmem [#allocation47], %s1356
        %p1358 = pneg %p765
        %p1359 = pneg %p762
        %s1360 = sand.u32 %s100, 1
        %s1361 = scalar_lea.sflag [#allocation48], %s1360
        %s1362 = sand.u32 %s752, 1
        %s1363 = scalar_lea.vmem [#allocation49], %s1362
        %s1365 = sld [smem:[#allocation3]]
        %v1366 = vld [vmem:[%s1139] sm:$0x1]
        %v1367 = vunpack.c.l.bf16 %v1366
        %v1368 = vld [vmem:[#allocation13] sm:$0x1]
        %v1369 = vld [vmem:[#allocation15] sm:$0x1]
        %vm1370 = vcmask 122880
        %v1371 = vsel %vm1370, %v1367, 0.0
        %1372 = vadd.xlane.f32.xlu0 %v1371
        %v1373 = vpop.xlane.xlu0 %1372
        %v1374 = vrcp.pop 16.0
        %v1375 = vmul.f32 %v1373, %v1374
        %v1376 = vsub.f32 %v1367, %v1375
        %v1377 = vmul.f32 %v1376, %v1376
        %v1378 = vsel %vm1370, %v1377, 0.0
        %1379 = vadd.xlane.f32.xlu0 %v1378
        %v1380 = vpop.xlane.xlu0 %1379
        %v1381 = vmul.f32 %v1380, %v1374
        %v1382 = vadd.f32 %v1381, 1e-05
        %v1383 = vrsqrt.pop %v1382
        %v1384 = vmul.f32 %v1376, %v1383
        %v1385 = vmul.f32 %v1384, %v1368
        %v1386 = vadd.f32 %v1385, %v1369
        %v1387 = vpack.c.bf16 %v1386, %v1386
        %v1388 = vld [vmem:[#allocation16] sm:$0xf]
        %v1389 = vld [vmem:[#allocation16 + $0x4] sm:$0xf]
        %v1390 = vld [vmem:[#allocation18] sm:$0x1]
        %v1393 = vunpack.c.l.b16 %v1388
        %v1394 = vunpack.c.l.b16 %v1389
        %v1395 = vpack.c.b16 %v1394, %v1393
        %vm1397 = vcmask 130048
        %v1399 = vsel %vm1397, %v1387, 0
        %1401 = vmatprep.subr.bf16.mxu0 0
        %1402 = vmatpush1.bf16.msra.mxu0 %v1395
        %1403 = vmatprep.subr.bf16.mxu0 0
        %1404 = vmatpush1.bf16.msra.mxu0 0
        %1405 = vmatprep.subr.bf16.mxu0 0
        %1406 = vmatpush1.bf16.msra.mxu0 0
        %1407 = vmatprep.subr.bf16.mxu0 0
        %1408 = vmatpush1.bf16.msra.mxu0 0
        %1409 = vmatprep.subr.bf16.mxu0 0
        %1410 = vmatpush1.bf16.msra.mxu0 0
        %1411 = vmatprep.subr.bf16.mxu0 0
        %1412 = vmatpush1.bf16.msra.mxu0 0
        %1413 = vmatprep.subr.bf16.mxu0 0
        %1414 = vmatpush1.bf16.msra.mxu0 0
        %1415 = vmatprep.subr.bf16.mxu0 0
        %1416 = vmatpush1.bf16.msra.mxu0 0
        %1417 = vmatprep.subr.bf16.mxu0 0
        %1418 = vmatpush1.bf16.msra.mxu0 0
        %1419 = vmatprep.subr.bf16.mxu0 0
        %1420 = vmatpush1.bf16.msra.mxu0 0
        %1421 = vmatprep.subr.bf16.mxu0 0
        %1422 = vmatpush1.bf16.msra.mxu0 0
        %1423 = vmatprep.subr.bf16.mxu0 0
        %1424 = vmatpush1.bf16.msra.mxu0 0
        %1425 = vmatprep.subr.bf16.mxu0 0
        %1426 = vmatpush1.bf16.msra.mxu0 0
        %1427 = vmatprep.subr.bf16.mxu0 0
        %1428 = vmatpush1.bf16.msra.mxu0 0
        %1429 = vmatprep.subr.bf16.mxu0 0
        %1430 = vmatpush1.bf16.msra.mxu0 0
        %1431 = vmatprep.subr.bf16.mxu0 0
        %1432 = vmatpush1.bf16.msra.mxu0 0
        %1433 = vmatprep.mubr.bf16.mxu0 0
        %1434 = vmatmul.mubr.bf16.gmra.mrb[0].mxu0 %v1399
        %v1435 = vpop.f32.mrb[0].mxu0
        %v1436 = vadd.f32 %v1390, %v1435
        %v1437 = vpop.f32.mrb[0].mxu0
        %v1438 = vpop.f32.mrb[0].mxu0
        %v1439 = vpop.f32.mrb[0].mxu0
        %1440 = vdwg.mxu0
        %v1441 = vpack.c.bf16 %v1436, %v1436
        %v1444 = vunpack.c.l.s4 1966171168
        %v1445 = vunpack.c.0.s8 %v1444
        %v1446 = vlaneseq
        %v1447 = vshrl.u32 %v1446, 7
        %v1448 = vsub.s32 %v1445, %v1447
        %v1449 = vrot.slane %v1441, %v1448
        %v1451 = vunpack.c.l.s4 1966171168
        %v1452 = vunpack.c.0.s8 %v1451
        %v1453 = vlaneseq
        %v1454 = vshrl.u32 %v1453, 7
        %v1455 = vsub.s32 %v1452, %v1454
        %v1456 = vrot.slane %v1449, %v1455
        %1457 = vrot.lane.b32.xlu0 %v1456, 112
        %v1458 = vpop.permute.xlu0 %1457
        %vm1460 = vcmask 122880
        %vm1461 = vsmask.f32 256
        %vm1462 = vmand %vm1460, %vm1461
        %v1463 = vld [vmem:[%s1357] sm:$0x1]
        %v1464 = vsel %vm1462, %v1458, %v1463
        %1465 = vst [vmem:[%s1357] sm:$0x1] %v1464
        %1466 = vrot.lane.b32.xlu0 %v1456, 96
        %v1467 = vpop.permute.xlu0 %1466
        %v1469 = vld [vmem:[%s1363] sm:$0x1]
        %v1470 = vsel %vm1462, %v1467, %v1469
        %1471 = vst [vmem:[%s1363] sm:$0x1] %v1470
        %v1472 = vld [vmem:[%s1148] sm:$0x7]
        %v1473 = vld [vmem:[%s1157] sm:$0x7]
        %v1474 = vlaneseq
        %v1475 = vand.u32 %v1474, 127
        %v1476 = vstv %s1365
        %vm1477 = vcmp.lt.s32.totalorder %v1475, %v1476
        %vm1478 = vcmask 64512
        %v1480 = vsel %vm1478, %v1441, 0
        %v1483 = vsel %vm1478, %v1472, 0
        %1485 = vmatprep.subr.bf16.mxu0 0
        %1486 = vmatpush1.bf16.xpose.msra.mxu0 %v1483
        %1487 = vmatprep.subr.bf16.mxu0 0
        %1488 = vmatpush1.bf16.xpose.msra.mxu0 0
        %1489 = vmatprep.subr.bf16.mxu0 0
        %1490 = vmatpush1.bf16.xpose.msra.mxu0 0
        %1491 = vmatprep.subr.bf16.mxu0 0
        %1492 = vmatpush1.bf16.xpose.msra.mxu0 0
        %1493 = vmatprep.subr.bf16.mxu0 0
        %1494 = vmatpush1.bf16.xpose.msra.mxu0 0
        %1495 = vmatprep.subr.bf16.mxu0 0
        %1496 = vmatpush1.bf16.xpose.msra.mxu0 0
        %1497 = vmatprep.subr.bf16.mxu0 0
        %1498 = vmatpush1.bf16.xpose.msra.mxu0 0
        %1499 = vmatprep.subr.bf16.mxu0 0
        %1500 = vmatpush1.bf16.xpose.msra.mxu0 0
        %1501 = vmatprep.subr.bf16.mxu0 0
        %1502 = vmatpush1.bf16.xpose.msra.mxu0 0
        %1503 = vmatprep.subr.bf16.mxu0 0
        %1504 = vmatpush1.bf16.xpose.msra.mxu0 0
        %1505 = vmatprep.subr.bf16.mxu0 0
        %1506 = vmatpush1.bf16.xpose.msra.mxu0 0
        %1507 = vmatprep.subr.bf16.mxu0 0
        %1508 = vmatpush1.bf16.xpose.msra.mxu0 0
        %1509 = vmatprep.subr.bf16.mxu0 0
        %1510 = vmatpush1.bf16.xpose.msra.mxu0 0
        %1511 = vmatprep.subr.bf16.mxu0 0
        %1512 = vmatpush1.bf16.xpose.msra.mxu0 0
        %1513 = vmatprep.subr.bf16.mxu0 0
        %1514 = vmatpush1.bf16.xpose.msra.mxu0 0
        %1515 = vmatprep.subr.bf16.mxu0 0
        %1516 = vmatpush1.bf16.xpose.msra.mxu0 0
        %1517 = vmatprep.mubr.bf16.mxu0 0
        %1518 = vmatmul.mubr.bf16.gmra.mrb[0].mxu0 %v1480
        %v1519 = vpop.f32.mrb[0].mxu0
        %v1520 = vadd.f32 0.0, %v1519
        %v1521 = vpop.f32.mrb[0].mxu0
        %v1522 = vpop.f32.mrb[0].mxu0
        %v1523 = vpop.f32.mrb[0].mxu0
        %1524 = vdwg.mxu0
        %v1525 = vmul.f32 %v1520, 0.35355338
        %v1526 = vsel %vm1477, %v1525, -1e+09
        %1528 = vrot.lane.b32.xlu0 %v1436, 112
        %v1529 = vpop.permute.xlu0 %1528
        %v1531 = vmul.f32 %v1436, %v1529
        %vm1532 = vcmask 57344
        %v1533 = vsel %vm1532, %v1531, 0.0
        %1534 = vadd.xlane.f32.xlu0 %v1533
        %v1535 = vpop.xlane.xlu0 %1534
        %v1536 = vmul.f32 %v1535, 0.35355338
        %vm1537 = vcmask 48128
        %v1538 = vsel %vm1537, %v1526, %v1536
        %vm1539 = vcmask 49152
        %v1540 = vsel %vm1539, %v1538, -inf
        %1541 = vmax.xlane.f32.xlu0 %v1540
        %v1542 = vpop.xlane.xlu0 %1541
        %v1543 = vsub.f32 %v1538, %v1542
        %v1544 = vmul.f32 %v1543, 1.442695
        %v1545 = vpow.pop %v1544
        %v1546 = vsel %vm1539, %v1545, 0.0
        %1547 = vadd.xlane.f32.xlu0 %v1546
        %v1548 = vpop.xlane.xlu0 %1547
        %v1549 = vrcp.pop %v1548
        %v1550 = vmul.f32 %v1545, %v1549
        %v1551 = vpack.c.bf16 %v1550, %v1550
        %1553 = vset.pattern.permute.xlu0 6
        %1554 = vperm.xlu0 %1553, %v1550
        %v1555 = vpop.permute.xlu0 %1554
        %v1557 = vmul.f32 %v1555, %v1436
        %1559 = vrot.lane.b32.xlu0 %v1557, 96
        %v1560 = vpop.permute.xlu0 %1559
        %v1563 = vsel %vm1537, %v1551, 0
        %vm1565 = vcmask 1042432
        %v1567 = vsel %vm1565, %v1473, 0
        %1569 = vmatprep.subr.bf16.mxu0 0
        %1570 = vmatpush1.bf16.msra.mxu0 %v1567
        %1571 = vmatprep.subr.bf16.mxu0 0
        %1572 = vmatpush1.bf16.msra.mxu0 0
        %1573 = vmatprep.subr.bf16.mxu0 0
        %1574 = vmatpush1.bf16.msra.mxu0 0
        %1575 = vmatprep.subr.bf16.mxu0 0
        %1576 = vmatpush1.bf16.msra.mxu0 0
        %1577 = vmatprep.subr.bf16.mxu0 0
        %1578 = vmatpush1.bf16.msra.mxu0 0
        %1579 = vmatprep.subr.bf16.mxu0 0
        %1580 = vmatpush1.bf16.msra.mxu0 0
        %1581 = vmatprep.subr.bf16.mxu0 0
        %1582 = vmatpush1.bf16.msra.mxu0 0
        %1583 = vmatprep.subr.bf16.mxu0 0
        %1584 = vmatpush1.bf16.msra.mxu0 0
        %1585 = vmatprep.subr.bf16.mxu0 0
        %1586 = vmatpush1.bf16.msra.mxu0 0
        %1587 = vmatprep.subr.bf16.mxu0 0
        %1588 = vmatpush1.bf16.msra.mxu0 0
        %1589 = vmatprep.subr.bf16.mxu0 0
        %1590 = vmatpush1.bf16.msra.mxu0 0
        %1591 = vmatprep.subr.bf16.mxu0 0
        %1592 = vmatpush1.bf16.msra.mxu0 0
        %1593 = vmatprep.subr.bf16.mxu0 0
        %1594 = vmatpush1.bf16.msra.mxu0 0
        %1595 = vmatprep.subr.bf16.mxu0 0
        %1596 = vmatpush1.bf16.msra.mxu0 0
        %1597 = vmatprep.subr.bf16.mxu0 0
        %1598 = vmatpush1.bf16.msra.mxu0 0
        %1599 = vmatprep.subr.bf16.mxu0 0
        %1600 = vmatpush1.bf16.msra.mxu0 0
        %1601 = vmatprep.mubr.bf16.mxu0 0
        %1602 = vmatmul.mubr.bf16.gmra.mrb[0].mxu0 %v1563
        %v1603 = vpop.f32.mrb[0].mxu0
        %v1604 = vadd.f32 %v1560, %v1603
        %v1605 = vpop.f32.mrb[0].mxu0
        %v1606 = vpop.f32.mrb[0].mxu0
        %v1607 = vpop.f32.mrb[0].mxu0
        %1608 = vdwg.mxu0
        %1609 = vrot.lane.b32.xlu0 %v1441, 120
        %v1610 = vpop.permute.xlu0 %1609
        %v1612 = vunpack.c.l.b16 %v1472
        %v1613 = vpack.c.b16 %v1612, %v1612
        %1614 = vrot.lane.b32.xlu0 %v1613, 120
        %v1615 = vpop.permute.xlu0 %1614
        %v1617 = vsel %vm1478, %v1610, 0
        %v1620 = vsel %vm1478, %v1615, 0
        %1622 = vmatprep.subr.bf16.mxu0 0
        %1623 = vmatpush1.bf16.xpose.msra.mxu0 %v1620
        %1624 = vmatprep.subr.bf16.mxu0 0
        %1625 = vmatpush1.bf16.xpose.msra.mxu0 0
        %1626 = vmatprep.subr.bf16.mxu0 0
        %1627 = vmatpush1.bf16.xpose.msra.mxu0 0
        %1628 = vmatprep.subr.bf16.mxu0 0
        %1629 = vmatpush1.bf16.xpose.msra.mxu0 0
        %1630 = vmatprep.subr.bf16.mxu0 0
        %1631 = vmatpush1.bf16.xpose.msra.mxu0 0
        %1632 = vmatprep.subr.bf16.mxu0 0
        %1633 = vmatpush1.bf16.xpose.msra.mxu0 0
        %1634 = vmatprep.subr.bf16.mxu0 0
        %1635 = vmatpush1.bf16.xpose.msra.mxu0 0
        %1636 = vmatprep.subr.bf16.mxu0 0
        %1637 = vmatpush1.bf16.xpose.msra.mxu0 0
        %1638 = vmatprep.subr.bf16.mxu0 0
        %1639 = vmatpush1.bf16.xpose.msra.mxu0 0
        %1640 = vmatprep.subr.bf16.mxu0 0
        %1641 = vmatpush1.bf16.xpose.msra.mxu0 0
        %1642 = vmatprep.subr.bf16.mxu0 0
        %1643 = vmatpush1.bf16.xpose.msra.mxu0 0
        %1644 = vmatprep.subr.bf16.mxu0 0
        %1645 = vmatpush1.bf16.xpose.msra.mxu0 0
        %1646 = vmatprep.subr.bf16.mxu0 0
        %1647 = vmatpush1.bf16.xpose.msra.mxu0 0
        %1648 = vmatprep.subr.bf16.mxu0 0
        %1649 = vmatpush1.bf16.xpose.msra.mxu0 0
        %1650 = vmatprep.subr.bf16.mxu0 0
        %1651 = vmatpush1.bf16.xpose.msra.mxu0 0
        %1652 = vmatprep.subr.bf16.mxu0 0
        %1653 = vmatpush1.bf16.xpose.msra.mxu0 0
        %1654 = vmatprep.mubr.bf16.mxu0 0
        %1655 = vmatmul.mubr.bf16.gmra.mrb[0].mxu0 %v1617
        %v1656 = vpop.f32.mrb[0].mxu0
        %v1657 = vadd.f32 0.0, %v1656
        %v1658 = vpop.f32.mrb[0].mxu0
        %v1659 = vpop.f32.mrb[0].mxu0
        %v1660 = vpop.f32.mrb[0].mxu0
        %1661 = vdwg.mxu0
        %v1662 = vmul.f32 %v1657, 0.35355338
        %v1663 = vsel %vm1477, %v1662, -1e+09
        %1665 = vrot.lane.b32.xlu0 %v1531, 120
        %v1666 = vpop.permute.xlu0 %1665
        %v1668 = vsel %vm1532, %v1666, 0.0
        %1669 = vadd.xlane.f32.xlu0 %v1668
        %v1670 = vpop.xlane.xlu0 %1669
        %v1671 = vmul.f32 %v1670, 0.35355338
        %v1672 = vsel %vm1537, %v1663, %v1671
        %v1673 = vsel %vm1539, %v1672, -inf
        %1674 = vmax.xlane.f32.xlu0 %v1673
        %v1675 = vpop.xlane.xlu0 %1674
        %v1676 = vsub.f32 %v1672, %v1675
        %v1677 = vmul.f32 %v1676, 1.442695
        %v1678 = vpow.pop %v1677
        %v1679 = vsel %vm1539, %v1678, 0.0
        %1680 = vadd.xlane.f32.xlu0 %v1679
        %v1681 = vpop.xlane.xlu0 %1680
        %v1682 = vrcp.pop %v1681
        %v1683 = vmul.f32 %v1678, %v1682
        %v1684 = vpack.c.bf16 %v1683, %v1683
        %1686 = vset.pattern.permute.xlu0 6
        %1687 = vperm.xlu0 %1686, %v1683
        %v1688 = vpop.permute.xlu0 %1687
        %v1690 = vmul.f32 %v1688, %v1436
        %v1692 = vunpack.c.l.b16 %v1473
        %v1693 = vpack.c.b16 %v1692, %v1692
        %1694 = vrot.lane.b32.xlu0 %v1693, 120
        %v1695 = vpop.permute.xlu0 %1694
        %1697 = vrot.lane.b32.xlu0 %v1690, 88
        %v1698 = vpop.permute.xlu0 %1697
        %v1701 = vsel %vm1537, %v1684, 0
        %v1704 = vsel %vm1565, %v1695, 0
        %1706 = vmatprep.subr.bf16.mxu0 0
        %1707 = vmatpush1.bf16.msra.mxu0 %v1704
        %1708 = vmatprep.subr.bf16.mxu0 0
        %1709 = vmatpush1.bf16.msra.mxu0 0
        %1710 = vmatprep.subr.bf16.mxu0 0
        %1711 = vmatpush1.bf16.msra.mxu0 0
        %1712 = vmatprep.subr.bf16.mxu0 0
        %1713 = vmatpush1.bf16.msra.mxu0 0
        %1714 = vmatprep.subr.bf16.mxu0 0
        %1715 = vmatpush1.bf16.msra.mxu0 0
        %1716 = vmatprep.subr.bf16.mxu0 0
        %1717 = vmatpush1.bf16.msra.mxu0 0
        %1718 = vmatprep.subr.bf16.mxu0 0
        %1719 = vmatpush1.bf16.msra.mxu0 0
        %1720 = vmatprep.subr.bf16.mxu0 0
        %1721 = vmatpush1.bf16.msra.mxu0 0
        %1722 = vmatprep.subr.bf16.mxu0 0
        %1723 = vmatpush1.bf16.msra.mxu0 0
        %1724 = vmatprep.subr.bf16.mxu0 0
        %1725 = vmatpush1.bf16.msra.mxu0 0
        %1726 = vmatprep.subr.bf16.mxu0 0
        %1727 = vmatpush1.bf16.msra.mxu0 0
        %1728 = vmatprep.subr.bf16.mxu0 0
        %1729 = vmatpush1.bf16.msra.mxu0 0
        %1730 = vmatprep.subr.bf16.mxu0 0
        %1731 = vmatpush1.bf16.msra.mxu0 0
        %1732 = vmatprep.subr.bf16.mxu0 0
        %1733 = vmatpush1.bf16.msra.mxu0 0
        %1734 = vmatprep.subr.bf16.mxu0 0
        %1735 = vmatpush1.bf16.msra.mxu0 0
        %1736 = vmatprep.subr.bf16.mxu0 0
        %1737 = vmatpush1.bf16.msra.mxu0 0
        %1738 = vmatprep.mubr.bf16.mxu0 0
        %1739 = vmatmul.mubr.bf16.gmra.mrb[0].mxu0 %v1701
        %v1740 = vpop.f32.mrb[0].mxu0
        %v1741 = vadd.f32 %v1698, %v1740
        %v1742 = vpop.f32.mrb[0].mxu0
        %v1743 = vpop.f32.mrb[0].mxu0
        %v1744 = vpop.f32.mrb[0].mxu0
        %1745 = vdwg.mxu0
        %1747 = vrot.lane.b32.xlu0 %v1741, 8
        %v1748 = vpop.permute.xlu0 %1747
        %v1750 = vsel %vm1478, %v1604, %v1748
        %v1751 = vpack.c.bf16 %v1750, %v1750
        %v1752 = vld [vmem:[#allocation19] sm:$0xf]
        %v1753 = vld [vmem:[#allocation19 + $0x4] sm:$0xf]
        %v1756 = vunpack.c.l.b16 %v1752
        %v1757 = vunpack.c.l.b16 %v1753
        %v1758 = vpack.c.b16 %v1757, %v1756
        %v1761 = vsel %vm1397, %v1751, 0
        %1763 = vmatprep.subr.bf16.mxu0 0
        %1764 = vmatpush1.bf16.msra.mxu0 %v1758
        %1765 = vmatprep.subr.bf16.mxu0 0
        %1766 = vmatpush1.bf16.msra.mxu0 0
        %1767 = vmatprep.subr.bf16.mxu0 0
        %1768 = vmatpush1.bf16.msra.mxu0 0
        %1769 = vmatprep.subr.bf16.mxu0 0
        %1770 = vmatpush1.bf16.msra.mxu0 0
        %1771 = vmatprep.subr.bf16.mxu0 0
        %1772 = vmatpush1.bf16.msra.mxu0 0
        %1773 = vmatprep.subr.bf16.mxu0 0
        %1774 = vmatpush1.bf16.msra.mxu0 0
        %1775 = vmatprep.subr.bf16.mxu0 0
        %1776 = vmatpush1.bf16.msra.mxu0 0
        %1777 = vmatprep.subr.bf16.mxu0 0
        %1778 = vmatpush1.bf16.msra.mxu0 0
        %1779 = vmatprep.subr.bf16.mxu0 0
        %1780 = vmatpush1.bf16.msra.mxu0 0
        %1781 = vmatprep.subr.bf16.mxu0 0
        %1782 = vmatpush1.bf16.msra.mxu0 0
        %1783 = vmatprep.subr.bf16.mxu0 0
        %1784 = vmatpush1.bf16.msra.mxu0 0
        %1785 = vmatprep.subr.bf16.mxu0 0
        %1786 = vmatpush1.bf16.msra.mxu0 0
        %1787 = vmatprep.subr.bf16.mxu0 0
        %1788 = vmatpush1.bf16.msra.mxu0 0
        %1789 = vmatprep.subr.bf16.mxu0 0
        %1790 = vmatpush1.bf16.msra.mxu0 0
        %1791 = vmatprep.subr.bf16.mxu0 0
        %1792 = vmatpush1.bf16.msra.mxu0 0
        %1793 = vmatprep.subr.bf16.mxu0 0
        %1794 = vmatpush1.bf16.msra.mxu0 0
        %1795 = vmatprep.mubr.bf16.mxu0 0
        %1796 = vmatmul.mubr.bf16.gmra.mrb[0].mxu0 %v1761
        %v1797 = vpop.f32.mrb[0].mxu0
        %v1798 = vadd.f32 0.0, %v1797
        %v1799 = vpop.f32.mrb[0].mxu0
        %v1800 = vpop.f32.mrb[0].mxu0
        %v1801 = vpop.f32.mrb[0].mxu0
        %1802 = vdwg.mxu0
        %v1803 = vadd.f32 %v1367, %v1798
        %v1804 = vld [vmem:[#allocation21] sm:$0x1]
        %v1805 = vadd.f32 %v1803, %v1804
        %v1806 = vld [vmem:[#allocation22] sm:$0x1]
        %v1807 = vld [vmem:[#allocation24] sm:$0x1]
        %v1808 = vsel %vm1370, %v1805, 0.0
        %1809 = vadd.xlane.f32.xlu0 %v1808
        %v1810 = vpop.xlane.xlu0 %1809
        %v1811 = vmul.f32 %v1810, %v1374
        %v1812 = vsub.f32 %v1805, %v1811
        %v1813 = vmul.f32 %v1812, %v1812
        %v1814 = vsel %vm1370, %v1813, 0.0
        %1815 = vadd.xlane.f32.xlu0 %v1814
        %v1816 = vpop.xlane.xlu0 %1815
        %v1817 = vmul.f32 %v1816, %v1374
        %v1818 = vadd.f32 %v1817, 1e-05
        %v1819 = vrsqrt.pop %v1818
        %v1820 = vmul.f32 %v1812, %v1819
        %v1821 = vmul.f32 %v1820, %v1806
        %v1822 = vadd.f32 %v1821, %v1807
        %v1823 = vpack.c.bf16 %v1822, %v1822
        %v1824 = vld [vmem:[#allocation25] sm:$0xf]
        %v1825 = vld [vmem:[#allocation25 + $0x4] sm:$0xf]
        %v1826 = vld [vmem:[#allocation27] sm:$0x1]
        %v1829 = vunpack.c.l.b16 %v1824
        %v1830 = vunpack.c.l.b16 %v1825
        %v1831 = vpack.c.b16 %v1830, %v1829
        %v1834 = vsel %vm1397, %v1823, 0
        %1836 = vmatprep.subr.bf16.mxu0 0
        %1837 = vmatpush1.bf16.msra.mxu0 %v1831
        %1838 = vmatprep.subr.bf16.mxu0 0
        %1839 = vmatpush1.bf16.msra.mxu0 0
        %1840 = vmatprep.subr.bf16.mxu0 0
        %1841 = vmatpush1.bf16.msra.mxu0 0
        %1842 = vmatprep.subr.bf16.mxu0 0
        %1843 = vmatpush1.bf16.msra.mxu0 0
        %1844 = vmatprep.subr.bf16.mxu0 0
        %1845 = vmatpush1.bf16.msra.mxu0 0
        %1846 = vmatprep.subr.bf16.mxu0 0
        %1847 = vmatpush1.bf16.msra.mxu0 0
        %1848 = vmatprep.subr.bf16.mxu0 0
        %1849 = vmatpush1.bf16.msra.mxu0 0
        %1850 = vmatprep.subr.bf16.mxu0 0
        %1851 = vmatpush1.bf16.msra.mxu0 0
        %1852 = vmatprep.subr.bf16.mxu0 0
        %1853 = vmatpush1.bf16.msra.mxu0 0
        %1854 = vmatprep.subr.bf16.mxu0 0
        %1855 = vmatpush1.bf16.msra.mxu0 0
        %1856 = vmatprep.subr.bf16.mxu0 0
        %1857 = vmatpush1.bf16.msra.mxu0 0
        %1858 = vmatprep.subr.bf16.mxu0 0
        %1859 = vmatpush1.bf16.msra.mxu0 0
        %1860 = vmatprep.subr.bf16.mxu0 0
        %1861 = vmatpush1.bf16.msra.mxu0 0
        %1862 = vmatprep.subr.bf16.mxu0 0
        %1863 = vmatpush1.bf16.msra.mxu0 0
        %1864 = vmatprep.subr.bf16.mxu0 0
        %1865 = vmatpush1.bf16.msra.mxu0 0
        %1866 = vmatprep.subr.bf16.mxu0 0
        %1867 = vmatpush1.bf16.msra.mxu0 0
        %1868 = vmatprep.mubr.bf16.mxu0 0
        %1869 = vmatmul.mubr.bf16.gmra.mrb[0].mxu0 %v1834
        %v1870 = vpop.f32.mrb[0].mxu0
        %v1871 = vadd.f32 %v1826, %v1870
        %v1872 = vpop.f32.mrb[0].mxu0
        %v1873 = vpop.f32.mrb[0].mxu0
        %v1874 = vpop.f32.mrb[0].mxu0
        %1875 = vdwg.mxu0
        %v1876 = vld [vmem:[%s1166] sm:$0xf]
        %v1877 = vld [vmem:[%s1175] sm:$0xf]
        %v1878 = vpack.c.bf16 %v1871, %v1871
        %v1880 = vsel %vm1478, %v1878, 0
        %v1883 = vsel %vm1478, %v1876, 0
        %1885 = vmatprep.subr.bf16.mxu0 0
        %1886 = vmatpush1.bf16.xpose.msra.mxu0 %v1883
        %1887 = vmatprep.subr.bf16.mxu0 0
        %1888 = vmatpush1.bf16.xpose.msra.mxu0 0
        %1889 = vmatprep.subr.bf16.mxu0 0
        %1890 = vmatpush1.bf16.xpose.msra.mxu0 0
        %1891 = vmatprep.subr.bf16.mxu0 0
        %1892 = vmatpush1.bf16.xpose.msra.mxu0 0
        %1893 = vmatprep.subr.bf16.mxu0 0
        %1894 = vmatpush1.bf16.xpose.msra.mxu0 0
        %1895 = vmatprep.subr.bf16.mxu0 0
        %1896 = vmatpush1.bf16.xpose.msra.mxu0 0
        %1897 = vmatprep.subr.bf16.mxu0 0
        %1898 = vmatpush1.bf16.xpose.msra.mxu0 0
        %1899 = vmatprep.subr.bf16.mxu0 0
        %1900 = vmatpush1.bf16.xpose.msra.mxu0 0
        %1901 = vmatprep.subr.bf16.mxu0 0
        %1902 = vmatpush1.bf16.xpose.msra.mxu0 0
        %1903 = vmatprep.subr.bf16.mxu0 0
        %1904 = vmatpush1.bf16.xpose.msra.mxu0 0
        %1905 = vmatprep.subr.bf16.mxu0 0
        %1906 = vmatpush1.bf16.xpose.msra.mxu0 0
        %1907 = vmatprep.subr.bf16.mxu0 0
        %1908 = vmatpush1.bf16.xpose.msra.mxu0 0
        %1909 = vmatprep.subr.bf16.mxu0 0
        %1910 = vmatpush1.bf16.xpose.msra.mxu0 0
        %1911 = vmatprep.subr.bf16.mxu0 0
        %1912 = vmatpush1.bf16.xpose.msra.mxu0 0
        %1913 = vmatprep.subr.bf16.mxu0 0
        %1914 = vmatpush1.bf16.xpose.msra.mxu0 0
        %1915 = vmatprep.subr.bf16.mxu0 0
        %1916 = vmatpush1.bf16.xpose.msra.mxu0 0
        %1917 = vmatprep.mubr.bf16.mxu0 0
        %1918 = vmatmul.mubr.bf16.gmra.mrb[0].mxu0 %v1880
        %v1919 = vpop.f32.mrb[0].mxu0
        %v1920 = vadd.f32 0.0, %v1919
        %v1921 = vpop.f32.mrb[0].mxu0
        %v1922 = vpop.f32.mrb[0].mxu0
        %v1923 = vpop.f32.mrb[0].mxu0
        %1924 = vdwg.mxu0
        %v1925 = vmul.f32 %v1920, 0.35355338
        %v1926 = vsel %vm1532, %v1925, -inf
        %1927 = vmax.xlane.f32.xlu0 %v1926
        %v1928 = vpop.xlane.xlu0 %1927
        %v1929 = vsub.f32 %v1925, %v1928
        %v1930 = vmul.f32 %v1929, 1.442695
        %v1931 = vpow.pop %v1930
        %v1932 = vsel %vm1532, %v1931, 0.0
        %1933 = vadd.xlane.f32.xlu0 %v1932
        %v1934 = vpop.xlane.xlu0 %1933
        %v1935 = vrcp.pop %v1934
        %v1936 = vmul.f32 %v1931, %v1935
        %v1937 = vpack.c.bf16 %v1936, %v1936
        %v1939 = vsel %vm1478, %v1937, 0
        %vm1941 = vcmask 1043456
        %v1943 = vsel %vm1941, %v1877, 0
        %1945 = vmatprep.subr.bf16.mxu0 0
        %1946 = vmatpush1.bf16.msra.mxu0 %v1943
        %1947 = vmatprep.subr.bf16.mxu0 0
        %1948 = vmatpush1.bf16.msra.mxu0 0
        %1949 = vmatprep.subr.bf16.mxu0 0
        %1950 = vmatpush1.bf16.msra.mxu0 0
        %1951 = vmatprep.subr.bf16.mxu0 0
        %1952 = vmatpush1.bf16.msra.mxu0 0
        %1953 = vmatprep.subr.bf16.mxu0 0
        %1954 = vmatpush1.bf16.msra.mxu0 0
        %1955 = vmatprep.subr.bf16.mxu0 0
        %1956 = vmatpush1.bf16.msra.mxu0 0
        %1957 = vmatprep.subr.bf16.mxu0 0
        %1958 = vmatpush1.bf16.msra.mxu0 0
        %1959 = vmatprep.subr.bf16.mxu0 0
        %1960 = vmatpush1.bf16.msra.mxu0 0
        %1961 = vmatprep.subr.bf16.mxu0 0
        %1962 = vmatpush1.bf16.msra.mxu0 0
        %1963 = vmatprep.subr.bf16.mxu0 0
        %1964 = vmatpush1.bf16.msra.mxu0 0
        %1965 = vmatprep.subr.bf16.mxu0 0
        %1966 = vmatpush1.bf16.msra.mxu0 0
        %1967 = vmatprep.subr.bf16.mxu0 0
        %1968 = vmatpush1.bf16.msra.mxu0 0
        %1969 = vmatprep.subr.bf16.mxu0 0
        %1970 = vmatpush1.bf16.msra.mxu0 0
        %1971 = vmatprep.subr.bf16.mxu0 0
        %1972 = vmatpush1.bf16.msra.mxu0 0
        %1973 = vmatprep.subr.bf16.mxu0 0
        %1974 = vmatpush1.bf16.msra.mxu0 0
        %1975 = vmatprep.subr.bf16.mxu0 0
        %1976 = vmatpush1.bf16.msra.mxu0 0
        %1977 = vmatprep.mubr.bf16.mxu0 0
        %1978 = vmatmul.mubr.bf16.gmra.mrb[0].mxu0 %v1939
        %v1979 = vpop.f32.mrb[0].mxu0
        %v1980 = vadd.f32 0.0, %v1979
        %v1981 = vpop.f32.mrb[0].mxu0
        %v1982 = vpop.f32.mrb[0].mxu0
        %v1983 = vpop.f32.mrb[0].mxu0
        %1984 = vdwg.mxu0
        %1986 = vrot.lane.b32.xlu0 %v1878, 120
        %v1987 = vpop.permute.xlu0 %1986
        %v1989 = vunpack.c.l.b16 %v1876
        %v1990 = vpack.c.b16 %v1989, %v1989
        %1991 = vrot.lane.b32.xlu0 %v1990, 120
        %v1992 = vpop.permute.xlu0 %1991
        %v1994 = vsel %vm1478, %v1987, 0
        %v1997 = vsel %vm1478, %v1992, 0
        %1999 = vmatprep.subr.bf16.mxu0 0
        %2000 = vmatpush1.bf16.xpose.msra.mxu0 %v1997
        %2001 = vmatprep.subr.bf16.mxu0 0
        %2002 = vmatpush1.bf16.xpose.msra.mxu0 0
        %2003 = vmatprep.subr.bf16.mxu0 0
        %2004 = vmatpush1.bf16.xpose.msra.mxu0 0
        %2005 = vmatprep.subr.bf16.mxu0 0
        %2006 = vmatpush1.bf16.xpose.msra.mxu0 0
        %2007 = vmatprep.subr.bf16.mxu0 0
        %2008 = vmatpush1.bf16.xpose.msra.mxu0 0
        %2009 = vmatprep.subr.bf16.mxu0 0
        %2010 = vmatpush1.bf16.xpose.msra.mxu0 0
        %2011 = vmatprep.subr.bf16.mxu0 0
        %2012 = vmatpush1.bf16.xpose.msra.mxu0 0
        %2013 = vmatprep.subr.bf16.mxu0 0
        %2014 = vmatpush1.bf16.xpose.msra.mxu0 0
        %2015 = vmatprep.subr.bf16.mxu0 0
        %2016 = vmatpush1.bf16.xpose.msra.mxu0 0
        %2017 = vmatprep.subr.bf16.mxu0 0
        %2018 = vmatpush1.bf16.xpose.msra.mxu0 0
        %2019 = vmatprep.subr.bf16.mxu0 0
        %2020 = vmatpush1.bf16.xpose.msra.mxu0 0
        %2021 = vmatprep.subr.bf16.mxu0 0
        %2022 = vmatpush1.bf16.xpose.msra.mxu0 0
        %2023 = vmatprep.subr.bf16.mxu0 0
        %2024 = vmatpush1.bf16.xpose.msra.mxu0 0
        %2025 = vmatprep.subr.bf16.mxu0 0
        %2026 = vmatpush1.bf16.xpose.msra.mxu0 0
        %2027 = vmatprep.subr.bf16.mxu0 0
        %2028 = vmatpush1.bf16.xpose.msra.mxu0 0
        %2029 = vmatprep.subr.bf16.mxu0 0
        %2030 = vmatpush1.bf16.xpose.msra.mxu0 0
        %2031 = vmatprep.mubr.bf16.mxu0 0
        %2032 = vmatmul.mubr.bf16.gmra.mrb[0].mxu0 %v1994
        %v2033 = vpop.f32.mrb[0].mxu0
        %v2034 = vadd.f32 0.0, %v2033
        %v2035 = vpop.f32.mrb[0].mxu0
        %v2036 = vpop.f32.mrb[0].mxu0
        %v2037 = vpop.f32.mrb[0].mxu0
        %2038 = vdwg.mxu0
        %v2039 = vmul.f32 %v2034, 0.35355338
        %v2040 = vsel %vm1532, %v2039, -inf
        %2041 = vmax.xlane.f32.xlu0 %v2040
        %v2042 = vpop.xlane.xlu0 %2041
        %v2043 = vsub.f32 %v2039, %v2042
        %v2044 = vmul.f32 %v2043, 1.442695
        %v2045 = vpow.pop %v2044
        %v2046 = vsel %vm1532, %v2045, 0.0
        %2047 = vadd.xlane.f32.xlu0 %v2046
        %v2048 = vpop.xlane.xlu0 %2047
        %v2049 = vrcp.pop %v2048
        %v2050 = vmul.f32 %v2045, %v2049
        %v2051 = vpack.c.bf16 %v2050, %v2050
        %v2053 = vunpack.c.l.b16 %v1877
        %v2054 = vpack.c.b16 %v2053, %v2053
        %2055 = vrot.lane.b32.xlu0 %v2054, 120
        %v2056 = vpop.permute.xlu0 %2055
        %v2058 = vsel %vm1478, %v2051, 0
        %v2061 = vsel %vm1941, %v2056, 0
        %2063 = vmatprep.subr.bf16.mxu0 0
        %2064 = vmatpush1.bf16.msra.mxu0 %v2061
        %2065 = vmatprep.subr.bf16.mxu0 0
        %2066 = vmatpush1.bf16.msra.mxu0 0
        %2067 = vmatprep.subr.bf16.mxu0 0
        %2068 = vmatpush1.bf16.msra.mxu0 0
        %2069 = vmatprep.subr.bf16.mxu0 0
        %2070 = vmatpush1.bf16.msra.mxu0 0
        %2071 = vmatprep.subr.bf16.mxu0 0
        %2072 = vmatpush1.bf16.msra.mxu0 0
        %2073 = vmatprep.subr.bf16.mxu0 0
        %2074 = vmatpush1.bf16.msra.mxu0 0
        %2075 = vmatprep.subr.bf16.mxu0 0
        %2076 = vmatpush1.bf16.msra.mxu0 0
        %2077 = vmatprep.subr.bf16.mxu0 0
        %2078 = vmatpush1.bf16.msra.mxu0 0
        %2079 = vmatprep.subr.bf16.mxu0 0
        %2080 = vmatpush1.bf16.msra.mxu0 0
        %2081 = vmatprep.subr.bf16.mxu0 0
        %2082 = vmatpush1.bf16.msra.mxu0 0
        %2083 = vmatprep.subr.bf16.mxu0 0
        %2084 = vmatpush1.bf16.msra.mxu0 0
        %2085 = vmatprep.subr.bf16.mxu0 0
        %2086 = vmatpush1.bf16.msra.mxu0 0
        %2087 = vmatprep.subr.bf16.mxu0 0
        %2088 = vmatpush1.bf16.msra.mxu0 0
        %2089 = vmatprep.subr.bf16.mxu0 0
        %2090 = vmatpush1.bf16.msra.mxu0 0
        %2091 = vmatprep.subr.bf16.mxu0 0
        %2092 = vmatpush1.bf16.msra.mxu0 0
        %2093 = vmatprep.subr.bf16.mxu0 0
        %2094 = vmatpush1.bf16.msra.mxu0 0
        %2095 = vmatprep.mubr.bf16.mxu0 0
        %2096 = vmatmul.mubr.bf16.gmra.mrb[0].mxu0 %v2058
        %v2097 = vpop.f32.mrb[0].mxu0
        %v2098 = vadd.f32 0.0, %v2097
        %v2099 = vpop.f32.mrb[0].mxu0
        %v2100 = vpop.f32.mrb[0].mxu0
        %v2101 = vpop.f32.mrb[0].mxu0
        %2102 = vdwg.mxu0
        %2104 = vrot.lane.b32.xlu0 %v2098, 8
        %v2105 = vpop.permute.xlu0 %2104
        %v2107 = vsel %vm1478, %v1980, %v2105
        %v2108 = vpack.c.bf16 %v2107, %v2107
        %v2109 = vld [vmem:[#allocation28] sm:$0xf]
        %v2110 = vld [vmem:[#allocation28 + $0x4] sm:$0xf]
        %v2113 = vunpack.c.l.b16 %v2109
        %v2114 = vunpack.c.l.b16 %v2110
        %v2115 = vpack.c.b16 %v2114, %v2113
        %v2118 = vsel %vm1397, %v2108, 0
        %2120 = vmatprep.subr.bf16.mxu0 0
        %2121 = vmatpush1.bf16.msra.mxu0 %v2115
        %2122 = vmatprep.subr.bf16.mxu0 0
        %2123 = vmatpush1.bf16.msra.mxu0 0
        %2124 = vmatprep.subr.bf16.mxu0 0
        %2125 = vmatpush1.bf16.msra.mxu0 0
        %2126 = vmatprep.subr.bf16.mxu0 0
        %2127 = vmatpush1.bf16.msra.mxu0 0
        %2128 = vmatprep.subr.bf16.mxu0 0
        %2129 = vmatpush1.bf16.msra.mxu0 0
        %2130 = vmatprep.subr.bf16.mxu0 0
        %2131 = vmatpush1.bf16.msra.mxu0 0
        %2132 = vmatprep.subr.bf16.mxu0 0
        %2133 = vmatpush1.bf16.msra.mxu0 0
        %2134 = vmatprep.subr.bf16.mxu0 0
        %2135 = vmatpush1.bf16.msra.mxu0 0
        %2136 = vmatprep.subr.bf16.mxu0 0
        %2137 = vmatpush1.bf16.msra.mxu0 0
        %2138 = vmatprep.subr.bf16.mxu0 0
        %2139 = vmatpush1.bf16.msra.mxu0 0
        %2140 = vmatprep.subr.bf16.mxu0 0
        %2141 = vmatpush1.bf16.msra.mxu0 0
        %2142 = vmatprep.subr.bf16.mxu0 0
        %2143 = vmatpush1.bf16.msra.mxu0 0
        %2144 = vmatprep.subr.bf16.mxu0 0
        %2145 = vmatpush1.bf16.msra.mxu0 0
        %2146 = vmatprep.subr.bf16.mxu0 0
        %2147 = vmatpush1.bf16.msra.mxu0 0
        %2148 = vmatprep.subr.bf16.mxu0 0
        %2149 = vmatpush1.bf16.msra.mxu0 0
        %2150 = vmatprep.subr.bf16.mxu0 0
        %2151 = vmatpush1.bf16.msra.mxu0 0
        %2152 = vmatprep.mubr.bf16.mxu0 0
        %2153 = vmatmul.mubr.bf16.gmra.mrb[0].mxu0 %v2118
        %v2154 = vpop.f32.mrb[0].mxu0
        %v2155 = vadd.f32 0.0, %v2154
        %v2156 = vpop.f32.mrb[0].mxu0
        %v2157 = vpop.f32.mrb[0].mxu0
        %v2158 = vpop.f32.mrb[0].mxu0
        %2159 = vdwg.mxu0
        %v2160 = vadd.f32 %v1805, %v2155
        %v2161 = vld [vmem:[#allocation30] sm:$0x1]
        %v2162 = vadd.f32 %v2160, %v2161
        %v2163 = vld [vmem:[#allocation31] sm:$0x1]
        %v2164 = vld [vmem:[#allocation33] sm:$0x1]
        %v2165 = vsel %vm1370, %v2162, 0.0
        %2166 = vadd.xlane.f32.xlu0 %v2165
        %v2167 = vpop.xlane.xlu0 %2166
        %v2168 = vmul.f32 %v2167, %v1374
        %v2169 = vsub.f32 %v2162, %v2168
        %v2170 = vmul.f32 %v2169, %v2169
        %v2171 = vsel %vm1370, %v2170, 0.0
        %2172 = vadd.xlane.f32.xlu0 %v2171
        %v2173 = vpop.xlane.xlu0 %2172
        %v2174 = vmul.f32 %v2173, %v1374
        %v2175 = vadd.f32 %v2174, 1e-05
        %v2176 = vrsqrt.pop %v2175
        %v2177 = vmul.f32 %v2169, %v2176
        %v2178 = vmul.f32 %v2177, %v2163
        %v2179 = vadd.f32 %v2178, %v2164
        %v2180 = vpack.c.bf16 %v2179, %v2179
        %v2181 = vld [vmem:[#allocation34] sm:$0xf]
        %v2182 = vld [vmem:[#allocation34 + $0x4] sm:$0xf]
        %v2183 = vld [vmem:[#allocation36] sm:$0x1]
        %v2186 = vunpack.c.l.b16 %v2181
        %v2187 = vunpack.c.l.b16 %v2182
        %v2188 = vpack.c.b16 %v2187, %v2186
        %v2191 = vsel %vm1397, %v2180, 0
        %2193 = vmatprep.subr.bf16.mxu0 0
        %2194 = vmatpush1.bf16.msra.mxu0 %v2188
        %2195 = vmatprep.subr.bf16.mxu0 0
        %2196 = vmatpush1.bf16.msra.mxu0 0
        %2197 = vmatprep.subr.bf16.mxu0 0
        %2198 = vmatpush1.bf16.msra.mxu0 0
        %2199 = vmatprep.subr.bf16.mxu0 0
        %2200 = vmatpush1.bf16.msra.mxu0 0
        %2201 = vmatprep.subr.bf16.mxu0 0
        %2202 = vmatpush1.bf16.msra.mxu0 0
        %2203 = vmatprep.subr.bf16.mxu0 0
        %2204 = vmatpush1.bf16.msra.mxu0 0
        %2205 = vmatprep.subr.bf16.mxu0 0
        %2206 = vmatpush1.bf16.msra.mxu0 0
        %2207 = vmatprep.subr.bf16.mxu0 0
        %2208 = vmatpush1.bf16.msra.mxu0 0
        %2209 = vmatprep.subr.bf16.mxu0 0
        %2210 = vmatpush1.bf16.msra.mxu0 0
        %2211 = vmatprep.subr.bf16.mxu0 0
        %2212 = vmatpush1.bf16.msra.mxu0 0
        %2213 = vmatprep.subr.bf16.mxu0 0
        %2214 = vmatpush1.bf16.msra.mxu0 0
        %2215 = vmatprep.subr.bf16.mxu0 0
        %2216 = vmatpush1.bf16.msra.mxu0 0
        %2217 = vmatprep.subr.bf16.mxu0 0
        %2218 = vmatpush1.bf16.msra.mxu0 0
        %2219 = vmatprep.subr.bf16.mxu0 0
        %2220 = vmatpush1.bf16.msra.mxu0 0
        %2221 = vmatprep.subr.bf16.mxu0 0
        %2222 = vmatpush1.bf16.msra.mxu0 0
        %2223 = vmatprep.subr.bf16.mxu0 0
        %2224 = vmatpush1.bf16.msra.mxu0 0
        %2225 = vmatprep.mubr.bf16.mxu0 0
        %2226 = vmatmul.mubr.bf16.gmra.mrb[0].mxu0 %v2191
        %v2227 = vpop.f32.mrb[0].mxu0
        %v2228 = vadd.f32 %v2183, %v2227
        %v2229 = vpop.f32.mrb[0].mxu0
        %v2230 = vpop.f32.mrb[0].mxu0
        %v2231 = vpop.f32.mrb[0].mxu0
        %2232 = vdwg.mxu0
        %v2233 = vmul.f32 %v2228, %v2228
        %v2234 = vmul.f32 %v2228, %v2233
        %v2235 = vmul.f32 %v2234, 0.044715
        %v2236 = vadd.f32 %v2228, %v2235
        %v2237 = vmul.f32 %v2236, 0.7978846
        %v2238 = vtanh.pop %v2237
        %v2239 = vadd.f32 %v2238, 1.0
        %v2240 = vmul.f32 %v2239, 0.5
        %v2241 = vmul.f32 %v2228, %v2240
        %v2242 = vpack.c.bf16 %v2241, %v2241
        %v2243 = vld [vmem:[#allocation37] sm:$0xf]
        %v2244 = vld [vmem:[#allocation37 + $0x4] sm:$0xf]
        %v2245 = vld [vmem:[#allocation37 + $0x8] sm:$0xf]
        %v2246 = vld [vmem:[#allocation37 + $0xc] sm:$0xf]
        %v2247 = vld [vmem:[#allocation37 + $0x10] sm:$0xf]
        %v2248 = vld [vmem:[#allocation37 + $0x14] sm:$0xf]
        %v2249 = vld [vmem:[#allocation37 + $0x18] sm:$0xf]
        %v2250 = vld [vmem:[#allocation37 + $0x1c] sm:$0xf]
        %v2259 = vunpack.c.l.b16 %v2243
        %v2260 = vunpack.c.l.b16 %v2244
        %v2261 = vunpack.c.l.b16 %v2245
        %v2262 = vunpack.c.l.b16 %v2246
        %v2263 = vunpack.c.l.b16 %v2247
        %v2264 = vunpack.c.l.b16 %v2248
        %v2265 = vunpack.c.l.b16 %v2249
        %v2266 = vunpack.c.l.b16 %v2250
        %v2267 = vpack.c.b16 %v2260, %v2259
        %v2268 = vpack.c.b16 %v2262, %v2261
        %v2269 = vpack.c.b16 %v2264, %v2263
        %v2270 = vpack.c.b16 %v2266, %v2265
        %vm2275 = vcmask 523264
        %v2277 = vsel %vm2275, %v2242, 0
        %2279 = vmatprep.subr.bf16.mxu0 0
        %2280 = vmatpush1.bf16.msra.mxu0 %v2267
        %2281 = vmatprep.subr.bf16.mxu0 0
        %2282 = vmatpush1.bf16.msra.mxu0 %v2268
        %2283 = vmatprep.subr.bf16.mxu0 0
        %2284 = vmatpush1.bf16.msra.mxu0 %v2269
        %2285 = vmatprep.subr.bf16.mxu0 0
        %2286 = vmatpush1.bf16.msra.mxu0 %v2270
        %2287 = vmatprep.subr.bf16.mxu0 0
        %2288 = vmatpush1.bf16.msra.mxu0 0
        %2289 = vmatprep.subr.bf16.mxu0 0
        %2290 = vmatpush1.bf16.msra.mxu0 0
        %2291 = vmatprep.subr.bf16.mxu0 0
        %2292 = vmatpush1.bf16.msra.mxu0 0
        %2293 = vmatprep.subr.bf16.mxu0 0
        %2294 = vmatpush1.bf16.msra.mxu0 0
        %2295 = vmatprep.subr.bf16.mxu0 0
        %2296 = vmatpush1.bf16.msra.mxu0 0
        %2297 = vmatprep.subr.bf16.mxu0 0
        %2298 = vmatpush1.bf16.msra.mxu0 0
        %2299 = vmatprep.subr.bf16.mxu0 0
        %2300 = vmatpush1.bf16.msra.mxu0 0
        %2301 = vmatprep.subr.bf16.mxu0 0
        %2302 = vmatpush1.bf16.msra.mxu0 0
        %2303 = vmatprep.subr.bf16.mxu0 0
        %2304 = vmatpush1.bf16.msra.mxu0 0
        %2305 = vmatprep.subr.bf16.mxu0 0
        %2306 = vmatpush1.bf16.msra.mxu0 0
        %2307 = vmatprep.subr.bf16.mxu0 0
        %2308 = vmatpush1.bf16.msra.mxu0 0
        %2309 = vmatprep.subr.bf16.mxu0 0
        %2310 = vmatpush1.bf16.msra.mxu0 0
        %2311 = vmatprep.mubr.bf16.mxu0 0
        %2312 = vmatmul.mubr.bf16.gmra.mrb[0].mxu0 %v2277
        %v2313 = vpop.f32.mrb[0].mxu0
        %v2314 = vadd.f32 0.0, %v2313
        %v2315 = vpop.f32.mrb[0].mxu0
        %v2316 = vpop.f32.mrb[0].mxu0
        %v2317 = vpop.f32.mrb[0].mxu0
        %2318 = vdwg.mxu0
        %v2319 = vadd.f32 %v2162, %v2314
        %v2320 = vld [vmem:[#allocation39] sm:$0x1]
        %v2321 = vadd.f32 %v2319, %v2320
        %v2322 = vld [vmem:[#allocation40] sm:$0x1]
        %v2323 = vld [vmem:[#allocation42] sm:$0x1]
        %v2324 = vsel %vm1370, %v2321, 0.0
        %2325 = vadd.xlane.f32.xlu0 %v2324
        %v2326 = vpop.xlane.xlu0 %2325
        %v2327 = vmul.f32 %v2326, %v1374
        %v2328 = vsub.f32 %v2321, %v2327
        %v2329 = vmul.f32 %v2328, %v2328
        %v2330 = vsel %vm1370, %v2329, 0.0
        %2331 = vadd.xlane.f32.xlu0 %v2330
        %v2332 = vpop.xlane.xlu0 %2331
        %v2333 = vmul.f32 %v2332, %v1374
        %v2334 = vadd.f32 %v2333, 1e-05
        %v2335 = vrsqrt.pop %v2334
        %v2336 = vmul.f32 %v2328, %v2335
        %v2337 = vmul.f32 %v2336, %v2322
        %v2338 = vadd.f32 %v2337, %v2323
        %v2339 = vpack.c.bf16 %v2338, %v2338
        %v2340 = vld [vmem:[#allocation43] sm:$0xf]
        %v2341 = vld [vmem:[#allocation43 + $0x4] sm:$0xf]
        %v2342 = vld [vmem:[#allocation45] sm:$0x1]
        %v2345 = vunpack.c.l.b16 %v2340
        %v2346 = vunpack.c.l.b16 %v2341
        %v2347 = vpack.c.b16 %v2346, %v2345
        %v2350 = vsel %vm1397, %v2339, 0
        %2352 = vmatprep.subr.bf16.mxu0 0
        %2353 = vmatpush1.bf16.msra.mxu0 %v2347
        %2354 = vmatprep.subr.bf16.mxu0 0
        %2355 = vmatpush1.bf16.msra.mxu0 0
        %2356 = vmatprep.subr.bf16.mxu0 0
        %2357 = vmatpush1.bf16.msra.mxu0 0
        %2358 = vmatprep.subr.bf16.mxu0 0
        %2359 = vmatpush1.bf16.msra.mxu0 0
        %2360 = vmatprep.subr.bf16.mxu0 0
        %2361 = vmatpush1.bf16.msra.mxu0 0
        %2362 = vmatprep.subr.bf16.mxu0 0
        %2363 = vmatpush1.bf16.msra.mxu0 0
        %2364 = vmatprep.subr.bf16.mxu0 0
        %2365 = vmatpush1.bf16.msra.mxu0 0
        %2366 = vmatprep.subr.bf16.mxu0 0
        %2367 = vmatpush1.bf16.msra.mxu0 0
        %2368 = vmatprep.subr.bf16.mxu0 0
        %2369 = vmatpush1.bf16.msra.mxu0 0
        %2370 = vmatprep.subr.bf16.mxu0 0
        %2371 = vmatpush1.bf16.msra.mxu0 0
        %2372 = vmatprep.subr.bf16.mxu0 0
        %2373 = vmatpush1.bf16.msra.mxu0 0
        %2374 = vmatprep.subr.bf16.mxu0 0
        %2375 = vmatpush1.bf16.msra.mxu0 0
        %2376 = vmatprep.subr.bf16.mxu0 0
        %2377 = vmatpush1.bf16.msra.mxu0 0
        %2378 = vmatprep.subr.bf16.mxu0 0
        %2379 = vmatpush1.bf16.msra.mxu0 0
        %2380 = vmatprep.subr.bf16.mxu0 0
        %2381 = vmatpush1.bf16.msra.mxu0 0
        %2382 = vmatprep.subr.bf16.mxu0 0
        %2383 = vmatpush1.bf16.msra.mxu0 0
        %2384 = vmatprep.mubr.bf16.mxu0 0
        %2385 = vmatmul.mubr.bf16.gmra.mrb[0].mxu0 %v2350
        %v2386 = vpop.f32.mrb[0].mxu0
        %v2387 = vadd.f32 %v2342, %v2386
        %v2388 = vpop.f32.mrb[0].mxu0
        %v2389 = vpop.f32.mrb[0].mxu0
        %v2390 = vpop.f32.mrb[0].mxu0
        %2391 = vdwg.mxu0
        %2392 = vst.msk [vmem:[%s1351] sm:$0x1] %vm1370, %v2387
        %s2393 = sand.u32 %s700, 1
        %s2394 = scalar_lea.sflag [#allocation6], %s2393
        %s2395 = sand.u32 %s700, 1
        %s2396 = scalar_lea.vmem [#allocation46], %s2395
        %s2397 = sand.u32 %s100, 1
        %s2398 = scalar_lea.sflag [#allocation48], %s2397
        %s2399 = sand.u32 %s726, 1
        %s2400 = scalar_lea.vmem [#allocation47], %s2399
        %s2401 = sand.u32 %s100, 1
        %s2402 = scalar_lea.sflag [#allocation48], %s2401
        %s2403 = sand.u32 %s752, 1
        %s2404 = scalar_lea.vmem [#allocation49], %s2403
        // Predicated region
        $region237: #{closed_call.16} parent=127 // pred_check
          %p2405 = pneg %p710
        $region238: #{closed_call.16} parent=127 // pred_check_branch
          %2407 = sbr.rel (%p2405) target = $region240
        $region239: #{closed_call.16} parent=127 // pred_region
          %s2409 = ssub.s32 16, 16
          %2410 = vsyncadd %s2394, %s2409
          %s2411 = smul.addr %s100, 16
          %s2412 = scalar_lea.hbm %s57, %s2411
          %s2414 = sshll.u32 %s2396, 4
          %s2415 = int_to_ptr.vmem [resolvable:$true] %s2414
          %2417 = dma.vmem_to_hbm [thread:$0]  %s2415, 16, %s2412, %s2394
        $region240: #{closed_call.16} parent=127 // pred_fallthru
          _
        // Predicated region
        $region241: #{closed_call.16} parent=127 // pred_check
          %p2418 = pneg %p736
        $region242: #{closed_call.16} parent=127 // pred_check_branch
          %2420 = sbr.rel (%p2418) target = $region244
        $region243: #{closed_call.16} parent=127 // pred_region
          %s2422 = ssub.s32 16, 16
          %2423 = vsyncadd %s2398, %s2422
          %s2424 = smul.addr %s100, 16
          %s2425 = scalar_lea.hbm %s59, %s2424
          %s2427 = sshll.u32 %s2400, 4
          %s2428 = int_to_ptr.vmem [resolvable:$true] %s2427
          %2430 = dma.vmem_to_hbm [thread:$0]  %s2428, 16, %s2425, %s2398
        $region244: #{closed_call.16} parent=127 // pred_fallthru
          _
        // Predicated region
        $region245: #{closed_call.16} parent=127 // pred_check
          %p2431 = pneg %p762
        $region246: #{closed_call.16} parent=127 // pred_check_branch
          %2433 = sbr.rel (%p2431) target = $region248
        $region247: #{closed_call.16} parent=127 // pred_region
          %s2435 = ssub.s32 16, 16
          %2436 = vsyncadd %s2402, %s2435
          %s2437 = smul.addr %s100, 16
          %s2438 = scalar_lea.hbm %s61, %s2437
          %s2440 = sshll.u32 %s2404, 4
          %s2441 = int_to_ptr.vmem [resolvable:$true] %s2440
          %2443 = dma.vmem_to_hbm [thread:$0]  %s2441, 16, %s2438, %s2402
        $region248: #{closed_call.16} parent=127 // pred_fallthru
          _
      $region128: #{closed_call.16} parent=5 // pred_fallthru
        _
      %p2444 = scmp.le.s32.totalorder 2, %s95
      // Predicated region
      $region249: #{closed_call.16} parent=5 // pred_check
        %p2445 = pneg %p2444
      $region250: #{closed_call.16} parent=5 // pred_check_branch
        %2447 = sbr.rel (%p2445) target = $region252
      $region251: #{closed_call.16} parent=5 // pred_region
        %s2448 = ssub.s32 %s95, 2
        // Predicated region
        $region253: #{closed_call.16} parent=251 // pred_check
          %p2449 = pneg %p716
        $region254: #{closed_call.16} parent=251 // pred_check_branch
          %2451 = sbr.rel (%p2449) target = $region256
        $region255: #{closed_call.16} parent=251 // pred_region
          %s2452 = sand.u32 %s701, 1
          %s2453 = scalar_lea.sflag [#allocation6], %s2452
          %s2454 = sand.u32 %s701, 1
          %s2455 = scalar_lea.vmem [#allocation46], %s2454
          %2456 = dma.done %s2453, 16
        $region256: #{closed_call.16} parent=251 // pred_fallthru
          _
        // Predicated region
        $region257: #{closed_call.16} parent=251 // pred_check
          %p2457 = pneg %p742
        $region258: #{closed_call.16} parent=251 // pred_check_branch
          %2459 = sbr.rel (%p2457) target = $region260
        $region259: #{closed_call.16} parent=251 // pred_region
          %s2460 = sand.u32 %s101, 1
          %s2461 = scalar_lea.sflag [#allocation48], %s2460
          %s2462 = sand.u32 %s727, 1
          %s2463 = scalar_lea.vmem [#allocation47], %s2462
          %2464 = dma.done %s2461, 16
        $region260: #{closed_call.16} parent=251 // pred_fallthru
          _
        // Predicated region
        $region261: #{closed_call.16} parent=251 // pred_check
          %p2465 = pneg %p768
        $region262: #{closed_call.16} parent=251 // pred_check_branch
          %2467 = sbr.rel (%p2465) target = $region264
        $region263: #{closed_call.16} parent=251 // pred_region
          %s2468 = sand.u32 %s101, 1
          %s2469 = scalar_lea.sflag [#allocation48], %s2468
          %s2470 = sand.u32 %s753, 1
          %s2471 = scalar_lea.vmem [#allocation49], %s2470
          %2472 = dma.done %s2469, 16
        $region264: #{closed_call.16} parent=251 // pred_fallthru
          _
      $region252: #{closed_call.16} parent=5 // pred_fallthru
        _
    $region6: #{closed_call.16} parent=1 // loop_footer
      %s99 = sadd.s32 1, %s95
    $region7: #{closed_call.16} parent=1 // loop_footer_branch
      %94 = sbr.rel target = $region3
    $region8: #{closed_call.16} parent=1 // loop_exit
      _
    %2473 = vsyncpa [#allocation5], 1
    %s2474 = scalar_lea.sflag [#allocation5], 1
    %2475 = vsyncpa %s2474, 1
    %2476 = vsyncpa [#allocation8], 1
    %s2477 = scalar_lea.sflag [#allocation8], 1
    %2478 = vsyncpa %s2477, 1
    %2479 = vsyncpa [#allocation11], 1
    %s2480 = scalar_lea.sflag [#allocation11], 1
    %2481 = vsyncpa %s2480, 1
    %2482 = vsyncpa [#allocation14], 1
    %2483 = vsyncpa [#allocation17], 1
    %2484 = vsyncpa [#allocation20], 1
    %2485 = vsyncpa [#allocation23], 1
    %2486 = vsyncpa [#allocation26], 1
    %2487 = vsyncpa [#allocation29], 1
    %2488 = vsyncpa [#allocation32], 1
    %2489 = vsyncpa [#allocation35], 1
    %2490 = vsyncpa [#allocation38], 1
    %2491 = vsyncpa [#allocation41], 1
    %2492 = vsyncpa [#allocation44], 1
    %2493 = vsyncpa [#allocation6], 1
    %s2494 = scalar_lea.sflag [#allocation6], 1
    %2495 = vsyncpa %s2494, 1
    %2496 = vsyncpa [#allocation48], 1
    %s2497 = scalar_lea.sflag [#allocation48], 1
    %2498 = vsyncpa %s2497, 1

</llo_original>
